<compile_context>
chip_gen: v7x
topology: tpu7x:2x2x1
jax: 0.10.0
libtpu: 0.0.40
codegen_flags: <defaults>
</compile_context>

<pallas_src>
import functools

import jax
import jax.numpy as jnp
from jax.experimental import pallas as pl
from jax.experimental.pallas import tpu as pltpu


NUM_BRANCHES = 6
NUM_GROUPS = 2                      # grid size; "parallel" -> 1 step / TC on v7x
BRANCHES_PER_GROUP = NUM_BRANCHES // NUM_GROUPS


# ----------------------------------------------------------------------------
# Kernel: stem + downsample + 3 full branches (3 Bottlenecks each) per step
# ----------------------------------------------------------------------------
def _fused_kernel(x_ref, wc1_ref, bc1_ref, wd_ref, bd_ref,
                  w1_0_ref, b1_0_ref, w2_0_ref, b2_0_ref, w3_0_ref, b3_0_ref,
                  w1_12_ref, b1_12_ref, w2_12_ref, b2_12_ref, w3_12_ref,
                  b3_12_ref, x1_out_ref, y_out_ref, *, L):
    M = x_ref.shape[0]
    width = w1_0_ref.shape[-1]
    bpg = w1_0_ref.shape[1]

    # ---- stem: x1 = relu(x @ Wc1 + b1); id0 = x1 @ Wd + bd (shared downsample)
    # Recomputed per grid step (tiny) so everything stays in VMEM/vregs.
    x1 = jnp.dot(x_ref[...], wc1_ref[...], preferred_element_type=jnp.float32)
    x1 = jnp.maximum(x1 + bc1_ref[...], 0.0)
    x1_out_ref[0] = x1.astype(x1_out_ref.dtype)
    x1_b = x1.astype(jnp.bfloat16)
    id0 = jnp.dot(x1_b, wd_ref[...],
                  preferred_element_type=jnp.float32) + bd_ref[...]

    # ---- sequence-boundary masks, hoisted: one broadcast per grid step,
    # reused by all 9 bottlenecks of this step (rows are (n, l) flattened).
    pos = jax.lax.broadcasted_iota(jnp.int32, (M, 1), 0) % L
    not_first = jnp.broadcast_to((pos != 0).astype(jnp.float32), (M, width))
    not_last = jnp.broadcast_to((pos != (L - 1)).astype(jnp.float32), (M, width))

    def bottleneck(x_b, ident_f32, w1, b1, w2_taps, b2, w3, b3):
        # conv1x1 + folded-BN bias + relu (f32 accumulation / epilogue)
        h = jnp.dot(x_b, w1, preferred_element_type=jnp.float32) + b1
        h = jnp.maximum(h, 0.0)
        # conv(1,3), padding (0,1): neighbours via XLU sublane rotate, wrapped
        # rows (batch-element boundaries) zeroed by the precomputed masks,
        # then three accumulated K=width matmuls (no lane-axis im2col concat).
        h_prev = pltpu.roll(h, 1, 0) * not_first
        h_next = pltpu.roll(h, M - 1, 0) * not_last
        h2 = jnp.dot(h.astype(jnp.bfloat16), w2_taps[1],
                     preferred_element_type=jnp.float32)
        h2 = h2 + jnp.dot(h_prev.astype(jnp.bfloat16), w2_taps[0],
                          preferred_element_type=jnp.float32)
        h2 = h2 + jnp.dot(h_next.astype(jnp.bfloat16), w2_taps[2],
                          preferred_element_type=jnp.float32)
        h2 = jnp.maximum(h2 + b2, 0.0)
        # conv1x1 + bias + residual + relu
        y = jnp.dot(h2.astype(jnp.bfloat16), w3,
                    preferred_element_type=jnp.float32) + b3
        return jnp.maximum(y + ident_f32, 0.0)

    # Unrolled branches: independent matmul chains the scheduler can interleave.
    for j in range(bpg):
        # Block 0: identity = shared downsample(x1)
        y = bottleneck(
            x1_b, id0,
            w1_0_ref[0, j], b1_0_ref[0, j],
            (w2_0_ref[0, j, 0], w2_0_ref[0, j, 1], w2_0_ref[0, j, 2]),
            b2_0_ref[0, j], w3_0_ref[0, j], b3_0_ref[0, j])
        # Blocks 1 and 2: identity = block input
        for blk in range(2):
            idx = j * 2 + blk
            y = bottleneck(
                y.astype(jnp.bfloat16), y,
                w1_12_ref[0, idx], b1_12_ref[0, idx],
                (w2_12_ref[0, idx, 0], w2_12_ref[0, idx, 1],
                 w2_12_ref[0, idx, 2]),
                b2_12_ref[0, idx], w3_12_ref[0, idx], b3_12_ref[0, idx])
        y_out_ref[0, j] = y.astype(y_out_ref.dtype)


# ----------------------------------------------------------------------------
# Parameter construction (deterministic, synthetic; BN folded into weights)
# ----------------------------------------------------------------------------
def _kaiming_conv(key, cin, cout, kw):
    # kaiming_normal_, mode='fan_out', relu: std = sqrt(2/(cout*kw))
    std = (2.0 / (cout * kw)) ** 0.5
    if kw == 1:
        return std * jax.random.normal(key, (cin, cout), jnp.float32)
    return std * jax.random.normal(key, (kw, cin, cout), jnp.float32)


def _bn_folded(key, c):
    # Inference-mode BN -> per-channel (scale, bias); non-trivial values.
    k1, k2, k3, k4 = jax.random.split(key, 4)
    gamma = 1.0 + 0.1 * jax.random.normal(k1, (c,), jnp.float32)
    beta = 0.1 * jax.random.normal(k2, (c,), jnp.float32)
    mean = 0.1 * jax.random.normal(k3, (c,), jnp.float32)
    var = jax.random.uniform(k4, (c,), jnp.float32, 0.5, 1.5)
    scale = gamma / jnp.sqrt(var + 1e-5)
    bias = beta - mean * scale
    return scale, bias


def _fold_to_bf16(w, scale):
    # Fold BN scale into the conv output channels, then cast weights to bf16.
    return (w * scale).astype(jnp.bfloat16)


def _make_bottleneck_params(key, cin, width, planes):
    ks = jax.random.split(key, 6)
    s1, b1 = _bn_folded(ks[1], width)
    s2, b2 = _bn_folded(ks[3], width)
    s3, b3 = _bn_folded(ks[5], planes)
    w1 = _kaiming_conv(ks[0], cin, width, 1)      # (cin, width)
    w2 = _kaiming_conv(ks[2], width, width, 3)    # (3, cin, cout); [k]=W_pt[:,:,0,k].T
    w3 = _kaiming_conv(ks[4], width, planes, 1)   # (width, planes)
    return {
        "w1": _fold_to_bf16(w1, s1), "b1": b1.reshape(1, width),
        "w2": _fold_to_bf16(w2, s2), "b2": b2.reshape(1, width),
        "w3": _fold_to_bf16(w3, s3), "b3": b3.reshape(1, planes),
    }


def make_resnet_text_50_params(key, c_in, c1, width, planes,
                               num_branches=NUM_BRANCHES,
                               num_groups=NUM_GROUPS):
    assert num_branches % num_groups == 0
    keys = jax.random.split(key, 4 + num_branches)
    c_pad = ((c_in + 127) // 128) * 128           # lane-dense stem K
    w1 = _kaiming_conv(keys[0], c_in, c1, 1)
    w1 = jnp.pad(w1, ((0, c_pad - c_in), (0, 0)))  # zero rows for padded channels
    s1, b1 = _bn_folded(keys[1], c1)
    wd = _kaiming_conv(keys[2], c1, planes, 1)     # shared downsample module
    sd, bd = _bn_folded(keys[3], planes)
    params = {
        "conv1_w": _fold_to_bf16(w1, s1), "conv1_b": b1.reshape(1, c1),
        "down_w": _fold_to_bf16(wd, sd), "down_b": bd.reshape(1, planes),
    }
    blk0, blk12 = [], []
    for b in range(num_branches):
        bk = jax.random.split(keys[4 + b], 3)
        blk0.append(_make_bottleneck_params(bk[0], c1, width, planes))
        blk12.append([_make_bottleneck_params(bk[1], planes, width, planes),
                      _make_bottleneck_params(bk[2], planes, width, planes)])
    g, bpg = num_groups, num_branches // num_groups
    fields = ("w1", "b1", "w2", "b2", "w3", "b3")
    params["blk0"] = {
        f: jnp.stack([d[f] for d in blk0]).reshape((g, bpg) + blk0[0][f].shape)
        for f in fields}
    blk12_flat = [blk12[b][j] for b in range(num_branches) for j in range(2)]
    params["blk12"] = {
        f: jnp.stack([d[f] for d in blk12_flat]).reshape(
            (g, bpg * 2) + blk12_flat[0][f].shape)
        for f in fields}
    return params


# ----------------------------------------------------------------------------
# Forward pass (one pallas_call total)
# ----------------------------------------------------------------------------
def resnet_text_50_forward(params, x_nchw):
    N, c_in, _, L = x_nchw.shape
    M = N * L
    c_pad = params["conv1_w"].shape[0]
    c1 = params["conv1_w"].shape[1]
    planes = params["down_w"].shape[1]
    b0, b12 = params["blk0"], params["blk12"]
    g, bpg = b0["w1"].shape[0], b0["w1"].shape[1]

    # NCHW (N, C, 1, L) -> channels-last rows (N*L, C), padded to lane-dense C,
    # bf16 for the MXU.
    x_rows = jnp.transpose(x_nchw[:, :, 0, :], (0, 2, 1)).reshape(M, c_in)
    x_rows = jnp.pad(x_rows, ((0, 0), (0, c_pad - c_in))).astype(jnp.bfloat16)

    def full_spec(shape):
        nd = len(shape)
        def imap(grp):
            return (0,) * nd
        return pl.BlockSpec(shape, imap)

    def group_spec(arr):
        shape = arr.shape
        nd = len(shape)
        def imap(grp):
            return (grp,) + (0,) * (nd - 1)
        return pl.BlockSpec((1,) + shape[1:], imap)

    in_specs = [
        full_spec((M, c_pad)),
        full_spec((c_pad, c1)),
        full_spec((1, c1)),
        full_spec((c1, planes)),
        full_spec((1, planes)),
    ]
    fields = ("w1", "b1", "w2", "b2", "w3", "b3")
    in_specs += [group_spec(b0[f]) for f in fields]
    in_specs += [group_spec(b12[f]) for f in fields]

    out_shape = (
        jax.ShapeDtypeStruct((g, M, c1), jnp.float32),        # x1 (per group copy)
        jax.ShapeDtypeStruct((g, bpg, M, planes), jnp.float32),
    )
    out_specs = (
        pl.BlockSpec((1, M, c1), lambda grp: (grp, 0, 0)),
        pl.BlockSpec((1, bpg, M, planes), lambda grp: (grp, 0, 0, 0)),
    )

    x1_stack, y_stack = pl.pallas_call(
        functools.partial(_fused_kernel, L=L),
        out_shape=out_shape,
        grid=(g,),
        in_specs=in_specs,
        out_specs=out_specs,
        compiler_params=pltpu.CompilerParams(
            dimension_semantics=("parallel",)),
    )(x_rows, params["conv1_w"], params["conv1_b"],
      params["down_w"], params["down_b"],
      b0["w1"], b0["b1"], b0["w2"], b0["b2"], b0["w3"], b0["b3"],
      b12["w1"], b12["b1"], b12["w2"], b12["b2"], b12["w3"], b12["b3"])

    # Back to NCHW (N, C, 1, L)
    def to_nchw(rows, c):
        return jnp.transpose(rows.reshape(N, L, c), (0, 2, 1))[:, :, None, :]

    outs = [to_nchw(x1_stack[0], c1)]
    for gi in range(g):
        for j in range(bpg):
            outs.append(to_nchw(y_stack[gi, j], planes))
    return tuple(outs)


# ----------------------------------------------------------------------------
if __name__ == "__main__":
    # Scaled-down channel counts (original / 8): 768->96, 1024->128, 512->64,
    # 2048->256.  Forward-pass structure matches the PyTorch module exactly
    # (BatchNorm is inference-mode, folded into the conv weights).
    N, L = 2, 16
    C_IN, C1, WIDTH, PLANES = 96, 128, 64, 256

    key = jax.random.PRNGKey(0)
    k_param, k_input = jax.random.split(key)
    params = make_resnet_text_50_params(k_param, C_IN, C1, WIDTH, PLANES)

    x = jax.random.normal(k_input, (N, C_IN, 1, L), jnp.float32)  # NCHW, H == 1

    fwd = jax.jit(resnet_text_50_forward)
    outs = jax.block_until_ready(fwd(params, x))

    assert len(outs) == 7
    assert outs[0].shape == (N, C1, 1, L)
    assert all(o.shape == (N, PLANES, 1, L) for o in outs[1:])
    assert all(bool(jnp.isfinite(o).all()) for o in outs)
    print("KERNEL_OK")
</pallas_src>

<mosaic_0001>
module attributes {stable_mosaic.version = 11 : i64} {
  func.func @_fused_kernel(%arg0: i32, %arg1: memref<32x128xbf16, #tpu.memory_space<vmem>>, %arg2: memref<128x128xbf16, #tpu.memory_space<vmem>>, %arg3: memref<1x128xf32, #tpu.memory_space<vmem>>, %arg4: memref<128x256xbf16, #tpu.memory_space<vmem>>, %arg5: memref<1x256xf32, #tpu.memory_space<vmem>>, %arg6: memref<1x3x128x64xbf16, #tpu.memory_space<vmem>>, %arg7: memref<1x3x1x64xf32, #tpu.memory_space<vmem>>, %arg8: memref<1x3x3x64x64xbf16, #tpu.memory_space<vmem>>, %arg9: memref<1x3x1x64xf32, #tpu.memory_space<vmem>>, %arg10: memref<1x3x64x256xbf16, #tpu.memory_space<vmem>>, %arg11: memref<1x3x1x256xf32, #tpu.memory_space<vmem>>, %arg12: memref<1x6x256x64xbf16, #tpu.memory_space<vmem>>, %arg13: memref<1x6x1x64xf32, #tpu.memory_space<vmem>>, %arg14: memref<1x6x3x64x64xbf16, #tpu.memory_space<vmem>>, %arg15: memref<1x6x1x64xf32, #tpu.memory_space<vmem>>, %arg16: memref<1x6x64x256xbf16, #tpu.memory_space<vmem>>, %arg17: memref<1x6x1x256xf32, #tpu.memory_space<vmem>>, %arg18: memref<1x32x128xf32, #tpu.memory_space<vmem>>, %arg19: memref<1x3x32x256xf32, #tpu.memory_space<vmem>>) attributes {dimension_semantics = [#tpu.dimension_semantics<parallel>], iteration_bounds = array<i64: 2>, scalar_prefetch = 0 : i64, scratch_operands = 0 : i64, tpu.core_type = #tpu.core_type<tc>, window_params = [{pipeline_mode = #tpu.pipeline_mode<synchronous>, transform_indices = @transform_0, window_bounds = array<i64: 32, 128>}, {pipeline_mode = #tpu.pipeline_mode<synchronous>, transform_indices = @transform_1, window_bounds = array<i64: 128, 128>}, {pipeline_mode = #tpu.pipeline_mode<synchronous>, transform_indices = @transform_2, window_bounds = array<i64: 1, 128>}, {pipeline_mode = #tpu.pipeline_mode<synchronous>, transform_indices = @transform_3, window_bounds = array<i64: 128, 256>}, {pipeline_mode = #tpu.pipeline_mode<synchronous>, transform_indices = @transform_4, window_bounds = array<i64: 1, 256>}, {transform_indices = @transform_5, window_bounds = array<i64: 1, 3, 128, 64>}, {transform_indices = @transform_6, window_bounds = array<i64: 1, 3, 1, 64>}, {transform_indices = @transform_7, window_bounds = array<i64: 1, 3, 3, 64, 64>}, {transform_indices = @transform_8, window_bounds = array<i64: 1, 3, 1, 64>}, {transform_indices = @transform_9, window_bounds = array<i64: 1, 3, 64, 256>}, {transform_indices = @transform_10, window_bounds = array<i64: 1, 3, 1, 256>}, {transform_indices = @transform_11, window_bounds = array<i64: 1, 6, 256, 64>}, {transform_indices = @transform_12, window_bounds = array<i64: 1, 6, 1, 64>}, {transform_indices = @transform_13, window_bounds = array<i64: 1, 6, 3, 64, 64>}, {transform_indices = @transform_14, window_bounds = array<i64: 1, 6, 1, 64>}, {transform_indices = @transform_15, window_bounds = array<i64: 1, 6, 64, 256>}, {transform_indices = @transform_16, window_bounds = array<i64: 1, 6, 1, 256>}, {transform_indices = @transform_17, window_bounds = array<i64: 1, 32, 128>}, {transform_indices = @transform_18, window_bounds = array<i64: 1, 3, 32, 256>}]} {
    %c0 = arith.constant 0 : index
    %c0_0 = arith.constant 0 : index
    %0 = vector.load %arg1[%c0, %c0_0] : memref<32x128xbf16, #tpu.memory_space<vmem>>, vector<32x128xbf16>
    %c0_1 = arith.constant 0 : index
    %c0_2 = arith.constant 0 : index
    %1 = vector.load %arg2[%c0_1, %c0_2] : memref<128x128xbf16, #tpu.memory_space<vmem>>, vector<128x128xbf16>
    %cst = arith.constant dense<0.000000e+00> : vector<32x128xf32>
    %2 = tpu.matmul %0, %1, %cst {dimension_numbers = #tpu.dot_dimension_numbers<[1], [0], [0], [1], [0, 0, 1, 1], [], []>} : vector<32x128xbf16>, vector<128x128xbf16>, vector<32x128xf32> -> vector<32x128xf32>
    %c0_3 = arith.constant 0 : index
    %c0_4 = arith.constant 0 : index
    %3 = vector.load %arg3[%c0_3, %c0_4] : memref<1x128xf32, #tpu.memory_space<vmem>>, vector<1x128xf32>
    %4 = vector.broadcast %3 : vector<1x128xf32> to vector<32x128xf32>
    %5 = arith.addf %2, %4 : vector<32x128xf32>
    %cst_5 = arith.constant 0.000000e+00 : f32
    %6 = vector.broadcast %cst_5 : f32 to vector<32x128xf32>
    %7 = arith.maximumf %5, %6 : vector<32x128xf32>
    %c0_6 = arith.constant 0 : index
    %c0_7 = arith.constant 0 : index
    %c0_8 = arith.constant 0 : index
    %8 = vector.load %arg18[%c0_6, %c0_7, %c0_8] : memref<1x32x128xf32, #tpu.memory_space<vmem>>, vector<1x32x128xf32>
    %9 = vector.shape_cast %8 : vector<1x32x128xf32> to vector<32x128xf32>
    %10 = vector.shape_cast %7 : vector<32x128xf32> to vector<1x32x128xf32>
    tpu.vector_store %arg18[%c0_6, %c0_7, %c0_8], %10 {strides = array<i32>} : memref<1x32x128xf32, #tpu.memory_space<vmem>>, vector<1x32x128xf32>,
    %11 = arith.truncf %7 : vector<32x128xf32> to vector<32x128xbf16>
    %c0_9 = arith.constant 0 : index
    %c0_10 = arith.constant 0 : index
    %12 = vector.load %arg4[%c0_9, %c0_10] : memref<128x256xbf16, #tpu.memory_space<vmem>>, vector<128x256xbf16>
    %cst_11 = arith.constant dense<0.000000e+00> : vector<32x256xf32>
    %13 = tpu.matmul %11, %12, %cst_11 {dimension_numbers = #tpu.dot_dimension_numbers<[1], [0], [0], [1], [0, 0, 1, 1], [], []>} : vector<32x128xbf16>, vector<128x256xbf16>, vector<32x256xf32> -> vector<32x256xf32>
    %c0_12 = arith.constant 0 : index
    %c0_13 = arith.constant 0 : index
    %14 = vector.load %arg5[%c0_12, %c0_13] : memref<1x256xf32, #tpu.memory_space<vmem>>, vector<1x256xf32>
    %15 = vector.broadcast %14 : vector<1x256xf32> to vector<32x256xf32>
    %16 = arith.addf %13, %15 : vector<32x256xf32>
    %17 = tpu.iota {dimensions = array<i32: 0>} : vector<32x1xi32>
    %c16_i32 = arith.constant 16 : i32
    %c0_i32 = arith.constant 0 : i32
    %18 = arith.cmpi eq, %c16_i32, %c0_i32 : i32
    %c1_i32 = arith.constant 1 : i32
    %19 = arith.select %18, %c1_i32, %c16_i32 : i32
    %20 = vector.broadcast %19 : i32 to vector<32x1xi32>
    %21 = arith.remsi %17, %20 : vector<32x1xi32>
    %c0_i32_14 = arith.constant 0 : i32
    %22 = vector.broadcast %c0_i32_14 : i32 to vector<32x1xi32>
    %23 = arith.cmpi ne, %21, %22 : vector<32x1xi32>
    %c0_i32_15 = arith.constant 0 : i32
    %24 = vector.broadcast %c0_i32_15 : i32 to vector<32x1xi32>
    %25 = arith.cmpi slt, %21, %24 : vector<32x1xi32>
    %c0_i32_16 = arith.constant 0 : i32
    %26 = arith.cmpi slt, %19, %c0_i32_16 : i32
    %27 = vector.broadcast %26 : i1 to vector<32x1xi1>
    %28 = vector.broadcast %27 : vector<32x1xi1> to vector<32x1xi1>
    %29 = arith.xori %25, %28 : vector<32x1xi1>
    %30 = arith.andi %29, %23 : vector<32x1xi1>
    %31 = vector.broadcast %19 : i32 to vector<32x1xi32>
    %32 = arith.addi %21, %31 : vector<32x1xi32>
    %33 = arith.select %30, %32, %21 : vector<32x1xi1>, vector<32x1xi32>
    %c0_i32_17 = arith.constant 0 : i32
    %34 = vector.broadcast %c0_i32_17 : i32 to vector<32x1xi32>
    %35 = arith.cmpi ne, %33, %34 : vector<32x1xi32>
    %36 = arith.extui %35 : vector<32x1xi1> to vector<32x1xi32>
    %37 = arith.sitofp %36 : vector<32x1xi32> to vector<32x1xf32>
    %38 = vector.shape_cast %37 : vector<32x1xf32> to vector<32x1xf32>
    %39 = vector.broadcast %38 : vector<32x1xf32> to vector<32x64xf32>
    %c15_i32 = arith.constant 15 : i32
    %40 = vector.broadcast %c15_i32 : i32 to vector<32x1xi32>
    %41 = arith.cmpi ne, %33, %40 : vector<32x1xi32>
    %42 = arith.extui %41 : vector<32x1xi1> to vector<32x1xi32>
    %43 = arith.sitofp %42 : vector<32x1xi32> to vector<32x1xf32>
    %44 = vector.shape_cast %43 : vector<32x1xf32> to vector<32x1xf32>
    %45 = vector.broadcast %44 : vector<32x1xf32> to vector<32x64xf32>
    %c0_18 = arith.constant 0 : index
    %c0_19 = arith.constant 0 : index
    %c0_20 = arith.constant 0 : index
    %c0_21 = arith.constant 0 : index
    %46 = vector.load %arg6[%c0_18, %c0_19, %c0_20, %c0_21] : memref<1x3x128x64xbf16, #tpu.memory_space<vmem>>, vector<1x1x128x64xbf16>
    %47 = vector.shape_cast %46 : vector<1x1x128x64xbf16> to vector<128x64xbf16>
    %c0_22 = arith.constant 0 : index
    %c0_23 = arith.constant 0 : index
    %c0_24 = arith.constant 0 : index
    %c0_25 = arith.constant 0 : index
    %48 = vector.load %arg7[%c0_22, %c0_23, %c0_24, %c0_25] : memref<1x3x1x64xf32, #tpu.memory_space<vmem>>, vector<1x1x1x64xf32>
    %49 = vector.shape_cast %48 : vector<1x1x1x64xf32> to vector<1x64xf32>
    %c0_26 = arith.constant 0 : index
    %c0_27 = arith.constant 0 : index
    %c0_28 = arith.constant 0 : index
    %c0_29 = arith.constant 0 : index
    %c0_30 = arith.constant 0 : index
    %50 = vector.load %arg8[%c0_26, %c0_27, %c0_28, %c0_29, %c0_30] : memref<1x3x3x64x64xbf16, #tpu.memory_space<vmem>>, vector<1x1x1x64x64xbf16>
    %51 = vector.shape_cast %50 : vector<1x1x1x64x64xbf16> to vector<64x64xbf16>
    %c0_31 = arith.constant 0 : index
    %c0_32 = arith.constant 0 : index
    %c1 = arith.constant 1 : index
    %c0_33 = arith.constant 0 : index
    %c0_34 = arith.constant 0 : index
    %52 = vector.load %arg8[%c0_31, %c0_32, %c1, %c0_33, %c0_34] : memref<1x3x3x64x64xbf16, #tpu.memory_space<vmem>>, vector<1x1x1x64x64xbf16>
    %53 = vector.shape_cast %52 : vector<1x1x1x64x64xbf16> to vector<64x64xbf16>
    %c0_35 = arith.constant 0 : index
    %c0_36 = arith.constant 0 : index
    %c2 = arith.constant 2 : index
    %c0_37 = arith.constant 0 : index
    %c0_38 = arith.constant 0 : index
    %54 = vector.load %arg8[%c0_35, %c0_36, %c2, %c0_37, %c0_38] : memref<1x3x3x64x64xbf16, #tpu.memory_space<vmem>>, vector<1x1x1x64x64xbf16>
    %55 = vector.shape_cast %54 : vector<1x1x1x64x64xbf16> to vector<64x64xbf16>
    %c0_39 = arith.constant 0 : index
    %c0_40 = arith.constant 0 : index
    %c0_41 = arith.constant 0 : index
    %c0_42 = arith.constant 0 : index
    %56 = vector.load %arg9[%c0_39, %c0_40, %c0_41, %c0_42] : memref<1x3x1x64xf32, #tpu.memory_space<vmem>>, vector<1x1x1x64xf32>
    %57 = vector.shape_cast %56 : vector<1x1x1x64xf32> to vector<1x64xf32>
    %c0_43 = arith.constant 0 : index
    %c0_44 = arith.constant 0 : index
    %c0_45 = arith.constant 0 : index
    %c0_46 = arith.constant 0 : index
    %58 = vector.load %arg10[%c0_43, %c0_44, %c0_45, %c0_46] : memref<1x3x64x256xbf16, #tpu.memory_space<vmem>>, vector<1x1x64x256xbf16>
    %59 = vector.shape_cast %58 : vector<1x1x64x256xbf16> to vector<64x256xbf16>
    %c0_47 = arith.constant 0 : index
    %c0_48 = arith.constant 0 : index
    %c0_49 = arith.constant 0 : index
    %c0_50 = arith.constant 0 : index
    %60 = vector.load %arg11[%c0_47, %c0_48, %c0_49, %c0_50] : memref<1x3x1x256xf32, #tpu.memory_space<vmem>>, vector<1x1x1x256xf32>
    %61 = vector.shape_cast %60 : vector<1x1x1x256xf32> to vector<1x256xf32>
    %cst_51 = arith.constant dense<0.000000e+00> : vector<32x64xf32>
    %62 = tpu.matmul %11, %47, %cst_51 {dimension_numbers = #tpu.dot_dimension_numbers<[1], [0], [0], [1], [0, 0, 1, 1], [], []>} : vector<32x128xbf16>, vector<128x64xbf16>, vector<32x64xf32> -> vector<32x64xf32>
    %63 = vector.broadcast %49 : vector<1x64xf32> to vector<32x64xf32>
    %64 = arith.addf %62, %63 : vector<32x64xf32>
    %cst_52 = arith.constant 0.000000e+00 : f32
    %65 = vector.broadcast %cst_52 : f32 to vector<32x64xf32>
    %66 = arith.maximumf %64, %65 : vector<32x64xf32>
    %c1_i32_53 = arith.constant 1 : i32
    %67 = tpu.dynamic_rotate %66 by %c1_i32_53 dim 0 : vector<32x64xf32>, i32 -> vector<32x64xf32>
    %68 = arith.mulf %67, %39 : vector<32x64xf32>
    %c31_i32 = arith.constant 31 : i32
    %69 = tpu.dynamic_rotate %66 by %c31_i32 dim 0 : vector<32x64xf32>, i32 -> vector<32x64xf32>
    %70 = arith.mulf %69, %45 : vector<32x64xf32>
    %71 = arith.truncf %66 : vector<32x64xf32> to vector<32x64xbf16>
    %cst_54 = arith.constant dense<0.000000e+00> : vector<32x64xf32>
    %72 = tpu.matmul %71, %53, %cst_54 {dimension_numbers = #tpu.dot_dimension_numbers<[1], [0], [0], [1], [0, 0, 1, 1], [], []>} : vector<32x64xbf16>, vector<64x64xbf16>, vector<32x64xf32> -> vector<32x64xf32>
    %73 = arith.truncf %68 : vector<32x64xf32> to vector<32x64xbf16>
    %cst_55 = arith.constant dense<0.000000e+00> : vector<32x64xf32>
    %74 = tpu.matmul %73, %51, %cst_55 {dimension_numbers = #tpu.dot_dimension_numbers<[1], [0], [0], [1], [0, 0, 1, 1], [], []>} : vector<32x64xbf16>, vector<64x64xbf16>, vector<32x64xf32> -> vector<32x64xf32>
    %75 = arith.addf %72, %74 : vector<32x64xf32>
    %76 = arith.truncf %70 : vector<32x64xf32> to vector<32x64xbf16>
    %cst_56 = arith.constant dense<0.000000e+00> : vector<32x64xf32>
    %77 = tpu.matmul %76, %55, %cst_56 {dimension_numbers = #tpu.dot_dimension_numbers<[1], [0], [0], [1], [0, 0, 1, 1], [], []>} : vector<32x64xbf16>, vector<64x64xbf16>, vector<32x64xf32> -> vector<32x64xf32>
    %78 = arith.addf %75, %77 : vector<32x64xf32>
    %79 = vector.broadcast %57 : vector<1x64xf32> to vector<32x64xf32>
    %80 = arith.addf %78, %79 : vector<32x64xf32>
    %cst_57 = arith.constant 0.000000e+00 : f32
    %81 = vector.broadcast %cst_57 : f32 to vector<32x64xf32>
    %82 = arith.maximumf %80, %81 : vector<32x64xf32>
    %83 = arith.truncf %82 : vector<32x64xf32> to vector<32x64xbf16>
    %cst_58 = arith.constant dense<0.000000e+00> : vector<32x256xf32>
    %84 = tpu.matmul %83, %59, %cst_58 {dimension_numbers = #tpu.dot_dimension_numbers<[1], [0], [0], [1], [0, 0, 1, 1], [], []>} : vector<32x64xbf16>, vector<64x256xbf16>, vector<32x256xf32> -> vector<32x256xf32>
    %85 = vector.broadcast %61 : vector<1x256xf32> to vector<32x256xf32>
    %86 = arith.addf %84, %85 : vector<32x256xf32>
    %87 = arith.addf %86, %16 : vector<32x256xf32>
    %cst_59 = arith.constant 0.000000e+00 : f32
    %88 = vector.broadcast %cst_59 : f32 to vector<32x256xf32>
    %89 = arith.maximumf %87, %88 : vector<32x256xf32>
    %90 = arith.truncf %89 : vector<32x256xf32> to vector<32x256xbf16>
    %c0_60 = arith.constant 0 : index
    %c0_61 = arith.constant 0 : index
    %c0_62 = arith.constant 0 : index
    %c0_63 = arith.constant 0 : index
    %91 = vector.load %arg12[%c0_60, %c0_61, %c0_62, %c0_63] : memref<1x6x256x64xbf16, #tpu.memory_space<vmem>>, vector<1x1x256x64xbf16>
    %92 = vector.shape_cast %91 : vector<1x1x256x64xbf16> to vector<256x64xbf16>
    %c0_64 = arith.constant 0 : index
    %c0_65 = arith.constant 0 : index
    %c0_66 = arith.constant 0 : index
    %c0_67 = arith.constant 0 : index
    %93 = vector.load %arg13[%c0_64, %c0_65, %c0_66, %c0_67] : memref<1x6x1x64xf32, #tpu.memory_space<vmem>>, vector<1x1x1x64xf32>
    %94 = vector.shape_cast %93 : vector<1x1x1x64xf32> to vector<1x64xf32>
    %c0_68 = arith.constant 0 : index
    %c0_69 = arith.constant 0 : index
    %c0_70 = arith.constant 0 : index
    %c0_71 = arith.constant 0 : index
    %c0_72 = arith.constant 0 : index
    %95 = vector.load %arg14[%c0_68, %c0_69, %c0_70, %c0_71, %c0_72] : memref<1x6x3x64x64xbf16, #tpu.memory_space<vmem>>, vector<1x1x1x64x64xbf16>
    %96 = vector.shape_cast %95 : vector<1x1x1x64x64xbf16> to vector<64x64xbf16>
    %c0_73 = arith.constant 0 : index
    %c0_74 = arith.constant 0 : index
    %c1_75 = arith.constant 1 : index
    %c0_76 = arith.constant 0 : index
    %c0_77 = arith.constant 0 : index
    %97 = vector.load %arg14[%c0_73, %c0_74, %c1_75, %c0_76, %c0_77] : memref<1x6x3x64x64xbf16, #tpu.memory_space<vmem>>, vector<1x1x1x64x64xbf16>
    %98 = vector.shape_cast %97 : vector<1x1x1x64x64xbf16> to vector<64x64xbf16>
    %c0_78 = arith.constant 0 : index
    %c0_79 = arith.constant 0 : index
    %c2_80 = arith.constant 2 : index
    %c0_81 = arith.constant 0 : index
    %c0_82 = arith.constant 0 : index
    %99 = vector.load %arg14[%c0_78, %c0_79, %c2_80, %c0_81, %c0_82] : memref<1x6x3x64x64xbf16, #tpu.memory_space<vmem>>, vector<1x1x1x64x64xbf16>
    %100 = vector.shape_cast %99 : vector<1x1x1x64x64xbf16> to vector<64x64xbf16>
    %c0_83 = arith.constant 0 : index
    %c0_84 = arith.constant 0 : index
    %c0_85 = arith.constant 0 : index
    %c0_86 = arith.constant 0 : index
    %101 = vector.load %arg15[%c0_83, %c0_84, %c0_85, %c0_86] : memref<1x6x1x64xf32, #tpu.memory_space<vmem>>, vector<1x1x1x64xf32>
    %102 = vector.shape_cast %101 : vector<1x1x1x64xf32> to vector<1x64xf32>
    %c0_87 = arith.constant 0 : index
    %c0_88 = arith.constant 0 : index
    %c0_89 = arith.constant 0 : index
    %c0_90 = arith.constant 0 : index
    %103 = vector.load %arg16[%c0_87, %c0_88, %c0_89, %c0_90] : memref<1x6x64x256xbf16, #tpu.memory_space<vmem>>, vector<1x1x64x256xbf16>
    %104 = vector.shape_cast %103 : vector<1x1x64x256xbf16> to vector<64x256xbf16>
    %c0_91 = arith.constant 0 : index
    %c0_92 = arith.constant 0 : index
    %c0_93 = arith.constant 0 : index
    %c0_94 = arith.constant 0 : index
    %105 = vector.load %arg17[%c0_91, %c0_92, %c0_93, %c0_94] : memref<1x6x1x256xf32, #tpu.memory_space<vmem>>, vector<1x1x1x256xf32>
    %106 = vector.shape_cast %105 : vector<1x1x1x256xf32> to vector<1x256xf32>
    %cst_95 = arith.constant dense<0.000000e+00> : vector<32x64xf32>
    %107 = tpu.matmul %90, %92, %cst_95 {dimension_numbers = #tpu.dot_dimension_numbers<[1], [0], [0], [1], [0, 0, 1, 1], [], []>} : vector<32x256xbf16>, vector<256x64xbf16>, vector<32x64xf32> -> vector<32x64xf32>
    %108 = vector.broadcast %94 : vector<1x64xf32> to vector<32x64xf32>
    %109 = arith.addf %107, %108 : vector<32x64xf32>
    %cst_96 = arith.constant 0.000000e+00 : f32
    %110 = vector.broadcast %cst_96 : f32 to vector<32x64xf32>
    %111 = arith.maximumf %109, %110 : vector<32x64xf32>
    %c1_i32_97 = arith.constant 1 : i32
    %112 = tpu.dynamic_rotate %111 by %c1_i32_97 dim 0 : vector<32x64xf32>, i32 -> vector<32x64xf32>
    %113 = arith.mulf %112, %39 : vector<32x64xf32>
    %c31_i32_98 = arith.constant 31 : i32
    %114 = tpu.dynamic_rotate %111 by %c31_i32_98 dim 0 : vector<32x64xf32>, i32 -> vector<32x64xf32>
    %115 = arith.mulf %114, %45 : vector<32x64xf32>
    %116 = arith.truncf %111 : vector<32x64xf32> to vector<32x64xbf16>
    %cst_99 = arith.constant dense<0.000000e+00> : vector<32x64xf32>
    %117 = tpu.matmul %116, %98, %cst_99 {dimension_numbers = #tpu.dot_dimension_numbers<[1], [0], [0], [1], [0, 0, 1, 1], [], []>} : vector<32x64xbf16>, vector<64x64xbf16>, vector<32x64xf32> -> vector<32x64xf32>
    %118 = arith.truncf %113 : vector<32x64xf32> to vector<32x64xbf16>
    %cst_100 = arith.constant dense<0.000000e+00> : vector<32x64xf32>
    %119 = tpu.matmul %118, %96, %cst_100 {dimension_numbers = #tpu.dot_dimension_numbers<[1], [0], [0], [1], [0, 0, 1, 1], [], []>} : vector<32x64xbf16>, vector<64x64xbf16>, vector<32x64xf32> -> vector<32x64xf32>
    %120 = arith.addf %117, %119 : vector<32x64xf32>
    %121 = arith.truncf %115 : vector<32x64xf32> to vector<32x64xbf16>
    %cst_101 = arith.constant dense<0.000000e+00> : vector<32x64xf32>
    %122 = tpu.matmul %121, %100, %cst_101 {dimension_numbers = #tpu.dot_dimension_numbers<[1], [0], [0], [1], [0, 0, 1, 1], [], []>} : vector<32x64xbf16>, vector<64x64xbf16>, vector<32x64xf32> -> vector<32x64xf32>
    %123 = arith.addf %120, %122 : vector<32x64xf32>
    %124 = vector.broadcast %102 : vector<1x64xf32> to vector<32x64xf32>
    %125 = arith.addf %123, %124 : vector<32x64xf32>
    %cst_102 = arith.constant 0.000000e+00 : f32
    %126 = vector.broadcast %cst_102 : f32 to vector<32x64xf32>
    %127 = arith.maximumf %125, %126 : vector<32x64xf32>
    %128 = arith.truncf %127 : vector<32x64xf32> to vector<32x64xbf16>
    %cst_103 = arith.constant dense<0.000000e+00> : vector<32x256xf32>
    %129 = tpu.matmul %128, %104, %cst_103 {dimension_numbers = #tpu.dot_dimension_numbers<[1], [0], [0], [1], [0, 0, 1, 1], [], []>} : vector<32x64xbf16>, vector<64x256xbf16>, vector<32x256xf32> -> vector<32x256xf32>
    %130 = vector.broadcast %106 : vector<1x256xf32> to vector<32x256xf32>
    %131 = arith.addf %129, %130 : vector<32x256xf32>
    %132 = arith.addf %131, %89 : vector<32x256xf32>
    %cst_104 = arith.constant 0.000000e+00 : f32
    %133 = vector.broadcast %cst_104 : f32 to vector<32x256xf32>
    %134 = arith.maximumf %132, %133 : vector<32x256xf32>
    %135 = arith.truncf %134 : vector<32x256xf32> to vector<32x256xbf16>
    %c0_105 = arith.constant 0 : index
    %c1_106 = arith.constant 1 : index
    %c0_107 = arith.constant 0 : index
    %c0_108 = arith.constant 0 : index
    %136 = vector.load %arg12[%c0_105, %c1_106, %c0_107, %c0_108] : memref<1x6x256x64xbf16, #tpu.memory_space<vmem>>, vector<1x1x256x64xbf16>
    %137 = vector.shape_cast %136 : vector<1x1x256x64xbf16> to vector<256x64xbf16>
    %c0_109 = arith.constant 0 : index
    %c1_110 = arith.constant 1 : index
    %c0_111 = arith.constant 0 : index
    %c0_112 = arith.constant 0 : index
    %138 = vector.load %arg13[%c0_109, %c1_110, %c0_111, %c0_112] : memref<1x6x1x64xf32, #tpu.memory_space<vmem>>, vector<1x1x1x64xf32>
    %139 = vector.shape_cast %138 : vector<1x1x1x64xf32> to vector<1x64xf32>
    %c0_113 = arith.constant 0 : index
    %c1_114 = arith.constant 1 : index
    %c0_115 = arith.constant 0 : index
    %c0_116 = arith.constant 0 : index
    %c0_117 = arith.constant 0 : index
    %140 = vector.load %arg14[%c0_113, %c1_114, %c0_115, %c0_116, %c0_117] : memref<1x6x3x64x64xbf16, #tpu.memory_space<vmem>>, vector<1x1x1x64x64xbf16>
    %141 = vector.shape_cast %140 : vector<1x1x1x64x64xbf16> to vector<64x64xbf16>
    %c0_118 = arith.constant 0 : index
    %c1_119 = arith.constant 1 : index
    %c1_120 = arith.constant 1 : index
    %c0_121 = arith.constant 0 : index
    %c0_122 = arith.constant 0 : index
    %142 = vector.load %arg14[%c0_118, %c1_119, %c1_120, %c0_121, %c0_122] : memref<1x6x3x64x64xbf16, #tpu.memory_space<vmem>>, vector<1x1x1x64x64xbf16>
    %143 = vector.shape_cast %142 : vector<1x1x1x64x64xbf16> to vector<64x64xbf16>
    %c0_123 = arith.constant 0 : index
    %c1_124 = arith.constant 1 : index
    %c2_125 = arith.constant 2 : index
    %c0_126 = arith.constant 0 : index
    %c0_127 = arith.constant 0 : index
    %144 = vector.load %arg14[%c0_123, %c1_124, %c2_125, %c0_126, %c0_127] : memref<1x6x3x64x64xbf16, #tpu.memory_space<vmem>>, vector<1x1x1x64x64xbf16>
    %145 = vector.shape_cast %144 : vector<1x1x1x64x64xbf16> to vector<64x64xbf16>
    %c0_128 = arith.constant 0 : index
    %c1_129 = arith.constant 1 : index
    %c0_130 = arith.constant 0 : index
    %c0_131 = arith.constant 0 : index
    %146 = vector.load %arg15[%c0_128, %c1_129, %c0_130, %c0_131] : memref<1x6x1x64xf32, #tpu.memory_space<vmem>>, vector<1x1x1x64xf32>
    %147 = vector.shape_cast %146 : vector<1x1x1x64xf32> to vector<1x64xf32>
    %c0_132 = arith.constant 0 : index
    %c1_133 = arith.constant 1 : index
    %c0_134 = arith.constant 0 : index
    %c0_135 = arith.constant 0 : index
    %148 = vector.load %arg16[%c0_132, %c1_133, %c0_134, %c0_135] : memref<1x6x64x256xbf16, #tpu.memory_space<vmem>>, vector<1x1x64x256xbf16>
    %149 = vector.shape_cast %148 : vector<1x1x64x256xbf16> to vector<64x256xbf16>
    %c0_136 = arith.constant 0 : index
    %c1_137 = arith.constant 1 : index
    %c0_138 = arith.constant 0 : index
    %c0_139 = arith.constant 0 : index
    %150 = vector.load %arg17[%c0_136, %c1_137, %c0_138, %c0_139] : memref<1x6x1x256xf32, #tpu.memory_space<vmem>>, vector<1x1x1x256xf32>
    %151 = vector.shape_cast %150 : vector<1x1x1x256xf32> to vector<1x256xf32>
    %cst_140 = arith.constant dense<0.000000e+00> : vector<32x64xf32>
    %152 = tpu.matmul %135, %137, %cst_140 {dimension_numbers = #tpu.dot_dimension_numbers<[1], [0], [0], [1], [0, 0, 1, 1], [], []>} : vector<32x256xbf16>, vector<256x64xbf16>, vector<32x64xf32> -> vector<32x64xf32>
    %153 = vector.broadcast %139 : vector<1x64xf32> to vector<32x64xf32>
    %154 = arith.addf %152, %153 : vector<32x64xf32>
    %cst_141 = arith.constant 0.000000e+00 : f32
    %155 = vector.broadcast %cst_141 : f32 to vector<32x64xf32>
    %156 = arith.maximumf %154, %155 : vector<32x64xf32>
    %c1_i32_142 = arith.constant 1 : i32
    %157 = tpu.dynamic_rotate %156 by %c1_i32_142 dim 0 : vector<32x64xf32>, i32 -> vector<32x64xf32>
    %158 = arith.mulf %157, %39 : vector<32x64xf32>
    %c31_i32_143 = arith.constant 31 : i32
    %159 = tpu.dynamic_rotate %156 by %c31_i32_143 dim 0 : vector<32x64xf32>, i32 -> vector<32x64xf32>
    %160 = arith.mulf %159, %45 : vector<32x64xf32>
    %161 = arith.truncf %156 : vector<32x64xf32> to vector<32x64xbf16>
    %cst_144 = arith.constant dense<0.000000e+00> : vector<32x64xf32>
    %162 = tpu.matmul %161, %143, %cst_144 {dimension_numbers = #tpu.dot_dimension_numbers<[1], [0], [0], [1], [0, 0, 1, 1], [], []>} : vector<32x64xbf16>, vector<64x64xbf16>, vector<32x64xf32> -> vector<32x64xf32>
    %163 = arith.truncf %158 : vector<32x64xf32> to vector<32x64xbf16>
    %cst_145 = arith.constant dense<0.000000e+00> : vector<32x64xf32>
    %164 = tpu.matmul %163, %141, %cst_145 {dimension_numbers = #tpu.dot_dimension_numbers<[1], [0], [0], [1], [0, 0, 1, 1], [], []>} : vector<32x64xbf16>, vector<64x64xbf16>, vector<32x64xf32> -> vector<32x64xf32>
    %165 = arith.addf %162, %164 : vector<32x64xf32>
    %166 = arith.truncf %160 : vector<32x64xf32> to vector<32x64xbf16>
    %cst_146 = arith.constant dense<0.000000e+00> : vector<32x64xf32>
    %167 = tpu.matmul %166, %145, %cst_146 {dimension_numbers = #tpu.dot_dimension_numbers<[1], [0], [0], [1], [0, 0, 1, 1], [], []>} : vector<32x64xbf16>, vector<64x64xbf16>, vector<32x64xf32> -> vector<32x64xf32>
    %168 = arith.addf %165, %167 : vector<32x64xf32>
    %169 = vector.broadcast %147 : vector<1x64xf32> to vector<32x64xf32>
    %170 = arith.addf %168, %169 : vector<32x64xf32>
    %cst_147 = arith.constant 0.000000e+00 : f32
    %171 = vector.broadcast %cst_147 : f32 to vector<32x64xf32>
    %172 = arith.maximumf %170, %171 : vector<32x64xf32>
    %173 = arith.truncf %172 : vector<32x64xf32> to vector<32x64xbf16>
    %cst_148 = arith.constant dense<0.000000e+00> : vector<32x256xf32>
    %174 = tpu.matmul %173, %149, %cst_148 {dimension_numbers = #tpu.dot_dimension_numbers<[1], [0], [0], [1], [0, 0, 1, 1], [], []>} : vector<32x64xbf16>, vector<64x256xbf16>, vector<32x256xf32> -> vector<32x256xf32>
    %175 = vector.broadcast %151 : vector<1x256xf32> to vector<32x256xf32>
    %176 = arith.addf %174, %175 : vector<32x256xf32>
    %177 = arith.addf %176, %134 : vector<32x256xf32>
    %cst_149 = arith.constant 0.000000e+00 : f32
    %178 = vector.broadcast %cst_149 : f32 to vector<32x256xf32>
    %179 = arith.maximumf %177, %178 : vector<32x256xf32>
    %c0_150 = arith.constant 0 : index
    %c0_151 = arith.constant 0 : index
    %c0_152 = arith.constant 0 : index
    %c0_153 = arith.constant 0 : index
    %180 = vector.load %arg19[%c0_150, %c0_151, %c0_152, %c0_153] : memref<1x3x32x256xf32, #tpu.memory_space<vmem>>, vector<1x1x32x256xf32>
    %181 = vector.shape_cast %180 : vector<1x1x32x256xf32> to vector<32x256xf32>
    %182 = vector.shape_cast %179 : vector<32x256xf32> to vector<1x1x32x256xf32>
    tpu.vector_store %arg19[%c0_150, %c0_151, %c0_152, %c0_153], %182 {strides = array<i32>} : memref<1x3x32x256xf32, #tpu.memory_space<vmem>>, vector<1x1x32x256xf32>,
    %c0_154 = arith.constant 0 : index
    %c1_155 = arith.constant 1 : index
    %c0_156 = arith.constant 0 : index
    %c0_157 = arith.constant 0 : index
    %183 = vector.load %arg6[%c0_154, %c1_155, %c0_156, %c0_157] : memref<1x3x128x64xbf16, #tpu.memory_space<vmem>>, vector<1x1x128x64xbf16>
    %184 = vector.shape_cast %183 : vector<1x1x128x64xbf16> to vector<128x64xbf16>
    %c0_158 = arith.constant 0 : index
    %c1_159 = arith.constant 1 : index
    %c0_160 = arith.constant 0 : index
    %c0_161 = arith.constant 0 : index
    %185 = vector.load %arg7[%c0_158, %c1_159, %c0_160, %c0_161] : memref<1x3x1x64xf32, #tpu.memory_space<vmem>>, vector<1x1x1x64xf32>
    %186 = vector.shape_cast %185 : vector<1x1x1x64xf32> to vector<1x64xf32>
    %c0_162 = arith.constant 0 : index
    %c1_163 = arith.constant 1 : index
    %c0_164 = arith.constant 0 : index
    %c0_165 = arith.constant 0 : index
    %c0_166 = arith.constant 0 : index
    %187 = vector.load %arg8[%c0_162, %c1_163, %c0_164, %c0_165, %c0_166] : memref<1x3x3x64x64xbf16, #tpu.memory_space<vmem>>, vector<1x1x1x64x64xbf16>
    %188 = vector.shape_cast %187 : vector<1x1x1x64x64xbf16> to vector<64x64xbf16>
    %c0_167 = arith.constant 0 : index
    %c1_168 = arith.constant 1 : index
    %c1_169 = arith.constant 1 : index
    %c0_170 = arith.constant 0 : index
    %c0_171 = arith.constant 0 : index
    %189 = vector.load %arg8[%c0_167, %c1_168, %c1_169, %c0_170, %c0_171] : memref<1x3x3x64x64xbf16, #tpu.memory_space<vmem>>, vector<1x1x1x64x64xbf16>
    %190 = vector.shape_cast %189 : vector<1x1x1x64x64xbf16> to vector<64x64xbf16>
    %c0_172 = arith.constant 0 : index
    %c1_173 = arith.constant 1 : index
    %c2_174 = arith.constant 2 : index
    %c0_175 = arith.constant 0 : index
    %c0_176 = arith.constant 0 : index
    %191 = vector.load %arg8[%c0_172, %c1_173, %c2_174, %c0_175, %c0_176] : memref<1x3x3x64x64xbf16, #tpu.memory_space<vmem>>, vector<1x1x1x64x64xbf16>
    %192 = vector.shape_cast %191 : vector<1x1x1x64x64xbf16> to vector<64x64xbf16>
    %c0_177 = arith.constant 0 : index
    %c1_178 = arith.constant 1 : index
    %c0_179 = arith.constant 0 : index
    %c0_180 = arith.constant 0 : index
    %193 = vector.load %arg9[%c0_177, %c1_178, %c0_179, %c0_180] : memref<1x3x1x64xf32, #tpu.memory_space<vmem>>, vector<1x1x1x64xf32>
    %194 = vector.shape_cast %193 : vector<1x1x1x64xf32> to vector<1x64xf32>
    %c0_181 = arith.constant 0 : index
    %c1_182 = arith.constant 1 : index
    %c0_183 = arith.constant 0 : index
    %c0_184 = arith.constant 0 : index
    %195 = vector.load %arg10[%c0_181, %c1_182, %c0_183, %c0_184] : memref<1x3x64x256xbf16, #tpu.memory_space<vmem>>, vector<1x1x64x256xbf16>
    %196 = vector.shape_cast %195 : vector<1x1x64x256xbf16> to vector<64x256xbf16>
    %c0_185 = arith.constant 0 : index
    %c1_186 = arith.constant 1 : index
    %c0_187 = arith.constant 0 : index
    %c0_188 = arith.constant 0 : index
    %197 = vector.load %arg11[%c0_185, %c1_186, %c0_187, %c0_188] : memref<1x3x1x256xf32, #tpu.memory_space<vmem>>, vector<1x1x1x256xf32>
    %198 = vector.shape_cast %197 : vector<1x1x1x256xf32> to vector<1x256xf32>
    %cst_189 = arith.constant dense<0.000000e+00> : vector<32x64xf32>
    %199 = tpu.matmul %11, %184, %cst_189 {dimension_numbers = #tpu.dot_dimension_numbers<[1], [0], [0], [1], [0, 0, 1, 1], [], []>} : vector<32x128xbf16>, vector<128x64xbf16>, vector<32x64xf32> -> vector<32x64xf32>
    %200 = vector.broadcast %186 : vector<1x64xf32> to vector<32x64xf32>
    %201 = arith.addf %199, %200 : vector<32x64xf32>
    %cst_190 = arith.constant 0.000000e+00 : f32
    %202 = vector.broadcast %cst_190 : f32 to vector<32x64xf32>
    %203 = arith.maximumf %201, %202 : vector<32x64xf32>
    %c1_i32_191 = arith.constant 1 : i32
    %204 = tpu.dynamic_rotate %203 by %c1_i32_191 dim 0 : vector<32x64xf32>, i32 -> vector<32x64xf32>
    %205 = arith.mulf %204, %39 : vector<32x64xf32>
    %c31_i32_192 = arith.constant 31 : i32
    %206 = tpu.dynamic_rotate %203 by %c31_i32_192 dim 0 : vector<32x64xf32>, i32 -> vector<32x64xf32>
    %207 = arith.mulf %206, %45 : vector<32x64xf32>
    %208 = arith.truncf %203 : vector<32x64xf32> to vector<32x64xbf16>
    %cst_193 = arith.constant dense<0.000000e+00> : vector<32x64xf32>
    %209 = tpu.matmul %208, %190, %cst_193 {dimension_numbers = #tpu.dot_dimension_numbers<[1], [0], [0], [1], [0, 0, 1, 1], [], []>} : vector<32x64xbf16>, vector<64x64xbf16>, vector<32x64xf32> -> vector<32x64xf32>
    %210 = arith.truncf %205 : vector<32x64xf32> to vector<32x64xbf16>
    %cst_194 = arith.constant dense<0.000000e+00> : vector<32x64xf32>
    %211 = tpu.matmul %210, %188, %cst_194 {dimension_numbers = #tpu.dot_dimension_numbers<[1], [0], [0], [1], [0, 0, 1, 1], [], []>} : vector<32x64xbf16>, vector<64x64xbf16>, vector<32x64xf32> -> vector<32x64xf32>
    %212 = arith.addf %209, %211 : vector<32x64xf32>
    %213 = arith.truncf %207 : vector<32x64xf32> to vector<32x64xbf16>
    %cst_195 = arith.constant dense<0.000000e+00> : vector<32x64xf32>
    %214 = tpu.matmul %213, %192, %cst_195 {dimension_numbers = #tpu.dot_dimension_numbers<[1], [0], [0], [1], [0, 0, 1, 1], [], []>} : vector<32x64xbf16>, vector<64x64xbf16>, vector<32x64xf32> -> vector<32x64xf32>
    %215 = arith.addf %212, %214 : vector<32x64xf32>
    %216 = vector.broadcast %194 : vector<1x64xf32> to vector<32x64xf32>
    %217 = arith.addf %215, %216 : vector<32x64xf32>
    %cst_196 = arith.constant 0.000000e+00 : f32
    %218 = vector.broadcast %cst_196 : f32 to vector<32x64xf32>
    %219 = arith.maximumf %217, %218 : vector<32x64xf32>
    %220 = arith.truncf %219 : vector<32x64xf32> to vector<32x64xbf16>
    %cst_197 = arith.constant dense<0.000000e+00> : vector<32x256xf32>
    %221 = tpu.matmul %220, %196, %cst_197 {dimension_numbers = #tpu.dot_dimension_numbers<[1], [0], [0], [1], [0, 0, 1, 1], [], []>} : vector<32x64xbf16>, vector<64x256xbf16>, vector<32x256xf32> -> vector<32x256xf32>
    %222 = vector.broadcast %198 : vector<1x256xf32> to vector<32x256xf32>
    %223 = arith.addf %221, %222 : vector<32x256xf32>
    %224 = arith.addf %223, %16 : vector<32x256xf32>
    %cst_198 = arith.constant 0.000000e+00 : f32
    %225 = vector.broadcast %cst_198 : f32 to vector<32x256xf32>
    %226 = arith.maximumf %224, %225 : vector<32x256xf32>
    %227 = arith.truncf %226 : vector<32x256xf32> to vector<32x256xbf16>
    %c0_199 = arith.constant 0 : index
    %c2_200 = arith.constant 2 : index
    %c0_201 = arith.constant 0 : index
    %c0_202 = arith.constant 0 : index
    %228 = vector.load %arg12[%c0_199, %c2_200, %c0_201, %c0_202] : memref<1x6x256x64xbf16, #tpu.memory_space<vmem>>, vector<1x1x256x64xbf16>
    %229 = vector.shape_cast %228 : vector<1x1x256x64xbf16> to vector<256x64xbf16>
    %c0_203 = arith.constant 0 : index
    %c2_204 = arith.constant 2 : index
    %c0_205 = arith.constant 0 : index
    %c0_206 = arith.constant 0 : index
    %230 = vector.load %arg13[%c0_203, %c2_204, %c0_205, %c0_206] : memref<1x6x1x64xf32, #tpu.memory_space<vmem>>, vector<1x1x1x64xf32>
    %231 = vector.shape_cast %230 : vector<1x1x1x64xf32> to vector<1x64xf32>
    %c0_207 = arith.constant 0 : index
    %c2_208 = arith.constant 2 : index
    %c0_209 = arith.constant 0 : index
    %c0_210 = arith.constant 0 : index
    %c0_211 = arith.constant 0 : index
    %232 = vector.load %arg14[%c0_207, %c2_208, %c0_209, %c0_210, %c0_211] : memref<1x6x3x64x64xbf16, #tpu.memory_space<vmem>>, vector<1x1x1x64x64xbf16>
    %233 = vector.shape_cast %232 : vector<1x1x1x64x64xbf16> to vector<64x64xbf16>
    %c0_212 = arith.constant 0 : index
    %c2_213 = arith.constant 2 : index
    %c1_214 = arith.constant 1 : index
    %c0_215 = arith.constant 0 : index
    %c0_216 = arith.constant 0 : index
    %234 = vector.load %arg14[%c0_212, %c2_213, %c1_214, %c0_215, %c0_216] : memref<1x6x3x64x64xbf16, #tpu.memory_space<vmem>>, vector<1x1x1x64x64xbf16>
    %235 = vector.shape_cast %234 : vector<1x1x1x64x64xbf16> to vector<64x64xbf16>
    %c0_217 = arith.constant 0 : index
    %c2_218 = arith.constant 2 : index
    %c2_219 = arith.constant 2 : index
    %c0_220 = arith.constant 0 : index
    %c0_221 = arith.constant 0 : index
    %236 = vector.load %arg14[%c0_217, %c2_218, %c2_219, %c0_220, %c0_221] : memref<1x6x3x64x64xbf16, #tpu.memory_space<vmem>>, vector<1x1x1x64x64xbf16>
    %237 = vector.shape_cast %236 : vector<1x1x1x64x64xbf16> to vector<64x64xbf16>
    %c0_222 = arith.constant 0 : index
    %c2_223 = arith.constant 2 : index
    %c0_224 = arith.constant 0 : index
    %c0_225 = arith.constant 0 : index
    %238 = vector.load %arg15[%c0_222, %c2_223, %c0_224, %c0_225] : memref<1x6x1x64xf32, #tpu.memory_space<vmem>>, vector<1x1x1x64xf32>
    %239 = vector.shape_cast %238 : vector<1x1x1x64xf32> to vector<1x64xf32>
    %c0_226 = arith.constant 0 : index
    %c2_227 = arith.constant 2 : index
    %c0_228 = arith.constant 0 : index
    %c0_229 = arith.constant 0 : index
    %240 = vector.load %arg16[%c0_226, %c2_227, %c0_228, %c0_229] : memref<1x6x64x256xbf16, #tpu.memory_space<vmem>>, vector<1x1x64x256xbf16>
    %241 = vector.shape_cast %240 : vector<1x1x64x256xbf16> to vector<64x256xbf16>
    %c0_230 = arith.constant 0 : index
    %c2_231 = arith.constant 2 : index
    %c0_232 = arith.constant 0 : index
    %c0_233 = arith.constant 0 : index
    %242 = vector.load %arg17[%c0_230, %c2_231, %c0_232, %c0_233] : memref<1x6x1x256xf32, #tpu.memory_space<vmem>>, vector<1x1x1x256xf32>
    %243 = vector.shape_cast %242 : vector<1x1x1x256xf32> to vector<1x256xf32>
    %cst_234 = arith.constant dense<0.000000e+00> : vector<32x64xf32>
    %244 = tpu.matmul %227, %229, %cst_234 {dimension_numbers = #tpu.dot_dimension_numbers<[1], [0], [0], [1], [0, 0, 1, 1], [], []>} : vector<32x256xbf16>, vector<256x64xbf16>, vector<32x64xf32> -> vector<32x64xf32>
    %245 = vector.broadcast %231 : vector<1x64xf32> to vector<32x64xf32>
    %246 = arith.addf %244, %245 : vector<32x64xf32>
    %cst_235 = arith.constant 0.000000e+00 : f32
    %247 = vector.broadcast %cst_235 : f32 to vector<32x64xf32>
    %248 = arith.maximumf %246, %247 : vector<32x64xf32>
    %c1_i32_236 = arith.constant 1 : i32
    %249 = tpu.dynamic_rotate %248 by %c1_i32_236 dim 0 : vector<32x64xf32>, i32 -> vector<32x64xf32>
    %250 = arith.mulf %249, %39 : vector<32x64xf32>
    %c31_i32_237 = arith.constant 31 : i32
    %251 = tpu.dynamic_rotate %248 by %c31_i32_237 dim 0 : vector<32x64xf32>, i32 -> vector<32x64xf32>
    %252 = arith.mulf %251, %45 : vector<32x64xf32>
    %253 = arith.truncf %248 : vector<32x64xf32> to vector<32x64xbf16>
    %cst_238 = arith.constant dense<0.000000e+00> : vector<32x64xf32>
    %254 = tpu.matmul %253, %235, %cst_238 {dimension_numbers = #tpu.dot_dimension_numbers<[1], [0], [0], [1], [0, 0, 1, 1], [], []>} : vector<32x64xbf16>, vector<64x64xbf16>, vector<32x64xf32> -> vector<32x64xf32>
    %255 = arith.truncf %250 : vector<32x64xf32> to vector<32x64xbf16>
    %cst_239 = arith.constant dense<0.000000e+00> : vector<32x64xf32>
    %256 = tpu.matmul %255, %233, %cst_239 {dimension_numbers = #tpu.dot_dimension_numbers<[1], [0], [0], [1], [0, 0, 1, 1], [], []>} : vector<32x64xbf16>, vector<64x64xbf16>, vector<32x64xf32> -> vector<32x64xf32>
    %257 = arith.addf %254, %256 : vector<32x64xf32>
    %258 = arith.truncf %252 : vector<32x64xf32> to vector<32x64xbf16>
    %cst_240 = arith.constant dense<0.000000e+00> : vector<32x64xf32>
    %259 = tpu.matmul %258, %237, %cst_240 {dimension_numbers = #tpu.dot_dimension_numbers<[1], [0], [0], [1], [0, 0, 1, 1], [], []>} : vector<32x64xbf16>, vector<64x64xbf16>, vector<32x64xf32> -> vector<32x64xf32>
    %260 = arith.addf %257, %259 : vector<32x64xf32>
    %261 = vector.broadcast %239 : vector<1x64xf32> to vector<32x64xf32>
    %262 = arith.addf %260, %261 : vector<32x64xf32>
    %cst_241 = arith.constant 0.000000e+00 : f32
    %263 = vector.broadcast %cst_241 : f32 to vector<32x64xf32>
    %264 = arith.maximumf %262, %263 : vector<32x64xf32>
    %265 = arith.truncf %264 : vector<32x64xf32> to vector<32x64xbf16>
    %cst_242 = arith.constant dense<0.000000e+00> : vector<32x256xf32>
    %266 = tpu.matmul %265, %241, %cst_242 {dimension_numbers = #tpu.dot_dimension_numbers<[1], [0], [0], [1], [0, 0, 1, 1], [], []>} : vector<32x64xbf16>, vector<64x256xbf16>, vector<32x256xf32> -> vector<32x256xf32>
    %267 = vector.broadcast %243 : vector<1x256xf32> to vector<32x256xf32>
    %268 = arith.addf %266, %267 : vector<32x256xf32>
    %269 = arith.addf %268, %226 : vector<32x256xf32>
    %cst_243 = arith.constant 0.000000e+00 : f32
    %270 = vector.broadcast %cst_243 : f32 to vector<32x256xf32>
    %271 = arith.maximumf %269, %270 : vector<32x256xf32>
    %272 = arith.truncf %271 : vector<32x256xf32> to vector<32x256xbf16>
    %c0_244 = arith.constant 0 : index
    %c3 = arith.constant 3 : index
    %c0_245 = arith.constant 0 : index
    %c0_246 = arith.constant 0 : index
    %273 = vector.load %arg12[%c0_244, %c3, %c0_245, %c0_246] : memref<1x6x256x64xbf16, #tpu.memory_space<vmem>>, vector<1x1x256x64xbf16>
    %274 = vector.shape_cast %273 : vector<1x1x256x64xbf16> to vector<256x64xbf16>
    %c0_247 = arith.constant 0 : index
    %c3_248 = arith.constant 3 : index
    %c0_249 = arith.constant 0 : index
    %c0_250 = arith.constant 0 : index
    %275 = vector.load %arg13[%c0_247, %c3_248, %c0_249, %c0_250] : memref<1x6x1x64xf32, #tpu.memory_space<vmem>>, vector<1x1x1x64xf32>
    %276 = vector.shape_cast %275 : vector<1x1x1x64xf32> to vector<1x64xf32>
    %c0_251 = arith.constant 0 : index
    %c3_252 = arith.constant 3 : index
    %c0_253 = arith.constant 0 : index
    %c0_254 = arith.constant 0 : index
    %c0_255 = arith.constant 0 : index
    %277 = vector.load %arg14[%c0_251, %c3_252, %c0_253, %c0_254, %c0_255] : memref<1x6x3x64x64xbf16, #tpu.memory_space<vmem>>, vector<1x1x1x64x64xbf16>
    %278 = vector.shape_cast %277 : vector<1x1x1x64x64xbf16> to vector<64x64xbf16>
    %c0_256 = arith.constant 0 : index
    %c3_257 = arith.constant 3 : index
    %c1_258 = arith.constant 1 : index
    %c0_259 = arith.constant 0 : index
    %c0_260 = arith.constant 0 : index
    %279 = vector.load %arg14[%c0_256, %c3_257, %c1_258, %c0_259, %c0_260] : memref<1x6x3x64x64xbf16, #tpu.memory_space<vmem>>, vector<1x1x1x64x64xbf16>
    %280 = vector.shape_cast %279 : vector<1x1x1x64x64xbf16> to vector<64x64xbf16>
    %c0_261 = arith.constant 0 : index
    %c3_262 = arith.constant 3 : index
    %c2_263 = arith.constant 2 : index
    %c0_264 = arith.constant 0 : index
    %c0_265 = arith.constant 0 : index
    %281 = vector.load %arg14[%c0_261, %c3_262, %c2_263, %c0_264, %c0_265] : memref<1x6x3x64x64xbf16, #tpu.memory_space<vmem>>, vector<1x1x1x64x64xbf16>
    %282 = vector.shape_cast %281 : vector<1x1x1x64x64xbf16> to vector<64x64xbf16>
    %c0_266 = arith.constant 0 : index
    %c3_267 = arith.constant 3 : index
    %c0_268 = arith.constant 0 : index
    %c0_269 = arith.constant 0 : index
    %283 = vector.load %arg15[%c0_266, %c3_267, %c0_268, %c0_269] : memref<1x6x1x64xf32, #tpu.memory_space<vmem>>, vector<1x1x1x64xf32>
    %284 = vector.shape_cast %283 : vector<1x1x1x64xf32> to vector<1x64xf32>
    %c0_270 = arith.constant 0 : index
    %c3_271 = arith.constant 3 : index
    %c0_272 = arith.constant 0 : index
    %c0_273 = arith.constant 0 : index
    %285 = vector.load %arg16[%c0_270, %c3_271, %c0_272, %c0_273] : memref<1x6x64x256xbf16, #tpu.memory_space<vmem>>, vector<1x1x64x256xbf16>
    %286 = vector.shape_cast %285 : vector<1x1x64x256xbf16> to vector<64x256xbf16>
    %c0_274 = arith.constant 0 : index
    %c3_275 = arith.constant 3 : index
    %c0_276 = arith.constant 0 : index
    %c0_277 = arith.constant 0 : index
    %287 = vector.load %arg17[%c0_274, %c3_275, %c0_276, %c0_277] : memref<1x6x1x256xf32, #tpu.memory_space<vmem>>, vector<1x1x1x256xf32>
    %288 = vector.shape_cast %287 : vector<1x1x1x256xf32> to vector<1x256xf32>
    %cst_278 = arith.constant dense<0.000000e+00> : vector<32x64xf32>
    %289 = tpu.matmul %272, %274, %cst_278 {dimension_numbers = #tpu.dot_dimension_numbers<[1], [0], [0], [1], [0, 0, 1, 1], [], []>} : vector<32x256xbf16>, vector<256x64xbf16>, vector<32x64xf32> -> vector<32x64xf32>
    %290 = vector.broadcast %276 : vector<1x64xf32> to vector<32x64xf32>
    %291 = arith.addf %289, %290 : vector<32x64xf32>
    %cst_279 = arith.constant 0.000000e+00 : f32
    %292 = vector.broadcast %cst_279 : f32 to vector<32x64xf32>
    %293 = arith.maximumf %291, %292 : vector<32x64xf32>
    %c1_i32_280 = arith.constant 1 : i32
    %294 = tpu.dynamic_rotate %293 by %c1_i32_280 dim 0 : vector<32x64xf32>, i32 -> vector<32x64xf32>
    %295 = arith.mulf %294, %39 : vector<32x64xf32>
    %c31_i32_281 = arith.constant 31 : i32
    %296 = tpu.dynamic_rotate %293 by %c31_i32_281 dim 0 : vector<32x64xf32>, i32 -> vector<32x64xf32>
    %297 = arith.mulf %296, %45 : vector<32x64xf32>
    %298 = arith.truncf %293 : vector<32x64xf32> to vector<32x64xbf16>
    %cst_282 = arith.constant dense<0.000000e+00> : vector<32x64xf32>
    %299 = tpu.matmul %298, %280, %cst_282 {dimension_numbers = #tpu.dot_dimension_numbers<[1], [0], [0], [1], [0, 0, 1, 1], [], []>} : vector<32x64xbf16>, vector<64x64xbf16>, vector<32x64xf32> -> vector<32x64xf32>
    %300 = arith.truncf %295 : vector<32x64xf32> to vector<32x64xbf16>
    %cst_283 = arith.constant dense<0.000000e+00> : vector<32x64xf32>
    %301 = tpu.matmul %300, %278, %cst_283 {dimension_numbers = #tpu.dot_dimension_numbers<[1], [0], [0], [1], [0, 0, 1, 1], [], []>} : vector<32x64xbf16>, vector<64x64xbf16>, vector<32x64xf32> -> vector<32x64xf32>
    %302 = arith.addf %299, %301 : vector<32x64xf32>
    %303 = arith.truncf %297 : vector<32x64xf32> to vector<32x64xbf16>
    %cst_284 = arith.constant dense<0.000000e+00> : vector<32x64xf32>
    %304 = tpu.matmul %303, %282, %cst_284 {dimension_numbers = #tpu.dot_dimension_numbers<[1], [0], [0], [1], [0, 0, 1, 1], [], []>} : vector<32x64xbf16>, vector<64x64xbf16>, vector<32x64xf32> -> vector<32x64xf32>
    %305 = arith.addf %302, %304 : vector<32x64xf32>
    %306 = vector.broadcast %284 : vector<1x64xf32> to vector<32x64xf32>
    %307 = arith.addf %305, %306 : vector<32x64xf32>
    %cst_285 = arith.constant 0.000000e+00 : f32
    %308 = vector.broadcast %cst_285 : f32 to vector<32x64xf32>
    %309 = arith.maximumf %307, %308 : vector<32x64xf32>
    %310 = arith.truncf %309 : vector<32x64xf32> to vector<32x64xbf16>
    %cst_286 = arith.constant dense<0.000000e+00> : vector<32x256xf32>
    %311 = tpu.matmul %310, %286, %cst_286 {dimension_numbers = #tpu.dot_dimension_numbers<[1], [0], [0], [1], [0, 0, 1, 1], [], []>} : vector<32x64xbf16>, vector<64x256xbf16>, vector<32x256xf32> -> vector<32x256xf32>
    %312 = vector.broadcast %288 : vector<1x256xf32> to vector<32x256xf32>
    %313 = arith.addf %311, %312 : vector<32x256xf32>
    %314 = arith.addf %313, %271 : vector<32x256xf32>
    %cst_287 = arith.constant 0.000000e+00 : f32
    %315 = vector.broadcast %cst_287 : f32 to vector<32x256xf32>
    %316 = arith.maximumf %314, %315 : vector<32x256xf32>
    %c0_288 = arith.constant 0 : index
    %c1_289 = arith.constant 1 : index
    %c0_290 = arith.constant 0 : index
    %c0_291 = arith.constant 0 : index
    %317 = vector.load %arg19[%c0_288, %c1_289, %c0_290, %c0_291] : memref<1x3x32x256xf32, #tpu.memory_space<vmem>>, vector<1x1x32x256xf32>
    %318 = vector.shape_cast %317 : vector<1x1x32x256xf32> to vector<32x256xf32>
    %319 = vector.shape_cast %316 : vector<32x256xf32> to vector<1x1x32x256xf32>
    tpu.vector_store %arg19[%c0_288, %c1_289, %c0_290, %c0_291], %319 {strides = array<i32>} : memref<1x3x32x256xf32, #tpu.memory_space<vmem>>, vector<1x1x32x256xf32>,
    %c0_292 = arith.constant 0 : index
    %c2_293 = arith.constant 2 : index
    %c0_294 = arith.constant 0 : index
    %c0_295 = arith.constant 0 : index
    %320 = vector.load %arg6[%c0_292, %c2_293, %c0_294, %c0_295] : memref<1x3x128x64xbf16, #tpu.memory_space<vmem>>, vector<1x1x128x64xbf16>
    %321 = vector.shape_cast %320 : vector<1x1x128x64xbf16> to vector<128x64xbf16>
    %c0_296 = arith.constant 0 : index
    %c2_297 = arith.constant 2 : index
    %c0_298 = arith.constant 0 : index
    %c0_299 = arith.constant 0 : index
    %322 = vector.load %arg7[%c0_296, %c2_297, %c0_298, %c0_299] : memref<1x3x1x64xf32, #tpu.memory_space<vmem>>, vector<1x1x1x64xf32>
    %323 = vector.shape_cast %322 : vector<1x1x1x64xf32> to vector<1x64xf32>
    %c0_300 = arith.constant 0 : index
    %c2_301 = arith.constant 2 : index
    %c0_302 = arith.constant 0 : index
    %c0_303 = arith.constant 0 : index
    %c0_304 = arith.constant 0 : index
    %324 = vector.load %arg8[%c0_300, %c2_301, %c0_302, %c0_303, %c0_304] : memref<1x3x3x64x64xbf16, #tpu.memory_space<vmem>>, vector<1x1x1x64x64xbf16>
    %325 = vector.shape_cast %324 : vector<1x1x1x64x64xbf16> to vector<64x64xbf16>
    %c0_305 = arith.constant 0 : index
    %c2_306 = arith.constant 2 : index
    %c1_307 = arith.constant 1 : index
    %c0_308 = arith.constant 0 : index
    %c0_309 = arith.constant 0 : index
    %326 = vector.load %arg8[%c0_305, %c2_306, %c1_307, %c0_308, %c0_309] : memref<1x3x3x64x64xbf16, #tpu.memory_space<vmem>>, vector<1x1x1x64x64xbf16>
    %327 = vector.shape_cast %326 : vector<1x1x1x64x64xbf16> to vector<64x64xbf16>
    %c0_310 = arith.constant 0 : index
    %c2_311 = arith.constant 2 : index
    %c2_312 = arith.constant 2 : index
    %c0_313 = arith.constant 0 : index
    %c0_314 = arith.constant 0 : index
    %328 = vector.load %arg8[%c0_310, %c2_311, %c2_312, %c0_313, %c0_314] : memref<1x3x3x64x64xbf16, #tpu.memory_space<vmem>>, vector<1x1x1x64x64xbf16>
    %329 = vector.shape_cast %328 : vector<1x1x1x64x64xbf16> to vector<64x64xbf16>
    %c0_315 = arith.constant 0 : index
    %c2_316 = arith.constant 2 : index
    %c0_317 = arith.constant 0 : index
    %c0_318 = arith.constant 0 : index
    %330 = vector.load %arg9[%c0_315, %c2_316, %c0_317, %c0_318] : memref<1x3x1x64xf32, #tpu.memory_space<vmem>>, vector<1x1x1x64xf32>
    %331 = vector.shape_cast %330 : vector<1x1x1x64xf32> to vector<1x64xf32>
    %c0_319 = arith.constant 0 : index
    %c2_320 = arith.constant 2 : index
    %c0_321 = arith.constant 0 : index
    %c0_322 = arith.constant 0 : index
    %332 = vector.load %arg10[%c0_319, %c2_320, %c0_321, %c0_322] : memref<1x3x64x256xbf16, #tpu.memory_space<vmem>>, vector<1x1x64x256xbf16>
    %333 = vector.shape_cast %332 : vector<1x1x64x256xbf16> to vector<64x256xbf16>
    %c0_323 = arith.constant 0 : index
    %c2_324 = arith.constant 2 : index
    %c0_325 = arith.constant 0 : index
    %c0_326 = arith.constant 0 : index
    %334 = vector.load %arg11[%c0_323, %c2_324, %c0_325, %c0_326] : memref<1x3x1x256xf32, #tpu.memory_space<vmem>>, vector<1x1x1x256xf32>
    %335 = vector.shape_cast %334 : vector<1x1x1x256xf32> to vector<1x256xf32>
    %cst_327 = arith.constant dense<0.000000e+00> : vector<32x64xf32>
    %336 = tpu.matmul %11, %321, %cst_327 {dimension_numbers = #tpu.dot_dimension_numbers<[1], [0], [0], [1], [0, 0, 1, 1], [], []>} : vector<32x128xbf16>, vector<128x64xbf16>, vector<32x64xf32> -> vector<32x64xf32>
    %337 = vector.broadcast %323 : vector<1x64xf32> to vector<32x64xf32>
    %338 = arith.addf %336, %337 : vector<32x64xf32>
    %cst_328 = arith.constant 0.000000e+00 : f32
    %339 = vector.broadcast %cst_328 : f32 to vector<32x64xf32>
    %340 = arith.maximumf %338, %339 : vector<32x64xf32>
    %c1_i32_329 = arith.constant 1 : i32
    %341 = tpu.dynamic_rotate %340 by %c1_i32_329 dim 0 : vector<32x64xf32>, i32 -> vector<32x64xf32>
    %342 = arith.mulf %341, %39 : vector<32x64xf32>
    %c31_i32_330 = arith.constant 31 : i32
    %343 = tpu.dynamic_rotate %340 by %c31_i32_330 dim 0 : vector<32x64xf32>, i32 -> vector<32x64xf32>
    %344 = arith.mulf %343, %45 : vector<32x64xf32>
    %345 = arith.truncf %340 : vector<32x64xf32> to vector<32x64xbf16>
    %cst_331 = arith.constant dense<0.000000e+00> : vector<32x64xf32>
    %346 = tpu.matmul %345, %327, %cst_331 {dimension_numbers = #tpu.dot_dimension_numbers<[1], [0], [0], [1], [0, 0, 1, 1], [], []>} : vector<32x64xbf16>, vector<64x64xbf16>, vector<32x64xf32> -> vector<32x64xf32>
    %347 = arith.truncf %342 : vector<32x64xf32> to vector<32x64xbf16>
    %cst_332 = arith.constant dense<0.000000e+00> : vector<32x64xf32>
    %348 = tpu.matmul %347, %325, %cst_332 {dimension_numbers = #tpu.dot_dimension_numbers<[1], [0], [0], [1], [0, 0, 1, 1], [], []>} : vector<32x64xbf16>, vector<64x64xbf16>, vector<32x64xf32> -> vector<32x64xf32>
    %349 = arith.addf %346, %348 : vector<32x64xf32>
    %350 = arith.truncf %344 : vector<32x64xf32> to vector<32x64xbf16>
    %cst_333 = arith.constant dense<0.000000e+00> : vector<32x64xf32>
    %351 = tpu.matmul %350, %329, %cst_333 {dimension_numbers = #tpu.dot_dimension_numbers<[1], [0], [0], [1], [0, 0, 1, 1], [], []>} : vector<32x64xbf16>, vector<64x64xbf16>, vector<32x64xf32> -> vector<32x64xf32>
    %352 = arith.addf %349, %351 : vector<32x64xf32>
    %353 = vector.broadcast %331 : vector<1x64xf32> to vector<32x64xf32>
    %354 = arith.addf %352, %353 : vector<32x64xf32>
    %cst_334 = arith.constant 0.000000e+00 : f32
    %355 = vector.broadcast %cst_334 : f32 to vector<32x64xf32>
    %356 = arith.maximumf %354, %355 : vector<32x64xf32>
    %357 = arith.truncf %356 : vector<32x64xf32> to vector<32x64xbf16>
    %cst_335 = arith.constant dense<0.000000e+00> : vector<32x256xf32>
    %358 = tpu.matmul %357, %333, %cst_335 {dimension_numbers = #tpu.dot_dimension_numbers<[1], [0], [0], [1], [0, 0, 1, 1], [], []>} : vector<32x64xbf16>, vector<64x256xbf16>, vector<32x256xf32> -> vector<32x256xf32>
    %359 = vector.broadcast %335 : vector<1x256xf32> to vector<32x256xf32>
    %360 = arith.addf %358, %359 : vector<32x256xf32>
    %361 = arith.addf %360, %16 : vector<32x256xf32>
    %cst_336 = arith.constant 0.000000e+00 : f32
    %362 = vector.broadcast %cst_336 : f32 to vector<32x256xf32>
    %363 = arith.maximumf %361, %362 : vector<32x256xf32>
    %364 = arith.truncf %363 : vector<32x256xf32> to vector<32x256xbf16>
    %c0_337 = arith.constant 0 : index
    %c4 = arith.constant 4 : index
    %c0_338 = arith.constant 0 : index
    %c0_339 = arith.constant 0 : index
    %365 = vector.load %arg12[%c0_337, %c4, %c0_338, %c0_339] : memref<1x6x256x64xbf16, #tpu.memory_space<vmem>>, vector<1x1x256x64xbf16>
    %366 = vector.shape_cast %365 : vector<1x1x256x64xbf16> to vector<256x64xbf16>
    %c0_340 = arith.constant 0 : index
    %c4_341 = arith.constant 4 : index
    %c0_342 = arith.constant 0 : index
    %c0_343 = arith.constant 0 : index
    %367 = vector.load %arg13[%c0_340, %c4_341, %c0_342, %c0_343] : memref<1x6x1x64xf32, #tpu.memory_space<vmem>>, vector<1x1x1x64xf32>
    %368 = vector.shape_cast %367 : vector<1x1x1x64xf32> to vector<1x64xf32>
    %c0_344 = arith.constant 0 : index
    %c4_345 = arith.constant 4 : index
    %c0_346 = arith.constant 0 : index
    %c0_347 = arith.constant 0 : index
    %c0_348 = arith.constant 0 : index
    %369 = vector.load %arg14[%c0_344, %c4_345, %c0_346, %c0_347, %c0_348] : memref<1x6x3x64x64xbf16, #tpu.memory_space<vmem>>, vector<1x1x1x64x64xbf16>
    %370 = vector.shape_cast %369 : vector<1x1x1x64x64xbf16> to vector<64x64xbf16>
    %c0_349 = arith.constant 0 : index
    %c4_350 = arith.constant 4 : index
    %c1_351 = arith.constant 1 : index
    %c0_352 = arith.constant 0 : index
    %c0_353 = arith.constant 0 : index
    %371 = vector.load %arg14[%c0_349, %c4_350, %c1_351, %c0_352, %c0_353] : memref<1x6x3x64x64xbf16, #tpu.memory_space<vmem>>, vector<1x1x1x64x64xbf16>
    %372 = vector.shape_cast %371 : vector<1x1x1x64x64xbf16> to vector<64x64xbf16>
    %c0_354 = arith.constant 0 : index
    %c4_355 = arith.constant 4 : index
    %c2_356 = arith.constant 2 : index
    %c0_357 = arith.constant 0 : index
    %c0_358 = arith.constant 0 : index
    %373 = vector.load %arg14[%c0_354, %c4_355, %c2_356, %c0_357, %c0_358] : memref<1x6x3x64x64xbf16, #tpu.memory_space<vmem>>, vector<1x1x1x64x64xbf16>
    %374 = vector.shape_cast %373 : vector<1x1x1x64x64xbf16> to vector<64x64xbf16>
    %c0_359 = arith.constant 0 : index
    %c4_360 = arith.constant 4 : index
    %c0_361 = arith.constant 0 : index
    %c0_362 = arith.constant 0 : index
    %375 = vector.load %arg15[%c0_359, %c4_360, %c0_361, %c0_362] : memref<1x6x1x64xf32, #tpu.memory_space<vmem>>, vector<1x1x1x64xf32>
    %376 = vector.shape_cast %375 : vector<1x1x1x64xf32> to vector<1x64xf32>
    %c0_363 = arith.constant 0 : index
    %c4_364 = arith.constant 4 : index
    %c0_365 = arith.constant 0 : index
    %c0_366 = arith.constant 0 : index
    %377 = vector.load %arg16[%c0_363, %c4_364, %c0_365, %c0_366] : memref<1x6x64x256xbf16, #tpu.memory_space<vmem>>, vector<1x1x64x256xbf16>
    %378 = vector.shape_cast %377 : vector<1x1x64x256xbf16> to vector<64x256xbf16>
    %c0_367 = arith.constant 0 : index
    %c4_368 = arith.constant 4 : index
    %c0_369 = arith.constant 0 : index
    %c0_370 = arith.constant 0 : index
    %379 = vector.load %arg17[%c0_367, %c4_368, %c0_369, %c0_370] : memref<1x6x1x256xf32, #tpu.memory_space<vmem>>, vector<1x1x1x256xf32>
    %380 = vector.shape_cast %379 : vector<1x1x1x256xf32> to vector<1x256xf32>
    %cst_371 = arith.constant dense<0.000000e+00> : vector<32x64xf32>
    %381 = tpu.matmul %364, %366, %cst_371 {dimension_numbers = #tpu.dot_dimension_numbers<[1], [0], [0], [1], [0, 0, 1, 1], [], []>} : vector<32x256xbf16>, vector<256x64xbf16>, vector<32x64xf32> -> vector<32x64xf32>
    %382 = vector.broadcast %368 : vector<1x64xf32> to vector<32x64xf32>
    %383 = arith.addf %381, %382 : vector<32x64xf32>
    %cst_372 = arith.constant 0.000000e+00 : f32
    %384 = vector.broadcast %cst_372 : f32 to vector<32x64xf32>
    %385 = arith.maximumf %383, %384 : vector<32x64xf32>
    %c1_i32_373 = arith.constant 1 : i32
    %386 = tpu.dynamic_rotate %385 by %c1_i32_373 dim 0 : vector<32x64xf32>, i32 -> vector<32x64xf32>
    %387 = arith.mulf %386, %39 : vector<32x64xf32>
    %c31_i32_374 = arith.constant 31 : i32
    %388 = tpu.dynamic_rotate %385 by %c31_i32_374 dim 0 : vector<32x64xf32>, i32 -> vector<32x64xf32>
    %389 = arith.mulf %388, %45 : vector<32x64xf32>
    %390 = arith.truncf %385 : vector<32x64xf32> to vector<32x64xbf16>
    %cst_375 = arith.constant dense<0.000000e+00> : vector<32x64xf32>
    %391 = tpu.matmul %390, %372, %cst_375 {dimension_numbers = #tpu.dot_dimension_numbers<[1], [0], [0], [1], [0, 0, 1, 1], [], []>} : vector<32x64xbf16>, vector<64x64xbf16>, vector<32x64xf32> -> vector<32x64xf32>
    %392 = arith.truncf %387 : vector<32x64xf32> to vector<32x64xbf16>
    %cst_376 = arith.constant dense<0.000000e+00> : vector<32x64xf32>
    %393 = tpu.matmul %392, %370, %cst_376 {dimension_numbers = #tpu.dot_dimension_numbers<[1], [0], [0], [1], [0, 0, 1, 1], [], []>} : vector<32x64xbf16>, vector<64x64xbf16>, vector<32x64xf32> -> vector<32x64xf32>
    %394 = arith.addf %391, %393 : vector<32x64xf32>
    %395 = arith.truncf %389 : vector<32x64xf32> to vector<32x64xbf16>
    %cst_377 = arith.constant dense<0.000000e+00> : vector<32x64xf32>
    %396 = tpu.matmul %395, %374, %cst_377 {dimension_numbers = #tpu.dot_dimension_numbers<[1], [0], [0], [1], [0, 0, 1, 1], [], []>} : vector<32x64xbf16>, vector<64x64xbf16>, vector<32x64xf32> -> vector<32x64xf32>
    %397 = arith.addf %394, %396 : vector<32x64xf32>
    %398 = vector.broadcast %376 : vector<1x64xf32> to vector<32x64xf32>
    %399 = arith.addf %397, %398 : vector<32x64xf32>
    %cst_378 = arith.constant 0.000000e+00 : f32
    %400 = vector.broadcast %cst_378 : f32 to vector<32x64xf32>
    %401 = arith.maximumf %399, %400 : vector<32x64xf32>
    %402 = arith.truncf %401 : vector<32x64xf32> to vector<32x64xbf16>
    %cst_379 = arith.constant dense<0.000000e+00> : vector<32x256xf32>
    %403 = tpu.matmul %402, %378, %cst_379 {dimension_numbers = #tpu.dot_dimension_numbers<[1], [0], [0], [1], [0, 0, 1, 1], [], []>} : vector<32x64xbf16>, vector<64x256xbf16>, vector<32x256xf32> -> vector<32x256xf32>
    %404 = vector.broadcast %380 : vector<1x256xf32> to vector<32x256xf32>
    %405 = arith.addf %403, %404 : vector<32x256xf32>
    %406 = arith.addf %405, %363 : vector<32x256xf32>
    %cst_380 = arith.constant 0.000000e+00 : f32
    %407 = vector.broadcast %cst_380 : f32 to vector<32x256xf32>
    %408 = arith.maximumf %406, %407 : vector<32x256xf32>
    %409 = arith.truncf %408 : vector<32x256xf32> to vector<32x256xbf16>
    %c0_381 = arith.constant 0 : index
    %c5 = arith.constant 5 : index
    %c0_382 = arith.constant 0 : index
    %c0_383 = arith.constant 0 : index
    %410 = vector.load %arg12[%c0_381, %c5, %c0_382, %c0_383] : memref<1x6x256x64xbf16, #tpu.memory_space<vmem>>, vector<1x1x256x64xbf16>
    %411 = vector.shape_cast %410 : vector<1x1x256x64xbf16> to vector<256x64xbf16>
    %c0_384 = arith.constant 0 : index
    %c5_385 = arith.constant 5 : index
    %c0_386 = arith.constant 0 : index
    %c0_387 = arith.constant 0 : index
    %412 = vector.load %arg13[%c0_384, %c5_385, %c0_386, %c0_387] : memref<1x6x1x64xf32, #tpu.memory_space<vmem>>, vector<1x1x1x64xf32>
    %413 = vector.shape_cast %412 : vector<1x1x1x64xf32> to vector<1x64xf32>
    %c0_388 = arith.constant 0 : index
    %c5_389 = arith.constant 5 : index
    %c0_390 = arith.constant 0 : index
    %c0_391 = arith.constant 0 : index
    %c0_392 = arith.constant 0 : index
    %414 = vector.load %arg14[%c0_388, %c5_389, %c0_390, %c0_391, %c0_392] : memref<1x6x3x64x64xbf16, #tpu.memory_space<vmem>>, vector<1x1x1x64x64xbf16>
    %415 = vector.shape_cast %414 : vector<1x1x1x64x64xbf16> to vector<64x64xbf16>
    %c0_393 = arith.constant 0 : index
    %c5_394 = arith.constant 5 : index
    %c1_395 = arith.constant 1 : index
    %c0_396 = arith.constant 0 : index
    %c0_397 = arith.constant 0 : index
    %416 = vector.load %arg14[%c0_393, %c5_394, %c1_395, %c0_396, %c0_397] : memref<1x6x3x64x64xbf16, #tpu.memory_space<vmem>>, vector<1x1x1x64x64xbf16>
    %417 = vector.shape_cast %416 : vector<1x1x1x64x64xbf16> to vector<64x64xbf16>
    %c0_398 = arith.constant 0 : index
    %c5_399 = arith.constant 5 : index
    %c2_400 = arith.constant 2 : index
    %c0_401 = arith.constant 0 : index
    %c0_402 = arith.constant 0 : index
    %418 = vector.load %arg14[%c0_398, %c5_399, %c2_400, %c0_401, %c0_402] : memref<1x6x3x64x64xbf16, #tpu.memory_space<vmem>>, vector<1x1x1x64x64xbf16>
    %419 = vector.shape_cast %418 : vector<1x1x1x64x64xbf16> to vector<64x64xbf16>
    %c0_403 = arith.constant 0 : index
    %c5_404 = arith.constant 5 : index
    %c0_405 = arith.constant 0 : index
    %c0_406 = arith.constant 0 : index
    %420 = vector.load %arg15[%c0_403, %c5_404, %c0_405, %c0_406] : memref<1x6x1x64xf32, #tpu.memory_space<vmem>>, vector<1x1x1x64xf32>
    %421 = vector.shape_cast %420 : vector<1x1x1x64xf32> to vector<1x64xf32>
    %c0_407 = arith.constant 0 : index
    %c5_408 = arith.constant 5 : index
    %c0_409 = arith.constant 0 : index
    %c0_410 = arith.constant 0 : index
    %422 = vector.load %arg16[%c0_407, %c5_408, %c0_409, %c0_410] : memref<1x6x64x256xbf16, #tpu.memory_space<vmem>>, vector<1x1x64x256xbf16>
    %423 = vector.shape_cast %422 : vector<1x1x64x256xbf16> to vector<64x256xbf16>
    %c0_411 = arith.constant 0 : index
    %c5_412 = arith.constant 5 : index
    %c0_413 = arith.constant 0 : index
    %c0_414 = arith.constant 0 : index
    %424 = vector.load %arg17[%c0_411, %c5_412, %c0_413, %c0_414] : memref<1x6x1x256xf32, #tpu.memory_space<vmem>>, vector<1x1x1x256xf32>
    %425 = vector.shape_cast %424 : vector<1x1x1x256xf32> to vector<1x256xf32>
    %cst_415 = arith.constant dense<0.000000e+00> : vector<32x64xf32>
    %426 = tpu.matmul %409, %411, %cst_415 {dimension_numbers = #tpu.dot_dimension_numbers<[1], [0], [0], [1], [0, 0, 1, 1], [], []>} : vector<32x256xbf16>, vector<256x64xbf16>, vector<32x64xf32> -> vector<32x64xf32>
    %427 = vector.broadcast %413 : vector<1x64xf32> to vector<32x64xf32>
    %428 = arith.addf %426, %427 : vector<32x64xf32>
    %cst_416 = arith.constant 0.000000e+00 : f32
    %429 = vector.broadcast %cst_416 : f32 to vector<32x64xf32>
    %430 = arith.maximumf %428, %429 : vector<32x64xf32>
    %c1_i32_417 = arith.constant 1 : i32
    %431 = tpu.dynamic_rotate %430 by %c1_i32_417 dim 0 : vector<32x64xf32>, i32 -> vector<32x64xf32>
    %432 = arith.mulf %431, %39 : vector<32x64xf32>
    %c31_i32_418 = arith.constant 31 : i32
    %433 = tpu.dynamic_rotate %430 by %c31_i32_418 dim 0 : vector<32x64xf32>, i32 -> vector<32x64xf32>
    %434 = arith.mulf %433, %45 : vector<32x64xf32>
    %435 = arith.truncf %430 : vector<32x64xf32> to vector<32x64xbf16>
    %cst_419 = arith.constant dense<0.000000e+00> : vector<32x64xf32>
    %436 = tpu.matmul %435, %417, %cst_419 {dimension_numbers = #tpu.dot_dimension_numbers<[1], [0], [0], [1], [0, 0, 1, 1], [], []>} : vector<32x64xbf16>, vector<64x64xbf16>, vector<32x64xf32> -> vector<32x64xf32>
    %437 = arith.truncf %432 : vector<32x64xf32> to vector<32x64xbf16>
    %cst_420 = arith.constant dense<0.000000e+00> : vector<32x64xf32>
    %438 = tpu.matmul %437, %415, %cst_420 {dimension_numbers = #tpu.dot_dimension_numbers<[1], [0], [0], [1], [0, 0, 1, 1], [], []>} : vector<32x64xbf16>, vector<64x64xbf16>, vector<32x64xf32> -> vector<32x64xf32>
    %439 = arith.addf %436, %438 : vector<32x64xf32>
    %440 = arith.truncf %434 : vector<32x64xf32> to vector<32x64xbf16>
    %cst_421 = arith.constant dense<0.000000e+00> : vector<32x64xf32>
    %441 = tpu.matmul %440, %419, %cst_421 {dimension_numbers = #tpu.dot_dimension_numbers<[1], [0], [0], [1], [0, 0, 1, 1], [], []>} : vector<32x64xbf16>, vector<64x64xbf16>, vector<32x64xf32> -> vector<32x64xf32>
    %442 = arith.addf %439, %441 : vector<32x64xf32>
    %443 = vector.broadcast %421 : vector<1x64xf32> to vector<32x64xf32>
    %444 = arith.addf %442, %443 : vector<32x64xf32>
    %cst_422 = arith.constant 0.000000e+00 : f32
    %445 = vector.broadcast %cst_422 : f32 to vector<32x64xf32>
    %446 = arith.maximumf %444, %445 : vector<32x64xf32>
    %447 = arith.truncf %446 : vector<32x64xf32> to vector<32x64xbf16>
    %cst_423 = arith.constant dense<0.000000e+00> : vector<32x256xf32>
    %448 = tpu.matmul %447, %423, %cst_423 {dimension_numbers = #tpu.dot_dimension_numbers<[1], [0], [0], [1], [0, 0, 1, 1], [], []>} : vector<32x64xbf16>, vector<64x256xbf16>, vector<32x256xf32> -> vector<32x256xf32>
    %449 = vector.broadcast %425 : vector<1x256xf32> to vector<32x256xf32>
    %450 = arith.addf %448, %449 : vector<32x256xf32>
    %451 = arith.addf %450, %408 : vector<32x256xf32>
    %cst_424 = arith.constant 0.000000e+00 : f32
    %452 = vector.broadcast %cst_424 : f32 to vector<32x256xf32>
    %453 = arith.maximumf %451, %452 : vector<32x256xf32>
    %c0_425 = arith.constant 0 : index
    %c2_426 = arith.constant 2 : index
    %c0_427 = arith.constant 0 : index
    %c0_428 = arith.constant 0 : index
    %454 = vector.load %arg19[%c0_425, %c2_426, %c0_427, %c0_428] : memref<1x3x32x256xf32, #tpu.memory_space<vmem>>, vector<1x1x32x256xf32>
    %455 = vector.shape_cast %454 : vector<1x1x32x256xf32> to vector<32x256xf32>
    %456 = vector.shape_cast %453 : vector<32x256xf32> to vector<1x1x32x256xf32>
    tpu.vector_store %arg19[%c0_425, %c2_426, %c0_427, %c0_428], %456 {strides = array<i32>} : memref<1x3x32x256xf32, #tpu.memory_space<vmem>>, vector<1x1x32x256xf32>,
    return
  }
  func.func @transform_0(%arg0: i32) -> (i32, i32) {
    %c0_i32 = arith.constant 0 : i32
    %c0_i32_0 = arith.constant 0 : i32
    %c0_i32_1 = arith.constant 0 : i32
    return %c0_i32, %c0_i32_0 : i32, i32
  }
  func.func @transform_1(%arg0: i32) -> (i32, i32) {
    %c0_i32 = arith.constant 0 : i32
    %c0_i32_0 = arith.constant 0 : i32
    %c0_i32_1 = arith.constant 0 : i32
    return %c0_i32, %c0_i32_0 : i32, i32
  }
  func.func @transform_2(%arg0: i32) -> (i32, i32) {
    %c0_i32 = arith.constant 0 : i32
    %c0_i32_0 = arith.constant 0 : i32
    %c0_i32_1 = arith.constant 0 : i32
    return %c0_i32, %c0_i32_0 : i32, i32
  }
  func.func @transform_3(%arg0: i32) -> (i32, i32) {
    %c0_i32 = arith.constant 0 : i32
    %c0_i32_0 = arith.constant 0 : i32
    %c0_i32_1 = arith.constant 0 : i32
    return %c0_i32, %c0_i32_0 : i32, i32
  }
  func.func @transform_4(%arg0: i32) -> (i32, i32) {
    %c0_i32 = arith.constant 0 : i32
    %c0_i32_0 = arith.constant 0 : i32
    %c0_i32_1 = arith.constant 0 : i32
    return %c0_i32, %c0_i32_0 : i32, i32
  }
  func.func @transform_5(%arg0: i32) -> (i32, i32, i32, i32) {
    %c0_i32 = arith.constant 0 : i32
    %c0_i32_0 = arith.constant 0 : i32
    %c0_i32_1 = arith.constant 0 : i32
    %c0_i32_2 = arith.constant 0 : i32
    return %arg0, %c0_i32, %c0_i32_0, %c0_i32_1 : i32, i32, i32, i32
  }
  func.func @transform_6(%arg0: i32) -> (i32, i32, i32, i32) {
    %c0_i32 = arith.constant 0 : i32
    %c0_i32_0 = arith.constant 0 : i32
    %c0_i32_1 = arith.constant 0 : i32
    %c0_i32_2 = arith.constant 0 : i32
    return %arg0, %c0_i32, %c0_i32_0, %c0_i32_1 : i32, i32, i32, i32
  }
  func.func @transform_7(%arg0: i32) -> (i32, i32, i32, i32, i32) {
    %c0_i32 = arith.constant 0 : i32
    %c0_i32_0 = arith.constant 0 : i32
    %c0_i32_1 = arith.constant 0 : i32
    %c0_i32_2 = arith.constant 0 : i32
    %c0_i32_3 = arith.constant 0 : i32
    return %arg0, %c0_i32, %c0_i32_0, %c0_i32_1, %c0_i32_2 : i32, i32, i32, i32, i32
  }
  func.func @transform_8(%arg0: i32) -> (i32, i32, i32, i32) {
    %c0_i32 = arith.constant 0 : i32
    %c0_i32_0 = arith.constant 0 : i32
    %c0_i32_1 = arith.constant 0 : i32
    %c0_i32_2 = arith.constant 0 : i32
    return %arg0, %c0_i32, %c0_i32_0, %c0_i32_1 : i32, i32, i32, i32
  }
  func.func @transform_9(%arg0: i32) -> (i32, i32, i32, i32) {
    %c0_i32 = arith.constant 0 : i32
    %c0_i32_0 = arith.constant 0 : i32
    %c0_i32_1 = arith.constant 0 : i32
    %c0_i32_2 = arith.constant 0 : i32
    return %arg0, %c0_i32, %c0_i32_0, %c0_i32_1 : i32, i32, i32, i32
  }
  func.func @transform_10(%arg0: i32) -> (i32, i32, i32, i32) {
    %c0_i32 = arith.constant 0 : i32
    %c0_i32_0 = arith.constant 0 : i32
    %c0_i32_1 = arith.constant 0 : i32
    %c0_i32_2 = arith.constant 0 : i32
    return %arg0, %c0_i32, %c0_i32_0, %c0_i32_1 : i32, i32, i32, i32
  }
  func.func @transform_11(%arg0: i32) -> (i32, i32, i32, i32) {
    %c0_i32 = arith.constant 0 : i32
    %c0_i32_0 = arith.constant 0 : i32
    %c0_i32_1 = arith.constant 0 : i32
    %c0_i32_2 = arith.constant 0 : i32
    return %arg0, %c0_i32, %c0_i32_0, %c0_i32_1 : i32, i32, i32, i32
  }
  func.func @transform_12(%arg0: i32) -> (i32, i32, i32, i32) {
    %c0_i32 = arith.constant 0 : i32
    %c0_i32_0 = arith.constant 0 : i32
    %c0_i32_1 = arith.constant 0 : i32
    %c0_i32_2 = arith.constant 0 : i32
    return %arg0, %c0_i32, %c0_i32_0, %c0_i32_1 : i32, i32, i32, i32
  }
  func.func @transform_13(%arg0: i32) -> (i32, i32, i32, i32, i32) {
    %c0_i32 = arith.constant 0 : i32
    %c0_i32_0 = arith.constant 0 : i32
    %c0_i32_1 = arith.constant 0 : i32
    %c0_i32_2 = arith.constant 0 : i32
    %c0_i32_3 = arith.constant 0 : i32
    return %arg0, %c0_i32, %c0_i32_0, %c0_i32_1, %c0_i32_2 : i32, i32, i32, i32, i32
  }
  func.func @transform_14(%arg0: i32) -> (i32, i32, i32, i32) {
    %c0_i32 = arith.constant 0 : i32
    %c0_i32_0 = arith.constant 0 : i32
    %c0_i32_1 = arith.constant 0 : i32
    %c0_i32_2 = arith.constant 0 : i32
    return %arg0, %c0_i32, %c0_i32_0, %c0_i32_1 : i32, i32, i32, i32
  }
  func.func @transform_15(%arg0: i32) -> (i32, i32, i32, i32) {
    %c0_i32 = arith.constant 0 : i32
    %c0_i32_0 = arith.constant 0 : i32
    %c0_i32_1 = arith.constant 0 : i32
    %c0_i32_2 = arith.constant 0 : i32
    return %arg0, %c0_i32, %c0_i32_0, %c0_i32_1 : i32, i32, i32, i32
  }
  func.func @transform_16(%arg0: i32) -> (i32, i32, i32, i32) {
    %c0_i32 = arith.constant 0 : i32
    %c0_i32_0 = arith.constant 0 : i32
    %c0_i32_1 = arith.constant 0 : i32
    %c0_i32_2 = arith.constant 0 : i32
    return %arg0, %c0_i32, %c0_i32_0, %c0_i32_1 : i32, i32, i32, i32
  }
  func.func @transform_17(%arg0: i32) -> (i32, i32, i32) {
    %c0_i32 = arith.constant 0 : i32
    %c0_i32_0 = arith.constant 0 : i32
    %c0_i32_1 = arith.constant 0 : i32
    return %arg0, %c0_i32, %c0_i32_0 : i32, i32, i32
  }
  func.func @transform_18(%arg0: i32) -> (i32, i32, i32, i32) {
    %c0_i32 = arith.constant 0 : i32
    %c0_i32_0 = arith.constant 0 : i32
    %c0_i32_1 = arith.constant 0 : i32
    %c0_i32_2 = arith.constant 0 : i32
    return %arg0, %c0_i32, %c0_i32_0, %c0_i32_1 : i32, i32, i32, i32
  }
}

</mosaic_0001>

<llo_original>
// kernel: resnet_text_50_forward.1
$region0: #{resnet_text_50_forward.1}
  #allocation0 [shape = 'u32[]', space=smem, size = 0x4, offset = 0x4, fixed_abs, tag = 'smem constant byte address 0x4 - core index']
  #allocation1 [shape = 'u32[144,128]{1,0:T(1,128)}', space=vmem, size = 0x12000, scoped, tag = 'internal scratch']
  %s0 = inlined_call_operand.vmem [shape: bf16[32,128], index: 0, kind: input, shape index: {}]
  %s1 = inlined_call_operand.vmem [shape: bf16[128,128], index: 1, kind: input, shape index: {}]
  %s2 = inlined_call_operand.vmem [shape: f32[1,128], index: 2, kind: input, shape index: {}]
  %s3 = inlined_call_operand.hbm [shape: bf16[128,256], index: 3, kind: input, shape index: {}]
  %s4 = inlined_call_operand.vmem [shape: f32[1,256], index: 4, kind: input, shape index: {}]
  %s5 = inlined_call_operand.vmem [shape: bf16[2,3,128,64], index: 5, kind: input, shape index: {}]
  %s6 = inlined_call_operand.vmem [shape: f32[2,3,1,64], index: 6, kind: input, shape index: {}]
  %s7 = inlined_call_operand.vmem [shape: bf16[2,3,3,64,64], index: 7, kind: input, shape index: {}]
  %s8 = inlined_call_operand.hbm [shape: f32[2,3,1,64], index: 8, kind: input, shape index: {}]
  %s9 = inlined_call_operand.vmem [shape: bf16[2,3,64,256], index: 9, kind: input, shape index: {}]
  %s10 = inlined_call_operand.vmem [shape: f32[2,3,1,256], index: 10, kind: input, shape index: {}]
  %s11 = inlined_call_operand.vmem [shape: bf16[2,6,256,64], index: 11, kind: input, shape index: {}]
  %s12 = inlined_call_operand.hbm [shape: f32[2,6,1,64], index: 12, kind: input, shape index: {}]
  %s13 = inlined_call_operand.vmem [shape: bf16[2,6,3,64,64], index: 13, kind: input, shape index: {}]
  %s14 = inlined_call_operand.hbm [shape: f32[2,6,1,64], index: 14, kind: input, shape index: {}]
  %s15 = inlined_call_operand.vmem [shape: bf16[2,6,64,256], index: 15, kind: input, shape index: {}]
  %s16 = inlined_call_operand.vmem [shape: f32[2,6,1,256], index: 16, kind: input, shape index: {}]
  %s17 = inlined_call_operand.vmem [shape: f32[2,32,128], index: 17, kind: output, shape index: {0}]
  %s18 = inlined_call_operand.vmem [shape: f32[2,3,32,256], index: 18, kind: output, shape index: {1}]
  %19 = xla_tuple %s17, %s18
  %s20 = sld [smem:[#allocation0]]
  $region125: #{resnet_text_50_forward.1} parent=0
    _
  %s22 = ssub.s32 1, %s20
  %s23 = scalar_select 0, %s22, %s20
  $region1: #{resnet_text_50_forward.1} parent=0
    #allocation2 [shape = 'u8[65536]{0}', space=vmem, size = 0x10000, scoped, tag = 'input window, operand 3, single buffered']
    #allocation3 [shape = 's32[2]{0}', space=sflag, size = 0x8, scoped, tag = 'scoped memory for resnet_text_50_forward.1']
    #allocation4 [shape = 'u8[3072]{0}', space=vmem, size = 0xc00, scoped, tag = 'input window, operand 8']
    #allocation5 [shape = 's32[2]{0}', space=sflag, size = 0x8, scoped, tag = 'scoped memory for resnet_text_50_forward.1']
    #allocation6 [shape = 'u8[6144]{0}', space=vmem, size = 0x1800, scoped, tag = 'input window, operand 12']
    #allocation7 [shape = 'u8[6144]{0}', space=vmem, size = 0x1800, scoped, tag = 'input window, operand 14']
    #allocation8 [shape = 's32[2]{0}', space=sflag, size = 0x8, scoped, tag = 'scoped memory for resnet_text_50_forward.1']
    %24 = vsyncpa [#allocation3], 0
    %25 = vsyncpa [#allocation5], 0
    %s26 = scalar_lea.sflag [#allocation5], 1
    %27 = vsyncpa %s26, 0
    %28 = vsyncpa [#allocation8], 0
    %s29 = scalar_lea.sflag [#allocation8], 1
    %30 = vsyncpa %s29, 0
    loop: start=0, step=1, limit=4
    $region2: #{resnet_text_50_forward.1} parent=1 // loop_pre_header
      _
    $region3: #{resnet_text_50_forward.1} parent=1 // loop_header
      %s32 = sphi 0, %s36
      %p33 = scmp.ge.s32.totalorder %s32, 4
      %s40 = sphi 0, %s40
      %s42 = sphi 0, %s40
      %s43 = sphi 0, %s42
      %s57 = sphi 0, %s43
      %s61 = sphi 0, %s61
      %s63 = sphi 0, %s61
      %s64 = sphi 0, %s63
      %s78 = sphi 0, %s64
      %s82 = sphi 0, %s82
      %s84 = sphi 0, %s82
      %s85 = sphi 0, %s84
      %s99 = sphi 0, %s85
      %s103 = sphi 0, %s103
      %s105 = sphi 0, %s103
      %s106 = sphi 0, %s105
      %s120 = sphi 0, %s106
      %s124 = sphi 0, %s124
      %s126 = sphi 0, %s124
      %s127 = sphi 0, %s126
      %s141 = sphi 0, %s127
      %s147 = sphi 0, %s149
      %s150 = sphi 0, %s147
      %s151 = sphi 0, %s150
      %s167 = sphi 0, %s151
      %s173 = sphi 0, %s175
      %s176 = sphi 0, %s173
      %s177 = sphi 0, %s176
      %s193 = sphi 0, %s177
      %s199 = sphi 0, %s201
      %s202 = sphi 0, %s199
      %s203 = sphi 0, %s202
      %s219 = sphi 0, %s203
      %s225 = sphi 0, %s227
      %s228 = sphi 0, %s225
      %s229 = sphi 0, %s228
      %s245 = sphi 0, %s229
      %s251 = sphi 0, %s253
      %s254 = sphi 0, %s251
      %s255 = sphi 0, %s254
      %s271 = sphi 0, %s255
      %s277 = sphi 0, %s279
      %s280 = sphi 0, %s277
      %s281 = sphi 0, %s280
      %s297 = sphi 0, %s281
      %s303 = sphi 0, %s305
      %s306 = sphi 0, %s303
      %s307 = sphi 0, %s306
      %s323 = sphi 0, %s307
      %s329 = sphi 0, %s331
      %s332 = sphi 0, %s329
      %s333 = sphi 0, %s332
      %s349 = sphi 0, %s333
      %s355 = sphi 0, %s357
      %s358 = sphi 0, %s355
      %s359 = sphi 0, %s358
      %s375 = sphi 0, %s359
      %s381 = sphi 0, %s383
      %s384 = sphi 0, %s381
      %s385 = sphi 0, %s384
      %s401 = sphi 0, %s385
      %s407 = sphi 0, %s409
      %s410 = sphi 0, %s407
      %s411 = sphi 0, %s410
      %s427 = sphi 0, %s411
      %s433 = sphi 0, %s435
      %s436 = sphi 0, %s433
      %s437 = sphi 0, %s436
      %s453 = sphi 0, %s437
      %s459 = sphi 0, %s461
      %s462 = sphi 0, %s459
      %s463 = sphi 0, %s462
      %s479 = sphi 0, %s463
      %s485 = sphi 0, %s487
      %s488 = sphi 0, %s485
      %s489 = sphi 0, %s488
      %s505 = sphi 0, %s489
    $region4: #{resnet_text_50_forward.1} parent=1 // loop_header_branch
      %35 = sbr.rel (%p33) target = $region8
    $region5: #{resnet_text_50_forward.1} parent=1 // loop_body
      %s37 = ssub.s32 %s32, 1
      %s38 = ssub.s32 %s32, 2
      %s39 = sadd.s32 %s32, 1
      %s41 = sadd.s32 %s40, 1
      %p44 = scmp.eq.s32.totalorder %s32, 1
      %p45 = scmp.ne.s32.totalorder %s40, %s42
      %p46 = scmp.eq.s32.totalorder %s32, 0
      %p47 = por %p45, %p46
      %p48 = scmp.ne.s32.totalorder %s40, %s42
      %p49 = scmp.eq.s32.totalorder %s37, 1
      %p50 = por %p48, %p49
      %p51 = scmp.ne.s32.totalorder %s42, %s43
      %p52 = scmp.eq.s32.totalorder %s37, 0
      %p53 = por %p51, %p52
      %p54 = scmp.ne.s32.totalorder %s42, %s43
      %p55 = scmp.eq.s32.totalorder %s38, 1
      %p56 = por %p54, %p55
      %p58 = scmp.ne.s32.totalorder %s43, %s57
      %p59 = scmp.eq.s32.totalorder %s38, 0
      %p60 = por %p58, %p59
      %s62 = sadd.s32 %s61, 1
      %p65 = scmp.eq.s32.totalorder %s32, 1
      %p66 = scmp.ne.s32.totalorder %s61, %s63
      %p67 = scmp.eq.s32.totalorder %s32, 0
      %p68 = por %p66, %p67
      %p69 = scmp.ne.s32.totalorder %s61, %s63
      %p70 = scmp.eq.s32.totalorder %s37, 1
      %p71 = por %p69, %p70
      %p72 = scmp.ne.s32.totalorder %s63, %s64
      %p73 = scmp.eq.s32.totalorder %s37, 0
      %p74 = por %p72, %p73
      %p75 = scmp.ne.s32.totalorder %s63, %s64
      %p76 = scmp.eq.s32.totalorder %s38, 1
      %p77 = por %p75, %p76
      %p79 = scmp.ne.s32.totalorder %s64, %s78
      %p80 = scmp.eq.s32.totalorder %s38, 0
      %p81 = por %p79, %p80
      %s83 = sadd.s32 %s82, 1
      %p86 = scmp.eq.s32.totalorder %s32, 1
      %p87 = scmp.ne.s32.totalorder %s82, %s84
      %p88 = scmp.eq.s32.totalorder %s32, 0
      %p89 = por %p87, %p88
      %p90 = scmp.ne.s32.totalorder %s82, %s84
      %p91 = scmp.eq.s32.totalorder %s37, 1
      %p92 = por %p90, %p91
      %p93 = scmp.ne.s32.totalorder %s84, %s85
      %p94 = scmp.eq.s32.totalorder %s37, 0
      %p95 = por %p93, %p94
      %p96 = scmp.ne.s32.totalorder %s84, %s85
      %p97 = scmp.eq.s32.totalorder %s38, 1
      %p98 = por %p96, %p97
      %p100 = scmp.ne.s32.totalorder %s85, %s99
      %p101 = scmp.eq.s32.totalorder %s38, 0
      %p102 = por %p100, %p101
      %s104 = sadd.s32 %s103, 1
      %p107 = scmp.eq.s32.totalorder %s32, 1
      %p108 = scmp.ne.s32.totalorder %s103, %s105
      %p109 = scmp.eq.s32.totalorder %s32, 0
      %p110 = por %p108, %p109
      %p111 = scmp.ne.s32.totalorder %s103, %s105
      %p112 = scmp.eq.s32.totalorder %s37, 1
      %p113 = por %p111, %p112
      %p114 = scmp.ne.s32.totalorder %s105, %s106
      %p115 = scmp.eq.s32.totalorder %s37, 0
      %p116 = por %p114, %p115
      %p117 = scmp.ne.s32.totalorder %s105, %s106
      %p118 = scmp.eq.s32.totalorder %s38, 1
      %p119 = por %p117, %p118
      %p121 = scmp.ne.s32.totalorder %s106, %s120
      %p122 = scmp.eq.s32.totalorder %s38, 0
      %p123 = por %p121, %p122
      %s125 = sadd.s32 %s124, 1
      %p128 = scmp.eq.s32.totalorder %s32, 1
      %p129 = scmp.ne.s32.totalorder %s124, %s126
      %p130 = scmp.eq.s32.totalorder %s32, 0
      %p131 = por %p129, %p130
      %p132 = scmp.ne.s32.totalorder %s124, %s126
      %p133 = scmp.eq.s32.totalorder %s37, 1
      %p134 = por %p132, %p133
      %p135 = scmp.ne.s32.totalorder %s126, %s127
      %p136 = scmp.eq.s32.totalorder %s37, 0
      %p137 = por %p135, %p136
      %p138 = scmp.ne.s32.totalorder %s126, %s127
      %p139 = scmp.eq.s32.totalorder %s38, 1
      %p140 = por %p138, %p139
      %p142 = scmp.ne.s32.totalorder %s127, %s141
      %p143 = scmp.eq.s32.totalorder %s38, 0
      %p144 = por %p142, %p143
      %s145 = ssub.s32 %s32, %s39
      %p146 = scmp.eq.s32.totalorder %s145, 0
      %s148 = sadd.s32 %s147, 1
      %s149 = scalar_select %p146, %s147, %s148
      %p152 = pneg %p146
      %p153 = scmp.eq.s32.totalorder %s32, 1
      %p154 = por %p152, %p153
      %p155 = scmp.ne.s32.totalorder %s147, %s150
      %p156 = scmp.eq.s32.totalorder %s32, 0
      %p157 = por %p155, %p156
      %p158 = scmp.ne.s32.totalorder %s147, %s150
      %p159 = scmp.eq.s32.totalorder %s37, 1
      %p160 = por %p158, %p159
      %p161 = scmp.ne.s32.totalorder %s150, %s151
      %p162 = scmp.eq.s32.totalorder %s37, 0
      %p163 = por %p161, %p162
      %p164 = scmp.ne.s32.totalorder %s150, %s151
      %p165 = scmp.eq.s32.totalorder %s38, 1
      %p166 = por %p164, %p165
      %p168 = scmp.ne.s32.totalorder %s151, %s167
      %p169 = scmp.eq.s32.totalorder %s38, 0
      %p170 = por %p168, %p169
      %s171 = ssub.s32 %s32, %s39
      %p172 = scmp.eq.s32.totalorder %s171, 0
      %s174 = sadd.s32 %s173, 1
      %s175 = scalar_select %p172, %s173, %s174
      %p178 = pneg %p172
      %p179 = scmp.eq.s32.totalorder %s32, 1
      %p180 = por %p178, %p179
      %p181 = scmp.ne.s32.totalorder %s173, %s176
      %p182 = scmp.eq.s32.totalorder %s32, 0
      %p183 = por %p181, %p182
      %p184 = scmp.ne.s32.totalorder %s173, %s176
      %p185 = scmp.eq.s32.totalorder %s37, 1
      %p186 = por %p184, %p185
      %p187 = scmp.ne.s32.totalorder %s176, %s177
      %p188 = scmp.eq.s32.totalorder %s37, 0
      %p189 = por %p187, %p188
      %p190 = scmp.ne.s32.totalorder %s176, %s177
      %p191 = scmp.eq.s32.totalorder %s38, 1
      %p192 = por %p190, %p191
      %p194 = scmp.ne.s32.totalorder %s177, %s193
      %p195 = scmp.eq.s32.totalorder %s38, 0
      %p196 = por %p194, %p195
      %s197 = ssub.s32 %s32, %s39
      %p198 = scmp.eq.s32.totalorder %s197, 0
      %s200 = sadd.s32 %s199, 1
      %s201 = scalar_select %p198, %s199, %s200
      %p204 = pneg %p198
      %p205 = scmp.eq.s32.totalorder %s32, 1
      %p206 = por %p204, %p205
      %p207 = scmp.ne.s32.totalorder %s199, %s202
      %p208 = scmp.eq.s32.totalorder %s32, 0
      %p209 = por %p207, %p208
      %p210 = scmp.ne.s32.totalorder %s199, %s202
      %p211 = scmp.eq.s32.totalorder %s37, 1
      %p212 = por %p210, %p211
      %p213 = scmp.ne.s32.totalorder %s202, %s203
      %p214 = scmp.eq.s32.totalorder %s37, 0
      %p215 = por %p213, %p214
      %p216 = scmp.ne.s32.totalorder %s202, %s203
      %p217 = scmp.eq.s32.totalorder %s38, 1
      %p218 = por %p216, %p217
      %p220 = scmp.ne.s32.totalorder %s203, %s219
      %p221 = scmp.eq.s32.totalorder %s38, 0
      %p222 = por %p220, %p221
      %s223 = ssub.s32 %s32, %s39
      %p224 = scmp.eq.s32.totalorder %s223, 0
      %s226 = sadd.s32 %s225, 1
      %s227 = scalar_select %p224, %s225, %s226
      %p230 = pneg %p224
      %p231 = scmp.eq.s32.totalorder %s32, 1
      %p232 = por %p230, %p231
      %p233 = scmp.ne.s32.totalorder %s225, %s228
      %p234 = scmp.eq.s32.totalorder %s32, 0
      %p235 = por %p233, %p234
      %p236 = scmp.ne.s32.totalorder %s225, %s228
      %p237 = scmp.eq.s32.totalorder %s37, 1
      %p238 = por %p236, %p237
      %p239 = scmp.ne.s32.totalorder %s228, %s229
      %p240 = scmp.eq.s32.totalorder %s37, 0
      %p241 = por %p239, %p240
      %p242 = scmp.ne.s32.totalorder %s228, %s229
      %p243 = scmp.eq.s32.totalorder %s38, 1
      %p244 = por %p242, %p243
      %p246 = scmp.ne.s32.totalorder %s229, %s245
      %p247 = scmp.eq.s32.totalorder %s38, 0
      %p248 = por %p246, %p247
      %s249 = ssub.s32 %s32, %s39
      %p250 = scmp.eq.s32.totalorder %s249, 0
      %s252 = sadd.s32 %s251, 1
      %s253 = scalar_select %p250, %s251, %s252
      %p256 = pneg %p250
      %p257 = scmp.eq.s32.totalorder %s32, 1
      %p258 = por %p256, %p257
      %p259 = scmp.ne.s32.totalorder %s251, %s254
      %p260 = scmp.eq.s32.totalorder %s32, 0
      %p261 = por %p259, %p260
      %p262 = scmp.ne.s32.totalorder %s251, %s254
      %p263 = scmp.eq.s32.totalorder %s37, 1
      %p264 = por %p262, %p263
      %p265 = scmp.ne.s32.totalorder %s254, %s255
      %p266 = scmp.eq.s32.totalorder %s37, 0
      %p267 = por %p265, %p266
      %p268 = scmp.ne.s32.totalorder %s254, %s255
      %p269 = scmp.eq.s32.totalorder %s38, 1
      %p270 = por %p268, %p269
      %p272 = scmp.ne.s32.totalorder %s255, %s271
      %p273 = scmp.eq.s32.totalorder %s38, 0
      %p274 = por %p272, %p273
      %s275 = ssub.s32 %s32, %s39
      %p276 = scmp.eq.s32.totalorder %s275, 0
      %s278 = sadd.s32 %s277, 1
      %s279 = scalar_select %p276, %s277, %s278
      %p282 = pneg %p276
      %p283 = scmp.eq.s32.totalorder %s32, 1
      %p284 = por %p282, %p283
      %p285 = scmp.ne.s32.totalorder %s277, %s280
      %p286 = scmp.eq.s32.totalorder %s32, 0
      %p287 = por %p285, %p286
      %p288 = scmp.ne.s32.totalorder %s277, %s280
      %p289 = scmp.eq.s32.totalorder %s37, 1
      %p290 = por %p288, %p289
      %p291 = scmp.ne.s32.totalorder %s280, %s281
      %p292 = scmp.eq.s32.totalorder %s37, 0
      %p293 = por %p291, %p292
      %p294 = scmp.ne.s32.totalorder %s280, %s281
      %p295 = scmp.eq.s32.totalorder %s38, 1
      %p296 = por %p294, %p295
      %p298 = scmp.ne.s32.totalorder %s281, %s297
      %p299 = scmp.eq.s32.totalorder %s38, 0
      %p300 = por %p298, %p299
      %s301 = ssub.s32 %s32, %s39
      %p302 = scmp.eq.s32.totalorder %s301, 0
      %s304 = sadd.s32 %s303, 1
      %s305 = scalar_select %p302, %s303, %s304
      %p308 = pneg %p302
      %p309 = scmp.eq.s32.totalorder %s32, 1
      %p310 = por %p308, %p309
      %p311 = scmp.ne.s32.totalorder %s303, %s306
      %p312 = scmp.eq.s32.totalorder %s32, 0
      %p313 = por %p311, %p312
      %p314 = scmp.ne.s32.totalorder %s303, %s306
      %p315 = scmp.eq.s32.totalorder %s37, 1
      %p316 = por %p314, %p315
      %p317 = scmp.ne.s32.totalorder %s306, %s307
      %p318 = scmp.eq.s32.totalorder %s37, 0
      %p319 = por %p317, %p318
      %p320 = scmp.ne.s32.totalorder %s306, %s307
      %p321 = scmp.eq.s32.totalorder %s38, 1
      %p322 = por %p320, %p321
      %p324 = scmp.ne.s32.totalorder %s307, %s323
      %p325 = scmp.eq.s32.totalorder %s38, 0
      %p326 = por %p324, %p325
      %s327 = ssub.s32 %s32, %s39
      %p328 = scmp.eq.s32.totalorder %s327, 0
      %s330 = sadd.s32 %s329, 1
      %s331 = scalar_select %p328, %s329, %s330
      %p334 = pneg %p328
      %p335 = scmp.eq.s32.totalorder %s32, 1
      %p336 = por %p334, %p335
      %p337 = scmp.ne.s32.totalorder %s329, %s332
      %p338 = scmp.eq.s32.totalorder %s32, 0
      %p339 = por %p337, %p338
      %p340 = scmp.ne.s32.totalorder %s329, %s332
      %p341 = scmp.eq.s32.totalorder %s37, 1
      %p342 = por %p340, %p341
      %p343 = scmp.ne.s32.totalorder %s332, %s333
      %p344 = scmp.eq.s32.totalorder %s37, 0
      %p345 = por %p343, %p344
      %p346 = scmp.ne.s32.totalorder %s332, %s333
      %p347 = scmp.eq.s32.totalorder %s38, 1
      %p348 = por %p346, %p347
      %p350 = scmp.ne.s32.totalorder %s333, %s349
      %p351 = scmp.eq.s32.totalorder %s38, 0
      %p352 = por %p350, %p351
      %s353 = ssub.s32 %s32, %s39
      %p354 = scmp.eq.s32.totalorder %s353, 0
      %s356 = sadd.s32 %s355, 1
      %s357 = scalar_select %p354, %s355, %s356
      %p360 = pneg %p354
      %p361 = scmp.eq.s32.totalorder %s32, 1
      %p362 = por %p360, %p361
      %p363 = scmp.ne.s32.totalorder %s355, %s358
      %p364 = scmp.eq.s32.totalorder %s32, 0
      %p365 = por %p363, %p364
      %p366 = scmp.ne.s32.totalorder %s355, %s358
      %p367 = scmp.eq.s32.totalorder %s37, 1
      %p368 = por %p366, %p367
      %p369 = scmp.ne.s32.totalorder %s358, %s359
      %p370 = scmp.eq.s32.totalorder %s37, 0
      %p371 = por %p369, %p370
      %p372 = scmp.ne.s32.totalorder %s358, %s359
      %p373 = scmp.eq.s32.totalorder %s38, 1
      %p374 = por %p372, %p373
      %p376 = scmp.ne.s32.totalorder %s359, %s375
      %p377 = scmp.eq.s32.totalorder %s38, 0
      %p378 = por %p376, %p377
      %s379 = ssub.s32 %s32, %s39
      %p380 = scmp.eq.s32.totalorder %s379, 0
      %s382 = sadd.s32 %s381, 1
      %s383 = scalar_select %p380, %s381, %s382
      %p386 = pneg %p380
      %p387 = scmp.eq.s32.totalorder %s32, 1
      %p388 = por %p386, %p387
      %p389 = scmp.ne.s32.totalorder %s381, %s384
      %p390 = scmp.eq.s32.totalorder %s32, 0
      %p391 = por %p389, %p390
      %p392 = scmp.ne.s32.totalorder %s381, %s384
      %p393 = scmp.eq.s32.totalorder %s37, 1
      %p394 = por %p392, %p393
      %p395 = scmp.ne.s32.totalorder %s384, %s385
      %p396 = scmp.eq.s32.totalorder %s37, 0
      %p397 = por %p395, %p396
      %p398 = scmp.ne.s32.totalorder %s384, %s385
      %p399 = scmp.eq.s32.totalorder %s38, 1
      %p400 = por %p398, %p399
      %p402 = scmp.ne.s32.totalorder %s385, %s401
      %p403 = scmp.eq.s32.totalorder %s38, 0
      %p404 = por %p402, %p403
      %s405 = ssub.s32 %s32, %s39
      %p406 = scmp.eq.s32.totalorder %s405, 0
      %s408 = sadd.s32 %s407, 1
      %s409 = scalar_select %p406, %s407, %s408
      %p412 = pneg %p406
      %p413 = scmp.eq.s32.totalorder %s32, 1
      %p414 = por %p412, %p413
      %p415 = scmp.ne.s32.totalorder %s407, %s410
      %p416 = scmp.eq.s32.totalorder %s32, 0
      %p417 = por %p415, %p416
      %p418 = scmp.ne.s32.totalorder %s407, %s410
      %p419 = scmp.eq.s32.totalorder %s37, 1
      %p420 = por %p418, %p419
      %p421 = scmp.ne.s32.totalorder %s410, %s411
      %p422 = scmp.eq.s32.totalorder %s37, 0
      %p423 = por %p421, %p422
      %p424 = scmp.ne.s32.totalorder %s410, %s411
      %p425 = scmp.eq.s32.totalorder %s38, 1
      %p426 = por %p424, %p425
      %p428 = scmp.ne.s32.totalorder %s411, %s427
      %p429 = scmp.eq.s32.totalorder %s38, 0
      %p430 = por %p428, %p429
      %s431 = ssub.s32 %s32, %s39
      %p432 = scmp.eq.s32.totalorder %s431, 0
      %s434 = sadd.s32 %s433, 1
      %s435 = scalar_select %p432, %s433, %s434
      %p438 = pneg %p432
      %p439 = scmp.eq.s32.totalorder %s32, 1
      %p440 = por %p438, %p439
      %p441 = scmp.ne.s32.totalorder %s433, %s436
      %p442 = scmp.eq.s32.totalorder %s32, 0
      %p443 = por %p441, %p442
      %p444 = scmp.ne.s32.totalorder %s433, %s436
      %p445 = scmp.eq.s32.totalorder %s37, 1
      %p446 = por %p444, %p445
      %p447 = scmp.ne.s32.totalorder %s436, %s437
      %p448 = scmp.eq.s32.totalorder %s37, 0
      %p449 = por %p447, %p448
      %p450 = scmp.ne.s32.totalorder %s436, %s437
      %p451 = scmp.eq.s32.totalorder %s38, 1
      %p452 = por %p450, %p451
      %p454 = scmp.ne.s32.totalorder %s437, %s453
      %p455 = scmp.eq.s32.totalorder %s38, 0
      %p456 = por %p454, %p455
      %s457 = ssub.s32 %s32, %s39
      %p458 = scmp.eq.s32.totalorder %s457, 0
      %s460 = sadd.s32 %s459, 1
      %s461 = scalar_select %p458, %s459, %s460
      %p464 = pneg %p458
      %p465 = scmp.eq.s32.totalorder %s32, 1
      %p466 = por %p464, %p465
      %p467 = scmp.ne.s32.totalorder %s459, %s462
      %p468 = scmp.eq.s32.totalorder %s32, 0
      %p469 = por %p467, %p468
      %p470 = scmp.ne.s32.totalorder %s459, %s462
      %p471 = scmp.eq.s32.totalorder %s37, 1
      %p472 = por %p470, %p471
      %p473 = scmp.ne.s32.totalorder %s462, %s463
      %p474 = scmp.eq.s32.totalorder %s37, 0
      %p475 = por %p473, %p474
      %p476 = scmp.ne.s32.totalorder %s462, %s463
      %p477 = scmp.eq.s32.totalorder %s38, 1
      %p478 = por %p476, %p477
      %p480 = scmp.ne.s32.totalorder %s463, %s479
      %p481 = scmp.eq.s32.totalorder %s38, 0
      %p482 = por %p480, %p481
      %s483 = ssub.s32 %s32, %s39
      %p484 = scmp.eq.s32.totalorder %s483, 0
      %s486 = sadd.s32 %s485, 1
      %s487 = scalar_select %p484, %s485, %s486
      %p490 = pneg %p484
      %p491 = scmp.eq.s32.totalorder %s32, 1
      %p492 = por %p490, %p491
      %p493 = scmp.ne.s32.totalorder %s485, %s488
      %p494 = scmp.eq.s32.totalorder %s32, 0
      %p495 = por %p493, %p494
      %p496 = scmp.ne.s32.totalorder %s485, %s488
      %p497 = scmp.eq.s32.totalorder %s37, 1
      %p498 = por %p496, %p497
      %p499 = scmp.ne.s32.totalorder %s488, %s489
      %p500 = scmp.eq.s32.totalorder %s37, 0
      %p501 = por %p499, %p500
      %p502 = scmp.ne.s32.totalorder %s488, %s489
      %p503 = scmp.eq.s32.totalorder %s38, 1
      %p504 = por %p502, %p503
      %p506 = scmp.ne.s32.totalorder %s489, %s505
      %p507 = scmp.eq.s32.totalorder %s38, 0
      %p508 = por %p506, %p507
      %p509 = scmp.le.s32.totalorder 1, %s32
      %p510 = scmp.lt.s32.totalorder %s32, 3
      %p511 = pnand %p509, %p510
      %p512 = pneg %p511
      // Predicated region
      $region9: #{resnet_text_50_forward.1} parent=5 // pred_check
        _
      $region10: #{resnet_text_50_forward.1} parent=5 // pred_check_branch
        %514 = sbr.rel (%p511) target = $region12
      $region11: #{resnet_text_50_forward.1} parent=5 // pred_region
        %s515 = ssub.s32 %s32, 1
        // Predicated region
        $region13: #{resnet_text_50_forward.1} parent=11 // pred_check
          %p516 = pneg %p53
        $region14: #{resnet_text_50_forward.1} parent=11 // pred_check_branch
          %518 = sbr.rel (%p516) target = $region16
        $region15: #{resnet_text_50_forward.1} parent=11 // pred_region
          _
        $region16: #{resnet_text_50_forward.1} parent=11 // pred_fallthru
          _
        // Predicated region
        $region17: #{resnet_text_50_forward.1} parent=11 // pred_check
          %p519 = pneg %p74
        $region18: #{resnet_text_50_forward.1} parent=11 // pred_check_branch
          %521 = sbr.rel (%p519) target = $region20
        $region19: #{resnet_text_50_forward.1} parent=11 // pred_region
          _
        $region20: #{resnet_text_50_forward.1} parent=11 // pred_fallthru
          _
        // Predicated region
        $region21: #{resnet_text_50_forward.1} parent=11 // pred_check
          %p522 = pneg %p95
        $region22: #{resnet_text_50_forward.1} parent=11 // pred_check_branch
          %524 = sbr.rel (%p522) target = $region24
        $region23: #{resnet_text_50_forward.1} parent=11 // pred_region
          _
        $region24: #{resnet_text_50_forward.1} parent=11 // pred_fallthru
          _
        // Predicated region
        $region25: #{resnet_text_50_forward.1} parent=11 // pred_check
          %p525 = pneg %p116
        $region26: #{resnet_text_50_forward.1} parent=11 // pred_check_branch
          %527 = sbr.rel (%p525) target = $region28
        $region27: #{resnet_text_50_forward.1} parent=11 // pred_region
          %s529 = ssub.s32 2048, 2048
          %530 = vsyncadd [#allocation3], %s529
          %s531 = sshll.u32 [#allocation2], 4
          %s532 = int_to_ptr.vmem [resolvable:$true] %s531
          %537 = dma.hbm_to_vmem [thread:$0]  %s3, 2048, %s532, [#allocation3], 128, 128, 8
        $region28: #{resnet_text_50_forward.1} parent=11 // pred_fallthru
          _
        // Predicated region
        $region29: #{resnet_text_50_forward.1} parent=11 // pred_check
          %p538 = pneg %p137
        $region30: #{resnet_text_50_forward.1} parent=11 // pred_check_branch
          %540 = sbr.rel (%p538) target = $region32
        $region31: #{resnet_text_50_forward.1} parent=11 // pred_region
          _
        $region32: #{resnet_text_50_forward.1} parent=11 // pred_fallthru
          _
      $region12: #{resnet_text_50_forward.1} parent=5 // pred_fallthru
        _
      %p541 = scmp.lt.s32.totalorder %s32, 2
      // Predicated region
      $region33: #{resnet_text_50_forward.1} parent=5 // pred_check
        %p542 = pneg %p541
      $region34: #{resnet_text_50_forward.1} parent=5 // pred_check_branch
        %544 = sbr.rel (%p542) target = $region36
      $region35: #{resnet_text_50_forward.1} parent=5 // pred_region
        // Predicated region
        $region37: #{resnet_text_50_forward.1} parent=35 // pred_check
          %p545 = pneg %p157
        $region38: #{resnet_text_50_forward.1} parent=35 // pred_check_branch
          %547 = sbr.rel (%p545) target = $region40
        $region39: #{resnet_text_50_forward.1} parent=35 // pred_region
          %p548 = scmp.lt.s32.totalorder %s32, 1
          %s549 = scalar_select %p548, %s32, 1
          %s550 = smul.addr %s549, 48
          %s551 = smul.addr %s550, 4
          %s552 = scalar_lea.vmem %s5, %s551
        $region40: #{resnet_text_50_forward.1} parent=35 // pred_fallthru
          _
        // Predicated region
        $region41: #{resnet_text_50_forward.1} parent=35 // pred_check
          %p553 = pneg %p183
        $region42: #{resnet_text_50_forward.1} parent=35 // pred_check_branch
          %555 = sbr.rel (%p553) target = $region44
        $region43: #{resnet_text_50_forward.1} parent=35 // pred_region
          %p556 = scmp.lt.s32.totalorder %s32, 1
          %s557 = scalar_select %p556, %s32, 1
          %s558 = smul.addr %s557, 3
          %s559 = scalar_lea.vmem %s6, %s558
        $region44: #{resnet_text_50_forward.1} parent=35 // pred_fallthru
          _
        // Predicated region
        $region45: #{resnet_text_50_forward.1} parent=35 // pred_check
          %p560 = pneg %p209
        $region46: #{resnet_text_50_forward.1} parent=35 // pred_check_branch
          %562 = sbr.rel (%p560) target = $region48
        $region47: #{resnet_text_50_forward.1} parent=35 // pred_region
          %p563 = scmp.lt.s32.totalorder %s32, 1
          %s564 = scalar_select %p563, %s32, 1
          %s565 = smul.addr %s564, 72
          %s566 = smul.addr %s565, 4
          %s567 = scalar_lea.vmem %s7, %s566
        $region48: #{resnet_text_50_forward.1} parent=35 // pred_fallthru
          _
        // Predicated region
        $region49: #{resnet_text_50_forward.1} parent=35 // pred_check
          %p568 = pneg %p235
        $region50: #{resnet_text_50_forward.1} parent=35 // pred_check_branch
          %570 = sbr.rel (%p568) target = $region52
        $region51: #{resnet_text_50_forward.1} parent=35 // pred_region
          %s571 = sand.u32 %s32, 1
          %s572 = scalar_lea.sflag [#allocation5], %s571
          %s573 = sand.u32 %s225, 1
          %s574 = smul.addr %s573, 3
          %s575 = scalar_lea.vmem [#allocation4], %s574
          %s577 = ssub.s32 48, 48
          %578 = vsyncadd %s572, %s577
          %s579 = smul.addr %s32, 3
          %s580 = smul.addr %s579, 16
          %s581 = scalar_lea.hbm %s8, %s580
          %s582 = sshll.u32 %s575, 4
          %s583 = int_to_ptr.vmem [resolvable:$true] %s582
          %588 = dma.hbm_to_vmem [thread:$0]  %s581, 48, %s583, %s572, 16, 16, 1
        $region52: #{resnet_text_50_forward.1} parent=35 // pred_fallthru
          _
        // Predicated region
        $region53: #{resnet_text_50_forward.1} parent=35 // pred_check
          %p589 = pneg %p261
        $region54: #{resnet_text_50_forward.1} parent=35 // pred_check_branch
          %591 = sbr.rel (%p589) target = $region56
        $region55: #{resnet_text_50_forward.1} parent=35 // pred_region
          %p592 = scmp.lt.s32.totalorder %s32, 1
          %s593 = scalar_select %p592, %s32, 1
          %s594 = smul.addr %s593, 48
          %s595 = smul.addr %s594, 4
          %s596 = scalar_lea.vmem %s9, %s595
        $region56: #{resnet_text_50_forward.1} parent=35 // pred_fallthru
          _
        // Predicated region
        $region57: #{resnet_text_50_forward.1} parent=35 // pred_check
          %p597 = pneg %p287
        $region58: #{resnet_text_50_forward.1} parent=35 // pred_check_branch
          %599 = sbr.rel (%p597) target = $region60
        $region59: #{resnet_text_50_forward.1} parent=35 // pred_region
          %p600 = scmp.lt.s32.totalorder %s32, 1
          %s601 = scalar_select %p600, %s32, 1
          %s602 = smul.addr %s601, 6
          %s603 = scalar_lea.vmem %s10, %s602
        $region60: #{resnet_text_50_forward.1} parent=35 // pred_fallthru
          _
        // Predicated region
        $region61: #{resnet_text_50_forward.1} parent=35 // pred_check
          %p604 = pneg %p313
        $region62: #{resnet_text_50_forward.1} parent=35 // pred_check_branch
          %606 = sbr.rel (%p604) target = $region64
        $region63: #{resnet_text_50_forward.1} parent=35 // pred_region
          %p607 = scmp.lt.s32.totalorder %s32, 1
          %s608 = scalar_select %p607, %s32, 1
          %s609 = smul.addr %s608, 192
          %s610 = smul.addr %s609, 4
          %s611 = scalar_lea.vmem %s11, %s610
        $region64: #{resnet_text_50_forward.1} parent=35 // pred_fallthru
          _
        // Predicated region
        $region65: #{resnet_text_50_forward.1} parent=35 // pred_check
          %p612 = pneg %p339
        $region66: #{resnet_text_50_forward.1} parent=35 // pred_check_branch
          %614 = sbr.rel (%p612) target = $region68
        $region67: #{resnet_text_50_forward.1} parent=35 // pred_region
          %s615 = sand.u32 %s32, 1
          %s616 = scalar_lea.sflag [#allocation5], %s615
          %s617 = sand.u32 %s329, 1
          %s618 = smul.addr %s617, 6
          %s619 = scalar_lea.vmem [#allocation6], %s618
          %s621 = ssub.s32 96, 96
          %622 = vsyncadd %s616, %s621
          %s623 = smul.addr %s32, 6
          %s624 = smul.addr %s623, 16
          %s625 = scalar_lea.hbm %s12, %s624
          %s626 = sshll.u32 %s619, 4
          %s627 = int_to_ptr.vmem [resolvable:$true] %s626
          %632 = dma.hbm_to_vmem [thread:$0]  %s625, 96, %s627, %s616, 16, 16, 1
        $region68: #{resnet_text_50_forward.1} parent=35 // pred_fallthru
          _
        // Predicated region
        $region69: #{resnet_text_50_forward.1} parent=35 // pred_check
          %p633 = pneg %p365
        $region70: #{resnet_text_50_forward.1} parent=35 // pred_check_branch
          %635 = sbr.rel (%p633) target = $region72
        $region71: #{resnet_text_50_forward.1} parent=35 // pred_region
          %p636 = scmp.lt.s32.totalorder %s32, 1
          %s637 = scalar_select %p636, %s32, 1
          %s638 = smul.addr %s637, 144
          %s639 = smul.addr %s638, 4
          %s640 = scalar_lea.vmem %s13, %s639
        $region72: #{resnet_text_50_forward.1} parent=35 // pred_fallthru
          _
        // Predicated region
        $region73: #{resnet_text_50_forward.1} parent=35 // pred_check
          %p641 = pneg %p391
        $region74: #{resnet_text_50_forward.1} parent=35 // pred_check_branch
          %643 = sbr.rel (%p641) target = $region76
        $region75: #{resnet_text_50_forward.1} parent=35 // pred_region
          %s644 = sand.u32 %s381, 1
          %s645 = scalar_lea.sflag [#allocation8], %s644
          %s646 = sand.u32 %s381, 1
          %s647 = smul.addr %s646, 6
          %s648 = scalar_lea.vmem [#allocation7], %s647
          %s650 = ssub.s32 96, 96
          %651 = vsyncadd %s645, %s650
          %s652 = smul.addr %s32, 6
          %s653 = smul.addr %s652, 16
          %s654 = scalar_lea.hbm %s14, %s653
          %s655 = sshll.u32 %s648, 4
          %s656 = int_to_ptr.vmem [resolvable:$true] %s655
          %661 = dma.hbm_to_vmem [thread:$0]  %s654, 96, %s656, %s645, 16, 16, 1
        $region76: #{resnet_text_50_forward.1} parent=35 // pred_fallthru
          _
        // Predicated region
        $region77: #{resnet_text_50_forward.1} parent=35 // pred_check
          %p662 = pneg %p417
        $region78: #{resnet_text_50_forward.1} parent=35 // pred_check_branch
          %664 = sbr.rel (%p662) target = $region80
        $region79: #{resnet_text_50_forward.1} parent=35 // pred_region
          %p665 = scmp.lt.s32.totalorder %s32, 1
          %s666 = scalar_select %p665, %s32, 1
          %s667 = smul.addr %s666, 96
          %s668 = smul.addr %s667, 4
          %s669 = scalar_lea.vmem %s15, %s668
        $region80: #{resnet_text_50_forward.1} parent=35 // pred_fallthru
          _
        // Predicated region
        $region81: #{resnet_text_50_forward.1} parent=35 // pred_check
          %p670 = pneg %p443
        $region82: #{resnet_text_50_forward.1} parent=35 // pred_check_branch
          %672 = sbr.rel (%p670) target = $region84
        $region83: #{resnet_text_50_forward.1} parent=35 // pred_region
          %p673 = scmp.lt.s32.totalorder %s32, 1
          %s674 = scalar_select %p673, %s32, 1
          %s675 = smul.addr %s674, 12
          %s676 = scalar_lea.vmem %s16, %s675
        $region84: #{resnet_text_50_forward.1} parent=35 // pred_fallthru
          _
      $region36: #{resnet_text_50_forward.1} parent=5 // pred_fallthru
        _
      %p677 = scmp.le.s32.totalorder 1, %s32
      %p678 = scmp.lt.s32.totalorder %s32, 3
      %p679 = pnand %p677, %p678
      %p680 = pneg %p679
      // Predicated region
      $region85: #{resnet_text_50_forward.1} parent=5 // pred_check
        _
      $region86: #{resnet_text_50_forward.1} parent=5 // pred_check_branch
        %682 = sbr.rel (%p679) target = $region88
      $region87: #{resnet_text_50_forward.1} parent=5 // pred_region
        %s683 = ssub.s32 %s32, 1
        // Predicated region
        $region89: #{resnet_text_50_forward.1} parent=87 // pred_check
          %p684 = pneg %p116
        $region90: #{resnet_text_50_forward.1} parent=87 // pred_check_branch
          %686 = sbr.rel (%p684) target = $region92
        $region91: #{resnet_text_50_forward.1} parent=87 // pred_region
          %687 = dma.done [#allocation3], 2048
        $region92: #{resnet_text_50_forward.1} parent=87 // pred_fallthru
          _
        %s688 = sand.u32 %s37, 1
        %s689 = scalar_lea.sflag [#allocation5], %s688
        %s690 = sand.u32 %s228, 1
        %s691 = smul.addr %s690, 3
        %s692 = scalar_lea.vmem [#allocation4], %s691
        // Predicated region
        $region93: #{resnet_text_50_forward.1} parent=87 // pred_check
          %p693 = pneg %p241
        $region94: #{resnet_text_50_forward.1} parent=87 // pred_check_branch
          %695 = sbr.rel (%p693) target = $region96
        $region95: #{resnet_text_50_forward.1} parent=87 // pred_region
          %696 = dma.done %s689, 48
        $region96: #{resnet_text_50_forward.1} parent=87 // pred_fallthru
          _
        %s697 = sand.u32 %s37, 1
        %s698 = scalar_lea.sflag [#allocation5], %s697
        %s699 = sand.u32 %s332, 1
        %s700 = smul.addr %s699, 6
        %s701 = scalar_lea.vmem [#allocation6], %s700
        // Predicated region
        $region97: #{resnet_text_50_forward.1} parent=87 // pred_check
          %p702 = pneg %p345
        $region98: #{resnet_text_50_forward.1} parent=87 // pred_check_branch
          %704 = sbr.rel (%p702) target = $region100
        $region99: #{resnet_text_50_forward.1} parent=87 // pred_region
          %705 = dma.done %s698, 96
        $region100: #{resnet_text_50_forward.1} parent=87 // pred_fallthru
          _
        %s706 = sand.u32 %s384, 1
        %s707 = scalar_lea.sflag [#allocation8], %s706
        %s708 = sand.u32 %s384, 1
        %s709 = smul.addr %s708, 6
        %s710 = scalar_lea.vmem [#allocation7], %s709
        // Predicated region
        $region101: #{resnet_text_50_forward.1} parent=87 // pred_check
          %p711 = pneg %p397
        $region102: #{resnet_text_50_forward.1} parent=87 // pred_check_branch
          %713 = sbr.rel (%p711) target = $region104
        $region103: #{resnet_text_50_forward.1} parent=87 // pred_region
          %714 = dma.done %s707, 96
        $region104: #{resnet_text_50_forward.1} parent=87 // pred_fallthru
          _
        %p715 = pneg %p53
        %p716 = pneg %p50
        %p717 = pneg %p74
        %p718 = pneg %p71
        %p719 = pneg %p95
        %p720 = pneg %p92
        %p721 = pneg %p116
        %p722 = pneg %p113
        %p723 = pneg %p137
        %p724 = pneg %p134
        %p725 = scmp.lt.s32.totalorder %s37, 1
        %s726 = scalar_select %p725, %s37, 1
        %s727 = smul.addr %s726, 48
        %s728 = smul.addr %s727, 4
        %s729 = scalar_lea.vmem %s5, %s728
        %p730 = pneg %p163
        %p731 = pneg %p160
        %p732 = scmp.lt.s32.totalorder %s37, 1
        %s733 = scalar_select %p732, %s37, 1
        %s734 = smul.addr %s733, 3
        %s735 = scalar_lea.vmem %s6, %s734
        %p736 = pneg %p189
        %p737 = pneg %p186
        %p738 = scmp.lt.s32.totalorder %s37, 1
        %s739 = scalar_select %p738, %s37, 1
        %s740 = smul.addr %s739, 72
        %s741 = smul.addr %s740, 4
        %s742 = scalar_lea.vmem %s7, %s741
        %p743 = pneg %p215
        %p744 = pneg %p212
        %s745 = sand.u32 %s37, 1
        %s746 = scalar_lea.sflag [#allocation5], %s745
        %s747 = sand.u32 %s228, 1
        %s748 = smul.addr %s747, 3
        %s749 = scalar_lea.vmem [#allocation4], %s748
        %p750 = pneg %p241
        %p751 = pneg %p238
        %p752 = scmp.lt.s32.totalorder %s37, 1
        %s753 = scalar_select %p752, %s37, 1
        %s754 = smul.addr %s753, 48
        %s755 = smul.addr %s754, 4
        %s756 = scalar_lea.vmem %s9, %s755
        %p757 = pneg %p267
        %p758 = pneg %p264
        %p759 = scmp.lt.s32.totalorder %s37, 1
        %s760 = scalar_select %p759, %s37, 1
        %s761 = smul.addr %s760, 6
        %s762 = scalar_lea.vmem %s10, %s761
        %p763 = pneg %p293
        %p764 = pneg %p290
        %p765 = scmp.lt.s32.totalorder %s37, 1
        %s766 = scalar_select %p765, %s37, 1
        %s767 = smul.addr %s766, 192
        %s768 = smul.addr %s767, 4
        %s769 = scalar_lea.vmem %s11, %s768
        %p770 = pneg %p319
        %p771 = pneg %p316
        %s772 = sand.u32 %s37, 1
        %s773 = scalar_lea.sflag [#allocation5], %s772
        %s774 = sand.u32 %s332, 1
        %s775 = smul.addr %s774, 6
        %s776 = scalar_lea.vmem [#allocation6], %s775
        %p777 = pneg %p345
        %p778 = pneg %p342
        %p779 = scmp.lt.s32.totalorder %s37, 1
        %s780 = scalar_select %p779, %s37, 1
        %s781 = smul.addr %s780, 144
        %s782 = smul.addr %s781, 4
        %s783 = scalar_lea.vmem %s13, %s782
        %p784 = pneg %p371
        %p785 = pneg %p368
        %s786 = sand.u32 %s384, 1
        %s787 = scalar_lea.sflag [#allocation8], %s786
        %s788 = sand.u32 %s384, 1
        %s789 = smul.addr %s788, 6
        %s790 = scalar_lea.vmem [#allocation7], %s789
        %p791 = pneg %p397
        %p792 = pneg %p394
        %p793 = scmp.lt.s32.totalorder %s37, 1
        %s794 = scalar_select %p793, %s37, 1
        %s795 = smul.addr %s794, 96
        %s796 = smul.addr %s795, 4
        %s797 = scalar_lea.vmem %s15, %s796
        %p798 = pneg %p423
        %p799 = pneg %p420
        %p800 = scmp.lt.s32.totalorder %s37, 1
        %s801 = scalar_select %p800, %s37, 1
        %s802 = smul.addr %s801, 12
        %s803 = scalar_lea.vmem %s16, %s802
        %p804 = pneg %p449
        %p805 = pneg %p446
        %p806 = pneg %p475
        %p807 = pneg %p472
        %p808 = scmp.lt.s32.totalorder %s37, 1
        %s809 = scalar_select %p808, %s37, 1
        %s810 = smul.addr %s809, 4
        %s811 = smul.addr %s810, 8
        %s812 = scalar_lea.vmem %s17, %s811
        %p813 = pneg %p501
        %p814 = pneg %p498
        %p815 = scmp.lt.s32.totalorder %s37, 1
        %s816 = scalar_select %p815, %s37, 1
        %s817 = smul.addr %s816, 24
        %s818 = smul.addr %s817, 8
        %s819 = scalar_lea.vmem %s18, %s818
        %p820 = scmp.lt.s32.totalorder %s37, 1
        %s821 = scalar_select %p820, %s37, 1
        %s822 = smul.addr %s821, 48
        %s823 = smul.addr %s822, 4
        %s824 = scalar_lea.vmem %s5, %s823
        %p825 = scmp.lt.s32.totalorder %s37, 1
        %s826 = scalar_select %p825, %s37, 1
        %s827 = smul.addr %s826, 3
        %s828 = scalar_lea.vmem %s6, %s827
        %p829 = scmp.lt.s32.totalorder %s37, 1
        %s830 = scalar_select %p829, %s37, 1
        %s831 = smul.addr %s830, 72
        %s832 = smul.addr %s831, 4
        %s833 = scalar_lea.vmem %s7, %s832
        %p834 = scmp.lt.s32.totalorder %s37, 1
        %s835 = scalar_select %p834, %s37, 1
        %s836 = smul.addr %s835, 48
        %s837 = smul.addr %s836, 4
        %s838 = scalar_lea.vmem %s9, %s837
        %p839 = scmp.lt.s32.totalorder %s37, 1
        %s840 = scalar_select %p839, %s37, 1
        %s841 = smul.addr %s840, 6
        %s842 = scalar_lea.vmem %s10, %s841
        %p843 = scmp.lt.s32.totalorder %s37, 1
        %s844 = scalar_select %p843, %s37, 1
        %s845 = smul.addr %s844, 192
        %s846 = smul.addr %s845, 4
        %s847 = scalar_lea.vmem %s11, %s846
        %p848 = scmp.lt.s32.totalorder %s37, 1
        %s849 = scalar_select %p848, %s37, 1
        %s850 = smul.addr %s849, 144
        %s851 = smul.addr %s850, 4
        %s852 = scalar_lea.vmem %s13, %s851
        %p853 = scmp.lt.s32.totalorder %s37, 1
        %s854 = scalar_select %p853, %s37, 1
        %s855 = smul.addr %s854, 96
        %s856 = smul.addr %s855, 4
        %s857 = scalar_lea.vmem %s15, %s856
        %p858 = scmp.lt.s32.totalorder %s37, 1
        %s859 = scalar_select %p858, %s37, 1
        %s860 = smul.addr %s859, 12
        %s861 = scalar_lea.vmem %s16, %s860
        %p862 = scmp.lt.s32.totalorder %s37, 1
        %s863 = scalar_select %p862, %s37, 1
        %s864 = smul.addr %s863, 4
        %s865 = smul.addr %s864, 8
        %s866 = scalar_lea.vmem %s17, %s865
        %p867 = scmp.lt.s32.totalorder %s37, 1
        %s868 = scalar_select %p867, %s37, 1
        %s869 = smul.addr %s868, 24
        %s870 = smul.addr %s869, 8
        %s871 = scalar_lea.vmem %s18, %s870
        %v873 = vld [vmem:[%s0] sm:$0xf]
        %v874 = vld [vmem:[%s0 + $0x4] sm:$0xf]
        %v875 = vld [vmem:[%s0 + $0x8] sm:$0xf]
        %v876 = vld [vmem:[%s0 + $0xc] sm:$0xf]
        %v877 = vld [vmem:[%s1] sm:$0xf]
        %v878 = vld [vmem:[%s1 + $0x4] sm:$0xf]
        %v879 = vld [vmem:[%s1 + $0x8] sm:$0xf]
        %v880 = vld [vmem:[%s1 + $0xc] sm:$0xf]
        %v881 = vld [vmem:[%s1 + $0x10] sm:$0xf]
        %v882 = vld [vmem:[%s1 + $0x14] sm:$0xf]
        %v883 = vld [vmem:[%s1 + $0x18] sm:$0xf]
        %v884 = vld [vmem:[%s1 + $0x1c] sm:$0xf]
        %v885 = vld [vmem:[%s1 + $0x20] sm:$0xf]
        %v886 = vld [vmem:[%s1 + $0x24] sm:$0xf]
        %v887 = vld [vmem:[%s1 + $0x28] sm:$0xf]
        %v888 = vld [vmem:[%s1 + $0x2c] sm:$0xf]
        %v889 = vld [vmem:[%s1 + $0x30] sm:$0xf]
        %v890 = vld [vmem:[%s1 + $0x34] sm:$0xf]
        %v891 = vld [vmem:[%s1 + $0x38] sm:$0xf]
        %v892 = vld [vmem:[%s1 + $0x3c] sm:$0xf]
        %v893 = vld [vmem:[%s2] sm:$0x1]
        %v895 = vlaneseq
        %v896 = vshrl.u32 %v895, 7
        %v897 = vsub.s32 0, %v896
        %v898 = vrot.slane %v893, %v897
        %v904 = vunpack.c.l.b16 %v873
        %v905 = vunpack.c.l.b16 %v874
        %v906 = vunpack.c.l.b16 %v875
        %v907 = vunpack.c.l.b16 %v876
        %v908 = vpack.c.b16 %v905, %v904
        %v909 = vpack.c.b16 %v907, %v906
        %v928 = vunpack.c.l.b16 %v877
        %v929 = vunpack.c.l.b16 %v878
        %v930 = vunpack.c.l.b16 %v879
        %v931 = vunpack.c.l.b16 %v880
        %v932 = vunpack.c.l.b16 %v881
        %v933 = vunpack.c.l.b16 %v882
        %v934 = vunpack.c.l.b16 %v883
        %v935 = vunpack.c.l.b16 %v884
        %v936 = vunpack.c.l.b16 %v885
        %v937 = vunpack.c.l.b16 %v886
        %v938 = vunpack.c.l.b16 %v887
        %v939 = vunpack.c.l.b16 %v888
        %v940 = vunpack.c.l.b16 %v889
        %v941 = vunpack.c.l.b16 %v890
        %v942 = vunpack.c.l.b16 %v891
        %v943 = vunpack.c.l.b16 %v892
        %v944 = vpack.c.b16 %v929, %v928
        %v945 = vpack.c.b16 %v931, %v930
        %v946 = vpack.c.b16 %v933, %v932
        %v947 = vpack.c.b16 %v935, %v934
        %v948 = vpack.c.b16 %v937, %v936
        %v949 = vpack.c.b16 %v939, %v938
        %v950 = vpack.c.b16 %v941, %v940
        %v951 = vpack.c.b16 %v943, %v942
        %960 = vmatprep.subr.bf16.mxu0 0
        %961 = vmatpush1.bf16.msra.mxu0 %v944
        %962 = vmatprep.subr.bf16.mxu0 0
        %963 = vmatpush1.bf16.msra.mxu0 %v945
        %964 = vmatprep.subr.bf16.mxu0 0
        %965 = vmatpush1.bf16.msra.mxu0 %v946
        %966 = vmatprep.subr.bf16.mxu0 0
        %967 = vmatpush1.bf16.msra.mxu0 %v947
        %968 = vmatprep.subr.bf16.mxu0 0
        %969 = vmatpush1.bf16.msra.mxu0 %v948
        %970 = vmatprep.subr.bf16.mxu0 0
        %971 = vmatpush1.bf16.msra.mxu0 %v949
        %972 = vmatprep.subr.bf16.mxu0 0
        %973 = vmatpush1.bf16.msra.mxu0 %v950
        %974 = vmatprep.subr.bf16.mxu0 0
        %975 = vmatpush1.bf16.msra.mxu0 %v951
        %976 = vmatprep.subr.bf16.mxu0 0
        %977 = vmatpush1.bf16.msra.mxu0 0
        %978 = vmatprep.subr.bf16.mxu0 0
        %979 = vmatpush1.bf16.msra.mxu0 0
        %980 = vmatprep.subr.bf16.mxu0 0
        %981 = vmatpush1.bf16.msra.mxu0 0
        %982 = vmatprep.subr.bf16.mxu0 0
        %983 = vmatpush1.bf16.msra.mxu0 0
        %984 = vmatprep.subr.bf16.mxu0 0
        %985 = vmatpush1.bf16.msra.mxu0 0
        %986 = vmatprep.subr.bf16.mxu0 0
        %987 = vmatpush1.bf16.msra.mxu0 0
        %988 = vmatprep.subr.bf16.mxu0 0
        %989 = vmatpush1.bf16.msra.mxu0 0
        %990 = vmatprep.subr.bf16.mxu0 0
        %991 = vmatpush1.bf16.msra.mxu0 0
        %992 = vmatprep.mubr.bf16.mxu0 0
        %993 = vmatmul.mubr.bf16.gmra.mrb[0].mxu0 %v908
        %v994 = vpop.f32.mrb[0].mxu0
        %v995 = vadd.f32 %v898, %v994
        %v996 = vpop.f32.mrb[0].mxu0
        %v997 = vpop.f32.mrb[0].mxu0
        %v998 = vadd.f32 %v898, %v997
        %v999 = vpop.f32.mrb[0].mxu0
        %1000 = vmatprep.mubr.bf16.mxu0 0
        %1001 = vmatmul.mubr.bf16.gmra.mrb[0].mxu0 %v909
        %v1002 = vpop.f32.mrb[0].mxu0
        %v1003 = vadd.f32 %v898, %v1002
        %v1004 = vpop.f32.mrb[0].mxu0
        %v1005 = vpop.f32.mrb[0].mxu0
        %v1006 = vadd.f32 %v898, %v1005
        %v1007 = vpop.f32.mrb[0].mxu0
        %1008 = vdwg.mxu0
        %v1009 = vmax.f32 %v995, 0.0
        %v1010 = vmax.f32 %v998, 0.0
        %v1011 = vmax.f32 %v1003, 0.0
        %v1012 = vmax.f32 %v1006, 0.0
        %1013 = vst [vmem:[%s866] sm:$0xff] %v1009
        %1014 = vst [vmem:[%s866 + $0x8] sm:$0xff] %v1010
        %1015 = vst [vmem:[%s866 + $0x10] sm:$0xff] %v1011
        %1016 = vst [vmem:[%s866 + $0x18] sm:$0xff] %v1012
        %v1017 = vpack.c.bf16 %v1010, %v1009
        %v1018 = vpack.c.bf16 %v1012, %v1011
        %v1019 = vld [vmem:[#allocation2] sm:$0xff]
        %v1020 = vld [vmem:[#allocation2 + $0x8] sm:$0xff]
        %v1021 = vld [vmem:[#allocation2 + $0x10] sm:$0xff]
        %v1022 = vld [vmem:[#allocation2 + $0x18] sm:$0xff]
        %v1023 = vld [vmem:[#allocation2 + $0x20] sm:$0xff]
        %v1024 = vld [vmem:[#allocation2 + $0x28] sm:$0xff]
        %v1025 = vld [vmem:[#allocation2 + $0x30] sm:$0xff]
        %v1026 = vld [vmem:[#allocation2 + $0x38] sm:$0xff]
        %v1027 = vld [vmem:[#allocation2 + $0x40] sm:$0xff]
        %v1028 = vld [vmem:[#allocation2 + $0x48] sm:$0xff]
        %v1029 = vld [vmem:[#allocation2 + $0x50] sm:$0xff]
        %v1030 = vld [vmem:[#allocation2 + $0x58] sm:$0xff]
        %v1031 = vld [vmem:[#allocation2 + $0x60] sm:$0xff]
        %v1032 = vld [vmem:[#allocation2 + $0x68] sm:$0xff]
        %v1033 = vld [vmem:[#allocation2 + $0x70] sm:$0xff]
        %v1034 = vld [vmem:[#allocation2 + $0x78] sm:$0xff]
        %v1035 = vld [vmem:[%s4] sm:$0x3]
        %v1037 = vlaneseq
        %v1038 = vshrl.u32 %v1037, 7
        %v1039 = vsub.s32 0, %v1038
        %v1040 = vrot.slane %v1035, %v1039
        %v1041 = vlaneseq
        %v1042 = vshrl.u32 %v1041, 7
        %v1043 = vsub.s32 1, %v1042
        %v1044 = vrot.slane %v1035, %v1043
        %v1063 = vunpack.c.l.b16 %v1019
        %v1064 = vunpack.c.h.b16 %v1019
        %v1065 = vunpack.c.l.b16 %v1020
        %v1066 = vunpack.c.h.b16 %v1020
        %v1067 = vunpack.c.l.b16 %v1021
        %v1068 = vunpack.c.h.b16 %v1021
        %v1069 = vunpack.c.l.b16 %v1022
        %v1070 = vunpack.c.h.b16 %v1022
        %v1071 = vunpack.c.l.b16 %v1023
        %v1072 = vunpack.c.h.b16 %v1023
        %v1073 = vunpack.c.l.b16 %v1024
        %v1074 = vunpack.c.h.b16 %v1024
        %v1075 = vunpack.c.l.b16 %v1025
        %v1076 = vunpack.c.h.b16 %v1025
        %v1077 = vunpack.c.l.b16 %v1026
        %v1078 = vunpack.c.h.b16 %v1026
        %v1079 = vunpack.c.l.b16 %v1027
        %v1080 = vunpack.c.h.b16 %v1027
        %v1081 = vunpack.c.l.b16 %v1028
        %v1082 = vunpack.c.h.b16 %v1028
        %v1083 = vunpack.c.l.b16 %v1029
        %v1084 = vunpack.c.h.b16 %v1029
        %v1085 = vunpack.c.l.b16 %v1030
        %v1086 = vunpack.c.h.b16 %v1030
        %v1087 = vunpack.c.l.b16 %v1031
        %v1088 = vunpack.c.h.b16 %v1031
        %v1089 = vunpack.c.l.b16 %v1032
        %v1090 = vunpack.c.h.b16 %v1032
        %v1091 = vunpack.c.l.b16 %v1033
        %v1092 = vunpack.c.h.b16 %v1033
        %v1093 = vunpack.c.l.b16 %v1034
        %v1094 = vunpack.c.h.b16 %v1034
        %v1095 = vpack.c.b16 %v1065, %v1063
        %v1096 = vpack.c.b16 %v1066, %v1064
        %v1097 = vpack.c.b16 %v1069, %v1067
        %v1098 = vpack.c.b16 %v1070, %v1068
        %v1099 = vpack.c.b16 %v1073, %v1071
        %v1100 = vpack.c.b16 %v1074, %v1072
        %v1101 = vpack.c.b16 %v1077, %v1075
        %v1102 = vpack.c.b16 %v1078, %v1076
        %v1103 = vpack.c.b16 %v1081, %v1079
        %v1104 = vpack.c.b16 %v1082, %v1080
        %v1105 = vpack.c.b16 %v1085, %v1083
        %v1106 = vpack.c.b16 %v1086, %v1084
        %v1107 = vpack.c.b16 %v1089, %v1087
        %v1108 = vpack.c.b16 %v1090, %v1088
        %v1109 = vpack.c.b16 %v1093, %v1091
        %v1110 = vpack.c.b16 %v1094, %v1092
        %1127 = vmatprep.subr.bf16.mxu0 %v1096
        %1128 = vmatpush1.bf16.msra.mxu0 %v1095
        %1129 = vmatprep.subr.bf16.mxu0 %v1098
        %1130 = vmatpush1.bf16.msra.mxu0 %v1097
        %1131 = vmatprep.subr.bf16.mxu0 %v1100
        %1132 = vmatpush1.bf16.msra.mxu0 %v1099
        %1133 = vmatprep.subr.bf16.mxu0 %v1102
        %1134 = vmatpush1.bf16.msra.mxu0 %v1101
        %1135 = vmatprep.subr.bf16.mxu0 %v1104
        %1136 = vmatpush1.bf16.msra.mxu0 %v1103
        %1137 = vmatprep.subr.bf16.mxu0 %v1106
        %1138 = vmatpush1.bf16.msra.mxu0 %v1105
        %1139 = vmatprep.subr.bf16.mxu0 %v1108
        %1140 = vmatpush1.bf16.msra.mxu0 %v1107
        %1141 = vmatprep.subr.bf16.mxu0 %v1110
        %1142 = vmatpush1.bf16.msra.mxu0 %v1109
        %1143 = vmatprep.subr.bf16.mxu0 0
        %1144 = vmatpush1.bf16.msra.mxu0 0
        %1145 = vmatprep.subr.bf16.mxu0 0
        %1146 = vmatpush1.bf16.msra.mxu0 0
        %1147 = vmatprep.subr.bf16.mxu0 0
        %1148 = vmatpush1.bf16.msra.mxu0 0
        %1149 = vmatprep.subr.bf16.mxu0 0
        %1150 = vmatpush1.bf16.msra.mxu0 0
        %1151 = vmatprep.subr.bf16.mxu0 0
        %1152 = vmatpush1.bf16.msra.mxu0 0
        %1153 = vmatprep.subr.bf16.mxu0 0
        %1154 = vmatpush1.bf16.msra.mxu0 0
        %1155 = vmatprep.subr.bf16.mxu0 0
        %1156 = vmatpush1.bf16.msra.mxu0 0
        %1157 = vmatprep.subr.bf16.mxu0 0
        %1158 = vmatpush1.bf16.msra.mxu0 0
        %1159 = vmatprep.mubr.bf16.mxu0 0
        %1160 = vmatmul.mubr.bf16.gmra.mrb[0].mxu0 %v1017
        %v1161 = vpop.f32.mrb[0].mxu0
        %v1162 = vadd.f32 %v1040, %v1161
        %v1163 = vpop.f32.mrb[0].mxu0
        %v1164 = vadd.f32 %v1044, %v1163
        %v1165 = vpop.f32.mrb[0].mxu0
        %v1166 = vadd.f32 %v1040, %v1165
        %v1167 = vpop.f32.mrb[0].mxu0
        %v1168 = vadd.f32 %v1044, %v1167
        %1169 = vmatprep.mubr.bf16.mxu0 0
        %1170 = vmatmul.mubr.bf16.gmra.mrb[0].mxu0 %v1018
        %v1171 = vpop.f32.mrb[0].mxu0
        %v1172 = vadd.f32 %v1040, %v1171
        %v1173 = vpop.f32.mrb[0].mxu0
        %v1174 = vadd.f32 %v1044, %v1173
        %v1175 = vpop.f32.mrb[0].mxu0
        %v1176 = vadd.f32 %v1040, %v1175
        %v1177 = vpop.f32.mrb[0].mxu0
        %v1178 = vadd.f32 %v1044, %v1177
        %1179 = vdwg.mxu0
        %v1180 = vlaneseq
        %v1181 = vshrl.u32 %v1180, 7
        %v1182 = vadd.s32 %v1181, 8
        %v1183 = vadd.s32 %v1181, 16
        %v1184 = vadd.s32 %v1181, 24
        %vm1185 = vcmp.lt.s32.totalorder %v1181, 0
        %v1186 = vsub.s32 0, %v1181
        %v1187 = vsel %vm1185, %v1186, %v1181
        %v1188 = vshrl.u32 %v1187, 4
        %v1189 = vand.u32 %v1187, 15
        %v1190 = vsub.s32 0, %v1189
        %v1191 = vsel %vm1185, %v1190, %v1189
        %vm1192 = vcmp.lt.s32.totalorder %v1182, 0
        %v1193 = vsub.s32 0, %v1182
        %v1194 = vsel %vm1192, %v1193, %v1182
        %v1195 = vshrl.u32 %v1194, 4
        %v1196 = vand.u32 %v1194, 15
        %v1197 = vsub.s32 0, %v1196
        %v1198 = vsel %vm1192, %v1197, %v1196
        %vm1199 = vcmp.lt.s32.totalorder %v1183, 0
        %v1200 = vsub.s32 0, %v1183
        %v1201 = vsel %vm1199, %v1200, %v1183
        %v1202 = vshrl.u32 %v1201, 4
        %v1203 = vand.u32 %v1201, 15
        %v1204 = vsub.s32 0, %v1203
        %v1205 = vsel %vm1199, %v1204, %v1203
        %vm1206 = vcmp.lt.s32.totalorder %v1184, 0
        %v1207 = vsub.s32 0, %v1184
        %v1208 = vsel %vm1206, %v1207, %v1184
        %v1209 = vshrl.u32 %v1208, 4
        %v1210 = vand.u32 %v1208, 15
        %v1211 = vsub.s32 0, %v1210
        %v1212 = vsel %vm1206, %v1211, %v1210
        %vm1213 = vcmp.ne.s32.totalorder %v1191, 0
        %vm1214 = vcmp.ne.s32.totalorder %v1198, 0
        %vm1215 = vcmp.ne.s32.totalorder %v1205, 0
        %vm1216 = vcmp.ne.s32.totalorder %v1212, 0
        %vm1217 = vcmp.lt.s32.totalorder %v1191, 0
        %vm1218 = vcmp.lt.s32.totalorder %v1198, 0
        %vm1219 = vcmp.lt.s32.totalorder %v1205, 0
        %vm1220 = vcmp.lt.s32.totalorder %v1212, 0
        %vm1221 = vmand %vm1217, %vm1213
        %vm1222 = vmand %vm1218, %vm1214
        %vm1223 = vmand %vm1219, %vm1215
        %vm1224 = vmand %vm1220, %vm1216
        %v1225 = vadd.s32 %v1191, 16
        %v1226 = vadd.s32 %v1198, 16
        %v1227 = vadd.s32 %v1205, 16
        %v1228 = vadd.s32 %v1212, 16
        %v1229 = vsel %vm1221, %v1225, %v1191
        %v1230 = vsel %vm1222, %v1226, %v1198
        %v1231 = vsel %vm1223, %v1227, %v1205
        %v1232 = vsel %vm1224, %v1228, %v1212
        %vm1233 = vcmp.ne.s32.totalorder %v1229, 0
        %vm1234 = vcmp.ne.s32.totalorder %v1230, 0
        %vm1235 = vcmp.ne.s32.totalorder %v1231, 0
        %vm1236 = vcmp.ne.s32.totalorder %v1232, 0
        %v1237 = vsel %vm1233, 1, 0
        %v1238 = vsel %vm1234, 1, 0
        %v1239 = vsel %vm1235, 1, 0
        %v1240 = vsel %vm1236, 1, 0
        %v1241 = vcvt.s32.f32 %v1237
        %v1242 = vcvt.s32.f32 %v1238
        %v1243 = vcvt.s32.f32 %v1239
        %v1244 = vcvt.s32.f32 %v1240
        %vm1245 = vcmp.ne.s32.totalorder %v1229, 15
        %vm1246 = vcmp.ne.s32.totalorder %v1230, 15
        %vm1247 = vcmp.ne.s32.totalorder %v1231, 15
        %vm1248 = vcmp.ne.s32.totalorder %v1232, 15
        %v1249 = vsel %vm1245, 1, 0
        %v1250 = vsel %vm1246, 1, 0
        %v1251 = vsel %vm1247, 1, 0
        %v1252 = vsel %vm1248, 1, 0
        %v1253 = vcvt.s32.f32 %v1249
        %v1254 = vcvt.s32.f32 %v1250
        %v1255 = vcvt.s32.f32 %v1251
        %v1256 = vcvt.s32.f32 %v1252
        %v1257 = vld [vmem:[%s824] sm:$0xf]
        %v1258 = vld [vmem:[%s824 + $0x4] sm:$0xf]
        %v1259 = vld [vmem:[%s824 + $0x8] sm:$0xf]
        %v1260 = vld [vmem:[%s824 + $0xc] sm:$0xf]
        %v1261 = vld [vmem:[%s824 + $0x10] sm:$0xf]
        %v1262 = vld [vmem:[%s824 + $0x14] sm:$0xf]
        %v1263 = vld [vmem:[%s824 + $0x18] sm:$0xf]
        %v1264 = vld [vmem:[%s824 + $0x1c] sm:$0xf]
        %v1265 = vld [vmem:[%s824 + $0x20] sm:$0xf]
        %v1266 = vld [vmem:[%s824 + $0x24] sm:$0xf]
        %v1267 = vld [vmem:[%s824 + $0x28] sm:$0xf]
        %v1268 = vld [vmem:[%s824 + $0x2c] sm:$0xf]
        %v1269 = vld [vmem:[%s824 + $0x30] sm:$0xf]
        %v1270 = vld [vmem:[%s824 + $0x34] sm:$0xf]
        %v1271 = vld [vmem:[%s824 + $0x38] sm:$0xf]
        %v1272 = vld [vmem:[%s824 + $0x3c] sm:$0xf]
        %v1273 = vld [vmem:[%s828] sm:$0x1]
        %v1274 = vld [vmem:[%s833] sm:$0xf]
        %v1275 = vld [vmem:[%s833 + $0x4] sm:$0xf]
        %v1276 = vld [vmem:[%s833 + $0x8] sm:$0xf]
        %v1277 = vld [vmem:[%s833 + $0xc] sm:$0xf]
        %v1278 = vld [vmem:[%s833 + $0x10] sm:$0xf]
        %v1279 = vld [vmem:[%s833 + $0x14] sm:$0xf]
        %v1280 = vld [vmem:[%s833 + $0x18] sm:$0xf]
        %v1281 = vld [vmem:[%s833 + $0x1c] sm:$0xf]
        %s1282 = scalar_lea.vmem %s833, 32
        %v1283 = vld [vmem:[%s1282] sm:$0xf]
        %v1284 = vld [vmem:[%s1282 + $0x4] sm:$0xf]
        %v1285 = vld [vmem:[%s1282 + $0x8] sm:$0xf]
        %v1286 = vld [vmem:[%s1282 + $0xc] sm:$0xf]
        %v1287 = vld [vmem:[%s1282 + $0x10] sm:$0xf]
        %v1288 = vld [vmem:[%s1282 + $0x14] sm:$0xf]
        %v1289 = vld [vmem:[%s1282 + $0x18] sm:$0xf]
        %v1290 = vld [vmem:[%s1282 + $0x1c] sm:$0xf]
        %s1291 = scalar_lea.vmem %s833, 64
        %v1292 = vld [vmem:[%s1291] sm:$0xf]
        %v1293 = vld [vmem:[%s1291 + $0x4] sm:$0xf]
        %v1294 = vld [vmem:[%s1291 + $0x8] sm:$0xf]
        %v1295 = vld [vmem:[%s1291 + $0xc] sm:$0xf]
        %v1296 = vld [vmem:[%s1291 + $0x10] sm:$0xf]
        %v1297 = vld [vmem:[%s1291 + $0x14] sm:$0xf]
        %v1298 = vld [vmem:[%s1291 + $0x18] sm:$0xf]
        %v1299 = vld [vmem:[%s1291 + $0x1c] sm:$0xf]
        %v1300 = vld [vmem:[%s692] sm:$0x1]
        %v1301 = vld [vmem:[%s838] sm:$0xff]
        %v1302 = vld [vmem:[%s838 + $0x8] sm:$0xff]
        %v1303 = vld [vmem:[%s838 + $0x10] sm:$0xff]
        %v1304 = vld [vmem:[%s838 + $0x18] sm:$0xff]
        %v1305 = vld [vmem:[%s838 + $0x20] sm:$0xff]
        %v1306 = vld [vmem:[%s838 + $0x28] sm:$0xff]
        %v1307 = vld [vmem:[%s838 + $0x30] sm:$0xff]
        %v1308 = vld [vmem:[%s838 + $0x38] sm:$0xff]
        %v1309 = vld [vmem:[%s842] sm:$0x3]
        %v1311 = vlaneseq
        %v1312 = vshrl.u32 %v1311, 7
        %v1313 = vsub.s32 0, %v1312
        %v1314 = vrot.slane %v1273, %v1313
        %v1332 = vunpack.c.l.b16 %v1257
        %v1333 = vunpack.c.l.b16 %v1258
        %v1334 = vunpack.c.l.b16 %v1259
        %v1335 = vunpack.c.l.b16 %v1260
        %v1336 = vunpack.c.l.b16 %v1261
        %v1337 = vunpack.c.l.b16 %v1262
        %v1338 = vunpack.c.l.b16 %v1263
        %v1339 = vunpack.c.l.b16 %v1264
        %v1340 = vunpack.c.l.b16 %v1265
        %v1341 = vunpack.c.l.b16 %v1266
        %v1342 = vunpack.c.l.b16 %v1267
        %v1343 = vunpack.c.l.b16 %v1268
        %v1344 = vunpack.c.l.b16 %v1269
        %v1345 = vunpack.c.l.b16 %v1270
        %v1346 = vunpack.c.l.b16 %v1271
        %v1347 = vunpack.c.l.b16 %v1272
        %v1348 = vpack.c.b16 %v1333, %v1332
        %v1349 = vpack.c.b16 %v1335, %v1334
        %v1350 = vpack.c.b16 %v1337, %v1336
        %v1351 = vpack.c.b16 %v1339, %v1338
        %v1352 = vpack.c.b16 %v1341, %v1340
        %v1353 = vpack.c.b16 %v1343, %v1342
        %v1354 = vpack.c.b16 %v1345, %v1344
        %v1355 = vpack.c.b16 %v1347, %v1346
        %1364 = vmatprep.subr.bf16.mxu0 0
        %1365 = vmatpush1.bf16.msra.mxu0 %v1348
        %1366 = vmatprep.subr.bf16.mxu0 0
        %1367 = vmatpush1.bf16.msra.mxu0 %v1349
        %1368 = vmatprep.subr.bf16.mxu0 0
        %1369 = vmatpush1.bf16.msra.mxu0 %v1350
        %1370 = vmatprep.subr.bf16.mxu0 0
        %1371 = vmatpush1.bf16.msra.mxu0 %v1351
        %1372 = vmatprep.subr.bf16.mxu0 0
        %1373 = vmatpush1.bf16.msra.mxu0 %v1352
        %1374 = vmatprep.subr.bf16.mxu0 0
        %1375 = vmatpush1.bf16.msra.mxu0 %v1353
        %1376 = vmatprep.subr.bf16.mxu0 0
        %1377 = vmatpush1.bf16.msra.mxu0 %v1354
        %1378 = vmatprep.subr.bf16.mxu0 0
        %1379 = vmatpush1.bf16.msra.mxu0 %v1355
        %1380 = vmatprep.subr.bf16.mxu0 0
        %1381 = vmatpush1.bf16.msra.mxu0 0
        %1382 = vmatprep.subr.bf16.mxu0 0
        %1383 = vmatpush1.bf16.msra.mxu0 0
        %1384 = vmatprep.subr.bf16.mxu0 0
        %1385 = vmatpush1.bf16.msra.mxu0 0
        %1386 = vmatprep.subr.bf16.mxu0 0
        %1387 = vmatpush1.bf16.msra.mxu0 0
        %1388 = vmatprep.subr.bf16.mxu0 0
        %1389 = vmatpush1.bf16.msra.mxu0 0
        %1390 = vmatprep.subr.bf16.mxu0 0
        %1391 = vmatpush1.bf16.msra.mxu0 0
        %1392 = vmatprep.subr.bf16.mxu0 0
        %1393 = vmatpush1.bf16.msra.mxu0 0
        %1394 = vmatprep.subr.bf16.mxu0 0
        %1395 = vmatpush1.bf16.msra.mxu0 0
        %1396 = vmatprep.mubr.bf16.mxu0 0
        %1397 = vmatmul.mubr.bf16.gmra.mrb[0].mxu0 %v1017
        %v1398 = vpop.f32.mrb[0].mxu0
        %v1399 = vadd.f32 %v1314, %v1398
        %v1400 = vpop.f32.mrb[0].mxu0
        %v1401 = vpop.f32.mrb[0].mxu0
        %v1402 = vadd.f32 %v1314, %v1401
        %v1403 = vpop.f32.mrb[0].mxu0
        %1404 = vmatprep.mubr.bf16.mxu0 0
        %1405 = vmatmul.mubr.bf16.gmra.mrb[0].mxu0 %v1018
        %v1406 = vpop.f32.mrb[0].mxu0
        %v1407 = vadd.f32 %v1314, %v1406
        %v1408 = vpop.f32.mrb[0].mxu0
        %v1409 = vpop.f32.mrb[0].mxu0
        %v1410 = vadd.f32 %v1314, %v1409
        %v1411 = vpop.f32.mrb[0].mxu0
        %1412 = vdwg.mxu0
        %v1413 = vmax.f32 %v1399, 0.0
        %v1414 = vmax.f32 %v1402, 0.0
        %v1415 = vmax.f32 %v1407, 0.0
        %v1416 = vmax.f32 %v1410, 0.0
        %v1417 = vrot.slane %v1413, 7
        %v1418 = vrot.slane %v1414, 7
        %v1419 = vrot.slane %v1415, 7
        %v1420 = vrot.slane %v1416, 7
        %vm1421 = vcmp.lt.s32.totalorder %v1181, 1
        %v1422 = vsel %vm1421, %v1419, %v1420
        %v1423 = vsel %vm1421, %v1418, %v1419
        %v1424 = vsel %vm1421, %v1417, %v1418
        %v1425 = vsel %vm1421, %v1420, %v1417
        %v1426 = vmul.f32 %v1425, %v1241
        %v1427 = vmul.f32 %v1424, %v1242
        %v1428 = vmul.f32 %v1423, %v1243
        %v1429 = vmul.f32 %v1422, %v1244
        %v1430 = vrot.slane %v1413, 1
        %v1431 = vrot.slane %v1414, 1
        %v1432 = vrot.slane %v1415, 1
        %v1433 = vrot.slane %v1416, 1
        %vm1434 = vcmp.lt.s32.totalorder %v1181, 7
        %v1435 = vsel %vm1434, %v1432, %v1433
        %v1436 = vsel %vm1434, %v1431, %v1432
        %v1437 = vsel %vm1434, %v1430, %v1431
        %v1438 = vsel %vm1434, %v1433, %v1430
        %v1439 = vmul.f32 %v1437, %v1253
        %v1440 = vmul.f32 %v1436, %v1254
        %v1441 = vmul.f32 %v1435, %v1255
        %v1442 = vmul.f32 %v1438, %v1256
        %v1443 = vpack.c.bf16 %v1414, %v1413
        %v1444 = vpack.c.bf16 %v1416, %v1415
        %v1445 = vpack.c.bf16 %v1427, %v1426
        %v1446 = vpack.c.bf16 %v1429, %v1428
        %v1455 = vunpack.c.l.b16 %v1274
        %v1456 = vunpack.c.l.b16 %v1275
        %v1457 = vunpack.c.l.b16 %v1276
        %v1458 = vunpack.c.l.b16 %v1277
        %v1459 = vunpack.c.l.b16 %v1278
        %v1460 = vunpack.c.l.b16 %v1279
        %v1461 = vunpack.c.l.b16 %v1280
        %v1462 = vunpack.c.l.b16 %v1281
        %v1463 = vpack.c.b16 %v1456, %v1455
        %v1464 = vpack.c.b16 %v1458, %v1457
        %v1465 = vpack.c.b16 %v1460, %v1459
        %v1466 = vpack.c.b16 %v1462, %v1461
        %vm1471 = vcmask 523264
        %v1473 = vsel %vm1471, %v1445, 0
        %v1476 = vsel %vm1471, %v1446, 0
        %1478 = vmatprep.subr.bf16.mxu0 0
        %1479 = vmatpush1.bf16.msra.mxu0 %v1463
        %1480 = vmatprep.subr.bf16.mxu0 0
        %1481 = vmatpush1.bf16.msra.mxu0 %v1464
        %1482 = vmatprep.subr.bf16.mxu0 0
        %1483 = vmatpush1.bf16.msra.mxu0 %v1465
        %1484 = vmatprep.subr.bf16.mxu0 0
        %1485 = vmatpush1.bf16.msra.mxu0 %v1466
        %1486 = vmatprep.subr.bf16.mxu0 0
        %1487 = vmatpush1.bf16.msra.mxu0 0
        %1488 = vmatprep.subr.bf16.mxu0 0
        %1489 = vmatpush1.bf16.msra.mxu0 0
        %1490 = vmatprep.subr.bf16.mxu0 0
        %1491 = vmatpush1.bf16.msra.mxu0 0
        %1492 = vmatprep.subr.bf16.mxu0 0
        %1493 = vmatpush1.bf16.msra.mxu0 0
        %1494 = vmatprep.subr.bf16.mxu0 0
        %1495 = vmatpush1.bf16.msra.mxu0 0
        %1496 = vmatprep.subr.bf16.mxu0 0
        %1497 = vmatpush1.bf16.msra.mxu0 0
        %1498 = vmatprep.subr.bf16.mxu0 0
        %1499 = vmatpush1.bf16.msra.mxu0 0
        %1500 = vmatprep.subr.bf16.mxu0 0
        %1501 = vmatpush1.bf16.msra.mxu0 0
        %1502 = vmatprep.subr.bf16.mxu0 0
        %1503 = vmatpush1.bf16.msra.mxu0 0
        %1504 = vmatprep.subr.bf16.mxu0 0
        %1505 = vmatpush1.bf16.msra.mxu0 0
        %1506 = vmatprep.subr.bf16.mxu0 0
        %1507 = vmatpush1.bf16.msra.mxu0 0
        %1508 = vmatprep.subr.bf16.mxu0 0
        %1509 = vmatpush1.bf16.msra.mxu0 0
        %1510 = vmatprep.mubr.bf16.mxu0 0
        %1511 = vmatmul.mubr.bf16.gmra.mrb[0].mxu0 %v1473
        %v1512 = vpop.f32.mrb[0].mxu0
        %v1513 = vadd.f32 0.0, %v1512
        %v1514 = vpop.f32.mrb[0].mxu0
        %v1515 = vpop.f32.mrb[0].mxu0
        %v1516 = vadd.f32 0.0, %v1515
        %v1517 = vpop.f32.mrb[0].mxu0
        %1518 = vmatprep.mubr.bf16.mxu0 0
        %1519 = vmatmul.mubr.bf16.gmra.mrb[0].mxu0 %v1476
        %v1520 = vpop.f32.mrb[0].mxu0
        %v1521 = vadd.f32 0.0, %v1520
        %v1522 = vpop.f32.mrb[0].mxu0
        %v1523 = vpop.f32.mrb[0].mxu0
        %v1524 = vadd.f32 0.0, %v1523
        %v1525 = vpop.f32.mrb[0].mxu0
        %1526 = vdwg.mxu0
        %v1535 = vunpack.c.l.b16 %v1283
        %v1536 = vunpack.c.l.b16 %v1284
        %v1537 = vunpack.c.l.b16 %v1285
        %v1538 = vunpack.c.l.b16 %v1286
        %v1539 = vunpack.c.l.b16 %v1287
        %v1540 = vunpack.c.l.b16 %v1288
        %v1541 = vunpack.c.l.b16 %v1289
        %v1542 = vunpack.c.l.b16 %v1290
        %v1543 = vpack.c.b16 %v1536, %v1535
        %v1544 = vpack.c.b16 %v1538, %v1537
        %v1545 = vpack.c.b16 %v1540, %v1539
        %v1546 = vpack.c.b16 %v1542, %v1541
        %v1552 = vsel %vm1471, %v1443, 0
        %v1555 = vsel %vm1471, %v1444, 0
        %1557 = vmatprep.subr.bf16.mxu0 0
        %1558 = vmatpush1.bf16.msra.mxu0 %v1543
        %1559 = vmatprep.subr.bf16.mxu0 0
        %1560 = vmatpush1.bf16.msra.mxu0 %v1544
        %1561 = vmatprep.subr.bf16.mxu0 0
        %1562 = vmatpush1.bf16.msra.mxu0 %v1545
        %1563 = vmatprep.subr.bf16.mxu0 0
        %1564 = vmatpush1.bf16.msra.mxu0 %v1546
        %1565 = vmatprep.subr.bf16.mxu0 0
        %1566 = vmatpush1.bf16.msra.mxu0 0
        %1567 = vmatprep.subr.bf16.mxu0 0
        %1568 = vmatpush1.bf16.msra.mxu0 0
        %1569 = vmatprep.subr.bf16.mxu0 0
        %1570 = vmatpush1.bf16.msra.mxu0 0
        %1571 = vmatprep.subr.bf16.mxu0 0
        %1572 = vmatpush1.bf16.msra.mxu0 0
        %1573 = vmatprep.subr.bf16.mxu0 0
        %1574 = vmatpush1.bf16.msra.mxu0 0
        %1575 = vmatprep.subr.bf16.mxu0 0
        %1576 = vmatpush1.bf16.msra.mxu0 0
        %1577 = vmatprep.subr.bf16.mxu0 0
        %1578 = vmatpush1.bf16.msra.mxu0 0
        %1579 = vmatprep.subr.bf16.mxu0 0
        %1580 = vmatpush1.bf16.msra.mxu0 0
        %1581 = vmatprep.subr.bf16.mxu0 0
        %1582 = vmatpush1.bf16.msra.mxu0 0
        %1583 = vmatprep.subr.bf16.mxu0 0
        %1584 = vmatpush1.bf16.msra.mxu0 0
        %1585 = vmatprep.subr.bf16.mxu0 0
        %1586 = vmatpush1.bf16.msra.mxu0 0
        %1587 = vmatprep.subr.bf16.mxu0 0
        %1588 = vmatpush1.bf16.msra.mxu0 0
        %1589 = vmatprep.mubr.bf16.mxu0 0
        %1590 = vmatmul.mubr.bf16.gmra.mrb[0].mxu0 %v1552
        %v1591 = vpop.f32.mrb[0].mxu0
        %v1592 = vadd.f32 %v1513, %v1591
        %v1593 = vpop.f32.mrb[0].mxu0
        %v1594 = vpop.f32.mrb[0].mxu0
        %v1595 = vadd.f32 %v1516, %v1594
        %v1596 = vpop.f32.mrb[0].mxu0
        %1597 = vmatprep.mubr.bf16.mxu0 0
        %1598 = vmatmul.mubr.bf16.gmra.mrb[0].mxu0 %v1555
        %v1599 = vpop.f32.mrb[0].mxu0
        %v1600 = vadd.f32 %v1521, %v1599
        %v1601 = vpop.f32.mrb[0].mxu0
        %v1602 = vpop.f32.mrb[0].mxu0
        %v1603 = vadd.f32 %v1524, %v1602
        %v1604 = vpop.f32.mrb[0].mxu0
        %1605 = vdwg.mxu0
        %v1606 = vpack.c.bf16 %v1440, %v1439
        %v1607 = vpack.c.bf16 %v1442, %v1441
        %v1616 = vunpack.c.l.b16 %v1292
        %v1617 = vunpack.c.l.b16 %v1293
        %v1618 = vunpack.c.l.b16 %v1294
        %v1619 = vunpack.c.l.b16 %v1295
        %v1620 = vunpack.c.l.b16 %v1296
        %v1621 = vunpack.c.l.b16 %v1297
        %v1622 = vunpack.c.l.b16 %v1298
        %v1623 = vunpack.c.l.b16 %v1299
        %v1624 = vpack.c.b16 %v1617, %v1616
        %v1625 = vpack.c.b16 %v1619, %v1618
        %v1626 = vpack.c.b16 %v1621, %v1620
        %v1627 = vpack.c.b16 %v1623, %v1622
        %v1633 = vsel %vm1471, %v1606, 0
        %v1636 = vsel %vm1471, %v1607, 0
        %1638 = vmatprep.subr.bf16.mxu0 0
        %1639 = vmatpush1.bf16.msra.mxu0 %v1624
        %1640 = vmatprep.subr.bf16.mxu0 0
        %1641 = vmatpush1.bf16.msra.mxu0 %v1625
        %1642 = vmatprep.subr.bf16.mxu0 0
        %1643 = vmatpush1.bf16.msra.mxu0 %v1626
        %1644 = vmatprep.subr.bf16.mxu0 0
        %1645 = vmatpush1.bf16.msra.mxu0 %v1627
        %1646 = vmatprep.subr.bf16.mxu0 0
        %1647 = vmatpush1.bf16.msra.mxu0 0
        %1648 = vmatprep.subr.bf16.mxu0 0
        %1649 = vmatpush1.bf16.msra.mxu0 0
        %1650 = vmatprep.subr.bf16.mxu0 0
        %1651 = vmatpush1.bf16.msra.mxu0 0
        %1652 = vmatprep.subr.bf16.mxu0 0
        %1653 = vmatpush1.bf16.msra.mxu0 0
        %1654 = vmatprep.subr.bf16.mxu0 0
        %1655 = vmatpush1.bf16.msra.mxu0 0
        %1656 = vmatprep.subr.bf16.mxu0 0
        %1657 = vmatpush1.bf16.msra.mxu0 0
        %1658 = vmatprep.subr.bf16.mxu0 0
        %1659 = vmatpush1.bf16.msra.mxu0 0
        %1660 = vmatprep.subr.bf16.mxu0 0
        %1661 = vmatpush1.bf16.msra.mxu0 0
        %1662 = vmatprep.subr.bf16.mxu0 0
        %1663 = vmatpush1.bf16.msra.mxu0 0
        %1664 = vmatprep.subr.bf16.mxu0 0
        %1665 = vmatpush1.bf16.msra.mxu0 0
        %1666 = vmatprep.subr.bf16.mxu0 0
        %1667 = vmatpush1.bf16.msra.mxu0 0
        %1668 = vmatprep.subr.bf16.mxu0 0
        %1669 = vmatpush1.bf16.msra.mxu0 0
        %1670 = vmatprep.mubr.bf16.mxu0 0
        %1671 = vmatmul.mubr.bf16.gmra.mrb[0].mxu0 %v1633
        %v1672 = vpop.f32.mrb[0].mxu0
        %v1673 = vadd.f32 0.0, %v1672
        %v1674 = vpop.f32.mrb[0].mxu0
        %v1675 = vpop.f32.mrb[0].mxu0
        %v1676 = vadd.f32 0.0, %v1675
        %v1677 = vpop.f32.mrb[0].mxu0
        %1678 = vmatprep.mubr.bf16.mxu0 0
        %1679 = vmatmul.mubr.bf16.gmra.mrb[0].mxu0 %v1636
        %v1680 = vpop.f32.mrb[0].mxu0
        %v1681 = vadd.f32 0.0, %v1680
        %v1682 = vpop.f32.mrb[0].mxu0
        %v1683 = vpop.f32.mrb[0].mxu0
        %v1684 = vadd.f32 0.0, %v1683
        %v1685 = vpop.f32.mrb[0].mxu0
        %1686 = vdwg.mxu0
        %v1687 = vadd.f32 %v1592, %v1673
        %v1688 = vadd.f32 %v1595, %v1676
        %v1689 = vadd.f32 %v1600, %v1681
        %v1690 = vadd.f32 %v1603, %v1684
        %v1692 = vlaneseq
        %v1693 = vshrl.u32 %v1692, 7
        %v1694 = vsub.s32 0, %v1693
        %v1695 = vrot.slane %v1300, %v1694
        %v1697 = vadd.f32 %v1687, %v1695
        %v1698 = vadd.f32 %v1688, %v1695
        %v1699 = vadd.f32 %v1689, %v1695
        %v1700 = vadd.f32 %v1690, %v1695
        %v1701 = vmax.f32 %v1697, 0.0
        %v1702 = vmax.f32 %v1698, 0.0
        %v1703 = vmax.f32 %v1699, 0.0
        %v1704 = vmax.f32 %v1700, 0.0
        %v1705 = vpack.c.bf16 %v1702, %v1701
        %v1706 = vpack.c.bf16 %v1704, %v1703
        %v1708 = vlaneseq
        %v1709 = vshrl.u32 %v1708, 7
        %v1710 = vsub.s32 0, %v1709
        %v1711 = vrot.slane %v1309, %v1710
        %v1712 = vlaneseq
        %v1713 = vshrl.u32 %v1712, 7
        %v1714 = vsub.s32 1, %v1713
        %v1715 = vrot.slane %v1309, %v1714
        %v1726 = vunpack.c.l.b16 %v1301
        %v1727 = vunpack.c.h.b16 %v1301
        %v1728 = vunpack.c.l.b16 %v1302
        %v1729 = vunpack.c.h.b16 %v1302
        %v1730 = vunpack.c.l.b16 %v1303
        %v1731 = vunpack.c.h.b16 %v1303
        %v1732 = vunpack.c.l.b16 %v1304
        %v1733 = vunpack.c.h.b16 %v1304
        %v1734 = vunpack.c.l.b16 %v1305
        %v1735 = vunpack.c.h.b16 %v1305
        %v1736 = vunpack.c.l.b16 %v1306
        %v1737 = vunpack.c.h.b16 %v1306
        %v1738 = vunpack.c.l.b16 %v1307
        %v1739 = vunpack.c.h.b16 %v1307
        %v1740 = vunpack.c.l.b16 %v1308
        %v1741 = vunpack.c.h.b16 %v1308
        %v1742 = vpack.c.b16 %v1728, %v1726
        %v1743 = vpack.c.b16 %v1729, %v1727
        %v1744 = vpack.c.b16 %v1732, %v1730
        %v1745 = vpack.c.b16 %v1733, %v1731
        %v1746 = vpack.c.b16 %v1736, %v1734
        %v1747 = vpack.c.b16 %v1737, %v1735
        %v1748 = vpack.c.b16 %v1740, %v1738
        %v1749 = vpack.c.b16 %v1741, %v1739
        %v1759 = vsel %vm1471, %v1705, 0
        %v1762 = vsel %vm1471, %v1706, 0
        %1764 = vmatprep.subr.bf16.mxu0 %v1743
        %1765 = vmatpush1.bf16.msra.mxu0 %v1742
        %1766 = vmatprep.subr.bf16.mxu0 %v1745
        %1767 = vmatpush1.bf16.msra.mxu0 %v1744
        %1768 = vmatprep.subr.bf16.mxu0 %v1747
        %1769 = vmatpush1.bf16.msra.mxu0 %v1746
        %1770 = vmatprep.subr.bf16.mxu0 %v1749
        %1771 = vmatpush1.bf16.msra.mxu0 %v1748
        %1772 = vmatprep.subr.bf16.mxu0 0
        %1773 = vmatpush1.bf16.msra.mxu0 0
        %1774 = vmatprep.subr.bf16.mxu0 0
        %1775 = vmatpush1.bf16.msra.mxu0 0
        %1776 = vmatprep.subr.bf16.mxu0 0
        %1777 = vmatpush1.bf16.msra.mxu0 0
        %1778 = vmatprep.subr.bf16.mxu0 0
        %1779 = vmatpush1.bf16.msra.mxu0 0
        %1780 = vmatprep.subr.bf16.mxu0 0
        %1781 = vmatpush1.bf16.msra.mxu0 0
        %1782 = vmatprep.subr.bf16.mxu0 0
        %1783 = vmatpush1.bf16.msra.mxu0 0
        %1784 = vmatprep.subr.bf16.mxu0 0
        %1785 = vmatpush1.bf16.msra.mxu0 0
        %1786 = vmatprep.subr.bf16.mxu0 0
        %1787 = vmatpush1.bf16.msra.mxu0 0
        %1788 = vmatprep.subr.bf16.mxu0 0
        %1789 = vmatpush1.bf16.msra.mxu0 0
        %1790 = vmatprep.subr.bf16.mxu0 0
        %1791 = vmatpush1.bf16.msra.mxu0 0
        %1792 = vmatprep.subr.bf16.mxu0 0
        %1793 = vmatpush1.bf16.msra.mxu0 0
        %1794 = vmatprep.subr.bf16.mxu0 0
        %1795 = vmatpush1.bf16.msra.mxu0 0
        %1796 = vmatprep.mubr.bf16.mxu0 0
        %1797 = vmatmul.mubr.bf16.gmra.mrb[0].mxu0 %v1759
        %v1798 = vpop.f32.mrb[0].mxu0
        %v1799 = vadd.f32 %v1711, %v1798
        %v1800 = vpop.f32.mrb[0].mxu0
        %v1801 = vadd.f32 %v1715, %v1800
        %v1802 = vpop.f32.mrb[0].mxu0
        %v1803 = vadd.f32 %v1711, %v1802
        %v1804 = vpop.f32.mrb[0].mxu0
        %v1805 = vadd.f32 %v1715, %v1804
        %1806 = vmatprep.mubr.bf16.mxu0 0
        %1807 = vmatmul.mubr.bf16.gmra.mrb[0].mxu0 %v1762
        %v1808 = vpop.f32.mrb[0].mxu0
        %v1809 = vadd.f32 %v1711, %v1808
        %v1810 = vpop.f32.mrb[0].mxu0
        %v1811 = vadd.f32 %v1715, %v1810
        %v1812 = vpop.f32.mrb[0].mxu0
        %v1813 = vadd.f32 %v1711, %v1812
        %v1814 = vpop.f32.mrb[0].mxu0
        %v1815 = vadd.f32 %v1715, %v1814
        %1816 = vdwg.mxu0
        %v1817 = vadd.f32 %v1799, %v1162
        %v1818 = vadd.f32 %v1801, %v1164
        %v1819 = vadd.f32 %v1803, %v1166
        %v1820 = vadd.f32 %v1805, %v1168
        %v1821 = vadd.f32 %v1809, %v1172
        %v1822 = vadd.f32 %v1811, %v1174
        %v1823 = vadd.f32 %v1813, %v1176
        %v1824 = vadd.f32 %v1815, %v1178
        %v1825 = vmax.f32 %v1817, 0.0
        %v1826 = vmax.f32 %v1818, 0.0
        %v1827 = vmax.f32 %v1819, 0.0
        %v1828 = vmax.f32 %v1820, 0.0
        %v1829 = vmax.f32 %v1821, 0.0
        %v1830 = vmax.f32 %v1822, 0.0
        %v1831 = vmax.f32 %v1823, 0.0
        %v1832 = vmax.f32 %v1824, 0.0
        %v1833 = vpack.c.bf16 %v1827, %v1825
        %v1834 = vpack.c.bf16 %v1828, %v1826
        %v1835 = vpack.c.bf16 %v1831, %v1829
        %v1836 = vpack.c.bf16 %v1832, %v1830
        %v1837 = vld [vmem:[%s847] sm:$0xf]
        %v1838 = vld [vmem:[%s847 + $0x4] sm:$0xf]
        %v1839 = vld [vmem:[%s847 + $0x8] sm:$0xf]
        %v1840 = vld [vmem:[%s847 + $0xc] sm:$0xf]
        %v1841 = vld [vmem:[%s847 + $0x10] sm:$0xf]
        %v1842 = vld [vmem:[%s847 + $0x14] sm:$0xf]
        %v1843 = vld [vmem:[%s847 + $0x18] sm:$0xf]
        %v1844 = vld [vmem:[%s847 + $0x1c] sm:$0xf]
        %v1845 = vld [vmem:[%s847 + $0x20] sm:$0xf]
        %v1846 = vld [vmem:[%s847 + $0x24] sm:$0xf]
        %v1847 = vld [vmem:[%s847 + $0x28] sm:$0xf]
        %v1848 = vld [vmem:[%s847 + $0x2c] sm:$0xf]
        %v1849 = vld [vmem:[%s847 + $0x30] sm:$0xf]
        %v1850 = vld [vmem:[%s847 + $0x34] sm:$0xf]
        %v1851 = vld [vmem:[%s847 + $0x38] sm:$0xf]
        %v1852 = vld [vmem:[%s847 + $0x3c] sm:$0xf]
        %v1853 = vld [vmem:[%s847 + $0x40] sm:$0xf]
        %v1854 = vld [vmem:[%s847 + $0x44] sm:$0xf]
        %v1855 = vld [vmem:[%s847 + $0x48] sm:$0xf]
        %v1856 = vld [vmem:[%s847 + $0x4c] sm:$0xf]
        %v1857 = vld [vmem:[%s847 + $0x50] sm:$0xf]
        %v1858 = vld [vmem:[%s847 + $0x54] sm:$0xf]
        %v1859 = vld [vmem:[%s847 + $0x58] sm:$0xf]
        %v1860 = vld [vmem:[%s847 + $0x5c] sm:$0xf]
        %v1861 = vld [vmem:[%s847 + $0x60] sm:$0xf]
        %v1862 = vld [vmem:[%s847 + $0x64] sm:$0xf]
        %v1863 = vld [vmem:[%s847 + $0x68] sm:$0xf]
        %v1864 = vld [vmem:[%s847 + $0x6c] sm:$0xf]
        %v1865 = vld [vmem:[%s847 + $0x70] sm:$0xf]
        %v1866 = vld [vmem:[%s847 + $0x74] sm:$0xf]
        %v1867 = vld [vmem:[%s847 + $0x78] sm:$0xf]
        %v1868 = vld [vmem:[%s847 + $0x7c] sm:$0xf]
        %v1869 = vld [vmem:[%s701] sm:$0x1]
        %v1870 = vld [vmem:[%s852] sm:$0xf]
        %v1871 = vld [vmem:[%s852 + $0x4] sm:$0xf]
        %v1872 = vld [vmem:[%s852 + $0x8] sm:$0xf]
        %v1873 = vld [vmem:[%s852 + $0xc] sm:$0xf]
        %v1874 = vld [vmem:[%s852 + $0x10] sm:$0xf]
        %v1875 = vld [vmem:[%s852 + $0x14] sm:$0xf]
        %v1876 = vld [vmem:[%s852 + $0x18] sm:$0xf]
        %v1877 = vld [vmem:[%s852 + $0x1c] sm:$0xf]
        %s1878 = scalar_lea.vmem %s852, 32
        %v1879 = vld [vmem:[%s1878] sm:$0xf]
        %v1880 = vld [vmem:[%s1878 + $0x4] sm:$0xf]
        %v1881 = vld [vmem:[%s1878 + $0x8] sm:$0xf]
        %v1882 = vld [vmem:[%s1878 + $0xc] sm:$0xf]
        %v1883 = vld [vmem:[%s1878 + $0x10] sm:$0xf]
        %v1884 = vld [vmem:[%s1878 + $0x14] sm:$0xf]
        %v1885 = vld [vmem:[%s1878 + $0x18] sm:$0xf]
        %v1886 = vld [vmem:[%s1878 + $0x1c] sm:$0xf]
        %s1887 = scalar_lea.vmem %s852, 64
        %v1888 = vld [vmem:[%s1887] sm:$0xf]
        %v1889 = vld [vmem:[%s1887 + $0x4] sm:$0xf]
        %v1890 = vld [vmem:[%s1887 + $0x8] sm:$0xf]
        %v1891 = vld [vmem:[%s1887 + $0xc] sm:$0xf]
        %v1892 = vld [vmem:[%s1887 + $0x10] sm:$0xf]
        %v1893 = vld [vmem:[%s1887 + $0x14] sm:$0xf]
        %v1894 = vld [vmem:[%s1887 + $0x18] sm:$0xf]
        %v1895 = vld [vmem:[%s1887 + $0x1c] sm:$0xf]
        %v1896 = vld [vmem:[%s710] sm:$0x1]
        %v1897 = vld [vmem:[%s857] sm:$0xff]
        %v1898 = vld [vmem:[%s857 + $0x8] sm:$0xff]
        %v1899 = vld [vmem:[%s857 + $0x10] sm:$0xff]
        %v1900 = vld [vmem:[%s857 + $0x18] sm:$0xff]
        %v1901 = vld [vmem:[%s857 + $0x20] sm:$0xff]
        %v1902 = vld [vmem:[%s857 + $0x28] sm:$0xff]
        %v1903 = vld [vmem:[%s857 + $0x30] sm:$0xff]
        %v1904 = vld [vmem:[%s857 + $0x38] sm:$0xff]
        %v1905 = vld [vmem:[%s861] sm:$0x3]
        %v1907 = vlaneseq
        %v1908 = vshrl.u32 %v1907, 7
        %v1909 = vsub.s32 0, %v1908
        %v1910 = vrot.slane %v1869, %v1909
        %v1944 = vunpack.c.l.b16 %v1837
        %v1945 = vunpack.c.l.b16 %v1838
        %v1946 = vunpack.c.l.b16 %v1839
        %v1947 = vunpack.c.l.b16 %v1840
        %v1948 = vunpack.c.l.b16 %v1841
        %v1949 = vunpack.c.l.b16 %v1842
        %v1950 = vunpack.c.l.b16 %v1843
        %v1951 = vunpack.c.l.b16 %v1844
        %v1952 = vunpack.c.l.b16 %v1845
        %v1953 = vunpack.c.l.b16 %v1846
        %v1954 = vunpack.c.l.b16 %v1847
        %v1955 = vunpack.c.l.b16 %v1848
        %v1956 = vunpack.c.l.b16 %v1849
        %v1957 = vunpack.c.l.b16 %v1850
        %v1958 = vunpack.c.l.b16 %v1851
        %v1959 = vunpack.c.l.b16 %v1852
        %v1960 = vunpack.c.l.b16 %v1853
        %v1961 = vunpack.c.l.b16 %v1854
        %v1962 = vunpack.c.l.b16 %v1855
        %v1963 = vunpack.c.l.b16 %v1856
        %v1964 = vunpack.c.l.b16 %v1857
        %v1965 = vunpack.c.l.b16 %v1858
        %v1966 = vunpack.c.l.b16 %v1859
        %v1967 = vunpack.c.l.b16 %v1860
        %v1968 = vunpack.c.l.b16 %v1861
        %v1969 = vunpack.c.l.b16 %v1862
        %v1970 = vunpack.c.l.b16 %v1863
        %v1971 = vunpack.c.l.b16 %v1864
        %v1972 = vunpack.c.l.b16 %v1865
        %v1973 = vunpack.c.l.b16 %v1866
        %v1974 = vunpack.c.l.b16 %v1867
        %v1975 = vunpack.c.l.b16 %v1868
        %v1976 = vpack.c.b16 %v1945, %v1944
        %v1977 = vpack.c.b16 %v1947, %v1946
        %v1978 = vpack.c.b16 %v1949, %v1948
        %v1979 = vpack.c.b16 %v1951, %v1950
        %v1980 = vpack.c.b16 %v1953, %v1952
        %v1981 = vpack.c.b16 %v1955, %v1954
        %v1982 = vpack.c.b16 %v1957, %v1956
        %v1983 = vpack.c.b16 %v1959, %v1958
        %v1984 = vpack.c.b16 %v1961, %v1960
        %v1985 = vpack.c.b16 %v1963, %v1962
        %v1986 = vpack.c.b16 %v1965, %v1964
        %v1987 = vpack.c.b16 %v1967, %v1966
        %v1988 = vpack.c.b16 %v1969, %v1968
        %v1989 = vpack.c.b16 %v1971, %v1970
        %v1990 = vpack.c.b16 %v1973, %v1972
        %v1991 = vpack.c.b16 %v1975, %v1974
        %2008 = vmatprep.subr.bf16.mxu0 0
        %2009 = vmatpush1.bf16.msra.mxu0 %v1976
        %2010 = vmatprep.subr.bf16.mxu0 0
        %2011 = vmatpush1.bf16.msra.mxu0 %v1977
        %2012 = vmatprep.subr.bf16.mxu0 0
        %2013 = vmatpush1.bf16.msra.mxu0 %v1978
        %2014 = vmatprep.subr.bf16.mxu0 0
        %2015 = vmatpush1.bf16.msra.mxu0 %v1979
        %2016 = vmatprep.subr.bf16.mxu0 0
        %2017 = vmatpush1.bf16.msra.mxu0 %v1980
        %2018 = vmatprep.subr.bf16.mxu0 0
        %2019 = vmatpush1.bf16.msra.mxu0 %v1981
        %2020 = vmatprep.subr.bf16.mxu0 0
        %2021 = vmatpush1.bf16.msra.mxu0 %v1982
        %2022 = vmatprep.subr.bf16.mxu0 0
        %2023 = vmatpush1.bf16.msra.mxu0 %v1983
        %2024 = vmatprep.subr.bf16.mxu0 0
        %2025 = vmatpush1.bf16.msra.mxu0 %v1984
        %2026 = vmatprep.subr.bf16.mxu0 0
        %2027 = vmatpush1.bf16.msra.mxu0 %v1985
        %2028 = vmatprep.subr.bf16.mxu0 0
        %2029 = vmatpush1.bf16.msra.mxu0 %v1986
        %2030 = vmatprep.subr.bf16.mxu0 0
        %2031 = vmatpush1.bf16.msra.mxu0 %v1987
        %2032 = vmatprep.subr.bf16.mxu0 0
        %2033 = vmatpush1.bf16.msra.mxu0 %v1988
        %2034 = vmatprep.subr.bf16.mxu0 0
        %2035 = vmatpush1.bf16.msra.mxu0 %v1989
        %2036 = vmatprep.subr.bf16.mxu0 0
        %2037 = vmatpush1.bf16.msra.mxu0 %v1990
        %2038 = vmatprep.subr.bf16.mxu0 0
        %2039 = vmatpush1.bf16.msra.mxu0 %v1991
        %2040 = vmatprep.mubr.bf16.mxu0 %v1834
        %2041 = vmatmul.mubr.bf16.gmra.mrb[0].mxu0 %v1833
        %v2042 = vpop.f32.mrb[0].mxu0
        %v2043 = vadd.f32 %v1910, %v2042
        %v2044 = vpop.f32.mrb[0].mxu0
        %v2045 = vpop.f32.mrb[0].mxu0
        %v2046 = vadd.f32 %v1910, %v2045
        %v2047 = vpop.f32.mrb[0].mxu0
        %2048 = vmatprep.mubr.bf16.mxu0 %v1836
        %2049 = vmatmul.mubr.bf16.gmra.mrb[0].mxu0 %v1835
        %v2050 = vpop.f32.mrb[0].mxu0
        %v2051 = vadd.f32 %v1910, %v2050
        %v2052 = vpop.f32.mrb[0].mxu0
        %v2053 = vpop.f32.mrb[0].mxu0
        %v2054 = vadd.f32 %v1910, %v2053
        %v2055 = vpop.f32.mrb[0].mxu0
        %2056 = vdwg.mxu0
        %v2057 = vmax.f32 %v2043, 0.0
        %v2058 = vmax.f32 %v2046, 0.0
        %v2059 = vmax.f32 %v2051, 0.0
        %v2060 = vmax.f32 %v2054, 0.0
        %v2061 = vrot.slane %v2057, 7
        %v2062 = vrot.slane %v2058, 7
        %v2063 = vrot.slane %v2059, 7
        %v2064 = vrot.slane %v2060, 7
        %v2065 = vsel %vm1421, %v2063, %v2064
        %v2066 = vsel %vm1421, %v2062, %v2063
        %v2067 = vsel %vm1421, %v2061, %v2062
        %v2068 = vsel %vm1421, %v2064, %v2061
        %v2069 = vmul.f32 %v2068, %v1241
        %v2070 = vmul.f32 %v2067, %v1242
        %v2071 = vmul.f32 %v2066, %v1243
        %v2072 = vmul.f32 %v2065, %v1244
        %v2073 = vrot.slane %v2057, 1
        %v2074 = vrot.slane %v2058, 1
        %v2075 = vrot.slane %v2059, 1
        %v2076 = vrot.slane %v2060, 1
        %v2077 = vsel %vm1434, %v2075, %v2076
        %v2078 = vsel %vm1434, %v2074, %v2075
        %v2079 = vsel %vm1434, %v2073, %v2074
        %v2080 = vsel %vm1434, %v2076, %v2073
        %v2081 = vmul.f32 %v2079, %v1253
        %v2082 = vmul.f32 %v2078, %v1254
        %v2083 = vmul.f32 %v2077, %v1255
        %v2084 = vmul.f32 %v2080, %v1256
        %v2085 = vpack.c.bf16 %v2058, %v2057
        %v2086 = vpack.c.bf16 %v2060, %v2059
        %v2087 = vpack.c.bf16 %v2070, %v2069
        %v2088 = vpack.c.bf16 %v2072, %v2071
        %v2097 = vunpack.c.l.b16 %v1870
        %v2098 = vunpack.c.l.b16 %v1871
        %v2099 = vunpack.c.l.b16 %v1872
        %v2100 = vunpack.c.l.b16 %v1873
        %v2101 = vunpack.c.l.b16 %v1874
        %v2102 = vunpack.c.l.b16 %v1875
        %v2103 = vunpack.c.l.b16 %v1876
        %v2104 = vunpack.c.l.b16 %v1877
        %v2105 = vpack.c.b16 %v2098, %v2097
        %v2106 = vpack.c.b16 %v2100, %v2099
        %v2107 = vpack.c.b16 %v2102, %v2101
        %v2108 = vpack.c.b16 %v2104, %v2103
        %v2114 = vsel %vm1471, %v2087, 0
        %v2117 = vsel %vm1471, %v2088, 0
        %2119 = vmatprep.subr.bf16.mxu0 0
        %2120 = vmatpush1.bf16.msra.mxu0 %v2105
        %2121 = vmatprep.subr.bf16.mxu0 0
        %2122 = vmatpush1.bf16.msra.mxu0 %v2106
        %2123 = vmatprep.subr.bf16.mxu0 0
        %2124 = vmatpush1.bf16.msra.mxu0 %v2107
        %2125 = vmatprep.subr.bf16.mxu0 0
        %2126 = vmatpush1.bf16.msra.mxu0 %v2108
        %2127 = vmatprep.subr.bf16.mxu0 0
        %2128 = vmatpush1.bf16.msra.mxu0 0
        %2129 = vmatprep.subr.bf16.mxu0 0
        %2130 = vmatpush1.bf16.msra.mxu0 0
        %2131 = vmatprep.subr.bf16.mxu0 0
        %2132 = vmatpush1.bf16.msra.mxu0 0
        %2133 = vmatprep.subr.bf16.mxu0 0
        %2134 = vmatpush1.bf16.msra.mxu0 0
        %2135 = vmatprep.subr.bf16.mxu0 0
        %2136 = vmatpush1.bf16.msra.mxu0 0
        %2137 = vmatprep.subr.bf16.mxu0 0
        %2138 = vmatpush1.bf16.msra.mxu0 0
        %2139 = vmatprep.subr.bf16.mxu0 0
        %2140 = vmatpush1.bf16.msra.mxu0 0
        %2141 = vmatprep.subr.bf16.mxu0 0
        %2142 = vmatpush1.bf16.msra.mxu0 0
        %2143 = vmatprep.subr.bf16.mxu0 0
        %2144 = vmatpush1.bf16.msra.mxu0 0
        %2145 = vmatprep.subr.bf16.mxu0 0
        %2146 = vmatpush1.bf16.msra.mxu0 0
        %2147 = vmatprep.subr.bf16.mxu0 0
        %2148 = vmatpush1.bf16.msra.mxu0 0
        %2149 = vmatprep.subr.bf16.mxu0 0
        %2150 = vmatpush1.bf16.msra.mxu0 0
        %2151 = vmatprep.mubr.bf16.mxu0 0
        %2152 = vmatmul.mubr.bf16.gmra.mrb[0].mxu0 %v2114
        %v2153 = vpop.f32.mrb[0].mxu0
        %v2154 = vadd.f32 0.0, %v2153
        %v2155 = vpop.f32.mrb[0].mxu0
        %v2156 = vpop.f32.mrb[0].mxu0
        %v2157 = vadd.f32 0.0, %v2156
        %v2158 = vpop.f32.mrb[0].mxu0
        %2159 = vmatprep.mubr.bf16.mxu0 0
        %2160 = vmatmul.mubr.bf16.gmra.mrb[0].mxu0 %v2117
        %v2161 = vpop.f32.mrb[0].mxu0
        %v2162 = vadd.f32 0.0, %v2161
        %v2163 = vpop.f32.mrb[0].mxu0
        %v2164 = vpop.f32.mrb[0].mxu0
        %v2165 = vadd.f32 0.0, %v2164
        %v2166 = vpop.f32.mrb[0].mxu0
        %2167 = vdwg.mxu0
        %v2176 = vunpack.c.l.b16 %v1879
        %v2177 = vunpack.c.l.b16 %v1880
        %v2178 = vunpack.c.l.b16 %v1881
        %v2179 = vunpack.c.l.b16 %v1882
        %v2180 = vunpack.c.l.b16 %v1883
        %v2181 = vunpack.c.l.b16 %v1884
        %v2182 = vunpack.c.l.b16 %v1885
        %v2183 = vunpack.c.l.b16 %v1886
        %v2184 = vpack.c.b16 %v2177, %v2176
        %v2185 = vpack.c.b16 %v2179, %v2178
        %v2186 = vpack.c.b16 %v2181, %v2180
        %v2187 = vpack.c.b16 %v2183, %v2182
        %v2193 = vsel %vm1471, %v2085, 0
        %v2196 = vsel %vm1471, %v2086, 0
        %2198 = vmatprep.subr.bf16.mxu0 0
        %2199 = vmatpush1.bf16.msra.mxu0 %v2184
        %2200 = vmatprep.subr.bf16.mxu0 0
        %2201 = vmatpush1.bf16.msra.mxu0 %v2185
        %2202 = vmatprep.subr.bf16.mxu0 0
        %2203 = vmatpush1.bf16.msra.mxu0 %v2186
        %2204 = vmatprep.subr.bf16.mxu0 0
        %2205 = vmatpush1.bf16.msra.mxu0 %v2187
        %2206 = vmatprep.subr.bf16.mxu0 0
        %2207 = vmatpush1.bf16.msra.mxu0 0
        %2208 = vmatprep.subr.bf16.mxu0 0
        %2209 = vmatpush1.bf16.msra.mxu0 0
        %2210 = vmatprep.subr.bf16.mxu0 0
        %2211 = vmatpush1.bf16.msra.mxu0 0
        %2212 = vmatprep.subr.bf16.mxu0 0
        %2213 = vmatpush1.bf16.msra.mxu0 0
        %2214 = vmatprep.subr.bf16.mxu0 0
        %2215 = vmatpush1.bf16.msra.mxu0 0
        %2216 = vmatprep.subr.bf16.mxu0 0
        %2217 = vmatpush1.bf16.msra.mxu0 0
        %2218 = vmatprep.subr.bf16.mxu0 0
        %2219 = vmatpush1.bf16.msra.mxu0 0
        %2220 = vmatprep.subr.bf16.mxu0 0
        %2221 = vmatpush1.bf16.msra.mxu0 0
        %2222 = vmatprep.subr.bf16.mxu0 0
        %2223 = vmatpush1.bf16.msra.mxu0 0
        %2224 = vmatprep.subr.bf16.mxu0 0
        %2225 = vmatpush1.bf16.msra.mxu0 0
        %2226 = vmatprep.subr.bf16.mxu0 0
        %2227 = vmatpush1.bf16.msra.mxu0 0
        %2228 = vmatprep.subr.bf16.mxu0 0
        %2229 = vmatpush1.bf16.msra.mxu0 0
        %2230 = vmatprep.mubr.bf16.mxu0 0
        %2231 = vmatmul.mubr.bf16.gmra.mrb[0].mxu0 %v2193
        %v2232 = vpop.f32.mrb[0].mxu0
        %v2233 = vadd.f32 %v2154, %v2232
        %v2234 = vpop.f32.mrb[0].mxu0
        %v2235 = vpop.f32.mrb[0].mxu0
        %v2236 = vadd.f32 %v2157, %v2235
        %v2237 = vpop.f32.mrb[0].mxu0
        %2238 = vmatprep.mubr.bf16.mxu0 0
        %2239 = vmatmul.mubr.bf16.gmra.mrb[0].mxu0 %v2196
        %v2240 = vpop.f32.mrb[0].mxu0
        %v2241 = vadd.f32 %v2162, %v2240
        %v2242 = vpop.f32.mrb[0].mxu0
        %v2243 = vpop.f32.mrb[0].mxu0
        %v2244 = vadd.f32 %v2165, %v2243
        %v2245 = vpop.f32.mrb[0].mxu0
        %2246 = vdwg.mxu0
        %v2247 = vpack.c.bf16 %v2082, %v2081
        %v2248 = vpack.c.bf16 %v2084, %v2083
        %v2257 = vunpack.c.l.b16 %v1888
        %v2258 = vunpack.c.l.b16 %v1889
        %v2259 = vunpack.c.l.b16 %v1890
        %v2260 = vunpack.c.l.b16 %v1891
        %v2261 = vunpack.c.l.b16 %v1892
        %v2262 = vunpack.c.l.b16 %v1893
        %v2263 = vunpack.c.l.b16 %v1894
        %v2264 = vunpack.c.l.b16 %v1895
        %v2265 = vpack.c.b16 %v2258, %v2257
        %v2266 = vpack.c.b16 %v2260, %v2259
        %v2267 = vpack.c.b16 %v2262, %v2261
        %v2268 = vpack.c.b16 %v2264, %v2263
        %v2274 = vsel %vm1471, %v2247, 0
        %v2277 = vsel %vm1471, %v2248, 0
        %2279 = vmatprep.subr.bf16.mxu0 0
        %2280 = vmatpush1.bf16.msra.mxu0 %v2265
        %2281 = vmatprep.subr.bf16.mxu0 0
        %2282 = vmatpush1.bf16.msra.mxu0 %v2266
        %2283 = vmatprep.subr.bf16.mxu0 0
        %2284 = vmatpush1.bf16.msra.mxu0 %v2267
        %2285 = vmatprep.subr.bf16.mxu0 0
        %2286 = vmatpush1.bf16.msra.mxu0 %v2268
        %2287 = vmatprep.subr.bf16.mxu0 0
        %2288 = vmatpush1.bf16.msra.mxu0 0
        %2289 = vmatprep.subr.bf16.mxu0 0
        %2290 = vmatpush1.bf16.msra.mxu0 0
        %2291 = vmatprep.subr.bf16.mxu0 0
        %2292 = vmatpush1.bf16.msra.mxu0 0
        %2293 = vmatprep.subr.bf16.mxu0 0
        %2294 = vmatpush1.bf16.msra.mxu0 0
        %2295 = vmatprep.subr.bf16.mxu0 0
        %2296 = vmatpush1.bf16.msra.mxu0 0
        %2297 = vmatprep.subr.bf16.mxu0 0
        %2298 = vmatpush1.bf16.msra.mxu0 0
        %2299 = vmatprep.subr.bf16.mxu0 0
        %2300 = vmatpush1.bf16.msra.mxu0 0
        %2301 = vmatprep.subr.bf16.mxu0 0
        %2302 = vmatpush1.bf16.msra.mxu0 0
        %2303 = vmatprep.subr.bf16.mxu0 0
        %2304 = vmatpush1.bf16.msra.mxu0 0
        %2305 = vmatprep.subr.bf16.mxu0 0
        %2306 = vmatpush1.bf16.msra.mxu0 0
        %2307 = vmatprep.subr.bf16.mxu0 0
        %2308 = vmatpush1.bf16.msra.mxu0 0
        %2309 = vmatprep.subr.bf16.mxu0 0
        %2310 = vmatpush1.bf16.msra.mxu0 0
        %2311 = vmatprep.mubr.bf16.mxu0 0
        %2312 = vmatmul.mubr.bf16.gmra.mrb[0].mxu0 %v2274
        %v2313 = vpop.f32.mrb[0].mxu0
        %v2314 = vadd.f32 0.0, %v2313
        %v2315 = vpop.f32.mrb[0].mxu0
        %v2316 = vpop.f32.mrb[0].mxu0
        %v2317 = vadd.f32 0.0, %v2316
        %v2318 = vpop.f32.mrb[0].mxu0
        %2319 = vmatprep.mubr.bf16.mxu0 0
        %2320 = vmatmul.mubr.bf16.gmra.mrb[0].mxu0 %v2277
        %v2321 = vpop.f32.mrb[0].mxu0
        %v2322 = vadd.f32 0.0, %v2321
        %v2323 = vpop.f32.mrb[0].mxu0
        %v2324 = vpop.f32.mrb[0].mxu0
        %v2325 = vadd.f32 0.0, %v2324
        %v2326 = vpop.f32.mrb[0].mxu0
        %2327 = vdwg.mxu0
        %v2328 = vadd.f32 %v2233, %v2314
        %v2329 = vadd.f32 %v2236, %v2317
        %v2330 = vadd.f32 %v2241, %v2322
        %v2331 = vadd.f32 %v2244, %v2325
        %v2333 = vlaneseq
        %v2334 = vshrl.u32 %v2333, 7
        %v2335 = vsub.s32 0, %v2334
        %v2336 = vrot.slane %v1896, %v2335
        %v2338 = vadd.f32 %v2328, %v2336
        %v2339 = vadd.f32 %v2329, %v2336
        %v2340 = vadd.f32 %v2330, %v2336
        %v2341 = vadd.f32 %v2331, %v2336
        %v2342 = vmax.f32 %v2338, 0.0
        %v2343 = vmax.f32 %v2339, 0.0
        %v2344 = vmax.f32 %v2340, 0.0
        %v2345 = vmax.f32 %v2341, 0.0
        %v2346 = vpack.c.bf16 %v2343, %v2342
        %v2347 = vpack.c.bf16 %v2345, %v2344
        %v2349 = vlaneseq
        %v2350 = vshrl.u32 %v2349, 7
        %v2351 = vsub.s32 0, %v2350
        %v2352 = vrot.slane %v1905, %v2351
        %v2353 = vlaneseq
        %v2354 = vshrl.u32 %v2353, 7
        %v2355 = vsub.s32 1, %v2354
        %v2356 = vrot.slane %v1905, %v2355
        %v2367 = vunpack.c.l.b16 %v1897
        %v2368 = vunpack.c.h.b16 %v1897
        %v2369 = vunpack.c.l.b16 %v1898
        %v2370 = vunpack.c.h.b16 %v1898
        %v2371 = vunpack.c.l.b16 %v1899
        %v2372 = vunpack.c.h.b16 %v1899
        %v2373 = vunpack.c.l.b16 %v1900
        %v2374 = vunpack.c.h.b16 %v1900
        %v2375 = vunpack.c.l.b16 %v1901
        %v2376 = vunpack.c.h.b16 %v1901
        %v2377 = vunpack.c.l.b16 %v1902
        %v2378 = vunpack.c.h.b16 %v1902
        %v2379 = vunpack.c.l.b16 %v1903
        %v2380 = vunpack.c.h.b16 %v1903
        %v2381 = vunpack.c.l.b16 %v1904
        %v2382 = vunpack.c.h.b16 %v1904
        %v2383 = vpack.c.b16 %v2369, %v2367
        %v2384 = vpack.c.b16 %v2370, %v2368
        %v2385 = vpack.c.b16 %v2373, %v2371
        %v2386 = vpack.c.b16 %v2374, %v2372
        %v2387 = vpack.c.b16 %v2377, %v2375
        %v2388 = vpack.c.b16 %v2378, %v2376
        %v2389 = vpack.c.b16 %v2381, %v2379
        %v2390 = vpack.c.b16 %v2382, %v2380
        %v2400 = vsel %vm1471, %v2346, 0
        %v2403 = vsel %vm1471, %v2347, 0
        %2405 = vmatprep.subr.bf16.mxu0 %v2384
        %2406 = vmatpush1.bf16.msra.mxu0 %v2383
        %2407 = vmatprep.subr.bf16.mxu0 %v2386
        %2408 = vmatpush1.bf16.msra.mxu0 %v2385
        %2409 = vmatprep.subr.bf16.mxu0 %v2388
        %2410 = vmatpush1.bf16.msra.mxu0 %v2387
        %2411 = vmatprep.subr.bf16.mxu0 %v2390
        %2412 = vmatpush1.bf16.msra.mxu0 %v2389
        %2413 = vmatprep.subr.bf16.mxu0 0
        %2414 = vmatpush1.bf16.msra.mxu0 0
        %2415 = vmatprep.subr.bf16.mxu0 0
        %2416 = vmatpush1.bf16.msra.mxu0 0
        %2417 = vmatprep.subr.bf16.mxu0 0
        %2418 = vmatpush1.bf16.msra.mxu0 0
        %2419 = vmatprep.subr.bf16.mxu0 0
        %2420 = vmatpush1.bf16.msra.mxu0 0
        %2421 = vmatprep.subr.bf16.mxu0 0
        %2422 = vmatpush1.bf16.msra.mxu0 0
        %2423 = vmatprep.subr.bf16.mxu0 0
        %2424 = vmatpush1.bf16.msra.mxu0 0
        %2425 = vmatprep.subr.bf16.mxu0 0
        %2426 = vmatpush1.bf16.msra.mxu0 0
        %2427 = vmatprep.subr.bf16.mxu0 0
        %2428 = vmatpush1.bf16.msra.mxu0 0
        %2429 = vmatprep.subr.bf16.mxu0 0
        %2430 = vmatpush1.bf16.msra.mxu0 0
        %2431 = vmatprep.subr.bf16.mxu0 0
        %2432 = vmatpush1.bf16.msra.mxu0 0
        %2433 = vmatprep.subr.bf16.mxu0 0
        %2434 = vmatpush1.bf16.msra.mxu0 0
        %2435 = vmatprep.subr.bf16.mxu0 0
        %2436 = vmatpush1.bf16.msra.mxu0 0
        %2437 = vmatprep.mubr.bf16.mxu0 0
        %2438 = vmatmul.mubr.bf16.gmra.mrb[0].mxu0 %v2400
        %v2439 = vpop.f32.mrb[0].mxu0
        %v2440 = vadd.f32 %v2352, %v2439
        %v2441 = vpop.f32.mrb[0].mxu0
        %v2442 = vadd.f32 %v2356, %v2441
        %v2443 = vpop.f32.mrb[0].mxu0
        %v2444 = vadd.f32 %v2352, %v2443
        %v2445 = vpop.f32.mrb[0].mxu0
        %v2446 = vadd.f32 %v2356, %v2445
        %2447 = vmatprep.mubr.bf16.mxu0 0
        %2448 = vmatmul.mubr.bf16.gmra.mrb[0].mxu0 %v2403
        %v2449 = vpop.f32.mrb[0].mxu0
        %v2450 = vadd.f32 %v2352, %v2449
        %v2451 = vpop.f32.mrb[0].mxu0
        %v2452 = vadd.f32 %v2356, %v2451
        %v2453 = vpop.f32.mrb[0].mxu0
        %v2454 = vadd.f32 %v2352, %v2453
        %v2455 = vpop.f32.mrb[0].mxu0
        %v2456 = vadd.f32 %v2356, %v2455
        %2457 = vdwg.mxu0
        %v2458 = vadd.f32 %v2440, %v1825
        %v2459 = vadd.f32 %v2442, %v1826
        %v2460 = vadd.f32 %v2444, %v1827
        %v2461 = vadd.f32 %v2446, %v1828
        %v2462 = vadd.f32 %v2450, %v1829
        %v2463 = vadd.f32 %v2452, %v1830
        %v2464 = vadd.f32 %v2454, %v1831
        %v2465 = vadd.f32 %v2456, %v1832
        %v2466 = vmax.f32 %v2458, 0.0
        %v2467 = vmax.f32 %v2459, 0.0
        %v2468 = vmax.f32 %v2460, 0.0
        %v2469 = vmax.f32 %v2461, 0.0
        %v2470 = vmax.f32 %v2462, 0.0
        %v2471 = vmax.f32 %v2463, 0.0
        %v2472 = vmax.f32 %v2464, 0.0
        %v2473 = vmax.f32 %v2465, 0.0
        %v2474 = vpack.c.bf16 %v2468, %v2466
        %v2475 = vpack.c.bf16 %v2469, %v2467
        %v2476 = vpack.c.bf16 %v2472, %v2470
        %v2477 = vpack.c.bf16 %v2473, %v2471
        %s2478 = scalar_lea.vmem %s847, 128
        %v2479 = vld [vmem:[%s2478] sm:$0xf]
        %v2480 = vld [vmem:[%s2478 + $0x4] sm:$0xf]
        %v2481 = vld [vmem:[%s2478 + $0x8] sm:$0xf]
        %v2482 = vld [vmem:[%s2478 + $0xc] sm:$0xf]
        %v2483 = vld [vmem:[%s2478 + $0x10] sm:$0xf]
        %v2484 = vld [vmem:[%s2478 + $0x14] sm:$0xf]
        %v2485 = vld [vmem:[%s2478 + $0x18] sm:$0xf]
        %v2486 = vld [vmem:[%s2478 + $0x1c] sm:$0xf]
        %v2487 = vld [vmem:[%s2478 + $0x20] sm:$0xf]
        %v2488 = vld [vmem:[%s2478 + $0x24] sm:$0xf]
        %v2489 = vld [vmem:[%s2478 + $0x28] sm:$0xf]
        %v2490 = vld [vmem:[%s2478 + $0x2c] sm:$0xf]
        %v2491 = vld [vmem:[%s2478 + $0x30] sm:$0xf]
        %v2492 = vld [vmem:[%s2478 + $0x34] sm:$0xf]
        %v2493 = vld [vmem:[%s2478 + $0x38] sm:$0xf]
        %v2494 = vld [vmem:[%s2478 + $0x3c] sm:$0xf]
        %v2495 = vld [vmem:[%s2478 + $0x40] sm:$0xf]
        %v2496 = vld [vmem:[%s2478 + $0x44] sm:$0xf]
        %v2497 = vld [vmem:[%s2478 + $0x48] sm:$0xf]
        %v2498 = vld [vmem:[%s2478 + $0x4c] sm:$0xf]
        %v2499 = vld [vmem:[%s2478 + $0x50] sm:$0xf]
        %v2500 = vld [vmem:[%s2478 + $0x54] sm:$0xf]
        %v2501 = vld [vmem:[%s2478 + $0x58] sm:$0xf]
        %v2502 = vld [vmem:[%s2478 + $0x5c] sm:$0xf]
        %v2503 = vld [vmem:[%s2478 + $0x60] sm:$0xf]
        %v2504 = vld [vmem:[%s2478 + $0x64] sm:$0xf]
        %v2505 = vld [vmem:[%s2478 + $0x68] sm:$0xf]
        %v2506 = vld [vmem:[%s2478 + $0x6c] sm:$0xf]
        %v2507 = vld [vmem:[%s2478 + $0x70] sm:$0xf]
        %v2508 = vld [vmem:[%s2478 + $0x74] sm:$0xf]
        %v2509 = vld [vmem:[%s2478 + $0x78] sm:$0xf]
        %v2510 = vld [vmem:[%s2478 + $0x7c] sm:$0xf]
        %s2511 = scalar_lea.vmem %s701, 1 [#allocation6]
        %v2512 = vld [vmem:[%s2511] sm:$0x1]
        %s2513 = scalar_lea.vmem %s852, 96
        %v2514 = vld [vmem:[%s2513] sm:$0xf]
        %v2515 = vld [vmem:[%s2513 + $0x4] sm:$0xf]
        %v2516 = vld [vmem:[%s2513 + $0x8] sm:$0xf]
        %v2517 = vld [vmem:[%s2513 + $0xc] sm:$0xf]
        %v2518 = vld [vmem:[%s2513 + $0x10] sm:$0xf]
        %v2519 = vld [vmem:[%s2513 + $0x14] sm:$0xf]
        %v2520 = vld [vmem:[%s2513 + $0x18] sm:$0xf]
        %v2521 = vld [vmem:[%s2513 + $0x1c] sm:$0xf]
        %s2522 = scalar_lea.vmem %s852, 128
        %v2523 = vld [vmem:[%s2522] sm:$0xf]
        %v2524 = vld [vmem:[%s2522 + $0x4] sm:$0xf]
        %v2525 = vld [vmem:[%s2522 + $0x8] sm:$0xf]
        %v2526 = vld [vmem:[%s2522 + $0xc] sm:$0xf]
        %v2527 = vld [vmem:[%s2522 + $0x10] sm:$0xf]
        %v2528 = vld [vmem:[%s2522 + $0x14] sm:$0xf]
        %v2529 = vld [vmem:[%s2522 + $0x18] sm:$0xf]
        %v2530 = vld [vmem:[%s2522 + $0x1c] sm:$0xf]
        %s2531 = scalar_lea.vmem %s852, 160
        %v2532 = vld [vmem:[%s2531] sm:$0xf]
        %v2533 = vld [vmem:[%s2531 + $0x4] sm:$0xf]
        %v2534 = vld [vmem:[%s2531 + $0x8] sm:$0xf]
        %v2535 = vld [vmem:[%s2531 + $0xc] sm:$0xf]
        %v2536 = vld [vmem:[%s2531 + $0x10] sm:$0xf]
        %v2537 = vld [vmem:[%s2531 + $0x14] sm:$0xf]
        %v2538 = vld [vmem:[%s2531 + $0x18] sm:$0xf]
        %v2539 = vld [vmem:[%s2531 + $0x1c] sm:$0xf]
        %s2540 = scalar_lea.vmem %s710, 1 [#allocation7]
        %v2541 = vld [vmem:[%s2540] sm:$0x1]
        %s2542 = scalar_lea.vmem %s857, 64
        %v2543 = vld [vmem:[%s2542] sm:$0xff]
        %v2544 = vld [vmem:[%s2542 + $0x8] sm:$0xff]
        %v2545 = vld [vmem:[%s2542 + $0x10] sm:$0xff]
        %v2546 = vld [vmem:[%s2542 + $0x18] sm:$0xff]
        %v2547 = vld [vmem:[%s2542 + $0x20] sm:$0xff]
        %v2548 = vld [vmem:[%s2542 + $0x28] sm:$0xff]
        %v2549 = vld [vmem:[%s2542 + $0x30] sm:$0xff]
        %v2550 = vld [vmem:[%s2542 + $0x38] sm:$0xff]
        %s2551 = scalar_lea.vmem %s861, 2
        %v2552 = vld [vmem:[%s2551] sm:$0x3]
        %v2554 = vlaneseq
        %v2555 = vshrl.u32 %v2554, 7
        %v2556 = vsub.s32 0, %v2555
        %v2557 = vrot.slane %v2512, %v2556
        %v2591 = vunpack.c.l.b16 %v2479
        %v2592 = vunpack.c.l.b16 %v2480
        %v2593 = vunpack.c.l.b16 %v2481
        %v2594 = vunpack.c.l.b16 %v2482
        %v2595 = vunpack.c.l.b16 %v2483
        %v2596 = vunpack.c.l.b16 %v2484
        %v2597 = vunpack.c.l.b16 %v2485
        %v2598 = vunpack.c.l.b16 %v2486
        %v2599 = vunpack.c.l.b16 %v2487
        %v2600 = vunpack.c.l.b16 %v2488
        %v2601 = vunpack.c.l.b16 %v2489
        %v2602 = vunpack.c.l.b16 %v2490
        %v2603 = vunpack.c.l.b16 %v2491
        %v2604 = vunpack.c.l.b16 %v2492
        %v2605 = vunpack.c.l.b16 %v2493
        %v2606 = vunpack.c.l.b16 %v2494
        %v2607 = vunpack.c.l.b16 %v2495
        %v2608 = vunpack.c.l.b16 %v2496
        %v2609 = vunpack.c.l.b16 %v2497
        %v2610 = vunpack.c.l.b16 %v2498
        %v2611 = vunpack.c.l.b16 %v2499
        %v2612 = vunpack.c.l.b16 %v2500
        %v2613 = vunpack.c.l.b16 %v2501
        %v2614 = vunpack.c.l.b16 %v2502
        %v2615 = vunpack.c.l.b16 %v2503
        %v2616 = vunpack.c.l.b16 %v2504
        %v2617 = vunpack.c.l.b16 %v2505
        %v2618 = vunpack.c.l.b16 %v2506
        %v2619 = vunpack.c.l.b16 %v2507
        %v2620 = vunpack.c.l.b16 %v2508
        %v2621 = vunpack.c.l.b16 %v2509
        %v2622 = vunpack.c.l.b16 %v2510
        %v2623 = vpack.c.b16 %v2592, %v2591
        %v2624 = vpack.c.b16 %v2594, %v2593
        %v2625 = vpack.c.b16 %v2596, %v2595
        %v2626 = vpack.c.b16 %v2598, %v2597
        %v2627 = vpack.c.b16 %v2600, %v2599
        %v2628 = vpack.c.b16 %v2602, %v2601
        %v2629 = vpack.c.b16 %v2604, %v2603
        %v2630 = vpack.c.b16 %v2606, %v2605
        %v2631 = vpack.c.b16 %v2608, %v2607
        %v2632 = vpack.c.b16 %v2610, %v2609
        %v2633 = vpack.c.b16 %v2612, %v2611
        %v2634 = vpack.c.b16 %v2614, %v2613
        %v2635 = vpack.c.b16 %v2616, %v2615
        %v2636 = vpack.c.b16 %v2618, %v2617
        %v2637 = vpack.c.b16 %v2620, %v2619
        %v2638 = vpack.c.b16 %v2622, %v2621
        %2655 = vmatprep.subr.bf16.mxu0 0
        %2656 = vmatpush1.bf16.msra.mxu0 %v2623
        %2657 = vmatprep.subr.bf16.mxu0 0
        %2658 = vmatpush1.bf16.msra.mxu0 %v2624
        %2659 = vmatprep.subr.bf16.mxu0 0
        %2660 = vmatpush1.bf16.msra.mxu0 %v2625
        %2661 = vmatprep.subr.bf16.mxu0 0
        %2662 = vmatpush1.bf16.msra.mxu0 %v2626
        %2663 = vmatprep.subr.bf16.mxu0 0
        %2664 = vmatpush1.bf16.msra.mxu0 %v2627
        %2665 = vmatprep.subr.bf16.mxu0 0
        %2666 = vmatpush1.bf16.msra.mxu0 %v2628
        %2667 = vmatprep.subr.bf16.mxu0 0
        %2668 = vmatpush1.bf16.msra.mxu0 %v2629
        %2669 = vmatprep.subr.bf16.mxu0 0
        %2670 = vmatpush1.bf16.msra.mxu0 %v2630
        %2671 = vmatprep.subr.bf16.mxu0 0
        %2672 = vmatpush1.bf16.msra.mxu0 %v2631
        %2673 = vmatprep.subr.bf16.mxu0 0
        %2674 = vmatpush1.bf16.msra.mxu0 %v2632
        %2675 = vmatprep.subr.bf16.mxu0 0
        %2676 = vmatpush1.bf16.msra.mxu0 %v2633
        %2677 = vmatprep.subr.bf16.mxu0 0
        %2678 = vmatpush1.bf16.msra.mxu0 %v2634
        %2679 = vmatprep.subr.bf16.mxu0 0
        %2680 = vmatpush1.bf16.msra.mxu0 %v2635
        %2681 = vmatprep.subr.bf16.mxu0 0
        %2682 = vmatpush1.bf16.msra.mxu0 %v2636
        %2683 = vmatprep.subr.bf16.mxu0 0
        %2684 = vmatpush1.bf16.msra.mxu0 %v2637
        %2685 = vmatprep.subr.bf16.mxu0 0
        %2686 = vmatpush1.bf16.msra.mxu0 %v2638
        %2687 = vmatprep.mubr.bf16.mxu0 %v2475
        %2688 = vmatmul.mubr.bf16.gmra.mrb[0].mxu0 %v2474
        %v2689 = vpop.f32.mrb[0].mxu0
        %v2690 = vadd.f32 %v2557, %v2689
        %v2691 = vpop.f32.mrb[0].mxu0
        %v2692 = vpop.f32.mrb[0].mxu0
        %v2693 = vadd.f32 %v2557, %v2692
        %v2694 = vpop.f32.mrb[0].mxu0
        %2695 = vmatprep.mubr.bf16.mxu0 %v2477
        %2696 = vmatmul.mubr.bf16.gmra.mrb[0].mxu0 %v2476
        %v2697 = vpop.f32.mrb[0].mxu0
        %v2698 = vadd.f32 %v2557, %v2697
        %v2699 = vpop.f32.mrb[0].mxu0
        %v2700 = vpop.f32.mrb[0].mxu0
        %v2701 = vadd.f32 %v2557, %v2700
        %v2702 = vpop.f32.mrb[0].mxu0
        %2703 = vdwg.mxu0
        %v2704 = vmax.f32 %v2690, 0.0
        %v2705 = vmax.f32 %v2693, 0.0
        %v2706 = vmax.f32 %v2698, 0.0
        %v2707 = vmax.f32 %v2701, 0.0
        %v2708 = vrot.slane %v2704, 7
        %v2709 = vrot.slane %v2705, 7
        %v2710 = vrot.slane %v2706, 7
        %v2711 = vrot.slane %v2707, 7
        %v2712 = vsel %vm1421, %v2710, %v2711
        %v2713 = vsel %vm1421, %v2709, %v2710
        %v2714 = vsel %vm1421, %v2708, %v2709
        %v2715 = vsel %vm1421, %v2711, %v2708
        %v2716 = vmul.f32 %v2715, %v1241
        %v2717 = vmul.f32 %v2714, %v1242
        %v2718 = vmul.f32 %v2713, %v1243
        %v2719 = vmul.f32 %v2712, %v1244
        %v2720 = vrot.slane %v2704, 1
        %v2721 = vrot.slane %v2705, 1
        %v2722 = vrot.slane %v2706, 1
        %v2723 = vrot.slane %v2707, 1
        %v2724 = vsel %vm1434, %v2722, %v2723
        %v2725 = vsel %vm1434, %v2721, %v2722
        %v2726 = vsel %vm1434, %v2720, %v2721
        %v2727 = vsel %vm1434, %v2723, %v2720
        %v2728 = vmul.f32 %v2726, %v1253
        %v2729 = vmul.f32 %v2725, %v1254
        %v2730 = vmul.f32 %v2724, %v1255
        %v2731 = vmul.f32 %v2727, %v1256
        %v2732 = vpack.c.bf16 %v2705, %v2704
        %v2733 = vpack.c.bf16 %v2707, %v2706
        %v2734 = vpack.c.bf16 %v2717, %v2716
        %v2735 = vpack.c.bf16 %v2719, %v2718
        %v2744 = vunpack.c.l.b16 %v2514
        %v2745 = vunpack.c.l.b16 %v2515
        %v2746 = vunpack.c.l.b16 %v2516
        %v2747 = vunpack.c.l.b16 %v2517
        %v2748 = vunpack.c.l.b16 %v2518
        %v2749 = vunpack.c.l.b16 %v2519
        %v2750 = vunpack.c.l.b16 %v2520
        %v2751 = vunpack.c.l.b16 %v2521
        %v2752 = vpack.c.b16 %v2745, %v2744
        %v2753 = vpack.c.b16 %v2747, %v2746
        %v2754 = vpack.c.b16 %v2749, %v2748
        %v2755 = vpack.c.b16 %v2751, %v2750
        %v2761 = vsel %vm1471, %v2734, 0
        %v2764 = vsel %vm1471, %v2735, 0
        %2766 = vmatprep.subr.bf16.mxu0 0
        %2767 = vmatpush1.bf16.msra.mxu0 %v2752
        %2768 = vmatprep.subr.bf16.mxu0 0
        %2769 = vmatpush1.bf16.msra.mxu0 %v2753
        %2770 = vmatprep.subr.bf16.mxu0 0
        %2771 = vmatpush1.bf16.msra.mxu0 %v2754
        %2772 = vmatprep.subr.bf16.mxu0 0
        %2773 = vmatpush1.bf16.msra.mxu0 %v2755
        %2774 = vmatprep.subr.bf16.mxu0 0
        %2775 = vmatpush1.bf16.msra.mxu0 0
        %2776 = vmatprep.subr.bf16.mxu0 0
        %2777 = vmatpush1.bf16.msra.mxu0 0
        %2778 = vmatprep.subr.bf16.mxu0 0
        %2779 = vmatpush1.bf16.msra.mxu0 0
        %2780 = vmatprep.subr.bf16.mxu0 0
        %2781 = vmatpush1.bf16.msra.mxu0 0
        %2782 = vmatprep.subr.bf16.mxu0 0
        %2783 = vmatpush1.bf16.msra.mxu0 0
        %2784 = vmatprep.subr.bf16.mxu0 0
        %2785 = vmatpush1.bf16.msra.mxu0 0
        %2786 = vmatprep.subr.bf16.mxu0 0
        %2787 = vmatpush1.bf16.msra.mxu0 0
        %2788 = vmatprep.subr.bf16.mxu0 0
        %2789 = vmatpush1.bf16.msra.mxu0 0
        %2790 = vmatprep.subr.bf16.mxu0 0
        %2791 = vmatpush1.bf16.msra.mxu0 0
        %2792 = vmatprep.subr.bf16.mxu0 0
        %2793 = vmatpush1.bf16.msra.mxu0 0
        %2794 = vmatprep.subr.bf16.mxu0 0
        %2795 = vmatpush1.bf16.msra.mxu0 0
        %2796 = vmatprep.subr.bf16.mxu0 0
        %2797 = vmatpush1.bf16.msra.mxu0 0
        %2798 = vmatprep.mubr.bf16.mxu0 0
        %2799 = vmatmul.mubr.bf16.gmra.mrb[0].mxu0 %v2761
        %v2800 = vpop.f32.mrb[0].mxu0
        %v2801 = vadd.f32 0.0, %v2800
        %v2802 = vpop.f32.mrb[0].mxu0
        %v2803 = vpop.f32.mrb[0].mxu0
        %v2804 = vadd.f32 0.0, %v2803
        %v2805 = vpop.f32.mrb[0].mxu0
        %2806 = vmatprep.mubr.bf16.mxu0 0
        %2807 = vmatmul.mubr.bf16.gmra.mrb[0].mxu0 %v2764
        %v2808 = vpop.f32.mrb[0].mxu0
        %v2809 = vadd.f32 0.0, %v2808
        %v2810 = vpop.f32.mrb[0].mxu0
        %v2811 = vpop.f32.mrb[0].mxu0
        %v2812 = vadd.f32 0.0, %v2811
        %v2813 = vpop.f32.mrb[0].mxu0
        %2814 = vdwg.mxu0
        %v2823 = vunpack.c.l.b16 %v2523
        %v2824 = vunpack.c.l.b16 %v2524
        %v2825 = vunpack.c.l.b16 %v2525
        %v2826 = vunpack.c.l.b16 %v2526
        %v2827 = vunpack.c.l.b16 %v2527
        %v2828 = vunpack.c.l.b16 %v2528
        %v2829 = vunpack.c.l.b16 %v2529
        %v2830 = vunpack.c.l.b16 %v2530
        %v2831 = vpack.c.b16 %v2824, %v2823
        %v2832 = vpack.c.b16 %v2826, %v2825
        %v2833 = vpack.c.b16 %v2828, %v2827
        %v2834 = vpack.c.b16 %v2830, %v2829
        %v2840 = vsel %vm1471, %v2732, 0
        %v2843 = vsel %vm1471, %v2733, 0
        %2845 = vmatprep.subr.bf16.mxu0 0
        %2846 = vmatpush1.bf16.msra.mxu0 %v2831
        %2847 = vmatprep.subr.bf16.mxu0 0
        %2848 = vmatpush1.bf16.msra.mxu0 %v2832
        %2849 = vmatprep.subr.bf16.mxu0 0
        %2850 = vmatpush1.bf16.msra.mxu0 %v2833
        %2851 = vmatprep.subr.bf16.mxu0 0
        %2852 = vmatpush1.bf16.msra.mxu0 %v2834
        %2853 = vmatprep.subr.bf16.mxu0 0
        %2854 = vmatpush1.bf16.msra.mxu0 0
        %2855 = vmatprep.subr.bf16.mxu0 0
        %2856 = vmatpush1.bf16.msra.mxu0 0
        %2857 = vmatprep.subr.bf16.mxu0 0
        %2858 = vmatpush1.bf16.msra.mxu0 0
        %2859 = vmatprep.subr.bf16.mxu0 0
        %2860 = vmatpush1.bf16.msra.mxu0 0
        %2861 = vmatprep.subr.bf16.mxu0 0
        %2862 = vmatpush1.bf16.msra.mxu0 0
        %2863 = vmatprep.subr.bf16.mxu0 0
        %2864 = vmatpush1.bf16.msra.mxu0 0
        %2865 = vmatprep.subr.bf16.mxu0 0
        %2866 = vmatpush1.bf16.msra.mxu0 0
        %2867 = vmatprep.subr.bf16.mxu0 0
        %2868 = vmatpush1.bf16.msra.mxu0 0
        %2869 = vmatprep.subr.bf16.mxu0 0
        %2870 = vmatpush1.bf16.msra.mxu0 0
        %2871 = vmatprep.subr.bf16.mxu0 0
        %2872 = vmatpush1.bf16.msra.mxu0 0
        %2873 = vmatprep.subr.bf16.mxu0 0
        %2874 = vmatpush1.bf16.msra.mxu0 0
        %2875 = vmatprep.subr.bf16.mxu0 0
        %2876 = vmatpush1.bf16.msra.mxu0 0
        %2877 = vmatprep.mubr.bf16.mxu0 0
        %2878 = vmatmul.mubr.bf16.gmra.mrb[0].mxu0 %v2840
        %v2879 = vpop.f32.mrb[0].mxu0
        %v2880 = vadd.f32 %v2801, %v2879
        %v2881 = vpop.f32.mrb[0].mxu0
        %v2882 = vpop.f32.mrb[0].mxu0
        %v2883 = vadd.f32 %v2804, %v2882
        %v2884 = vpop.f32.mrb[0].mxu0
        %2885 = vmatprep.mubr.bf16.mxu0 0
        %2886 = vmatmul.mubr.bf16.gmra.mrb[0].mxu0 %v2843
        %v2887 = vpop.f32.mrb[0].mxu0
        %v2888 = vadd.f32 %v2809, %v2887
        %v2889 = vpop.f32.mrb[0].mxu0
        %v2890 = vpop.f32.mrb[0].mxu0
        %v2891 = vadd.f32 %v2812, %v2890
        %v2892 = vpop.f32.mrb[0].mxu0
        %2893 = vdwg.mxu0
        %v2894 = vpack.c.bf16 %v2729, %v2728
        %v2895 = vpack.c.bf16 %v2731, %v2730
        %v2904 = vunpack.c.l.b16 %v2532
        %v2905 = vunpack.c.l.b16 %v2533
        %v2906 = vunpack.c.l.b16 %v2534
        %v2907 = vunpack.c.l.b16 %v2535
        %v2908 = vunpack.c.l.b16 %v2536
        %v2909 = vunpack.c.l.b16 %v2537
        %v2910 = vunpack.c.l.b16 %v2538
        %v2911 = vunpack.c.l.b16 %v2539
        %v2912 = vpack.c.b16 %v2905, %v2904
        %v2913 = vpack.c.b16 %v2907, %v2906
        %v2914 = vpack.c.b16 %v2909, %v2908
        %v2915 = vpack.c.b16 %v2911, %v2910
        %v2921 = vsel %vm1471, %v2894, 0
        %v2924 = vsel %vm1471, %v2895, 0
        %2926 = vmatprep.subr.bf16.mxu0 0
        %2927 = vmatpush1.bf16.msra.mxu0 %v2912
        %2928 = vmatprep.subr.bf16.mxu0 0
        %2929 = vmatpush1.bf16.msra.mxu0 %v2913
        %2930 = vmatprep.subr.bf16.mxu0 0
        %2931 = vmatpush1.bf16.msra.mxu0 %v2914
        %2932 = vmatprep.subr.bf16.mxu0 0
        %2933 = vmatpush1.bf16.msra.mxu0 %v2915
        %2934 = vmatprep.subr.bf16.mxu0 0
        %2935 = vmatpush1.bf16.msra.mxu0 0
        %2936 = vmatprep.subr.bf16.mxu0 0
        %2937 = vmatpush1.bf16.msra.mxu0 0
        %2938 = vmatprep.subr.bf16.mxu0 0
        %2939 = vmatpush1.bf16.msra.mxu0 0
        %2940 = vmatprep.subr.bf16.mxu0 0
        %2941 = vmatpush1.bf16.msra.mxu0 0
        %2942 = vmatprep.subr.bf16.mxu0 0
        %2943 = vmatpush1.bf16.msra.mxu0 0
        %2944 = vmatprep.subr.bf16.mxu0 0
        %2945 = vmatpush1.bf16.msra.mxu0 0
        %2946 = vmatprep.subr.bf16.mxu0 0
        %2947 = vmatpush1.bf16.msra.mxu0 0
        %2948 = vmatprep.subr.bf16.mxu0 0
        %2949 = vmatpush1.bf16.msra.mxu0 0
        %2950 = vmatprep.subr.bf16.mxu0 0
        %2951 = vmatpush1.bf16.msra.mxu0 0
        %2952 = vmatprep.subr.bf16.mxu0 0
        %2953 = vmatpush1.bf16.msra.mxu0 0
        %2954 = vmatprep.subr.bf16.mxu0 0
        %2955 = vmatpush1.bf16.msra.mxu0 0
        %2956 = vmatprep.subr.bf16.mxu0 0
        %2957 = vmatpush1.bf16.msra.mxu0 0
        %2958 = vmatprep.mubr.bf16.mxu0 0
        %2959 = vmatmul.mubr.bf16.gmra.mrb[0].mxu0 %v2921
        %v2960 = vpop.f32.mrb[0].mxu0
        %v2961 = vadd.f32 0.0, %v2960
        %v2962 = vpop.f32.mrb[0].mxu0
        %v2963 = vpop.f32.mrb[0].mxu0
        %v2964 = vadd.f32 0.0, %v2963
        %v2965 = vpop.f32.mrb[0].mxu0
        %2966 = vmatprep.mubr.bf16.mxu0 0
        %2967 = vmatmul.mubr.bf16.gmra.mrb[0].mxu0 %v2924
        %v2968 = vpop.f32.mrb[0].mxu0
        %v2969 = vadd.f32 0.0, %v2968
        %v2970 = vpop.f32.mrb[0].mxu0
        %v2971 = vpop.f32.mrb[0].mxu0
        %v2972 = vadd.f32 0.0, %v2971
        %v2973 = vpop.f32.mrb[0].mxu0
        %2974 = vdwg.mxu0
        %v2975 = vadd.f32 %v2880, %v2961
        %v2976 = vadd.f32 %v2883, %v2964
        %v2977 = vadd.f32 %v2888, %v2969
        %v2978 = vadd.f32 %v2891, %v2972
        %v2980 = vlaneseq
        %v2981 = vshrl.u32 %v2980, 7
        %v2982 = vsub.s32 0, %v2981
        %v2983 = vrot.slane %v2541, %v2982
        %v2985 = vadd.f32 %v2975, %v2983
        %v2986 = vadd.f32 %v2976, %v2983
        %v2987 = vadd.f32 %v2977, %v2983
        %v2988 = vadd.f32 %v2978, %v2983
        %v2989 = vmax.f32 %v2985, 0.0
        %v2990 = vmax.f32 %v2986, 0.0
        %v2991 = vmax.f32 %v2987, 0.0
        %v2992 = vmax.f32 %v2988, 0.0
        %v2993 = vpack.c.bf16 %v2990, %v2989
        %v2994 = vpack.c.bf16 %v2992, %v2991
        %v2996 = vlaneseq
        %v2997 = vshrl.u32 %v2996, 7
        %v2998 = vsub.s32 0, %v2997
        %v2999 = vrot.slane %v2552, %v2998
        %v3000 = vlaneseq
        %v3001 = vshrl.u32 %v3000, 7
        %v3002 = vsub.s32 1, %v3001
        %v3003 = vrot.slane %v2552, %v3002
        %v3014 = vunpack.c.l.b16 %v2543
        %v3015 = vunpack.c.h.b16 %v2543
        %v3016 = vunpack.c.l.b16 %v2544
        %v3017 = vunpack.c.h.b16 %v2544
        %v3018 = vunpack.c.l.b16 %v2545
        %v3019 = vunpack.c.h.b16 %v2545
        %v3020 = vunpack.c.l.b16 %v2546
        %v3021 = vunpack.c.h.b16 %v2546
        %v3022 = vunpack.c.l.b16 %v2547
        %v3023 = vunpack.c.h.b16 %v2547
        %v3024 = vunpack.c.l.b16 %v2548
        %v3025 = vunpack.c.h.b16 %v2548
        %v3026 = vunpack.c.l.b16 %v2549
        %v3027 = vunpack.c.h.b16 %v2549
        %v3028 = vunpack.c.l.b16 %v2550
        %v3029 = vunpack.c.h.b16 %v2550
        %v3030 = vpack.c.b16 %v3016, %v3014
        %v3031 = vpack.c.b16 %v3017, %v3015
        %v3032 = vpack.c.b16 %v3020, %v3018
        %v3033 = vpack.c.b16 %v3021, %v3019
        %v3034 = vpack.c.b16 %v3024, %v3022
        %v3035 = vpack.c.b16 %v3025, %v3023
        %v3036 = vpack.c.b16 %v3028, %v3026
        %v3037 = vpack.c.b16 %v3029, %v3027
        %v3047 = vsel %vm1471, %v2993, 0
        %v3050 = vsel %vm1471, %v2994, 0
        %3052 = vmatprep.subr.bf16.mxu0 %v3031
        %3053 = vmatpush1.bf16.msra.mxu0 %v3030
        %3054 = vmatprep.subr.bf16.mxu0 %v3033
        %3055 = vmatpush1.bf16.msra.mxu0 %v3032
        %3056 = vmatprep.subr.bf16.mxu0 %v3035
        %3057 = vmatpush1.bf16.msra.mxu0 %v3034
        %3058 = vmatprep.subr.bf16.mxu0 %v3037
        %3059 = vmatpush1.bf16.msra.mxu0 %v3036
        %3060 = vmatprep.subr.bf16.mxu0 0
        %3061 = vmatpush1.bf16.msra.mxu0 0
        %3062 = vmatprep.subr.bf16.mxu0 0
        %3063 = vmatpush1.bf16.msra.mxu0 0
        %3064 = vmatprep.subr.bf16.mxu0 0
        %3065 = vmatpush1.bf16.msra.mxu0 0
        %3066 = vmatprep.subr.bf16.mxu0 0
        %3067 = vmatpush1.bf16.msra.mxu0 0
        %3068 = vmatprep.subr.bf16.mxu0 0
        %3069 = vmatpush1.bf16.msra.mxu0 0
        %3070 = vmatprep.subr.bf16.mxu0 0
        %3071 = vmatpush1.bf16.msra.mxu0 0
        %3072 = vmatprep.subr.bf16.mxu0 0
        %3073 = vmatpush1.bf16.msra.mxu0 0
        %3074 = vmatprep.subr.bf16.mxu0 0
        %3075 = vmatpush1.bf16.msra.mxu0 0
        %3076 = vmatprep.subr.bf16.mxu0 0
        %3077 = vmatpush1.bf16.msra.mxu0 0
        %3078 = vmatprep.subr.bf16.mxu0 0
        %3079 = vmatpush1.bf16.msra.mxu0 0
        %3080 = vmatprep.subr.bf16.mxu0 0
        %3081 = vmatpush1.bf16.msra.mxu0 0
        %3082 = vmatprep.subr.bf16.mxu0 0
        %3083 = vmatpush1.bf16.msra.mxu0 0
        %3084 = vmatprep.mubr.bf16.mxu0 0
        %3085 = vmatmul.mubr.bf16.gmra.mrb[0].mxu0 %v3047
        %v3086 = vpop.f32.mrb[0].mxu0
        %v3087 = vadd.f32 %v2999, %v3086
        %v3088 = vpop.f32.mrb[0].mxu0
        %v3089 = vadd.f32 %v3003, %v3088
        %v3090 = vpop.f32.mrb[0].mxu0
        %v3091 = vadd.f32 %v2999, %v3090
        %v3092 = vpop.f32.mrb[0].mxu0
        %v3093 = vadd.f32 %v3003, %v3092
        %3094 = vmatprep.mubr.bf16.mxu0 0
        %3095 = vmatmul.mubr.bf16.gmra.mrb[0].mxu0 %v3050
        %v3096 = vpop.f32.mrb[0].mxu0
        %v3097 = vadd.f32 %v2999, %v3096
        %v3098 = vpop.f32.mrb[0].mxu0
        %v3099 = vadd.f32 %v3003, %v3098
        %v3100 = vpop.f32.mrb[0].mxu0
        %v3101 = vadd.f32 %v2999, %v3100
        %v3102 = vpop.f32.mrb[0].mxu0
        %v3103 = vadd.f32 %v3003, %v3102
        %3104 = vdwg.mxu0
        %v3105 = vadd.f32 %v3087, %v2466
        %v3106 = vadd.f32 %v3089, %v2467
        %v3107 = vadd.f32 %v3091, %v2468
        %v3108 = vadd.f32 %v3093, %v2469
        %v3109 = vadd.f32 %v3097, %v2470
        %v3110 = vadd.f32 %v3099, %v2471
        %v3111 = vadd.f32 %v3101, %v2472
        %v3112 = vadd.f32 %v3103, %v2473
        %v3113 = vmax.f32 %v3105, 0.0
        %v3114 = vmax.f32 %v3106, 0.0
        %v3115 = vmax.f32 %v3107, 0.0
        %v3116 = vmax.f32 %v3108, 0.0
        %v3117 = vmax.f32 %v3109, 0.0
        %v3118 = vmax.f32 %v3110, 0.0
        %v3119 = vmax.f32 %v3111, 0.0
        %v3120 = vmax.f32 %v3112, 0.0
        %3121 = vst [vmem:[%s871] sm:$0xff] %v3113
        %3122 = vst [vmem:[%s871 + $0x8] sm:$0xff] %v3114
        %3123 = vst [vmem:[%s871 + $0x10] sm:$0xff] %v3115
        %3124 = vst [vmem:[%s871 + $0x18] sm:$0xff] %v3116
        %3125 = vst [vmem:[%s871 + $0x20] sm:$0xff] %v3117
        %3126 = vst [vmem:[%s871 + $0x28] sm:$0xff] %v3118
        %3127 = vst [vmem:[%s871 + $0x30] sm:$0xff] %v3119
        %3128 = vst [vmem:[%s871 + $0x38] sm:$0xff] %v3120
        %s3129 = scalar_lea.vmem %s824, 64
        %v3130 = vld [vmem:[%s3129] sm:$0xf]
        %v3131 = vld [vmem:[%s3129 + $0x4] sm:$0xf]
        %v3132 = vld [vmem:[%s3129 + $0x8] sm:$0xf]
        %v3133 = vld [vmem:[%s3129 + $0xc] sm:$0xf]
        %v3134 = vld [vmem:[%s3129 + $0x10] sm:$0xf]
        %v3135 = vld [vmem:[%s3129 + $0x14] sm:$0xf]
        %v3136 = vld [vmem:[%s3129 + $0x18] sm:$0xf]
        %v3137 = vld [vmem:[%s3129 + $0x1c] sm:$0xf]
        %v3138 = vld [vmem:[%s3129 + $0x20] sm:$0xf]
        %v3139 = vld [vmem:[%s3129 + $0x24] sm:$0xf]
        %v3140 = vld [vmem:[%s3129 + $0x28] sm:$0xf]
        %v3141 = vld [vmem:[%s3129 + $0x2c] sm:$0xf]
        %v3142 = vld [vmem:[%s3129 + $0x30] sm:$0xf]
        %v3143 = vld [vmem:[%s3129 + $0x34] sm:$0xf]
        %v3144 = vld [vmem:[%s3129 + $0x38] sm:$0xf]
        %v3145 = vld [vmem:[%s3129 + $0x3c] sm:$0xf]
        %s3146 = scalar_lea.vmem %s828, 1
        %v3147 = vld [vmem:[%s3146] sm:$0x1]
        %s3148 = scalar_lea.vmem %s833, 96
        %v3149 = vld [vmem:[%s3148] sm:$0xf]
        %v3150 = vld [vmem:[%s3148 + $0x4] sm:$0xf]
        %v3151 = vld [vmem:[%s3148 + $0x8] sm:$0xf]
        %v3152 = vld [vmem:[%s3148 + $0xc] sm:$0xf]
        %v3153 = vld [vmem:[%s3148 + $0x10] sm:$0xf]
        %v3154 = vld [vmem:[%s3148 + $0x14] sm:$0xf]
        %v3155 = vld [vmem:[%s3148 + $0x18] sm:$0xf]
        %v3156 = vld [vmem:[%s3148 + $0x1c] sm:$0xf]
        %s3157 = scalar_lea.vmem %s833, 128
        %v3158 = vld [vmem:[%s3157] sm:$0xf]
        %v3159 = vld [vmem:[%s3157 + $0x4] sm:$0xf]
        %v3160 = vld [vmem:[%s3157 + $0x8] sm:$0xf]
        %v3161 = vld [vmem:[%s3157 + $0xc] sm:$0xf]
        %v3162 = vld [vmem:[%s3157 + $0x10] sm:$0xf]
        %v3163 = vld [vmem:[%s3157 + $0x14] sm:$0xf]
        %v3164 = vld [vmem:[%s3157 + $0x18] sm:$0xf]
        %v3165 = vld [vmem:[%s3157 + $0x1c] sm:$0xf]
        %s3166 = scalar_lea.vmem %s833, 160
        %v3167 = vld [vmem:[%s3166] sm:$0xf]
        %v3168 = vld [vmem:[%s3166 + $0x4] sm:$0xf]
        %v3169 = vld [vmem:[%s3166 + $0x8] sm:$0xf]
        %v3170 = vld [vmem:[%s3166 + $0xc] sm:$0xf]
        %v3171 = vld [vmem:[%s3166 + $0x10] sm:$0xf]
        %v3172 = vld [vmem:[%s3166 + $0x14] sm:$0xf]
        %v3173 = vld [vmem:[%s3166 + $0x18] sm:$0xf]
        %v3174 = vld [vmem:[%s3166 + $0x1c] sm:$0xf]
        %s3175 = scalar_lea.vmem %s692, 1 [#allocation4]
        %v3176 = vld [vmem:[%s3175] sm:$0x1]
        %s3177 = scalar_lea.vmem %s838, 64
        %v3178 = vld [vmem:[%s3177] sm:$0xff]
        %v3179 = vld [vmem:[%s3177 + $0x8] sm:$0xff]
        %v3180 = vld [vmem:[%s3177 + $0x10] sm:$0xff]
        %v3181 = vld [vmem:[%s3177 + $0x18] sm:$0xff]
        %v3182 = vld [vmem:[%s3177 + $0x20] sm:$0xff]
        %v3183 = vld [vmem:[%s3177 + $0x28] sm:$0xff]
        %v3184 = vld [vmem:[%s3177 + $0x30] sm:$0xff]
        %v3185 = vld [vmem:[%s3177 + $0x38] sm:$0xff]
        %s3186 = scalar_lea.vmem %s842, 2
        %v3187 = vld [vmem:[%s3186] sm:$0x3]
        %v3189 = vlaneseq
        %v3190 = vshrl.u32 %v3189, 7
        %v3191 = vsub.s32 0, %v3190
        %v3192 = vrot.slane %v3147, %v3191
        %v3210 = vunpack.c.l.b16 %v3130
        %v3211 = vunpack.c.l.b16 %v3131
        %v3212 = vunpack.c.l.b16 %v3132
        %v3213 = vunpack.c.l.b16 %v3133
        %v3214 = vunpack.c.l.b16 %v3134
        %v3215 = vunpack.c.l.b16 %v3135
        %v3216 = vunpack.c.l.b16 %v3136
        %v3217 = vunpack.c.l.b16 %v3137
        %v3218 = vunpack.c.l.b16 %v3138
        %v3219 = vunpack.c.l.b16 %v3139
        %v3220 = vunpack.c.l.b16 %v3140
        %v3221 = vunpack.c.l.b16 %v3141
        %v3222 = vunpack.c.l.b16 %v3142
        %v3223 = vunpack.c.l.b16 %v3143
        %v3224 = vunpack.c.l.b16 %v3144
        %v3225 = vunpack.c.l.b16 %v3145
        %v3226 = vpack.c.b16 %v3211, %v3210
        %v3227 = vpack.c.b16 %v3213, %v3212
        %v3228 = vpack.c.b16 %v3215, %v3214
        %v3229 = vpack.c.b16 %v3217, %v3216
        %v3230 = vpack.c.b16 %v3219, %v3218
        %v3231 = vpack.c.b16 %v3221, %v3220
        %v3232 = vpack.c.b16 %v3223, %v3222
        %v3233 = vpack.c.b16 %v3225, %v3224
        %3242 = vmatprep.subr.bf16.mxu0 0
        %3243 = vmatpush1.bf16.msra.mxu0 %v3226
        %3244 = vmatprep.subr.bf16.mxu0 0
        %3245 = vmatpush1.bf16.msra.mxu0 %v3227
        %3246 = vmatprep.subr.bf16.mxu0 0
        %3247 = vmatpush1.bf16.msra.mxu0 %v3228
        %3248 = vmatprep.subr.bf16.mxu0 0
        %3249 = vmatpush1.bf16.msra.mxu0 %v3229
        %3250 = vmatprep.subr.bf16.mxu0 0
        %3251 = vmatpush1.bf16.msra.mxu0 %v3230
        %3252 = vmatprep.subr.bf16.mxu0 0
        %3253 = vmatpush1.bf16.msra.mxu0 %v3231
        %3254 = vmatprep.subr.bf16.mxu0 0
        %3255 = vmatpush1.bf16.msra.mxu0 %v3232
        %3256 = vmatprep.subr.bf16.mxu0 0
        %3257 = vmatpush1.bf16.msra.mxu0 %v3233
        %3258 = vmatprep.subr.bf16.mxu0 0
        %3259 = vmatpush1.bf16.msra.mxu0 0
        %3260 = vmatprep.subr.bf16.mxu0 0
        %3261 = vmatpush1.bf16.msra.mxu0 0
        %3262 = vmatprep.subr.bf16.mxu0 0
        %3263 = vmatpush1.bf16.msra.mxu0 0
        %3264 = vmatprep.subr.bf16.mxu0 0
        %3265 = vmatpush1.bf16.msra.mxu0 0
        %3266 = vmatprep.subr.bf16.mxu0 0
        %3267 = vmatpush1.bf16.msra.mxu0 0
        %3268 = vmatprep.subr.bf16.mxu0 0
        %3269 = vmatpush1.bf16.msra.mxu0 0
        %3270 = vmatprep.subr.bf16.mxu0 0
        %3271 = vmatpush1.bf16.msra.mxu0 0
        %3272 = vmatprep.subr.bf16.mxu0 0
        %3273 = vmatpush1.bf16.msra.mxu0 0
        %3274 = vmatprep.mubr.bf16.mxu0 0
        %3275 = vmatmul.mubr.bf16.gmra.mrb[0].mxu0 %v1017
        %v3276 = vpop.f32.mrb[0].mxu0
        %v3277 = vadd.f32 %v3192, %v3276
        %v3278 = vpop.f32.mrb[0].mxu0
        %v3279 = vpop.f32.mrb[0].mxu0
        %v3280 = vadd.f32 %v3192, %v3279
        %v3281 = vpop.f32.mrb[0].mxu0
        %3282 = vmatprep.mubr.bf16.mxu0 0
        %3283 = vmatmul.mubr.bf16.gmra.mrb[0].mxu0 %v1018
        %v3284 = vpop.f32.mrb[0].mxu0
        %v3285 = vadd.f32 %v3192, %v3284
        %v3286 = vpop.f32.mrb[0].mxu0
        %v3287 = vpop.f32.mrb[0].mxu0
        %v3288 = vadd.f32 %v3192, %v3287
        %v3289 = vpop.f32.mrb[0].mxu0
        %3290 = vdwg.mxu0
        %v3291 = vmax.f32 %v3277, 0.0
        %v3292 = vmax.f32 %v3280, 0.0
        %v3293 = vmax.f32 %v3285, 0.0
        %v3294 = vmax.f32 %v3288, 0.0
        %v3295 = vrot.slane %v3291, 7
        %v3296 = vrot.slane %v3292, 7
        %v3297 = vrot.slane %v3293, 7
        %v3298 = vrot.slane %v3294, 7
        %v3299 = vsel %vm1421, %v3297, %v3298
        %v3300 = vsel %vm1421, %v3296, %v3297
        %v3301 = vsel %vm1421, %v3295, %v3296
        %v3302 = vsel %vm1421, %v3298, %v3295
        %v3303 = vmul.f32 %v3302, %v1241
        %v3304 = vmul.f32 %v3301, %v1242
        %v3305 = vmul.f32 %v3300, %v1243
        %v3306 = vmul.f32 %v3299, %v1244
        %v3307 = vrot.slane %v3291, 1
        %v3308 = vrot.slane %v3292, 1
        %v3309 = vrot.slane %v3293, 1
        %v3310 = vrot.slane %v3294, 1
        %v3311 = vsel %vm1434, %v3309, %v3310
        %v3312 = vsel %vm1434, %v3308, %v3309
        %v3313 = vsel %vm1434, %v3307, %v3308
        %v3314 = vsel %vm1434, %v3310, %v3307
        %v3315 = vmul.f32 %v3313, %v1253
        %v3316 = vmul.f32 %v3312, %v1254
        %v3317 = vmul.f32 %v3311, %v1255
        %v3318 = vmul.f32 %v3314, %v1256
        %v3319 = vpack.c.bf16 %v3292, %v3291
        %v3320 = vpack.c.bf16 %v3294, %v3293
        %v3321 = vpack.c.bf16 %v3304, %v3303
        %v3322 = vpack.c.bf16 %v3306, %v3305
        %v3331 = vunpack.c.l.b16 %v3149
        %v3332 = vunpack.c.l.b16 %v3150
        %v3333 = vunpack.c.l.b16 %v3151
        %v3334 = vunpack.c.l.b16 %v3152
        %v3335 = vunpack.c.l.b16 %v3153
        %v3336 = vunpack.c.l.b16 %v3154
        %v3337 = vunpack.c.l.b16 %v3155
        %v3338 = vunpack.c.l.b16 %v3156
        %v3339 = vpack.c.b16 %v3332, %v3331
        %v3340 = vpack.c.b16 %v3334, %v3333
        %v3341 = vpack.c.b16 %v3336, %v3335
        %v3342 = vpack.c.b16 %v3338, %v3337
        %v3348 = vsel %vm1471, %v3321, 0
        %v3351 = vsel %vm1471, %v3322, 0
        %3353 = vmatprep.subr.bf16.mxu0 0
        %3354 = vmatpush1.bf16.msra.mxu0 %v3339
        %3355 = vmatprep.subr.bf16.mxu0 0
        %3356 = vmatpush1.bf16.msra.mxu0 %v3340
        %3357 = vmatprep.subr.bf16.mxu0 0
        %3358 = vmatpush1.bf16.msra.mxu0 %v3341
        %3359 = vmatprep.subr.bf16.mxu0 0
        %3360 = vmatpush1.bf16.msra.mxu0 %v3342
        %3361 = vmatprep.subr.bf16.mxu0 0
        %3362 = vmatpush1.bf16.msra.mxu0 0
        %3363 = vmatprep.subr.bf16.mxu0 0
        %3364 = vmatpush1.bf16.msra.mxu0 0
        %3365 = vmatprep.subr.bf16.mxu0 0
        %3366 = vmatpush1.bf16.msra.mxu0 0
        %3367 = vmatprep.subr.bf16.mxu0 0
        %3368 = vmatpush1.bf16.msra.mxu0 0
        %3369 = vmatprep.subr.bf16.mxu0 0
        %3370 = vmatpush1.bf16.msra.mxu0 0
        %3371 = vmatprep.subr.bf16.mxu0 0
        %3372 = vmatpush1.bf16.msra.mxu0 0
        %3373 = vmatprep.subr.bf16.mxu0 0
        %3374 = vmatpush1.bf16.msra.mxu0 0
        %3375 = vmatprep.subr.bf16.mxu0 0
        %3376 = vmatpush1.bf16.msra.mxu0 0
        %3377 = vmatprep.subr.bf16.mxu0 0
        %3378 = vmatpush1.bf16.msra.mxu0 0
        %3379 = vmatprep.subr.bf16.mxu0 0
        %3380 = vmatpush1.bf16.msra.mxu0 0
        %3381 = vmatprep.subr.bf16.mxu0 0
        %3382 = vmatpush1.bf16.msra.mxu0 0
        %3383 = vmatprep.subr.bf16.mxu0 0
        %3384 = vmatpush1.bf16.msra.mxu0 0
        %3385 = vmatprep.mubr.bf16.mxu0 0
        %3386 = vmatmul.mubr.bf16.gmra.mrb[0].mxu0 %v3348
        %v3387 = vpop.f32.mrb[0].mxu0
        %v3388 = vadd.f32 0.0, %v3387
        %v3389 = vpop.f32.mrb[0].mxu0
        %v3390 = vpop.f32.mrb[0].mxu0
        %v3391 = vadd.f32 0.0, %v3390
        %v3392 = vpop.f32.mrb[0].mxu0
        %3393 = vmatprep.mubr.bf16.mxu0 0
        %3394 = vmatmul.mubr.bf16.gmra.mrb[0].mxu0 %v3351
        %v3395 = vpop.f32.mrb[0].mxu0
        %v3396 = vadd.f32 0.0, %v3395
        %v3397 = vpop.f32.mrb[0].mxu0
        %v3398 = vpop.f32.mrb[0].mxu0
        %v3399 = vadd.f32 0.0, %v3398
        %v3400 = vpop.f32.mrb[0].mxu0
        %3401 = vdwg.mxu0
        %v3410 = vunpack.c.l.b16 %v3158
        %v3411 = vunpack.c.l.b16 %v3159
        %v3412 = vunpack.c.l.b16 %v3160
        %v3413 = vunpack.c.l.b16 %v3161
        %v3414 = vunpack.c.l.b16 %v3162
        %v3415 = vunpack.c.l.b16 %v3163
        %v3416 = vunpack.c.l.b16 %v3164
        %v3417 = vunpack.c.l.b16 %v3165
        %v3418 = vpack.c.b16 %v3411, %v3410
        %v3419 = vpack.c.b16 %v3413, %v3412
        %v3420 = vpack.c.b16 %v3415, %v3414
        %v3421 = vpack.c.b16 %v3417, %v3416
        %v3427 = vsel %vm1471, %v3319, 0
        %v3430 = vsel %vm1471, %v3320, 0
        %3432 = vmatprep.subr.bf16.mxu0 0
        %3433 = vmatpush1.bf16.msra.mxu0 %v3418
        %3434 = vmatprep.subr.bf16.mxu0 0
        %3435 = vmatpush1.bf16.msra.mxu0 %v3419
        %3436 = vmatprep.subr.bf16.mxu0 0
        %3437 = vmatpush1.bf16.msra.mxu0 %v3420
        %3438 = vmatprep.subr.bf16.mxu0 0
        %3439 = vmatpush1.bf16.msra.mxu0 %v3421
        %3440 = vmatprep.subr.bf16.mxu0 0
        %3441 = vmatpush1.bf16.msra.mxu0 0
        %3442 = vmatprep.subr.bf16.mxu0 0
        %3443 = vmatpush1.bf16.msra.mxu0 0
        %3444 = vmatprep.subr.bf16.mxu0 0
        %3445 = vmatpush1.bf16.msra.mxu0 0
        %3446 = vmatprep.subr.bf16.mxu0 0
        %3447 = vmatpush1.bf16.msra.mxu0 0
        %3448 = vmatprep.subr.bf16.mxu0 0
        %3449 = vmatpush1.bf16.msra.mxu0 0
        %3450 = vmatprep.subr.bf16.mxu0 0
        %3451 = vmatpush1.bf16.msra.mxu0 0
        %3452 = vmatprep.subr.bf16.mxu0 0
        %3453 = vmatpush1.bf16.msra.mxu0 0
        %3454 = vmatprep.subr.bf16.mxu0 0
        %3455 = vmatpush1.bf16.msra.mxu0 0
        %3456 = vmatprep.subr.bf16.mxu0 0
        %3457 = vmatpush1.bf16.msra.mxu0 0
        %3458 = vmatprep.subr.bf16.mxu0 0
        %3459 = vmatpush1.bf16.msra.mxu0 0
        %3460 = vmatprep.subr.bf16.mxu0 0
        %3461 = vmatpush1.bf16.msra.mxu0 0
        %3462 = vmatprep.subr.bf16.mxu0 0
        %3463 = vmatpush1.bf16.msra.mxu0 0
        %3464 = vmatprep.mubr.bf16.mxu0 0
        %3465 = vmatmul.mubr.bf16.gmra.mrb[0].mxu0 %v3427
        %v3466 = vpop.f32.mrb[0].mxu0
        %v3467 = vadd.f32 %v3388, %v3466
        %v3468 = vpop.f32.mrb[0].mxu0
        %v3469 = vpop.f32.mrb[0].mxu0
        %v3470 = vadd.f32 %v3391, %v3469
        %v3471 = vpop.f32.mrb[0].mxu0
        %3472 = vmatprep.mubr.bf16.mxu0 0
        %3473 = vmatmul.mubr.bf16.gmra.mrb[0].mxu0 %v3430
        %v3474 = vpop.f32.mrb[0].mxu0
        %v3475 = vadd.f32 %v3396, %v3474
        %v3476 = vpop.f32.mrb[0].mxu0
        %v3477 = vpop.f32.mrb[0].mxu0
        %v3478 = vadd.f32 %v3399, %v3477
        %v3479 = vpop.f32.mrb[0].mxu0
        %3480 = vdwg.mxu0
        %v3481 = vpack.c.bf16 %v3316, %v3315
        %v3482 = vpack.c.bf16 %v3318, %v3317
        %v3491 = vunpack.c.l.b16 %v3167
        %v3492 = vunpack.c.l.b16 %v3168
        %v3493 = vunpack.c.l.b16 %v3169
        %v3494 = vunpack.c.l.b16 %v3170
        %v3495 = vunpack.c.l.b16 %v3171
        %v3496 = vunpack.c.l.b16 %v3172
        %v3497 = vunpack.c.l.b16 %v3173
        %v3498 = vunpack.c.l.b16 %v3174
        %v3499 = vpack.c.b16 %v3492, %v3491
        %v3500 = vpack.c.b16 %v3494, %v3493
        %v3501 = vpack.c.b16 %v3496, %v3495
        %v3502 = vpack.c.b16 %v3498, %v3497
        %v3508 = vsel %vm1471, %v3481, 0
        %v3511 = vsel %vm1471, %v3482, 0
        %3513 = vmatprep.subr.bf16.mxu0 0
        %3514 = vmatpush1.bf16.msra.mxu0 %v3499
        %3515 = vmatprep.subr.bf16.mxu0 0
        %3516 = vmatpush1.bf16.msra.mxu0 %v3500
        %3517 = vmatprep.subr.bf16.mxu0 0
        %3518 = vmatpush1.bf16.msra.mxu0 %v3501
        %3519 = vmatprep.subr.bf16.mxu0 0
        %3520 = vmatpush1.bf16.msra.mxu0 %v3502
        %3521 = vmatprep.subr.bf16.mxu0 0
        %3522 = vmatpush1.bf16.msra.mxu0 0
        %3523 = vmatprep.subr.bf16.mxu0 0
        %3524 = vmatpush1.bf16.msra.mxu0 0
        %3525 = vmatprep.subr.bf16.mxu0 0
        %3526 = vmatpush1.bf16.msra.mxu0 0
        %3527 = vmatprep.subr.bf16.mxu0 0
        %3528 = vmatpush1.bf16.msra.mxu0 0
        %3529 = vmatprep.subr.bf16.mxu0 0
        %3530 = vmatpush1.bf16.msra.mxu0 0
        %3531 = vmatprep.subr.bf16.mxu0 0
        %3532 = vmatpush1.bf16.msra.mxu0 0
        %3533 = vmatprep.subr.bf16.mxu0 0
        %3534 = vmatpush1.bf16.msra.mxu0 0
        %3535 = vmatprep.subr.bf16.mxu0 0
        %3536 = vmatpush1.bf16.msra.mxu0 0
        %3537 = vmatprep.subr.bf16.mxu0 0
        %3538 = vmatpush1.bf16.msra.mxu0 0
        %3539 = vmatprep.subr.bf16.mxu0 0
        %3540 = vmatpush1.bf16.msra.mxu0 0
        %3541 = vmatprep.subr.bf16.mxu0 0
        %3542 = vmatpush1.bf16.msra.mxu0 0
        %3543 = vmatprep.subr.bf16.mxu0 0
        %3544 = vmatpush1.bf16.msra.mxu0 0
        %3545 = vmatprep.mubr.bf16.mxu0 0
        %3546 = vmatmul.mubr.bf16.gmra.mrb[0].mxu0 %v3508
        %v3547 = vpop.f32.mrb[0].mxu0
        %v3548 = vadd.f32 0.0, %v3547
        %v3549 = vpop.f32.mrb[0].mxu0
        %v3550 = vpop.f32.mrb[0].mxu0
        %v3551 = vadd.f32 0.0, %v3550
        %v3552 = vpop.f32.mrb[0].mxu0
        %3553 = vmatprep.mubr.bf16.mxu0 0
        %3554 = vmatmul.mubr.bf16.gmra.mrb[0].mxu0 %v3511
        %v3555 = vpop.f32.mrb[0].mxu0
        %v3556 = vadd.f32 0.0, %v3555
        %v3557 = vpop.f32.mrb[0].mxu0
        %v3558 = vpop.f32.mrb[0].mxu0
        %v3559 = vadd.f32 0.0, %v3558
        %v3560 = vpop.f32.mrb[0].mxu0
        %3561 = vdwg.mxu0
        %v3562 = vadd.f32 %v3467, %v3548
        %v3563 = vadd.f32 %v3470, %v3551
        %v3564 = vadd.f32 %v3475, %v3556
        %v3565 = vadd.f32 %v3478, %v3559
        %v3567 = vlaneseq
        %v3568 = vshrl.u32 %v3567, 7
        %v3569 = vsub.s32 0, %v3568
        %v3570 = vrot.slane %v3176, %v3569
        %v3572 = vadd.f32 %v3562, %v3570
        %v3573 = vadd.f32 %v3563, %v3570
        %v3574 = vadd.f32 %v3564, %v3570
        %v3575 = vadd.f32 %v3565, %v3570
        %v3576 = vmax.f32 %v3572, 0.0
        %v3577 = vmax.f32 %v3573, 0.0
        %v3578 = vmax.f32 %v3574, 0.0
        %v3579 = vmax.f32 %v3575, 0.0
        %v3580 = vpack.c.bf16 %v3577, %v3576
        %v3581 = vpack.c.bf16 %v3579, %v3578
        %v3583 = vlaneseq
        %v3584 = vshrl.u32 %v3583, 7
        %v3585 = vsub.s32 0, %v3584
        %v3586 = vrot.slane %v3187, %v3585
        %v3587 = vlaneseq
        %v3588 = vshrl.u32 %v3587, 7
        %v3589 = vsub.s32 1, %v3588
        %v3590 = vrot.slane %v3187, %v3589
        %v3601 = vunpack.c.l.b16 %v3178
        %v3602 = vunpack.c.h.b16 %v3178
        %v3603 = vunpack.c.l.b16 %v3179
        %v3604 = vunpack.c.h.b16 %v3179
        %v3605 = vunpack.c.l.b16 %v3180
        %v3606 = vunpack.c.h.b16 %v3180
        %v3607 = vunpack.c.l.b16 %v3181
        %v3608 = vunpack.c.h.b16 %v3181
        %v3609 = vunpack.c.l.b16 %v3182
        %v3610 = vunpack.c.h.b16 %v3182
        %v3611 = vunpack.c.l.b16 %v3183
        %v3612 = vunpack.c.h.b16 %v3183
        %v3613 = vunpack.c.l.b16 %v3184
        %v3614 = vunpack.c.h.b16 %v3184
        %v3615 = vunpack.c.l.b16 %v3185
        %v3616 = vunpack.c.h.b16 %v3185
        %v3617 = vpack.c.b16 %v3603, %v3601
        %v3618 = vpack.c.b16 %v3604, %v3602
        %v3619 = vpack.c.b16 %v3607, %v3605
        %v3620 = vpack.c.b16 %v3608, %v3606
        %v3621 = vpack.c.b16 %v3611, %v3609
        %v3622 = vpack.c.b16 %v3612, %v3610
        %v3623 = vpack.c.b16 %v3615, %v3613
        %v3624 = vpack.c.b16 %v3616, %v3614
        %v3634 = vsel %vm1471, %v3580, 0
        %v3637 = vsel %vm1471, %v3581, 0
        %3639 = vmatprep.subr.bf16.mxu0 %v3618
        %3640 = vmatpush1.bf16.msra.mxu0 %v3617
        %3641 = vmatprep.subr.bf16.mxu0 %v3620
        %3642 = vmatpush1.bf16.msra.mxu0 %v3619
        %3643 = vmatprep.subr.bf16.mxu0 %v3622
        %3644 = vmatpush1.bf16.msra.mxu0 %v3621
        %3645 = vmatprep.subr.bf16.mxu0 %v3624
        %3646 = vmatpush1.bf16.msra.mxu0 %v3623
        %3647 = vmatprep.subr.bf16.mxu0 0
        %3648 = vmatpush1.bf16.msra.mxu0 0
        %3649 = vmatprep.subr.bf16.mxu0 0
        %3650 = vmatpush1.bf16.msra.mxu0 0
        %3651 = vmatprep.subr.bf16.mxu0 0
        %3652 = vmatpush1.bf16.msra.mxu0 0
        %3653 = vmatprep.subr.bf16.mxu0 0
        %3654 = vmatpush1.bf16.msra.mxu0 0
        %3655 = vmatprep.subr.bf16.mxu0 0
        %3656 = vmatpush1.bf16.msra.mxu0 0
        %3657 = vmatprep.subr.bf16.mxu0 0
        %3658 = vmatpush1.bf16.msra.mxu0 0
        %3659 = vmatprep.subr.bf16.mxu0 0
        %3660 = vmatpush1.bf16.msra.mxu0 0
        %3661 = vmatprep.subr.bf16.mxu0 0
        %3662 = vmatpush1.bf16.msra.mxu0 0
        %3663 = vmatprep.subr.bf16.mxu0 0
        %3664 = vmatpush1.bf16.msra.mxu0 0
        %3665 = vmatprep.subr.bf16.mxu0 0
        %3666 = vmatpush1.bf16.msra.mxu0 0
        %3667 = vmatprep.subr.bf16.mxu0 0
        %3668 = vmatpush1.bf16.msra.mxu0 0
        %3669 = vmatprep.subr.bf16.mxu0 0
        %3670 = vmatpush1.bf16.msra.mxu0 0
        %3671 = vmatprep.mubr.bf16.mxu0 0
        %3672 = vmatmul.mubr.bf16.gmra.mrb[0].mxu0 %v3634
        %v3673 = vpop.f32.mrb[0].mxu0
        %v3674 = vadd.f32 %v3586, %v3673
        %v3675 = vpop.f32.mrb[0].mxu0
        %v3676 = vadd.f32 %v3590, %v3675
        %v3677 = vpop.f32.mrb[0].mxu0
        %v3678 = vadd.f32 %v3586, %v3677
        %v3679 = vpop.f32.mrb[0].mxu0
        %v3680 = vadd.f32 %v3590, %v3679
        %3681 = vmatprep.mubr.bf16.mxu0 0
        %3682 = vmatmul.mubr.bf16.gmra.mrb[0].mxu0 %v3637
        %v3683 = vpop.f32.mrb[0].mxu0
        %v3684 = vadd.f32 %v3586, %v3683
        %v3685 = vpop.f32.mrb[0].mxu0
        %v3686 = vadd.f32 %v3590, %v3685
        %v3687 = vpop.f32.mrb[0].mxu0
        %v3688 = vadd.f32 %v3586, %v3687
        %v3689 = vpop.f32.mrb[0].mxu0
        %v3690 = vadd.f32 %v3590, %v3689
        %3691 = vdwg.mxu0
        %v3692 = vadd.f32 %v3674, %v1162
        %v3693 = vadd.f32 %v3676, %v1164
        %v3694 = vadd.f32 %v3678, %v1166
        %v3695 = vadd.f32 %v3680, %v1168
        %v3696 = vadd.f32 %v3684, %v1172
        %v3697 = vadd.f32 %v3686, %v1174
        %v3698 = vadd.f32 %v3688, %v1176
        %v3699 = vadd.f32 %v3690, %v1178
        %v3700 = vmax.f32 %v3692, 0.0
        %v3701 = vmax.f32 %v3693, 0.0
        %v3702 = vmax.f32 %v3694, 0.0
        %v3703 = vmax.f32 %v3695, 0.0
        %v3704 = vmax.f32 %v3696, 0.0
        %v3705 = vmax.f32 %v3697, 0.0
        %v3706 = vmax.f32 %v3698, 0.0
        %v3707 = vmax.f32 %v3699, 0.0
        %v3708 = vpack.c.bf16 %v3702, %v3700
        %v3709 = vpack.c.bf16 %v3703, %v3701
        %v3710 = vpack.c.bf16 %v3706, %v3704
        %v3711 = vpack.c.bf16 %v3707, %v3705
        %s3712 = scalar_lea.vmem %s847, 256
        %v3713 = vld [vmem:[%s3712] sm:$0xf]
        %v3714 = vld [vmem:[%s3712 + $0x4] sm:$0xf]
        %v3715 = vld [vmem:[%s3712 + $0x8] sm:$0xf]
        %v3716 = vld [vmem:[%s3712 + $0xc] sm:$0xf]
        %v3717 = vld [vmem:[%s3712 + $0x10] sm:$0xf]
        %v3718 = vld [vmem:[%s3712 + $0x14] sm:$0xf]
        %v3719 = vld [vmem:[%s3712 + $0x18] sm:$0xf]
        %v3720 = vld [vmem:[%s3712 + $0x1c] sm:$0xf]
        %v3721 = vld [vmem:[%s3712 + $0x20] sm:$0xf]
        %v3722 = vld [vmem:[%s3712 + $0x24] sm:$0xf]
        %v3723 = vld [vmem:[%s3712 + $0x28] sm:$0xf]
        %v3724 = vld [vmem:[%s3712 + $0x2c] sm:$0xf]
        %v3725 = vld [vmem:[%s3712 + $0x30] sm:$0xf]
        %v3726 = vld [vmem:[%s3712 + $0x34] sm:$0xf]
        %v3727 = vld [vmem:[%s3712 + $0x38] sm:$0xf]
        %v3728 = vld [vmem:[%s3712 + $0x3c] sm:$0xf]
        %v3729 = vld [vmem:[%s3712 + $0x40] sm:$0xf]
        %v3730 = vld [vmem:[%s3712 + $0x44] sm:$0xf]
        %v3731 = vld [vmem:[%s3712 + $0x48] sm:$0xf]
        %v3732 = vld [vmem:[%s3712 + $0x4c] sm:$0xf]
        %v3733 = vld [vmem:[%s3712 + $0x50] sm:$0xf]
        %v3734 = vld [vmem:[%s3712 + $0x54] sm:$0xf]
        %v3735 = vld [vmem:[%s3712 + $0x58] sm:$0xf]
        %v3736 = vld [vmem:[%s3712 + $0x5c] sm:$0xf]
        %v3737 = vld [vmem:[%s3712 + $0x60] sm:$0xf]
        %v3738 = vld [vmem:[%s3712 + $0x64] sm:$0xf]
        %v3739 = vld [vmem:[%s3712 + $0x68] sm:$0xf]
        %v3740 = vld [vmem:[%s3712 + $0x6c] sm:$0xf]
        %v3741 = vld [vmem:[%s3712 + $0x70] sm:$0xf]
        %v3742 = vld [vmem:[%s3712 + $0x74] sm:$0xf]
        %v3743 = vld [vmem:[%s3712 + $0x78] sm:$0xf]
        %v3744 = vld [vmem:[%s3712 + $0x7c] sm:$0xf]
        %s3745 = scalar_lea.vmem %s701, 2 [#allocation6]
        %v3746 = vld [vmem:[%s3745] sm:$0x1]
        %s3747 = scalar_lea.vmem %s852, 192
        %v3748 = vld [vmem:[%s3747] sm:$0xf]
        %v3749 = vld [vmem:[%s3747 + $0x4] sm:$0xf]
        %v3750 = vld [vmem:[%s3747 + $0x8] sm:$0xf]
        %v3751 = vld [vmem:[%s3747 + $0xc] sm:$0xf]
        %v3752 = vld [vmem:[%s3747 + $0x10] sm:$0xf]
        %v3753 = vld [vmem:[%s3747 + $0x14] sm:$0xf]
        %v3754 = vld [vmem:[%s3747 + $0x18] sm:$0xf]
        %v3755 = vld [vmem:[%s3747 + $0x1c] sm:$0xf]
        %s3756 = scalar_lea.vmem %s852, 224
        %v3757 = vld [vmem:[%s3756] sm:$0xf]
        %v3758 = vld [vmem:[%s3756 + $0x4] sm:$0xf]
        %v3759 = vld [vmem:[%s3756 + $0x8] sm:$0xf]
        %v3760 = vld [vmem:[%s3756 + $0xc] sm:$0xf]
        %v3761 = vld [vmem:[%s3756 + $0x10] sm:$0xf]
        %v3762 = vld [vmem:[%s3756 + $0x14] sm:$0xf]
        %v3763 = vld [vmem:[%s3756 + $0x18] sm:$0xf]
        %v3764 = vld [vmem:[%s3756 + $0x1c] sm:$0xf]
        %s3765 = scalar_lea.vmem %s852, 256
        %v3766 = vld [vmem:[%s3765] sm:$0xf]
        %v3767 = vld [vmem:[%s3765 + $0x4] sm:$0xf]
        %v3768 = vld [vmem:[%s3765 + $0x8] sm:$0xf]
        %v3769 = vld [vmem:[%s3765 + $0xc] sm:$0xf]
        %v3770 = vld [vmem:[%s3765 + $0x10] sm:$0xf]
        %v3771 = vld [vmem:[%s3765 + $0x14] sm:$0xf]
        %v3772 = vld [vmem:[%s3765 + $0x18] sm:$0xf]
        %v3773 = vld [vmem:[%s3765 + $0x1c] sm:$0xf]
        %s3774 = scalar_lea.vmem %s710, 2 [#allocation7]
        %v3775 = vld [vmem:[%s3774] sm:$0x1]
        %s3776 = scalar_lea.vmem %s857, 128
        %v3777 = vld [vmem:[%s3776] sm:$0xff]
        %v3778 = vld [vmem:[%s3776 + $0x8] sm:$0xff]
        %v3779 = vld [vmem:[%s3776 + $0x10] sm:$0xff]
        %v3780 = vld [vmem:[%s3776 + $0x18] sm:$0xff]
        %v3781 = vld [vmem:[%s3776 + $0x20] sm:$0xff]
        %v3782 = vld [vmem:[%s3776 + $0x28] sm:$0xff]
        %v3783 = vld [vmem:[%s3776 + $0x30] sm:$0xff]
        %v3784 = vld [vmem:[%s3776 + $0x38] sm:$0xff]
        %s3785 = scalar_lea.vmem %s861, 4
        %v3786 = vld [vmem:[%s3785] sm:$0x3]
        %v3788 = vlaneseq
        %v3789 = vshrl.u32 %v3788, 7
        %v3790 = vsub.s32 0, %v3789
        %v3791 = vrot.slane %v3746, %v3790
        %v3825 = vunpack.c.l.b16 %v3713
        %v3826 = vunpack.c.l.b16 %v3714
        %v3827 = vunpack.c.l.b16 %v3715
        %v3828 = vunpack.c.l.b16 %v3716
        %v3829 = vunpack.c.l.b16 %v3717
        %v3830 = vunpack.c.l.b16 %v3718
        %v3831 = vunpack.c.l.b16 %v3719
        %v3832 = vunpack.c.l.b16 %v3720
        %v3833 = vunpack.c.l.b16 %v3721
        %v3834 = vunpack.c.l.b16 %v3722
        %v3835 = vunpack.c.l.b16 %v3723
        %v3836 = vunpack.c.l.b16 %v3724
        %v3837 = vunpack.c.l.b16 %v3725
        %v3838 = vunpack.c.l.b16 %v3726
        %v3839 = vunpack.c.l.b16 %v3727
        %v3840 = vunpack.c.l.b16 %v3728
        %v3841 = vunpack.c.l.b16 %v3729
        %v3842 = vunpack.c.l.b16 %v3730
        %v3843 = vunpack.c.l.b16 %v3731
        %v3844 = vunpack.c.l.b16 %v3732
        %v3845 = vunpack.c.l.b16 %v3733
        %v3846 = vunpack.c.l.b16 %v3734
        %v3847 = vunpack.c.l.b16 %v3735
        %v3848 = vunpack.c.l.b16 %v3736
        %v3849 = vunpack.c.l.b16 %v3737
        %v3850 = vunpack.c.l.b16 %v3738
        %v3851 = vunpack.c.l.b16 %v3739
        %v3852 = vunpack.c.l.b16 %v3740
        %v3853 = vunpack.c.l.b16 %v3741
        %v3854 = vunpack.c.l.b16 %v3742
        %v3855 = vunpack.c.l.b16 %v3743
        %v3856 = vunpack.c.l.b16 %v3744
        %v3857 = vpack.c.b16 %v3826, %v3825
        %v3858 = vpack.c.b16 %v3828, %v3827
        %v3859 = vpack.c.b16 %v3830, %v3829
        %v3860 = vpack.c.b16 %v3832, %v3831
        %v3861 = vpack.c.b16 %v3834, %v3833
        %v3862 = vpack.c.b16 %v3836, %v3835
        %v3863 = vpack.c.b16 %v3838, %v3837
        %v3864 = vpack.c.b16 %v3840, %v3839
        %v3865 = vpack.c.b16 %v3842, %v3841
        %v3866 = vpack.c.b16 %v3844, %v3843
        %v3867 = vpack.c.b16 %v3846, %v3845
        %v3868 = vpack.c.b16 %v3848, %v3847
        %v3869 = vpack.c.b16 %v3850, %v3849
        %v3870 = vpack.c.b16 %v3852, %v3851
        %v3871 = vpack.c.b16 %v3854, %v3853
        %v3872 = vpack.c.b16 %v3856, %v3855
        %3889 = vmatprep.subr.bf16.mxu0 0
        %3890 = vmatpush1.bf16.msra.mxu0 %v3857
        %3891 = vmatprep.subr.bf16.mxu0 0
        %3892 = vmatpush1.bf16.msra.mxu0 %v3858
        %3893 = vmatprep.subr.bf16.mxu0 0
        %3894 = vmatpush1.bf16.msra.mxu0 %v3859
        %3895 = vmatprep.subr.bf16.mxu0 0
        %3896 = vmatpush1.bf16.msra.mxu0 %v3860
        %3897 = vmatprep.subr.bf16.mxu0 0
        %3898 = vmatpush1.bf16.msra.mxu0 %v3861
        %3899 = vmatprep.subr.bf16.mxu0 0
        %3900 = vmatpush1.bf16.msra.mxu0 %v3862
        %3901 = vmatprep.subr.bf16.mxu0 0
        %3902 = vmatpush1.bf16.msra.mxu0 %v3863
        %3903 = vmatprep.subr.bf16.mxu0 0
        %3904 = vmatpush1.bf16.msra.mxu0 %v3864
        %3905 = vmatprep.subr.bf16.mxu0 0
        %3906 = vmatpush1.bf16.msra.mxu0 %v3865
        %3907 = vmatprep.subr.bf16.mxu0 0
        %3908 = vmatpush1.bf16.msra.mxu0 %v3866
        %3909 = vmatprep.subr.bf16.mxu0 0
        %3910 = vmatpush1.bf16.msra.mxu0 %v3867
        %3911 = vmatprep.subr.bf16.mxu0 0
        %3912 = vmatpush1.bf16.msra.mxu0 %v3868
        %3913 = vmatprep.subr.bf16.mxu0 0
        %3914 = vmatpush1.bf16.msra.mxu0 %v3869
        %3915 = vmatprep.subr.bf16.mxu0 0
        %3916 = vmatpush1.bf16.msra.mxu0 %v3870
        %3917 = vmatprep.subr.bf16.mxu0 0
        %3918 = vmatpush1.bf16.msra.mxu0 %v3871
        %3919 = vmatprep.subr.bf16.mxu0 0
        %3920 = vmatpush1.bf16.msra.mxu0 %v3872
        %3921 = vmatprep.mubr.bf16.mxu0 %v3709
        %3922 = vmatmul.mubr.bf16.gmra.mrb[0].mxu0 %v3708
        %v3923 = vpop.f32.mrb[0].mxu0
        %v3924 = vadd.f32 %v3791, %v3923
        %v3925 = vpop.f32.mrb[0].mxu0
        %v3926 = vpop.f32.mrb[0].mxu0
        %v3927 = vadd.f32 %v3791, %v3926
        %v3928 = vpop.f32.mrb[0].mxu0
        %3929 = vmatprep.mubr.bf16.mxu0 %v3711
        %3930 = vmatmul.mubr.bf16.gmra.mrb[0].mxu0 %v3710
        %v3931 = vpop.f32.mrb[0].mxu0
        %v3932 = vadd.f32 %v3791, %v3931
        %v3933 = vpop.f32.mrb[0].mxu0
        %v3934 = vpop.f32.mrb[0].mxu0
        %v3935 = vadd.f32 %v3791, %v3934
        %v3936 = vpop.f32.mrb[0].mxu0
        %3937 = vdwg.mxu0
        %v3938 = vmax.f32 %v3924, 0.0
        %v3939 = vmax.f32 %v3927, 0.0
        %v3940 = vmax.f32 %v3932, 0.0
        %v3941 = vmax.f32 %v3935, 0.0
        %v3942 = vrot.slane %v3938, 7
        %v3943 = vrot.slane %v3939, 7
        %v3944 = vrot.slane %v3940, 7
        %v3945 = vrot.slane %v3941, 7
        %v3946 = vsel %vm1421, %v3944, %v3945
        %v3947 = vsel %vm1421, %v3943, %v3944
        %v3948 = vsel %vm1421, %v3942, %v3943
        %v3949 = vsel %vm1421, %v3945, %v3942
        %v3950 = vmul.f32 %v3949, %v1241
        %v3951 = vmul.f32 %v3948, %v1242
        %v3952 = vmul.f32 %v3947, %v1243
        %v3953 = vmul.f32 %v3946, %v1244
        %v3954 = vrot.slane %v3938, 1
        %v3955 = vrot.slane %v3939, 1
        %v3956 = vrot.slane %v3940, 1
        %v3957 = vrot.slane %v3941, 1
        %v3958 = vsel %vm1434, %v3956, %v3957
        %v3959 = vsel %vm1434, %v3955, %v3956
        %v3960 = vsel %vm1434, %v3954, %v3955
        %v3961 = vsel %vm1434, %v3957, %v3954
        %v3962 = vmul.f32 %v3960, %v1253
        %v3963 = vmul.f32 %v3959, %v1254
        %v3964 = vmul.f32 %v3958, %v1255
        %v3965 = vmul.f32 %v3961, %v1256
        %v3966 = vpack.c.bf16 %v3939, %v3938
        %v3967 = vpack.c.bf16 %v3941, %v3940
        %v3968 = vpack.c.bf16 %v3951, %v3950
        %v3969 = vpack.c.bf16 %v3953, %v3952
        %v3978 = vunpack.c.l.b16 %v3748
        %v3979 = vunpack.c.l.b16 %v3749
        %v3980 = vunpack.c.l.b16 %v3750
        %v3981 = vunpack.c.l.b16 %v3751
        %v3982 = vunpack.c.l.b16 %v3752
        %v3983 = vunpack.c.l.b16 %v3753
        %v3984 = vunpack.c.l.b16 %v3754
        %v3985 = vunpack.c.l.b16 %v3755
        %v3986 = vpack.c.b16 %v3979, %v3978
        %v3987 = vpack.c.b16 %v3981, %v3980
        %v3988 = vpack.c.b16 %v3983, %v3982
        %v3989 = vpack.c.b16 %v3985, %v3984
        %v3995 = vsel %vm1471, %v3968, 0
        %v3998 = vsel %vm1471, %v3969, 0
        %4000 = vmatprep.subr.bf16.mxu0 0
        %4001 = vmatpush1.bf16.msra.mxu0 %v3986
        %4002 = vmatprep.subr.bf16.mxu0 0
        %4003 = vmatpush1.bf16.msra.mxu0 %v3987
        %4004 = vmatprep.subr.bf16.mxu0 0
        %4005 = vmatpush1.bf16.msra.mxu0 %v3988
        %4006 = vmatprep.subr.bf16.mxu0 0
        %4007 = vmatpush1.bf16.msra.mxu0 %v3989
        %4008 = vmatprep.subr.bf16.mxu0 0
        %4009 = vmatpush1.bf16.msra.mxu0 0
        %4010 = vmatprep.subr.bf16.mxu0 0
        %4011 = vmatpush1.bf16.msra.mxu0 0
        %4012 = vmatprep.subr.bf16.mxu0 0
        %4013 = vmatpush1.bf16.msra.mxu0 0
        %4014 = vmatprep.subr.bf16.mxu0 0
        %4015 = vmatpush1.bf16.msra.mxu0 0
        %4016 = vmatprep.subr.bf16.mxu0 0
        %4017 = vmatpush1.bf16.msra.mxu0 0
        %4018 = vmatprep.subr.bf16.mxu0 0
        %4019 = vmatpush1.bf16.msra.mxu0 0
        %4020 = vmatprep.subr.bf16.mxu0 0
        %4021 = vmatpush1.bf16.msra.mxu0 0
        %4022 = vmatprep.subr.bf16.mxu0 0
        %4023 = vmatpush1.bf16.msra.mxu0 0
        %4024 = vmatprep.subr.bf16.mxu0 0
        %4025 = vmatpush1.bf16.msra.mxu0 0
        %4026 = vmatprep.subr.bf16.mxu0 0
        %4027 = vmatpush1.bf16.msra.mxu0 0
        %4028 = vmatprep.subr.bf16.mxu0 0
        %4029 = vmatpush1.bf16.msra.mxu0 0
        %4030 = vmatprep.subr.bf16.mxu0 0
        %4031 = vmatpush1.bf16.msra.mxu0 0
        %4032 = vmatprep.mubr.bf16.mxu0 0
        %4033 = vmatmul.mubr.bf16.gmra.mrb[0].mxu0 %v3995
        %v4034 = vpop.f32.mrb[0].mxu0
        %v4035 = vadd.f32 0.0, %v4034
        %v4036 = vpop.f32.mrb[0].mxu0
        %v4037 = vpop.f32.mrb[0].mxu0
        %v4038 = vadd.f32 0.0, %v4037
        %v4039 = vpop.f32.mrb[0].mxu0
        %4040 = vmatprep.mubr.bf16.mxu0 0
        %4041 = vmatmul.mubr.bf16.gmra.mrb[0].mxu0 %v3998
        %v4042 = vpop.f32.mrb[0].mxu0
        %v4043 = vadd.f32 0.0, %v4042
        %v4044 = vpop.f32.mrb[0].mxu0
        %v4045 = vpop.f32.mrb[0].mxu0
        %v4046 = vadd.f32 0.0, %v4045
        %v4047 = vpop.f32.mrb[0].mxu0
        %4048 = vdwg.mxu0
        %v4057 = vunpack.c.l.b16 %v3757
        %v4058 = vunpack.c.l.b16 %v3758
        %v4059 = vunpack.c.l.b16 %v3759
        %v4060 = vunpack.c.l.b16 %v3760
        %v4061 = vunpack.c.l.b16 %v3761
        %v4062 = vunpack.c.l.b16 %v3762
        %v4063 = vunpack.c.l.b16 %v3763
        %v4064 = vunpack.c.l.b16 %v3764
        %v4065 = vpack.c.b16 %v4058, %v4057
        %v4066 = vpack.c.b16 %v4060, %v4059
        %v4067 = vpack.c.b16 %v4062, %v4061
        %v4068 = vpack.c.b16 %v4064, %v4063
        %v4074 = vsel %vm1471, %v3966, 0
        %v4077 = vsel %vm1471, %v3967, 0
        %4079 = vmatprep.subr.bf16.mxu0 0
        %4080 = vmatpush1.bf16.msra.mxu0 %v4065
        %4081 = vmatprep.subr.bf16.mxu0 0
        %4082 = vmatpush1.bf16.msra.mxu0 %v4066
        %4083 = vmatprep.subr.bf16.mxu0 0
        %4084 = vmatpush1.bf16.msra.mxu0 %v4067
        %4085 = vmatprep.subr.bf16.mxu0 0
        %4086 = vmatpush1.bf16.msra.mxu0 %v4068
        %4087 = vmatprep.subr.bf16.mxu0 0
        %4088 = vmatpush1.bf16.msra.mxu0 0
        %4089 = vmatprep.subr.bf16.mxu0 0
        %4090 = vmatpush1.bf16.msra.mxu0 0
        %4091 = vmatprep.subr.bf16.mxu0 0
        %4092 = vmatpush1.bf16.msra.mxu0 0
        %4093 = vmatprep.subr.bf16.mxu0 0
        %4094 = vmatpush1.bf16.msra.mxu0 0
        %4095 = vmatprep.subr.bf16.mxu0 0
        %4096 = vmatpush1.bf16.msra.mxu0 0
        %4097 = vmatprep.subr.bf16.mxu0 0
        %4098 = vmatpush1.bf16.msra.mxu0 0
        %4099 = vmatprep.subr.bf16.mxu0 0
        %4100 = vmatpush1.bf16.msra.mxu0 0
        %4101 = vmatprep.subr.bf16.mxu0 0
        %4102 = vmatpush1.bf16.msra.mxu0 0
        %4103 = vmatprep.subr.bf16.mxu0 0
        %4104 = vmatpush1.bf16.msra.mxu0 0
        %4105 = vmatprep.subr.bf16.mxu0 0
        %4106 = vmatpush1.bf16.msra.mxu0 0
        %4107 = vmatprep.subr.bf16.mxu0 0
        %4108 = vmatpush1.bf16.msra.mxu0 0
        %4109 = vmatprep.subr.bf16.mxu0 0
        %4110 = vmatpush1.bf16.msra.mxu0 0
        %4111 = vmatprep.mubr.bf16.mxu0 0
        %4112 = vmatmul.mubr.bf16.gmra.mrb[0].mxu0 %v4074
        %v4113 = vpop.f32.mrb[0].mxu0
        %v4114 = vadd.f32 %v4035, %v4113
        %v4115 = vpop.f32.mrb[0].mxu0
        %v4116 = vpop.f32.mrb[0].mxu0
        %v4117 = vadd.f32 %v4038, %v4116
        %v4118 = vpop.f32.mrb[0].mxu0
        %4119 = vmatprep.mubr.bf16.mxu0 0
        %4120 = vmatmul.mubr.bf16.gmra.mrb[0].mxu0 %v4077
        %v4121 = vpop.f32.mrb[0].mxu0
        %v4122 = vadd.f32 %v4043, %v4121
        %v4123 = vpop.f32.mrb[0].mxu0
        %v4124 = vpop.f32.mrb[0].mxu0
        %v4125 = vadd.f32 %v4046, %v4124
        %v4126 = vpop.f32.mrb[0].mxu0
        %4127 = vdwg.mxu0
        %v4128 = vpack.c.bf16 %v3963, %v3962
        %v4129 = vpack.c.bf16 %v3965, %v3964
        %v4138 = vunpack.c.l.b16 %v3766
        %v4139 = vunpack.c.l.b16 %v3767
        %v4140 = vunpack.c.l.b16 %v3768
        %v4141 = vunpack.c.l.b16 %v3769
        %v4142 = vunpack.c.l.b16 %v3770
        %v4143 = vunpack.c.l.b16 %v3771
        %v4144 = vunpack.c.l.b16 %v3772
        %v4145 = vunpack.c.l.b16 %v3773
        %v4146 = vpack.c.b16 %v4139, %v4138
        %v4147 = vpack.c.b16 %v4141, %v4140
        %v4148 = vpack.c.b16 %v4143, %v4142
        %v4149 = vpack.c.b16 %v4145, %v4144
        %v4155 = vsel %vm1471, %v4128, 0
        %v4158 = vsel %vm1471, %v4129, 0
        %4160 = vmatprep.subr.bf16.mxu0 0
        %4161 = vmatpush1.bf16.msra.mxu0 %v4146
        %4162 = vmatprep.subr.bf16.mxu0 0
        %4163 = vmatpush1.bf16.msra.mxu0 %v4147
        %4164 = vmatprep.subr.bf16.mxu0 0
        %4165 = vmatpush1.bf16.msra.mxu0 %v4148
        %4166 = vmatprep.subr.bf16.mxu0 0
        %4167 = vmatpush1.bf16.msra.mxu0 %v4149
        %4168 = vmatprep.subr.bf16.mxu0 0
        %4169 = vmatpush1.bf16.msra.mxu0 0
        %4170 = vmatprep.subr.bf16.mxu0 0
        %4171 = vmatpush1.bf16.msra.mxu0 0
        %4172 = vmatprep.subr.bf16.mxu0 0
        %4173 = vmatpush1.bf16.msra.mxu0 0
        %4174 = vmatprep.subr.bf16.mxu0 0
        %4175 = vmatpush1.bf16.msra.mxu0 0
        %4176 = vmatprep.subr.bf16.mxu0 0
        %4177 = vmatpush1.bf16.msra.mxu0 0
        %4178 = vmatprep.subr.bf16.mxu0 0
        %4179 = vmatpush1.bf16.msra.mxu0 0
        %4180 = vmatprep.subr.bf16.mxu0 0
        %4181 = vmatpush1.bf16.msra.mxu0 0
        %4182 = vmatprep.subr.bf16.mxu0 0
        %4183 = vmatpush1.bf16.msra.mxu0 0
        %4184 = vmatprep.subr.bf16.mxu0 0
        %4185 = vmatpush1.bf16.msra.mxu0 0
        %4186 = vmatprep.subr.bf16.mxu0 0
        %4187 = vmatpush1.bf16.msra.mxu0 0
        %4188 = vmatprep.subr.bf16.mxu0 0
        %4189 = vmatpush1.bf16.msra.mxu0 0
        %4190 = vmatprep.subr.bf16.mxu0 0
        %4191 = vmatpush1.bf16.msra.mxu0 0
        %4192 = vmatprep.mubr.bf16.mxu0 0
        %4193 = vmatmul.mubr.bf16.gmra.mrb[0].mxu0 %v4155
        %v4194 = vpop.f32.mrb[0].mxu0
        %v4195 = vadd.f32 0.0, %v4194
        %v4196 = vpop.f32.mrb[0].mxu0
        %v4197 = vpop.f32.mrb[0].mxu0
        %v4198 = vadd.f32 0.0, %v4197
        %v4199 = vpop.f32.mrb[0].mxu0
        %4200 = vmatprep.mubr.bf16.mxu0 0
        %4201 = vmatmul.mubr.bf16.gmra.mrb[0].mxu0 %v4158
        %v4202 = vpop.f32.mrb[0].mxu0
        %v4203 = vadd.f32 0.0, %v4202
        %v4204 = vpop.f32.mrb[0].mxu0
        %v4205 = vpop.f32.mrb[0].mxu0
        %v4206 = vadd.f32 0.0, %v4205
        %v4207 = vpop.f32.mrb[0].mxu0
        %4208 = vdwg.mxu0
        %v4209 = vadd.f32 %v4114, %v4195
        %v4210 = vadd.f32 %v4117, %v4198
        %v4211 = vadd.f32 %v4122, %v4203
        %v4212 = vadd.f32 %v4125, %v4206
        %v4214 = vlaneseq
        %v4215 = vshrl.u32 %v4214, 7
        %v4216 = vsub.s32 0, %v4215
        %v4217 = vrot.slane %v3775, %v4216
        %v4219 = vadd.f32 %v4209, %v4217
        %v4220 = vadd.f32 %v4210, %v4217
        %v4221 = vadd.f32 %v4211, %v4217
        %v4222 = vadd.f32 %v4212, %v4217
        %v4223 = vmax.f32 %v4219, 0.0
        %v4224 = vmax.f32 %v4220, 0.0
        %v4225 = vmax.f32 %v4221, 0.0
        %v4226 = vmax.f32 %v4222, 0.0
        %v4227 = vpack.c.bf16 %v4224, %v4223
        %v4228 = vpack.c.bf16 %v4226, %v4225
        %v4230 = vlaneseq
        %v4231 = vshrl.u32 %v4230, 7
        %v4232 = vsub.s32 0, %v4231
        %v4233 = vrot.slane %v3786, %v4232
        %v4234 = vlaneseq
        %v4235 = vshrl.u32 %v4234, 7
        %v4236 = vsub.s32 1, %v4235
        %v4237 = vrot.slane %v3786, %v4236
        %v4248 = vunpack.c.l.b16 %v3777
        %v4249 = vunpack.c.h.b16 %v3777
        %v4250 = vunpack.c.l.b16 %v3778
        %v4251 = vunpack.c.h.b16 %v3778
        %v4252 = vunpack.c.l.b16 %v3779
        %v4253 = vunpack.c.h.b16 %v3779
        %v4254 = vunpack.c.l.b16 %v3780
        %v4255 = vunpack.c.h.b16 %v3780
        %v4256 = vunpack.c.l.b16 %v3781
        %v4257 = vunpack.c.h.b16 %v3781
        %v4258 = vunpack.c.l.b16 %v3782
        %v4259 = vunpack.c.h.b16 %v3782
        %v4260 = vunpack.c.l.b16 %v3783
        %v4261 = vunpack.c.h.b16 %v3783
        %v4262 = vunpack.c.l.b16 %v3784
        %v4263 = vunpack.c.h.b16 %v3784
        %v4264 = vpack.c.b16 %v4250, %v4248
        %v4265 = vpack.c.b16 %v4251, %v4249
        %v4266 = vpack.c.b16 %v4254, %v4252
        %v4267 = vpack.c.b16 %v4255, %v4253
        %v4268 = vpack.c.b16 %v4258, %v4256
        %v4269 = vpack.c.b16 %v4259, %v4257
        %v4270 = vpack.c.b16 %v4262, %v4260
        %v4271 = vpack.c.b16 %v4263, %v4261
        %v4281 = vsel %vm1471, %v4227, 0
        %v4284 = vsel %vm1471, %v4228, 0
        %4286 = vmatprep.subr.bf16.mxu0 %v4265
        %4287 = vmatpush1.bf16.msra.mxu0 %v4264
        %4288 = vmatprep.subr.bf16.mxu0 %v4267
        %4289 = vmatpush1.bf16.msra.mxu0 %v4266
        %4290 = vmatprep.subr.bf16.mxu0 %v4269
        %4291 = vmatpush1.bf16.msra.mxu0 %v4268
        %4292 = vmatprep.subr.bf16.mxu0 %v4271
        %4293 = vmatpush1.bf16.msra.mxu0 %v4270
        %4294 = vmatprep.subr.bf16.mxu0 0
        %4295 = vmatpush1.bf16.msra.mxu0 0
        %4296 = vmatprep.subr.bf16.mxu0 0
        %4297 = vmatpush1.bf16.msra.mxu0 0
        %4298 = vmatprep.subr.bf16.mxu0 0
        %4299 = vmatpush1.bf16.msra.mxu0 0
        %4300 = vmatprep.subr.bf16.mxu0 0
        %4301 = vmatpush1.bf16.msra.mxu0 0
        %4302 = vmatprep.subr.bf16.mxu0 0
        %4303 = vmatpush1.bf16.msra.mxu0 0
        %4304 = vmatprep.subr.bf16.mxu0 0
        %4305 = vmatpush1.bf16.msra.mxu0 0
        %4306 = vmatprep.subr.bf16.mxu0 0
        %4307 = vmatpush1.bf16.msra.mxu0 0
        %4308 = vmatprep.subr.bf16.mxu0 0
        %4309 = vmatpush1.bf16.msra.mxu0 0
        %4310 = vmatprep.subr.bf16.mxu0 0
        %4311 = vmatpush1.bf16.msra.mxu0 0
        %4312 = vmatprep.subr.bf16.mxu0 0
        %4313 = vmatpush1.bf16.msra.mxu0 0
        %4314 = vmatprep.subr.bf16.mxu0 0
        %4315 = vmatpush1.bf16.msra.mxu0 0
        %4316 = vmatprep.subr.bf16.mxu0 0
        %4317 = vmatpush1.bf16.msra.mxu0 0
        %4318 = vmatprep.mubr.bf16.mxu0 0
        %4319 = vmatmul.mubr.bf16.gmra.mrb[0].mxu0 %v4281
        %v4320 = vpop.f32.mrb[0].mxu0
        %v4321 = vadd.f32 %v4233, %v4320
        %v4322 = vpop.f32.mrb[0].mxu0
        %v4323 = vadd.f32 %v4237, %v4322
        %v4324 = vpop.f32.mrb[0].mxu0
        %v4325 = vadd.f32 %v4233, %v4324
        %v4326 = vpop.f32.mrb[0].mxu0
        %v4327 = vadd.f32 %v4237, %v4326
        %4328 = vmatprep.mubr.bf16.mxu0 0
        %4329 = vmatmul.mubr.bf16.gmra.mrb[0].mxu0 %v4284
        %v4330 = vpop.f32.mrb[0].mxu0
        %v4331 = vadd.f32 %v4233, %v4330
        %v4332 = vpop.f32.mrb[0].mxu0
        %v4333 = vadd.f32 %v4237, %v4332
        %v4334 = vpop.f32.mrb[0].mxu0
        %v4335 = vadd.f32 %v4233, %v4334
        %v4336 = vpop.f32.mrb[0].mxu0
        %v4337 = vadd.f32 %v4237, %v4336
        %4338 = vdwg.mxu0
        %v4339 = vadd.f32 %v4321, %v3700
        %v4340 = vadd.f32 %v4323, %v3701
        %v4341 = vadd.f32 %v4325, %v3702
        %v4342 = vadd.f32 %v4327, %v3703
        %v4343 = vadd.f32 %v4331, %v3704
        %v4344 = vadd.f32 %v4333, %v3705
        %v4345 = vadd.f32 %v4335, %v3706
        %v4346 = vadd.f32 %v4337, %v3707
        %v4347 = vmax.f32 %v4339, 0.0
        %v4348 = vmax.f32 %v4340, 0.0
        %v4349 = vmax.f32 %v4341, 0.0
        %v4350 = vmax.f32 %v4342, 0.0
        %v4351 = vmax.f32 %v4343, 0.0
        %v4352 = vmax.f32 %v4344, 0.0
        %v4353 = vmax.f32 %v4345, 0.0
        %v4354 = vmax.f32 %v4346, 0.0
        %v4355 = vpack.c.bf16 %v4349, %v4347
        %v4356 = vpack.c.bf16 %v4350, %v4348
        %v4357 = vpack.c.bf16 %v4353, %v4351
        %v4358 = vpack.c.bf16 %v4354, %v4352
        %s4359 = scalar_lea.vmem %s847, 384
        %v4360 = vld [vmem:[%s4359] sm:$0xf]
        %v4361 = vld [vmem:[%s4359 + $0x4] sm:$0xf]
        %v4362 = vld [vmem:[%s4359 + $0x8] sm:$0xf]
        %v4363 = vld [vmem:[%s4359 + $0xc] sm:$0xf]
        %v4364 = vld [vmem:[%s4359 + $0x10] sm:$0xf]
        %v4365 = vld [vmem:[%s4359 + $0x14] sm:$0xf]
        %v4366 = vld [vmem:[%s4359 + $0x18] sm:$0xf]
        %v4367 = vld [vmem:[%s4359 + $0x1c] sm:$0xf]
        %v4368 = vld [vmem:[%s4359 + $0x20] sm:$0xf]
        %v4369 = vld [vmem:[%s4359 + $0x24] sm:$0xf]
        %v4370 = vld [vmem:[%s4359 + $0x28] sm:$0xf]
        %v4371 = vld [vmem:[%s4359 + $0x2c] sm:$0xf]
        %v4372 = vld [vmem:[%s4359 + $0x30] sm:$0xf]
        %v4373 = vld [vmem:[%s4359 + $0x34] sm:$0xf]
        %v4374 = vld [vmem:[%s4359 + $0x38] sm:$0xf]
        %v4375 = vld [vmem:[%s4359 + $0x3c] sm:$0xf]
        %v4376 = vld [vmem:[%s4359 + $0x40] sm:$0xf]
        %v4377 = vld [vmem:[%s4359 + $0x44] sm:$0xf]
        %v4378 = vld [vmem:[%s4359 + $0x48] sm:$0xf]
        %v4379 = vld [vmem:[%s4359 + $0x4c] sm:$0xf]
        %v4380 = vld [vmem:[%s4359 + $0x50] sm:$0xf]
        %v4381 = vld [vmem:[%s4359 + $0x54] sm:$0xf]
        %v4382 = vld [vmem:[%s4359 + $0x58] sm:$0xf]
        %v4383 = vld [vmem:[%s4359 + $0x5c] sm:$0xf]
        %v4384 = vld [vmem:[%s4359 + $0x60] sm:$0xf]
        %v4385 = vld [vmem:[%s4359 + $0x64] sm:$0xf]
        %v4386 = vld [vmem:[%s4359 + $0x68] sm:$0xf]
        %v4387 = vld [vmem:[%s4359 + $0x6c] sm:$0xf]
        %v4388 = vld [vmem:[%s4359 + $0x70] sm:$0xf]
        %v4389 = vld [vmem:[%s4359 + $0x74] sm:$0xf]
        %v4390 = vld [vmem:[%s4359 + $0x78] sm:$0xf]
        %v4391 = vld [vmem:[%s4359 + $0x7c] sm:$0xf]
        %s4392 = scalar_lea.vmem %s701, 3 [#allocation6]
        %v4393 = vld [vmem:[%s4392] sm:$0x1]
        %s4394 = scalar_lea.vmem %s852, 288
        %v4395 = vld [vmem:[%s4394] sm:$0xf]
        %v4396 = vld [vmem:[%s4394 + $0x4] sm:$0xf]
        %v4397 = vld [vmem:[%s4394 + $0x8] sm:$0xf]
        %v4398 = vld [vmem:[%s4394 + $0xc] sm:$0xf]
        %v4399 = vld [vmem:[%s4394 + $0x10] sm:$0xf]
        %v4400 = vld [vmem:[%s4394 + $0x14] sm:$0xf]
        %v4401 = vld [vmem:[%s4394 + $0x18] sm:$0xf]
        %v4402 = vld [vmem:[%s4394 + $0x1c] sm:$0xf]
        %s4403 = scalar_lea.vmem %s852, 320
        %v4404 = vld [vmem:[%s4403] sm:$0xf]
        %v4405 = vld [vmem:[%s4403 + $0x4] sm:$0xf]
        %v4406 = vld [vmem:[%s4403 + $0x8] sm:$0xf]
        %v4407 = vld [vmem:[%s4403 + $0xc] sm:$0xf]
        %v4408 = vld [vmem:[%s4403 + $0x10] sm:$0xf]
        %v4409 = vld [vmem:[%s4403 + $0x14] sm:$0xf]
        %v4410 = vld [vmem:[%s4403 + $0x18] sm:$0xf]
        %v4411 = vld [vmem:[%s4403 + $0x1c] sm:$0xf]
        %s4412 = scalar_lea.vmem %s852, 352
        %v4413 = vld [vmem:[%s4412] sm:$0xf]
        %v4414 = vld [vmem:[%s4412 + $0x4] sm:$0xf]
        %v4415 = vld [vmem:[%s4412 + $0x8] sm:$0xf]
        %v4416 = vld [vmem:[%s4412 + $0xc] sm:$0xf]
        %v4417 = vld [vmem:[%s4412 + $0x10] sm:$0xf]
        %v4418 = vld [vmem:[%s4412 + $0x14] sm:$0xf]
        %v4419 = vld [vmem:[%s4412 + $0x18] sm:$0xf]
        %v4420 = vld [vmem:[%s4412 + $0x1c] sm:$0xf]
        %s4421 = scalar_lea.vmem %s710, 3 [#allocation7]
        %v4422 = vld [vmem:[%s4421] sm:$0x1]
        %s4423 = scalar_lea.vmem %s857, 192
        %v4424 = vld [vmem:[%s4423] sm:$0xff]
        %v4425 = vld [vmem:[%s4423 + $0x8] sm:$0xff]
        %v4426 = vld [vmem:[%s4423 + $0x10] sm:$0xff]
        %v4427 = vld [vmem:[%s4423 + $0x18] sm:$0xff]
        %v4428 = vld [vmem:[%s4423 + $0x20] sm:$0xff]
        %v4429 = vld [vmem:[%s4423 + $0x28] sm:$0xff]
        %v4430 = vld [vmem:[%s4423 + $0x30] sm:$0xff]
        %v4431 = vld [vmem:[%s4423 + $0x38] sm:$0xff]
        %s4432 = scalar_lea.vmem %s861, 6
        %v4433 = vld [vmem:[%s4432] sm:$0x3]
        %v4435 = vlaneseq
        %v4436 = vshrl.u32 %v4435, 7
        %v4437 = vsub.s32 0, %v4436
        %v4438 = vrot.slane %v4393, %v4437
        %v4472 = vunpack.c.l.b16 %v4360
        %v4473 = vunpack.c.l.b16 %v4361
        %v4474 = vunpack.c.l.b16 %v4362
        %v4475 = vunpack.c.l.b16 %v4363
        %v4476 = vunpack.c.l.b16 %v4364
        %v4477 = vunpack.c.l.b16 %v4365
        %v4478 = vunpack.c.l.b16 %v4366
        %v4479 = vunpack.c.l.b16 %v4367
        %v4480 = vunpack.c.l.b16 %v4368
        %v4481 = vunpack.c.l.b16 %v4369
        %v4482 = vunpack.c.l.b16 %v4370
        %v4483 = vunpack.c.l.b16 %v4371
        %v4484 = vunpack.c.l.b16 %v4372
        %v4485 = vunpack.c.l.b16 %v4373
        %v4486 = vunpack.c.l.b16 %v4374
        %v4487 = vunpack.c.l.b16 %v4375
        %v4488 = vunpack.c.l.b16 %v4376
        %v4489 = vunpack.c.l.b16 %v4377
        %v4490 = vunpack.c.l.b16 %v4378
        %v4491 = vunpack.c.l.b16 %v4379
        %v4492 = vunpack.c.l.b16 %v4380
        %v4493 = vunpack.c.l.b16 %v4381
        %v4494 = vunpack.c.l.b16 %v4382
        %v4495 = vunpack.c.l.b16 %v4383
        %v4496 = vunpack.c.l.b16 %v4384
        %v4497 = vunpack.c.l.b16 %v4385
        %v4498 = vunpack.c.l.b16 %v4386
        %v4499 = vunpack.c.l.b16 %v4387
        %v4500 = vunpack.c.l.b16 %v4388
        %v4501 = vunpack.c.l.b16 %v4389
        %v4502 = vunpack.c.l.b16 %v4390
        %v4503 = vunpack.c.l.b16 %v4391
        %v4504 = vpack.c.b16 %v4473, %v4472
        %v4505 = vpack.c.b16 %v4475, %v4474
        %v4506 = vpack.c.b16 %v4477, %v4476
        %v4507 = vpack.c.b16 %v4479, %v4478
        %v4508 = vpack.c.b16 %v4481, %v4480
        %v4509 = vpack.c.b16 %v4483, %v4482
        %v4510 = vpack.c.b16 %v4485, %v4484
        %v4511 = vpack.c.b16 %v4487, %v4486
        %v4512 = vpack.c.b16 %v4489, %v4488
        %v4513 = vpack.c.b16 %v4491, %v4490
        %v4514 = vpack.c.b16 %v4493, %v4492
        %v4515 = vpack.c.b16 %v4495, %v4494
        %v4516 = vpack.c.b16 %v4497, %v4496
        %v4517 = vpack.c.b16 %v4499, %v4498
        %v4518 = vpack.c.b16 %v4501, %v4500
        %v4519 = vpack.c.b16 %v4503, %v4502
        %4536 = vmatprep.subr.bf16.mxu0 0
        %4537 = vmatpush1.bf16.msra.mxu0 %v4504
        %4538 = vmatprep.subr.bf16.mxu0 0
        %4539 = vmatpush1.bf16.msra.mxu0 %v4505
        %4540 = vmatprep.subr.bf16.mxu0 0
        %4541 = vmatpush1.bf16.msra.mxu0 %v4506
        %4542 = vmatprep.subr.bf16.mxu0 0
        %4543 = vmatpush1.bf16.msra.mxu0 %v4507
        %4544 = vmatprep.subr.bf16.mxu0 0
        %4545 = vmatpush1.bf16.msra.mxu0 %v4508
        %4546 = vmatprep.subr.bf16.mxu0 0
        %4547 = vmatpush1.bf16.msra.mxu0 %v4509
        %4548 = vmatprep.subr.bf16.mxu0 0
        %4549 = vmatpush1.bf16.msra.mxu0 %v4510
        %4550 = vmatprep.subr.bf16.mxu0 0
        %4551 = vmatpush1.bf16.msra.mxu0 %v4511
        %4552 = vmatprep.subr.bf16.mxu0 0
        %4553 = vmatpush1.bf16.msra.mxu0 %v4512
        %4554 = vmatprep.subr.bf16.mxu0 0
        %4555 = vmatpush1.bf16.msra.mxu0 %v4513
        %4556 = vmatprep.subr.bf16.mxu0 0
        %4557 = vmatpush1.bf16.msra.mxu0 %v4514
        %4558 = vmatprep.subr.bf16.mxu0 0
        %4559 = vmatpush1.bf16.msra.mxu0 %v4515
        %4560 = vmatprep.subr.bf16.mxu0 0
        %4561 = vmatpush1.bf16.msra.mxu0 %v4516
        %4562 = vmatprep.subr.bf16.mxu0 0
        %4563 = vmatpush1.bf16.msra.mxu0 %v4517
        %4564 = vmatprep.subr.bf16.mxu0 0
        %4565 = vmatpush1.bf16.msra.mxu0 %v4518
        %4566 = vmatprep.subr.bf16.mxu0 0
        %4567 = vmatpush1.bf16.msra.mxu0 %v4519
        %4568 = vmatprep.mubr.bf16.mxu0 %v4356
        %4569 = vmatmul.mubr.bf16.gmra.mrb[0].mxu0 %v4355
        %v4570 = vpop.f32.mrb[0].mxu0
        %v4571 = vadd.f32 %v4438, %v4570
        %v4572 = vpop.f32.mrb[0].mxu0
        %v4573 = vpop.f32.mrb[0].mxu0
        %v4574 = vadd.f32 %v4438, %v4573
        %v4575 = vpop.f32.mrb[0].mxu0
        %4576 = vmatprep.mubr.bf16.mxu0 %v4358
        %4577 = vmatmul.mubr.bf16.gmra.mrb[0].mxu0 %v4357
        %v4578 = vpop.f32.mrb[0].mxu0
        %v4579 = vadd.f32 %v4438, %v4578
        %v4580 = vpop.f32.mrb[0].mxu0
        %v4581 = vpop.f32.mrb[0].mxu0
        %v4582 = vadd.f32 %v4438, %v4581
        %v4583 = vpop.f32.mrb[0].mxu0
        %4584 = vdwg.mxu0
        %v4585 = vmax.f32 %v4571, 0.0
        %v4586 = vmax.f32 %v4574, 0.0
        %v4587 = vmax.f32 %v4579, 0.0
        %v4588 = vmax.f32 %v4582, 0.0
        %v4589 = vrot.slane %v4585, 7
        %v4590 = vrot.slane %v4586, 7
        %v4591 = vrot.slane %v4587, 7
        %v4592 = vrot.slane %v4588, 7
        %v4593 = vsel %vm1421, %v4591, %v4592
        %v4594 = vsel %vm1421, %v4590, %v4591
        %v4595 = vsel %vm1421, %v4589, %v4590
        %v4596 = vsel %vm1421, %v4592, %v4589
        %v4597 = vmul.f32 %v4596, %v1241
        %v4598 = vmul.f32 %v4595, %v1242
        %v4599 = vmul.f32 %v4594, %v1243
        %v4600 = vmul.f32 %v4593, %v1244
        %v4601 = vrot.slane %v4585, 1
        %v4602 = vrot.slane %v4586, 1
        %v4603 = vrot.slane %v4587, 1
        %v4604 = vrot.slane %v4588, 1
        %v4605 = vsel %vm1434, %v4603, %v4604
        %v4606 = vsel %vm1434, %v4602, %v4603
        %v4607 = vsel %vm1434, %v4601, %v4602
        %v4608 = vsel %vm1434, %v4604, %v4601
        %v4609 = vmul.f32 %v4607, %v1253
        %v4610 = vmul.f32 %v4606, %v1254
        %v4611 = vmul.f32 %v4605, %v1255
        %v4612 = vmul.f32 %v4608, %v1256
        %v4613 = vpack.c.bf16 %v4586, %v4585
        %v4614 = vpack.c.bf16 %v4588, %v4587
        %v4615 = vpack.c.bf16 %v4598, %v4597
        %v4616 = vpack.c.bf16 %v4600, %v4599
        %v4625 = vunpack.c.l.b16 %v4395
        %v4626 = vunpack.c.l.b16 %v4396
        %v4627 = vunpack.c.l.b16 %v4397
        %v4628 = vunpack.c.l.b16 %v4398
        %v4629 = vunpack.c.l.b16 %v4399
        %v4630 = vunpack.c.l.b16 %v4400
        %v4631 = vunpack.c.l.b16 %v4401
        %v4632 = vunpack.c.l.b16 %v4402
        %v4633 = vpack.c.b16 %v4626, %v4625
        %v4634 = vpack.c.b16 %v4628, %v4627
        %v4635 = vpack.c.b16 %v4630, %v4629
        %v4636 = vpack.c.b16 %v4632, %v4631
        %v4642 = vsel %vm1471, %v4615, 0
        %v4645 = vsel %vm1471, %v4616, 0
        %4647 = vmatprep.subr.bf16.mxu0 0
        %4648 = vmatpush1.bf16.msra.mxu0 %v4633
        %4649 = vmatprep.subr.bf16.mxu0 0
        %4650 = vmatpush1.bf16.msra.mxu0 %v4634
        %4651 = vmatprep.subr.bf16.mxu0 0
        %4652 = vmatpush1.bf16.msra.mxu0 %v4635
        %4653 = vmatprep.subr.bf16.mxu0 0
        %4654 = vmatpush1.bf16.msra.mxu0 %v4636
        %4655 = vmatprep.subr.bf16.mxu0 0
        %4656 = vmatpush1.bf16.msra.mxu0 0
        %4657 = vmatprep.subr.bf16.mxu0 0
        %4658 = vmatpush1.bf16.msra.mxu0 0
        %4659 = vmatprep.subr.bf16.mxu0 0
        %4660 = vmatpush1.bf16.msra.mxu0 0
        %4661 = vmatprep.subr.bf16.mxu0 0
        %4662 = vmatpush1.bf16.msra.mxu0 0
        %4663 = vmatprep.subr.bf16.mxu0 0
        %4664 = vmatpush1.bf16.msra.mxu0 0
        %4665 = vmatprep.subr.bf16.mxu0 0
        %4666 = vmatpush1.bf16.msra.mxu0 0
        %4667 = vmatprep.subr.bf16.mxu0 0
        %4668 = vmatpush1.bf16.msra.mxu0 0
        %4669 = vmatprep.subr.bf16.mxu0 0
        %4670 = vmatpush1.bf16.msra.mxu0 0
        %4671 = vmatprep.subr.bf16.mxu0 0
        %4672 = vmatpush1.bf16.msra.mxu0 0
        %4673 = vmatprep.subr.bf16.mxu0 0
        %4674 = vmatpush1.bf16.msra.mxu0 0
        %4675 = vmatprep.subr.bf16.mxu0 0
        %4676 = vmatpush1.bf16.msra.mxu0 0
        %4677 = vmatprep.subr.bf16.mxu0 0
        %4678 = vmatpush1.bf16.msra.mxu0 0
        %4679 = vmatprep.mubr.bf16.mxu0 0
        %4680 = vmatmul.mubr.bf16.gmra.mrb[0].mxu0 %v4642
        %v4681 = vpop.f32.mrb[0].mxu0
        %v4682 = vadd.f32 0.0, %v4681
        %v4683 = vpop.f32.mrb[0].mxu0
        %v4684 = vpop.f32.mrb[0].mxu0
        %v4685 = vadd.f32 0.0, %v4684
        %v4686 = vpop.f32.mrb[0].mxu0
        %4687 = vmatprep.mubr.bf16.mxu0 0
        %4688 = vmatmul.mubr.bf16.gmra.mrb[0].mxu0 %v4645
        %v4689 = vpop.f32.mrb[0].mxu0
        %v4690 = vadd.f32 0.0, %v4689
        %v4691 = vpop.f32.mrb[0].mxu0
        %v4692 = vpop.f32.mrb[0].mxu0
        %v4693 = vadd.f32 0.0, %v4692
        %v4694 = vpop.f32.mrb[0].mxu0
        %4695 = vdwg.mxu0
        %v4704 = vunpack.c.l.b16 %v4404
        %v4705 = vunpack.c.l.b16 %v4405
        %v4706 = vunpack.c.l.b16 %v4406
        %v4707 = vunpack.c.l.b16 %v4407
        %v4708 = vunpack.c.l.b16 %v4408
        %v4709 = vunpack.c.l.b16 %v4409
        %v4710 = vunpack.c.l.b16 %v4410
        %v4711 = vunpack.c.l.b16 %v4411
        %v4712 = vpack.c.b16 %v4705, %v4704
        %v4713 = vpack.c.b16 %v4707, %v4706
        %v4714 = vpack.c.b16 %v4709, %v4708
        %v4715 = vpack.c.b16 %v4711, %v4710
        %v4721 = vsel %vm1471, %v4613, 0
        %v4724 = vsel %vm1471, %v4614, 0
        %4726 = vmatprep.subr.bf16.mxu0 0
        %4727 = vmatpush1.bf16.msra.mxu0 %v4712
        %4728 = vmatprep.subr.bf16.mxu0 0
        %4729 = vmatpush1.bf16.msra.mxu0 %v4713
        %4730 = vmatprep.subr.bf16.mxu0 0
        %4731 = vmatpush1.bf16.msra.mxu0 %v4714
        %4732 = vmatprep.subr.bf16.mxu0 0
        %4733 = vmatpush1.bf16.msra.mxu0 %v4715
        %4734 = vmatprep.subr.bf16.mxu0 0
        %4735 = vmatpush1.bf16.msra.mxu0 0
        %4736 = vmatprep.subr.bf16.mxu0 0
        %4737 = vmatpush1.bf16.msra.mxu0 0
        %4738 = vmatprep.subr.bf16.mxu0 0
        %4739 = vmatpush1.bf16.msra.mxu0 0
        %4740 = vmatprep.subr.bf16.mxu0 0
        %4741 = vmatpush1.bf16.msra.mxu0 0
        %4742 = vmatprep.subr.bf16.mxu0 0
        %4743 = vmatpush1.bf16.msra.mxu0 0
        %4744 = vmatprep.subr.bf16.mxu0 0
        %4745 = vmatpush1.bf16.msra.mxu0 0
        %4746 = vmatprep.subr.bf16.mxu0 0
        %4747 = vmatpush1.bf16.msra.mxu0 0
        %4748 = vmatprep.subr.bf16.mxu0 0
        %4749 = vmatpush1.bf16.msra.mxu0 0
        %4750 = vmatprep.subr.bf16.mxu0 0
        %4751 = vmatpush1.bf16.msra.mxu0 0
        %4752 = vmatprep.subr.bf16.mxu0 0
        %4753 = vmatpush1.bf16.msra.mxu0 0
        %4754 = vmatprep.subr.bf16.mxu0 0
        %4755 = vmatpush1.bf16.msra.mxu0 0
        %4756 = vmatprep.subr.bf16.mxu0 0
        %4757 = vmatpush1.bf16.msra.mxu0 0
        %4758 = vmatprep.mubr.bf16.mxu0 0
        %4759 = vmatmul.mubr.bf16.gmra.mrb[0].mxu0 %v4721
        %v4760 = vpop.f32.mrb[0].mxu0
        %v4761 = vadd.f32 %v4682, %v4760
        %v4762 = vpop.f32.mrb[0].mxu0
        %v4763 = vpop.f32.mrb[0].mxu0
        %v4764 = vadd.f32 %v4685, %v4763
        %v4765 = vpop.f32.mrb[0].mxu0
        %4766 = vmatprep.mubr.bf16.mxu0 0
        %4767 = vmatmul.mubr.bf16.gmra.mrb[0].mxu0 %v4724
        %v4768 = vpop.f32.mrb[0].mxu0
        %v4769 = vadd.f32 %v4690, %v4768
        %v4770 = vpop.f32.mrb[0].mxu0
        %v4771 = vpop.f32.mrb[0].mxu0
        %v4772 = vadd.f32 %v4693, %v4771
        %v4773 = vpop.f32.mrb[0].mxu0
        %4774 = vdwg.mxu0
        %v4775 = vpack.c.bf16 %v4610, %v4609
        %v4776 = vpack.c.bf16 %v4612, %v4611
        %v4785 = vunpack.c.l.b16 %v4413
        %v4786 = vunpack.c.l.b16 %v4414
        %v4787 = vunpack.c.l.b16 %v4415
        %v4788 = vunpack.c.l.b16 %v4416
        %v4789 = vunpack.c.l.b16 %v4417
        %v4790 = vunpack.c.l.b16 %v4418
        %v4791 = vunpack.c.l.b16 %v4419
        %v4792 = vunpack.c.l.b16 %v4420
        %v4793 = vpack.c.b16 %v4786, %v4785
        %v4794 = vpack.c.b16 %v4788, %v4787
        %v4795 = vpack.c.b16 %v4790, %v4789
        %v4796 = vpack.c.b16 %v4792, %v4791
        %v4802 = vsel %vm1471, %v4775, 0
        %v4805 = vsel %vm1471, %v4776, 0
        %4807 = vmatprep.subr.bf16.mxu0 0
        %4808 = vmatpush1.bf16.msra.mxu0 %v4793
        %4809 = vmatprep.subr.bf16.mxu0 0
        %4810 = vmatpush1.bf16.msra.mxu0 %v4794
        %4811 = vmatprep.subr.bf16.mxu0 0
        %4812 = vmatpush1.bf16.msra.mxu0 %v4795
        %4813 = vmatprep.subr.bf16.mxu0 0
        %4814 = vmatpush1.bf16.msra.mxu0 %v4796
        %4815 = vmatprep.subr.bf16.mxu0 0
        %4816 = vmatpush1.bf16.msra.mxu0 0
        %4817 = vmatprep.subr.bf16.mxu0 0
        %4818 = vmatpush1.bf16.msra.mxu0 0
        %4819 = vmatprep.subr.bf16.mxu0 0
        %4820 = vmatpush1.bf16.msra.mxu0 0
        %4821 = vmatprep.subr.bf16.mxu0 0
        %4822 = vmatpush1.bf16.msra.mxu0 0
        %4823 = vmatprep.subr.bf16.mxu0 0
        %4824 = vmatpush1.bf16.msra.mxu0 0
        %4825 = vmatprep.subr.bf16.mxu0 0
        %4826 = vmatpush1.bf16.msra.mxu0 0
        %4827 = vmatprep.subr.bf16.mxu0 0
        %4828 = vmatpush1.bf16.msra.mxu0 0
        %4829 = vmatprep.subr.bf16.mxu0 0
        %4830 = vmatpush1.bf16.msra.mxu0 0
        %4831 = vmatprep.subr.bf16.mxu0 0
        %4832 = vmatpush1.bf16.msra.mxu0 0
        %4833 = vmatprep.subr.bf16.mxu0 0
        %4834 = vmatpush1.bf16.msra.mxu0 0
        %4835 = vmatprep.subr.bf16.mxu0 0
        %4836 = vmatpush1.bf16.msra.mxu0 0
        %4837 = vmatprep.subr.bf16.mxu0 0
        %4838 = vmatpush1.bf16.msra.mxu0 0
        %4839 = vmatprep.mubr.bf16.mxu0 0
        %4840 = vmatmul.mubr.bf16.gmra.mrb[0].mxu0 %v4802
        %v4841 = vpop.f32.mrb[0].mxu0
        %v4842 = vadd.f32 0.0, %v4841
        %v4843 = vpop.f32.mrb[0].mxu0
        %v4844 = vpop.f32.mrb[0].mxu0
        %v4845 = vadd.f32 0.0, %v4844
        %v4846 = vpop.f32.mrb[0].mxu0
        %4847 = vmatprep.mubr.bf16.mxu0 0
        %4848 = vmatmul.mubr.bf16.gmra.mrb[0].mxu0 %v4805
        %v4849 = vpop.f32.mrb[0].mxu0
        %v4850 = vadd.f32 0.0, %v4849
        %v4851 = vpop.f32.mrb[0].mxu0
        %v4852 = vpop.f32.mrb[0].mxu0
        %v4853 = vadd.f32 0.0, %v4852
        %v4854 = vpop.f32.mrb[0].mxu0
        %4855 = vdwg.mxu0
        %v4856 = vadd.f32 %v4761, %v4842
        %v4857 = vadd.f32 %v4764, %v4845
        %v4858 = vadd.f32 %v4769, %v4850
        %v4859 = vadd.f32 %v4772, %v4853
        %v4861 = vlaneseq
        %v4862 = vshrl.u32 %v4861, 7
        %v4863 = vsub.s32 0, %v4862
        %v4864 = vrot.slane %v4422, %v4863
        %v4866 = vadd.f32 %v4856, %v4864
        %v4867 = vadd.f32 %v4857, %v4864
        %v4868 = vadd.f32 %v4858, %v4864
        %v4869 = vadd.f32 %v4859, %v4864
        %v4870 = vmax.f32 %v4866, 0.0
        %v4871 = vmax.f32 %v4867, 0.0
        %v4872 = vmax.f32 %v4868, 0.0
        %v4873 = vmax.f32 %v4869, 0.0
        %v4874 = vpack.c.bf16 %v4871, %v4870
        %v4875 = vpack.c.bf16 %v4873, %v4872
        %v4877 = vlaneseq
        %v4878 = vshrl.u32 %v4877, 7
        %v4879 = vsub.s32 0, %v4878
        %v4880 = vrot.slane %v4433, %v4879
        %v4881 = vlaneseq
        %v4882 = vshrl.u32 %v4881, 7
        %v4883 = vsub.s32 1, %v4882
        %v4884 = vrot.slane %v4433, %v4883
        %v4895 = vunpack.c.l.b16 %v4424
        %v4896 = vunpack.c.h.b16 %v4424
        %v4897 = vunpack.c.l.b16 %v4425
        %v4898 = vunpack.c.h.b16 %v4425
        %v4899 = vunpack.c.l.b16 %v4426
        %v4900 = vunpack.c.h.b16 %v4426
        %v4901 = vunpack.c.l.b16 %v4427
        %v4902 = vunpack.c.h.b16 %v4427
        %v4903 = vunpack.c.l.b16 %v4428
        %v4904 = vunpack.c.h.b16 %v4428
        %v4905 = vunpack.c.l.b16 %v4429
        %v4906 = vunpack.c.h.b16 %v4429
        %v4907 = vunpack.c.l.b16 %v4430
        %v4908 = vunpack.c.h.b16 %v4430
        %v4909 = vunpack.c.l.b16 %v4431
        %v4910 = vunpack.c.h.b16 %v4431
        %v4911 = vpack.c.b16 %v4897, %v4895
        %v4912 = vpack.c.b16 %v4898, %v4896
        %v4913 = vpack.c.b16 %v4901, %v4899
        %v4914 = vpack.c.b16 %v4902, %v4900
        %v4915 = vpack.c.b16 %v4905, %v4903
        %v4916 = vpack.c.b16 %v4906, %v4904
        %v4917 = vpack.c.b16 %v4909, %v4907
        %v4918 = vpack.c.b16 %v4910, %v4908
        %v4928 = vsel %vm1471, %v4874, 0
        %v4931 = vsel %vm1471, %v4875, 0
        %4933 = vmatprep.subr.bf16.mxu0 %v4912
        %4934 = vmatpush1.bf16.msra.mxu0 %v4911
        %4935 = vmatprep.subr.bf16.mxu0 %v4914
        %4936 = vmatpush1.bf16.msra.mxu0 %v4913
        %4937 = vmatprep.subr.bf16.mxu0 %v4916
        %4938 = vmatpush1.bf16.msra.mxu0 %v4915
        %4939 = vmatprep.subr.bf16.mxu0 %v4918
        %4940 = vmatpush1.bf16.msra.mxu0 %v4917
        %4941 = vmatprep.subr.bf16.mxu0 0
        %4942 = vmatpush1.bf16.msra.mxu0 0
        %4943 = vmatprep.subr.bf16.mxu0 0
        %4944 = vmatpush1.bf16.msra.mxu0 0
        %4945 = vmatprep.subr.bf16.mxu0 0
        %4946 = vmatpush1.bf16.msra.mxu0 0
        %4947 = vmatprep.subr.bf16.mxu0 0
        %4948 = vmatpush1.bf16.msra.mxu0 0
        %4949 = vmatprep.subr.bf16.mxu0 0
        %4950 = vmatpush1.bf16.msra.mxu0 0
        %4951 = vmatprep.subr.bf16.mxu0 0
        %4952 = vmatpush1.bf16.msra.mxu0 0
        %4953 = vmatprep.subr.bf16.mxu0 0
        %4954 = vmatpush1.bf16.msra.mxu0 0
        %4955 = vmatprep.subr.bf16.mxu0 0
        %4956 = vmatpush1.bf16.msra.mxu0 0
        %4957 = vmatprep.subr.bf16.mxu0 0
        %4958 = vmatpush1.bf16.msra.mxu0 0
        %4959 = vmatprep.subr.bf16.mxu0 0
        %4960 = vmatpush1.bf16.msra.mxu0 0
        %4961 = vmatprep.subr.bf16.mxu0 0
        %4962 = vmatpush1.bf16.msra.mxu0 0
        %4963 = vmatprep.subr.bf16.mxu0 0
        %4964 = vmatpush1.bf16.msra.mxu0 0
        %4965 = vmatprep.mubr.bf16.mxu0 0
        %4966 = vmatmul.mubr.bf16.gmra.mrb[0].mxu0 %v4928
        %v4967 = vpop.f32.mrb[0].mxu0
        %v4968 = vadd.f32 %v4880, %v4967
        %v4969 = vpop.f32.mrb[0].mxu0
        %v4970 = vadd.f32 %v4884, %v4969
        %v4971 = vpop.f32.mrb[0].mxu0
        %v4972 = vadd.f32 %v4880, %v4971
        %v4973 = vpop.f32.mrb[0].mxu0
        %v4974 = vadd.f32 %v4884, %v4973
        %4975 = vmatprep.mubr.bf16.mxu0 0
        %4976 = vmatmul.mubr.bf16.gmra.mrb[0].mxu0 %v4931
        %v4977 = vpop.f32.mrb[0].mxu0
        %v4978 = vadd.f32 %v4880, %v4977
        %v4979 = vpop.f32.mrb[0].mxu0
        %v4980 = vadd.f32 %v4884, %v4979
        %v4981 = vpop.f32.mrb[0].mxu0
        %v4982 = vadd.f32 %v4880, %v4981
        %v4983 = vpop.f32.mrb[0].mxu0
        %v4984 = vadd.f32 %v4884, %v4983
        %4985 = vdwg.mxu0
        %v4986 = vadd.f32 %v4968, %v4347
        %v4987 = vadd.f32 %v4970, %v4348
        %v4988 = vadd.f32 %v4972, %v4349
        %v4989 = vadd.f32 %v4974, %v4350
        %v4990 = vadd.f32 %v4978, %v4351
        %v4991 = vadd.f32 %v4980, %v4352
        %v4992 = vadd.f32 %v4982, %v4353
        %v4993 = vadd.f32 %v4984, %v4354
        %v4994 = vmax.f32 %v4986, 0.0
        %v4995 = vmax.f32 %v4987, 0.0
        %v4996 = vmax.f32 %v4988, 0.0
        %v4997 = vmax.f32 %v4989, 0.0
        %v4998 = vmax.f32 %v4990, 0.0
        %v4999 = vmax.f32 %v4991, 0.0
        %v5000 = vmax.f32 %v4992, 0.0
        %v5001 = vmax.f32 %v4993, 0.0
        %s5002 = scalar_lea.vmem %s871, 64
        %5003 = vst [vmem:[%s5002] sm:$0xff] %v4994
        %5004 = vst [vmem:[%s5002 + $0x8] sm:$0xff] %v4995
        %5005 = vst [vmem:[%s5002 + $0x10] sm:$0xff] %v4996
        %5006 = vst [vmem:[%s5002 + $0x18] sm:$0xff] %v4997
        %5007 = vst [vmem:[%s5002 + $0x20] sm:$0xff] %v4998
        %5008 = vst [vmem:[%s5002 + $0x28] sm:$0xff] %v4999
        %5009 = vst [vmem:[%s5002 + $0x30] sm:$0xff] %v5000
        %5010 = vst [vmem:[%s5002 + $0x38] sm:$0xff] %v5001
        %s5011 = scalar_lea.vmem %s824, 128
        %v5012 = vld [vmem:[%s5011] sm:$0xf]
        %v5013 = vld [vmem:[%s5011 + $0x4] sm:$0xf]
        %v5014 = vld [vmem:[%s5011 + $0x8] sm:$0xf]
        %v5015 = vld [vmem:[%s5011 + $0xc] sm:$0xf]
        %v5016 = vld [vmem:[%s5011 + $0x10] sm:$0xf]
        %v5017 = vld [vmem:[%s5011 + $0x14] sm:$0xf]
        %v5018 = vld [vmem:[%s5011 + $0x18] sm:$0xf]
        %v5019 = vld [vmem:[%s5011 + $0x1c] sm:$0xf]
        %v5020 = vld [vmem:[%s5011 + $0x20] sm:$0xf]
        %v5021 = vld [vmem:[%s5011 + $0x24] sm:$0xf]
        %v5022 = vld [vmem:[%s5011 + $0x28] sm:$0xf]
        %v5023 = vld [vmem:[%s5011 + $0x2c] sm:$0xf]
        %v5024 = vld [vmem:[%s5011 + $0x30] sm:$0xf]
        %v5025 = vld [vmem:[%s5011 + $0x34] sm:$0xf]
        %v5026 = vld [vmem:[%s5011 + $0x38] sm:$0xf]
        %v5027 = vld [vmem:[%s5011 + $0x3c] sm:$0xf]
        %s5028 = scalar_lea.vmem %s828, 2
        %v5029 = vld [vmem:[%s5028] sm:$0x1]
        %s5030 = scalar_lea.vmem %s833, 192
        %v5031 = vld [vmem:[%s5030] sm:$0xf]
        %v5032 = vld [vmem:[%s5030 + $0x4] sm:$0xf]
        %v5033 = vld [vmem:[%s5030 + $0x8] sm:$0xf]
        %v5034 = vld [vmem:[%s5030 + $0xc] sm:$0xf]
        %v5035 = vld [vmem:[%s5030 + $0x10] sm:$0xf]
        %v5036 = vld [vmem:[%s5030 + $0x14] sm:$0xf]
        %v5037 = vld [vmem:[%s5030 + $0x18] sm:$0xf]
        %v5038 = vld [vmem:[%s5030 + $0x1c] sm:$0xf]
        %s5039 = scalar_lea.vmem %s833, 224
        %v5040 = vld [vmem:[%s5039] sm:$0xf]
        %v5041 = vld [vmem:[%s5039 + $0x4] sm:$0xf]
        %v5042 = vld [vmem:[%s5039 + $0x8] sm:$0xf]
        %v5043 = vld [vmem:[%s5039 + $0xc] sm:$0xf]
        %v5044 = vld [vmem:[%s5039 + $0x10] sm:$0xf]
        %v5045 = vld [vmem:[%s5039 + $0x14] sm:$0xf]
        %v5046 = vld [vmem:[%s5039 + $0x18] sm:$0xf]
        %v5047 = vld [vmem:[%s5039 + $0x1c] sm:$0xf]
        %s5048 = scalar_lea.vmem %s833, 256
        %v5049 = vld [vmem:[%s5048] sm:$0xf]
        %v5050 = vld [vmem:[%s5048 + $0x4] sm:$0xf]
        %v5051 = vld [vmem:[%s5048 + $0x8] sm:$0xf]
        %v5052 = vld [vmem:[%s5048 + $0xc] sm:$0xf]
        %v5053 = vld [vmem:[%s5048 + $0x10] sm:$0xf]
        %v5054 = vld [vmem:[%s5048 + $0x14] sm:$0xf]
        %v5055 = vld [vmem:[%s5048 + $0x18] sm:$0xf]
        %v5056 = vld [vmem:[%s5048 + $0x1c] sm:$0xf]
        %s5057 = scalar_lea.vmem %s692, 2 [#allocation4]
        %v5058 = vld [vmem:[%s5057] sm:$0x1]
        %s5059 = scalar_lea.vmem %s838, 128
        %v5060 = vld [vmem:[%s5059] sm:$0xff]
        %v5061 = vld [vmem:[%s5059 + $0x8] sm:$0xff]
        %v5062 = vld [vmem:[%s5059 + $0x10] sm:$0xff]
        %v5063 = vld [vmem:[%s5059 + $0x18] sm:$0xff]
        %v5064 = vld [vmem:[%s5059 + $0x20] sm:$0xff]
        %v5065 = vld [vmem:[%s5059 + $0x28] sm:$0xff]
        %v5066 = vld [vmem:[%s5059 + $0x30] sm:$0xff]
        %v5067 = vld [vmem:[%s5059 + $0x38] sm:$0xff]
        %s5068 = scalar_lea.vmem %s842, 4
        %v5069 = vld [vmem:[%s5068] sm:$0x3]
        %v5071 = vlaneseq
        %v5072 = vshrl.u32 %v5071, 7
        %v5073 = vsub.s32 0, %v5072
        %v5074 = vrot.slane %v5029, %v5073
        %v5092 = vunpack.c.l.b16 %v5012
        %v5093 = vunpack.c.l.b16 %v5013
        %v5094 = vunpack.c.l.b16 %v5014
        %v5095 = vunpack.c.l.b16 %v5015
        %v5096 = vunpack.c.l.b16 %v5016
        %v5097 = vunpack.c.l.b16 %v5017
        %v5098 = vunpack.c.l.b16 %v5018
        %v5099 = vunpack.c.l.b16 %v5019
        %v5100 = vunpack.c.l.b16 %v5020
        %v5101 = vunpack.c.l.b16 %v5021
        %v5102 = vunpack.c.l.b16 %v5022
        %v5103 = vunpack.c.l.b16 %v5023
        %v5104 = vunpack.c.l.b16 %v5024
        %v5105 = vunpack.c.l.b16 %v5025
        %v5106 = vunpack.c.l.b16 %v5026
        %v5107 = vunpack.c.l.b16 %v5027
        %v5108 = vpack.c.b16 %v5093, %v5092
        %v5109 = vpack.c.b16 %v5095, %v5094
        %v5110 = vpack.c.b16 %v5097, %v5096
        %v5111 = vpack.c.b16 %v5099, %v5098
        %v5112 = vpack.c.b16 %v5101, %v5100
        %v5113 = vpack.c.b16 %v5103, %v5102
        %v5114 = vpack.c.b16 %v5105, %v5104
        %v5115 = vpack.c.b16 %v5107, %v5106
        %5124 = vmatprep.subr.bf16.mxu0 0
        %5125 = vmatpush1.bf16.msra.mxu0 %v5108
        %5126 = vmatprep.subr.bf16.mxu0 0
        %5127 = vmatpush1.bf16.msra.mxu0 %v5109
        %5128 = vmatprep.subr.bf16.mxu0 0
        %5129 = vmatpush1.bf16.msra.mxu0 %v5110
        %5130 = vmatprep.subr.bf16.mxu0 0
        %5131 = vmatpush1.bf16.msra.mxu0 %v5111
        %5132 = vmatprep.subr.bf16.mxu0 0
        %5133 = vmatpush1.bf16.msra.mxu0 %v5112
        %5134 = vmatprep.subr.bf16.mxu0 0
        %5135 = vmatpush1.bf16.msra.mxu0 %v5113
        %5136 = vmatprep.subr.bf16.mxu0 0
        %5137 = vmatpush1.bf16.msra.mxu0 %v5114
        %5138 = vmatprep.subr.bf16.mxu0 0
        %5139 = vmatpush1.bf16.msra.mxu0 %v5115
        %5140 = vmatprep.subr.bf16.mxu0 0
        %5141 = vmatpush1.bf16.msra.mxu0 0
        %5142 = vmatprep.subr.bf16.mxu0 0
        %5143 = vmatpush1.bf16.msra.mxu0 0
        %5144 = vmatprep.subr.bf16.mxu0 0
        %5145 = vmatpush1.bf16.msra.mxu0 0
        %5146 = vmatprep.subr.bf16.mxu0 0
        %5147 = vmatpush1.bf16.msra.mxu0 0
        %5148 = vmatprep.subr.bf16.mxu0 0
        %5149 = vmatpush1.bf16.msra.mxu0 0
        %5150 = vmatprep.subr.bf16.mxu0 0
        %5151 = vmatpush1.bf16.msra.mxu0 0
        %5152 = vmatprep.subr.bf16.mxu0 0
        %5153 = vmatpush1.bf16.msra.mxu0 0
        %5154 = vmatprep.subr.bf16.mxu0 0
        %5155 = vmatpush1.bf16.msra.mxu0 0
        %5156 = vmatprep.mubr.bf16.mxu0 0
        %5157 = vmatmul.mubr.bf16.gmra.mrb[0].mxu0 %v1017
        %v5158 = vpop.f32.mrb[0].mxu0
        %v5159 = vadd.f32 %v5074, %v5158
        %v5160 = vpop.f32.mrb[0].mxu0
        %v5161 = vpop.f32.mrb[0].mxu0
        %v5162 = vadd.f32 %v5074, %v5161
        %v5163 = vpop.f32.mrb[0].mxu0
        %5164 = vmatprep.mubr.bf16.mxu0 0
        %5165 = vmatmul.mubr.bf16.gmra.mrb[0].mxu0 %v1018
        %v5166 = vpop.f32.mrb[0].mxu0
        %v5167 = vadd.f32 %v5074, %v5166
        %v5168 = vpop.f32.mrb[0].mxu0
        %v5169 = vpop.f32.mrb[0].mxu0
        %v5170 = vadd.f32 %v5074, %v5169
        %v5171 = vpop.f32.mrb[0].mxu0
        %5172 = vdwg.mxu0
        %v5173 = vmax.f32 %v5159, 0.0
        %v5174 = vmax.f32 %v5162, 0.0
        %v5175 = vmax.f32 %v5167, 0.0
        %v5176 = vmax.f32 %v5170, 0.0
        %v5177 = vrot.slane %v5173, 7
        %v5178 = vrot.slane %v5174, 7
        %v5179 = vrot.slane %v5175, 7
        %v5180 = vrot.slane %v5176, 7
        %v5181 = vsel %vm1421, %v5179, %v5180
        %v5182 = vsel %vm1421, %v5178, %v5179
        %v5183 = vsel %vm1421, %v5177, %v5178
        %v5184 = vsel %vm1421, %v5180, %v5177
        %v5185 = vmul.f32 %v5184, %v1241
        %v5186 = vmul.f32 %v5183, %v1242
        %v5187 = vmul.f32 %v5182, %v1243
        %v5188 = vmul.f32 %v5181, %v1244
        %v5189 = vrot.slane %v5173, 1
        %v5190 = vrot.slane %v5174, 1
        %v5191 = vrot.slane %v5175, 1
        %v5192 = vrot.slane %v5176, 1
        %v5193 = vsel %vm1434, %v5191, %v5192
        %v5194 = vsel %vm1434, %v5190, %v5191
        %v5195 = vsel %vm1434, %v5189, %v5190
        %v5196 = vsel %vm1434, %v5192, %v5189
        %v5197 = vmul.f32 %v5195, %v1253
        %v5198 = vmul.f32 %v5194, %v1254
        %v5199 = vmul.f32 %v5193, %v1255
        %v5200 = vmul.f32 %v5196, %v1256
        %v5201 = vpack.c.bf16 %v5174, %v5173
        %v5202 = vpack.c.bf16 %v5176, %v5175
        %v5203 = vpack.c.bf16 %v5186, %v5185
        %v5204 = vpack.c.bf16 %v5188, %v5187
        %v5213 = vunpack.c.l.b16 %v5031
        %v5214 = vunpack.c.l.b16 %v5032
        %v5215 = vunpack.c.l.b16 %v5033
        %v5216 = vunpack.c.l.b16 %v5034
        %v5217 = vunpack.c.l.b16 %v5035
        %v5218 = vunpack.c.l.b16 %v5036
        %v5219 = vunpack.c.l.b16 %v5037
        %v5220 = vunpack.c.l.b16 %v5038
        %v5221 = vpack.c.b16 %v5214, %v5213
        %v5222 = vpack.c.b16 %v5216, %v5215
        %v5223 = vpack.c.b16 %v5218, %v5217
        %v5224 = vpack.c.b16 %v5220, %v5219
        %v5230 = vsel %vm1471, %v5203, 0
        %v5233 = vsel %vm1471, %v5204, 0
        %5235 = vmatprep.subr.bf16.mxu0 0
        %5236 = vmatpush1.bf16.msra.mxu0 %v5221
        %5237 = vmatprep.subr.bf16.mxu0 0
        %5238 = vmatpush1.bf16.msra.mxu0 %v5222
        %5239 = vmatprep.subr.bf16.mxu0 0
        %5240 = vmatpush1.bf16.msra.mxu0 %v5223
        %5241 = vmatprep.subr.bf16.mxu0 0
        %5242 = vmatpush1.bf16.msra.mxu0 %v5224
        %5243 = vmatprep.subr.bf16.mxu0 0
        %5244 = vmatpush1.bf16.msra.mxu0 0
        %5245 = vmatprep.subr.bf16.mxu0 0
        %5246 = vmatpush1.bf16.msra.mxu0 0
        %5247 = vmatprep.subr.bf16.mxu0 0
        %5248 = vmatpush1.bf16.msra.mxu0 0
        %5249 = vmatprep.subr.bf16.mxu0 0
        %5250 = vmatpush1.bf16.msra.mxu0 0
        %5251 = vmatprep.subr.bf16.mxu0 0
        %5252 = vmatpush1.bf16.msra.mxu0 0
        %5253 = vmatprep.subr.bf16.mxu0 0
        %5254 = vmatpush1.bf16.msra.mxu0 0
        %5255 = vmatprep.subr.bf16.mxu0 0
        %5256 = vmatpush1.bf16.msra.mxu0 0
        %5257 = vmatprep.subr.bf16.mxu0 0
        %5258 = vmatpush1.bf16.msra.mxu0 0
        %5259 = vmatprep.subr.bf16.mxu0 0
        %5260 = vmatpush1.bf16.msra.mxu0 0
        %5261 = vmatprep.subr.bf16.mxu0 0
        %5262 = vmatpush1.bf16.msra.mxu0 0
        %5263 = vmatprep.subr.bf16.mxu0 0
        %5264 = vmatpush1.bf16.msra.mxu0 0
        %5265 = vmatprep.subr.bf16.mxu0 0
        %5266 = vmatpush1.bf16.msra.mxu0 0
        %5267 = vmatprep.mubr.bf16.mxu0 0
        %5268 = vmatmul.mubr.bf16.gmra.mrb[0].mxu0 %v5230
        %v5269 = vpop.f32.mrb[0].mxu0
        %v5270 = vadd.f32 0.0, %v5269
        %v5271 = vpop.f32.mrb[0].mxu0
        %v5272 = vpop.f32.mrb[0].mxu0
        %v5273 = vadd.f32 0.0, %v5272
        %v5274 = vpop.f32.mrb[0].mxu0
        %5275 = vmatprep.mubr.bf16.mxu0 0
        %5276 = vmatmul.mubr.bf16.gmra.mrb[0].mxu0 %v5233
        %v5277 = vpop.f32.mrb[0].mxu0
        %v5278 = vadd.f32 0.0, %v5277
        %v5279 = vpop.f32.mrb[0].mxu0
        %v5280 = vpop.f32.mrb[0].mxu0
        %v5281 = vadd.f32 0.0, %v5280
        %v5282 = vpop.f32.mrb[0].mxu0
        %5283 = vdwg.mxu0
        %v5292 = vunpack.c.l.b16 %v5040
        %v5293 = vunpack.c.l.b16 %v5041
        %v5294 = vunpack.c.l.b16 %v5042
        %v5295 = vunpack.c.l.b16 %v5043
        %v5296 = vunpack.c.l.b16 %v5044
        %v5297 = vunpack.c.l.b16 %v5045
        %v5298 = vunpack.c.l.b16 %v5046
        %v5299 = vunpack.c.l.b16 %v5047
        %v5300 = vpack.c.b16 %v5293, %v5292
        %v5301 = vpack.c.b16 %v5295, %v5294
        %v5302 = vpack.c.b16 %v5297, %v5296
        %v5303 = vpack.c.b16 %v5299, %v5298
        %v5309 = vsel %vm1471, %v5201, 0
        %v5312 = vsel %vm1471, %v5202, 0
        %5314 = vmatprep.subr.bf16.mxu0 0
        %5315 = vmatpush1.bf16.msra.mxu0 %v5300
        %5316 = vmatprep.subr.bf16.mxu0 0
        %5317 = vmatpush1.bf16.msra.mxu0 %v5301
        %5318 = vmatprep.subr.bf16.mxu0 0
        %5319 = vmatpush1.bf16.msra.mxu0 %v5302
        %5320 = vmatprep.subr.bf16.mxu0 0
        %5321 = vmatpush1.bf16.msra.mxu0 %v5303
        %5322 = vmatprep.subr.bf16.mxu0 0
        %5323 = vmatpush1.bf16.msra.mxu0 0
        %5324 = vmatprep.subr.bf16.mxu0 0
        %5325 = vmatpush1.bf16.msra.mxu0 0
        %5326 = vmatprep.subr.bf16.mxu0 0
        %5327 = vmatpush1.bf16.msra.mxu0 0
        %5328 = vmatprep.subr.bf16.mxu0 0
        %5329 = vmatpush1.bf16.msra.mxu0 0
        %5330 = vmatprep.subr.bf16.mxu0 0
        %5331 = vmatpush1.bf16.msra.mxu0 0
        %5332 = vmatprep.subr.bf16.mxu0 0
        %5333 = vmatpush1.bf16.msra.mxu0 0
        %5334 = vmatprep.subr.bf16.mxu0 0
        %5335 = vmatpush1.bf16.msra.mxu0 0
        %5336 = vmatprep.subr.bf16.mxu0 0
        %5337 = vmatpush1.bf16.msra.mxu0 0
        %5338 = vmatprep.subr.bf16.mxu0 0
        %5339 = vmatpush1.bf16.msra.mxu0 0
        %5340 = vmatprep.subr.bf16.mxu0 0
        %5341 = vmatpush1.bf16.msra.mxu0 0
        %5342 = vmatprep.subr.bf16.mxu0 0
        %5343 = vmatpush1.bf16.msra.mxu0 0
        %5344 = vmatprep.subr.bf16.mxu0 0
        %5345 = vmatpush1.bf16.msra.mxu0 0
        %5346 = vmatprep.mubr.bf16.mxu0 0
        %5347 = vmatmul.mubr.bf16.gmra.mrb[0].mxu0 %v5309
        %v5348 = vpop.f32.mrb[0].mxu0
        %v5349 = vadd.f32 %v5270, %v5348
        %v5350 = vpop.f32.mrb[0].mxu0
        %v5351 = vpop.f32.mrb[0].mxu0
        %v5352 = vadd.f32 %v5273, %v5351
        %v5353 = vpop.f32.mrb[0].mxu0
        %5354 = vmatprep.mubr.bf16.mxu0 0
        %5355 = vmatmul.mubr.bf16.gmra.mrb[0].mxu0 %v5312
        %v5356 = vpop.f32.mrb[0].mxu0
        %v5357 = vadd.f32 %v5278, %v5356
        %v5358 = vpop.f32.mrb[0].mxu0
        %v5359 = vpop.f32.mrb[0].mxu0
        %v5360 = vadd.f32 %v5281, %v5359
        %v5361 = vpop.f32.mrb[0].mxu0
        %5362 = vdwg.mxu0
        %v5363 = vpack.c.bf16 %v5198, %v5197
        %v5364 = vpack.c.bf16 %v5200, %v5199
        %v5373 = vunpack.c.l.b16 %v5049
        %v5374 = vunpack.c.l.b16 %v5050
        %v5375 = vunpack.c.l.b16 %v5051
        %v5376 = vunpack.c.l.b16 %v5052
        %v5377 = vunpack.c.l.b16 %v5053
        %v5378 = vunpack.c.l.b16 %v5054
        %v5379 = vunpack.c.l.b16 %v5055
        %v5380 = vunpack.c.l.b16 %v5056
        %v5381 = vpack.c.b16 %v5374, %v5373
        %v5382 = vpack.c.b16 %v5376, %v5375
        %v5383 = vpack.c.b16 %v5378, %v5377
        %v5384 = vpack.c.b16 %v5380, %v5379
        %v5390 = vsel %vm1471, %v5363, 0
        %v5393 = vsel %vm1471, %v5364, 0
        %5395 = vmatprep.subr.bf16.mxu0 0
        %5396 = vmatpush1.bf16.msra.mxu0 %v5381
        %5397 = vmatprep.subr.bf16.mxu0 0
        %5398 = vmatpush1.bf16.msra.mxu0 %v5382
        %5399 = vmatprep.subr.bf16.mxu0 0
        %5400 = vmatpush1.bf16.msra.mxu0 %v5383
        %5401 = vmatprep.subr.bf16.mxu0 0
        %5402 = vmatpush1.bf16.msra.mxu0 %v5384
        %5403 = vmatprep.subr.bf16.mxu0 0
        %5404 = vmatpush1.bf16.msra.mxu0 0
        %5405 = vmatprep.subr.bf16.mxu0 0
        %5406 = vmatpush1.bf16.msra.mxu0 0
        %5407 = vmatprep.subr.bf16.mxu0 0
        %5408 = vmatpush1.bf16.msra.mxu0 0
        %5409 = vmatprep.subr.bf16.mxu0 0
        %5410 = vmatpush1.bf16.msra.mxu0 0
        %5411 = vmatprep.subr.bf16.mxu0 0
        %5412 = vmatpush1.bf16.msra.mxu0 0
        %5413 = vmatprep.subr.bf16.mxu0 0
        %5414 = vmatpush1.bf16.msra.mxu0 0
        %5415 = vmatprep.subr.bf16.mxu0 0
        %5416 = vmatpush1.bf16.msra.mxu0 0
        %5417 = vmatprep.subr.bf16.mxu0 0
        %5418 = vmatpush1.bf16.msra.mxu0 0
        %5419 = vmatprep.subr.bf16.mxu0 0
        %5420 = vmatpush1.bf16.msra.mxu0 0
        %5421 = vmatprep.subr.bf16.mxu0 0
        %5422 = vmatpush1.bf16.msra.mxu0 0
        %5423 = vmatprep.subr.bf16.mxu0 0
        %5424 = vmatpush1.bf16.msra.mxu0 0
        %5425 = vmatprep.subr.bf16.mxu0 0
        %5426 = vmatpush1.bf16.msra.mxu0 0
        %5427 = vmatprep.mubr.bf16.mxu0 0
        %5428 = vmatmul.mubr.bf16.gmra.mrb[0].mxu0 %v5390
        %v5429 = vpop.f32.mrb[0].mxu0
        %v5430 = vadd.f32 0.0, %v5429
        %v5431 = vpop.f32.mrb[0].mxu0
        %v5432 = vpop.f32.mrb[0].mxu0
        %v5433 = vadd.f32 0.0, %v5432
        %v5434 = vpop.f32.mrb[0].mxu0
        %5435 = vmatprep.mubr.bf16.mxu0 0
        %5436 = vmatmul.mubr.bf16.gmra.mrb[0].mxu0 %v5393
        %v5437 = vpop.f32.mrb[0].mxu0
        %v5438 = vadd.f32 0.0, %v5437
        %v5439 = vpop.f32.mrb[0].mxu0
        %v5440 = vpop.f32.mrb[0].mxu0
        %v5441 = vadd.f32 0.0, %v5440
        %v5442 = vpop.f32.mrb[0].mxu0
        %5443 = vdwg.mxu0
        %v5444 = vadd.f32 %v5349, %v5430
        %v5445 = vadd.f32 %v5352, %v5433
        %v5446 = vadd.f32 %v5357, %v5438
        %v5447 = vadd.f32 %v5360, %v5441
        %v5449 = vlaneseq
        %v5450 = vshrl.u32 %v5449, 7
        %v5451 = vsub.s32 0, %v5450
        %v5452 = vrot.slane %v5058, %v5451
        %v5454 = vadd.f32 %v5444, %v5452
        %v5455 = vadd.f32 %v5445, %v5452
        %v5456 = vadd.f32 %v5446, %v5452
        %v5457 = vadd.f32 %v5447, %v5452
        %v5458 = vmax.f32 %v5454, 0.0
        %v5459 = vmax.f32 %v5455, 0.0
        %v5460 = vmax.f32 %v5456, 0.0
        %v5461 = vmax.f32 %v5457, 0.0
        %v5462 = vpack.c.bf16 %v5459, %v5458
        %v5463 = vpack.c.bf16 %v5461, %v5460
        %v5465 = vlaneseq
        %v5466 = vshrl.u32 %v5465, 7
        %v5467 = vsub.s32 0, %v5466
        %v5468 = vrot.slane %v5069, %v5467
        %v5469 = vlaneseq
        %v5470 = vshrl.u32 %v5469, 7
        %v5471 = vsub.s32 1, %v5470
        %v5472 = vrot.slane %v5069, %v5471
        %v5483 = vunpack.c.l.b16 %v5060
        %v5484 = vunpack.c.h.b16 %v5060
        %v5485 = vunpack.c.l.b16 %v5061
        %v5486 = vunpack.c.h.b16 %v5061
        %v5487 = vunpack.c.l.b16 %v5062
        %v5488 = vunpack.c.h.b16 %v5062
        %v5489 = vunpack.c.l.b16 %v5063
        %v5490 = vunpack.c.h.b16 %v5063
        %v5491 = vunpack.c.l.b16 %v5064
        %v5492 = vunpack.c.h.b16 %v5064
        %v5493 = vunpack.c.l.b16 %v5065
        %v5494 = vunpack.c.h.b16 %v5065
        %v5495 = vunpack.c.l.b16 %v5066
        %v5496 = vunpack.c.h.b16 %v5066
        %v5497 = vunpack.c.l.b16 %v5067
        %v5498 = vunpack.c.h.b16 %v5067
        %v5499 = vpack.c.b16 %v5485, %v5483
        %v5500 = vpack.c.b16 %v5486, %v5484
        %v5501 = vpack.c.b16 %v5489, %v5487
        %v5502 = vpack.c.b16 %v5490, %v5488
        %v5503 = vpack.c.b16 %v5493, %v5491
        %v5504 = vpack.c.b16 %v5494, %v5492
        %v5505 = vpack.c.b16 %v5497, %v5495
        %v5506 = vpack.c.b16 %v5498, %v5496
        %v5516 = vsel %vm1471, %v5462, 0
        %v5519 = vsel %vm1471, %v5463, 0
        %5521 = vmatprep.subr.bf16.mxu0 %v5500
        %5522 = vmatpush1.bf16.msra.mxu0 %v5499
        %5523 = vmatprep.subr.bf16.mxu0 %v5502
        %5524 = vmatpush1.bf16.msra.mxu0 %v5501
        %5525 = vmatprep.subr.bf16.mxu0 %v5504
        %5526 = vmatpush1.bf16.msra.mxu0 %v5503
        %5527 = vmatprep.subr.bf16.mxu0 %v5506
        %5528 = vmatpush1.bf16.msra.mxu0 %v5505
        %5529 = vmatprep.subr.bf16.mxu0 0
        %5530 = vmatpush1.bf16.msra.mxu0 0
        %5531 = vmatprep.subr.bf16.mxu0 0
        %5532 = vmatpush1.bf16.msra.mxu0 0
        %5533 = vmatprep.subr.bf16.mxu0 0
        %5534 = vmatpush1.bf16.msra.mxu0 0
        %5535 = vmatprep.subr.bf16.mxu0 0
        %5536 = vmatpush1.bf16.msra.mxu0 0
        %5537 = vmatprep.subr.bf16.mxu0 0
        %5538 = vmatpush1.bf16.msra.mxu0 0
        %5539 = vmatprep.subr.bf16.mxu0 0
        %5540 = vmatpush1.bf16.msra.mxu0 0
        %5541 = vmatprep.subr.bf16.mxu0 0
        %5542 = vmatpush1.bf16.msra.mxu0 0
        %5543 = vmatprep.subr.bf16.mxu0 0
        %5544 = vmatpush1.bf16.msra.mxu0 0
        %5545 = vmatprep.subr.bf16.mxu0 0
        %5546 = vmatpush1.bf16.msra.mxu0 0
        %5547 = vmatprep.subr.bf16.mxu0 0
        %5548 = vmatpush1.bf16.msra.mxu0 0
        %5549 = vmatprep.subr.bf16.mxu0 0
        %5550 = vmatpush1.bf16.msra.mxu0 0
        %5551 = vmatprep.subr.bf16.mxu0 0
        %5552 = vmatpush1.bf16.msra.mxu0 0
        %5553 = vmatprep.mubr.bf16.mxu0 0
        %5554 = vmatmul.mubr.bf16.gmra.mrb[0].mxu0 %v5516
        %v5555 = vpop.f32.mrb[0].mxu0
        %v5556 = vadd.f32 %v5468, %v5555
        %v5557 = vpop.f32.mrb[0].mxu0
        %v5558 = vadd.f32 %v5472, %v5557
        %v5559 = vpop.f32.mrb[0].mxu0
        %v5560 = vadd.f32 %v5468, %v5559
        %v5561 = vpop.f32.mrb[0].mxu0
        %v5562 = vadd.f32 %v5472, %v5561
        %5563 = vmatprep.mubr.bf16.mxu0 0
        %5564 = vmatmul.mubr.bf16.gmra.mrb[0].mxu0 %v5519
        %v5565 = vpop.f32.mrb[0].mxu0
        %v5566 = vadd.f32 %v5468, %v5565
        %v5567 = vpop.f32.mrb[0].mxu0
        %v5568 = vadd.f32 %v5472, %v5567
        %v5569 = vpop.f32.mrb[0].mxu0
        %v5570 = vadd.f32 %v5468, %v5569
        %v5571 = vpop.f32.mrb[0].mxu0
        %v5572 = vadd.f32 %v5472, %v5571
        %5573 = vdwg.mxu0
        %v5574 = vadd.f32 %v5556, %v1162
        %v5575 = vadd.f32 %v5558, %v1164
        %v5576 = vadd.f32 %v5560, %v1166
        %v5577 = vadd.f32 %v5562, %v1168
        %v5578 = vadd.f32 %v5566, %v1172
        %v5579 = vadd.f32 %v5568, %v1174
        %v5580 = vadd.f32 %v5570, %v1176
        %v5581 = vadd.f32 %v5572, %v1178
        %v5582 = vmax.f32 %v5574, 0.0
        %v5583 = vmax.f32 %v5575, 0.0
        %v5584 = vmax.f32 %v5576, 0.0
        %v5585 = vmax.f32 %v5577, 0.0
        %v5586 = vmax.f32 %v5578, 0.0
        %v5587 = vmax.f32 %v5579, 0.0
        %v5588 = vmax.f32 %v5580, 0.0
        %v5589 = vmax.f32 %v5581, 0.0
        %v5590 = vpack.c.bf16 %v5584, %v5582
        %v5591 = vpack.c.bf16 %v5585, %v5583
        %v5592 = vpack.c.bf16 %v5588, %v5586
        %v5593 = vpack.c.bf16 %v5589, %v5587
        %s5594 = scalar_lea.vmem %s847, 512
        %v5595 = vld [vmem:[%s5594] sm:$0xf]
        %v5596 = vld [vmem:[%s5594 + $0x4] sm:$0xf]
        %v5597 = vld [vmem:[%s5594 + $0x8] sm:$0xf]
        %v5598 = vld [vmem:[%s5594 + $0xc] sm:$0xf]
        %v5599 = vld [vmem:[%s5594 + $0x10] sm:$0xf]
        %v5600 = vld [vmem:[%s5594 + $0x14] sm:$0xf]
        %v5601 = vld [vmem:[%s5594 + $0x18] sm:$0xf]
        %v5602 = vld [vmem:[%s5594 + $0x1c] sm:$0xf]
        %v5603 = vld [vmem:[%s5594 + $0x20] sm:$0xf]
        %v5604 = vld [vmem:[%s5594 + $0x24] sm:$0xf]
        %v5605 = vld [vmem:[%s5594 + $0x28] sm:$0xf]
        %v5606 = vld [vmem:[%s5594 + $0x2c] sm:$0xf]
        %v5607 = vld [vmem:[%s5594 + $0x30] sm:$0xf]
        %v5608 = vld [vmem:[%s5594 + $0x34] sm:$0xf]
        %v5609 = vld [vmem:[%s5594 + $0x38] sm:$0xf]
        %v5610 = vld [vmem:[%s5594 + $0x3c] sm:$0xf]
        %v5611 = vld [vmem:[%s5594 + $0x40] sm:$0xf]
        %v5612 = vld [vmem:[%s5594 + $0x44] sm:$0xf]
        %v5613 = vld [vmem:[%s5594 + $0x48] sm:$0xf]
        %v5614 = vld [vmem:[%s5594 + $0x4c] sm:$0xf]
        %v5615 = vld [vmem:[%s5594 + $0x50] sm:$0xf]
        %v5616 = vld [vmem:[%s5594 + $0x54] sm:$0xf]
        %v5617 = vld [vmem:[%s5594 + $0x58] sm:$0xf]
        %v5618 = vld [vmem:[%s5594 + $0x5c] sm:$0xf]
        %v5619 = vld [vmem:[%s5594 + $0x60] sm:$0xf]
        %v5620 = vld [vmem:[%s5594 + $0x64] sm:$0xf]
        %v5621 = vld [vmem:[%s5594 + $0x68] sm:$0xf]
        %v5622 = vld [vmem:[%s5594 + $0x6c] sm:$0xf]
        %v5623 = vld [vmem:[%s5594 + $0x70] sm:$0xf]
        %v5624 = vld [vmem:[%s5594 + $0x74] sm:$0xf]
        %v5625 = vld [vmem:[%s5594 + $0x78] sm:$0xf]
        %v5626 = vld [vmem:[%s5594 + $0x7c] sm:$0xf]
        %s5627 = scalar_lea.vmem %s701, 4 [#allocation6]
        %v5628 = vld [vmem:[%s5627] sm:$0x1]
        %s5629 = scalar_lea.vmem %s852, 384
        %v5630 = vld [vmem:[%s5629] sm:$0xf]
        %v5631 = vld [vmem:[%s5629 + $0x4] sm:$0xf]
        %v5632 = vld [vmem:[%s5629 + $0x8] sm:$0xf]
        %v5633 = vld [vmem:[%s5629 + $0xc] sm:$0xf]
        %v5634 = vld [vmem:[%s5629 + $0x10] sm:$0xf]
        %v5635 = vld [vmem:[%s5629 + $0x14] sm:$0xf]
        %v5636 = vld [vmem:[%s5629 + $0x18] sm:$0xf]
        %v5637 = vld [vmem:[%s5629 + $0x1c] sm:$0xf]
        %s5638 = scalar_lea.vmem %s852, 416
        %v5639 = vld [vmem:[%s5638] sm:$0xf]
        %v5640 = vld [vmem:[%s5638 + $0x4] sm:$0xf]
        %v5641 = vld [vmem:[%s5638 + $0x8] sm:$0xf]
        %v5642 = vld [vmem:[%s5638 + $0xc] sm:$0xf]
        %v5643 = vld [vmem:[%s5638 + $0x10] sm:$0xf]
        %v5644 = vld [vmem:[%s5638 + $0x14] sm:$0xf]
        %v5645 = vld [vmem:[%s5638 + $0x18] sm:$0xf]
        %v5646 = vld [vmem:[%s5638 + $0x1c] sm:$0xf]
        %s5647 = scalar_lea.vmem %s852, 448
        %v5648 = vld [vmem:[%s5647] sm:$0xf]
        %v5649 = vld [vmem:[%s5647 + $0x4] sm:$0xf]
        %v5650 = vld [vmem:[%s5647 + $0x8] sm:$0xf]
        %v5651 = vld [vmem:[%s5647 + $0xc] sm:$0xf]
        %v5652 = vld [vmem:[%s5647 + $0x10] sm:$0xf]
        %v5653 = vld [vmem:[%s5647 + $0x14] sm:$0xf]
        %v5654 = vld [vmem:[%s5647 + $0x18] sm:$0xf]
        %v5655 = vld [vmem:[%s5647 + $0x1c] sm:$0xf]
        %s5656 = scalar_lea.vmem %s710, 4 [#allocation7]
        %v5657 = vld [vmem:[%s5656] sm:$0x1]
        %s5658 = scalar_lea.vmem %s857, 256
        %v5659 = vld [vmem:[%s5658] sm:$0xff]
        %v5660 = vld [vmem:[%s5658 + $0x8] sm:$0xff]
        %v5661 = vld [vmem:[%s5658 + $0x10] sm:$0xff]
        %v5662 = vld [vmem:[%s5658 + $0x18] sm:$0xff]
        %v5663 = vld [vmem:[%s5658 + $0x20] sm:$0xff]
        %v5664 = vld [vmem:[%s5658 + $0x28] sm:$0xff]
        %v5665 = vld [vmem:[%s5658 + $0x30] sm:$0xff]
        %v5666 = vld [vmem:[%s5658 + $0x38] sm:$0xff]
        %s5667 = scalar_lea.vmem %s861, 8
        %v5668 = vld [vmem:[%s5667] sm:$0x3]
        %v5670 = vlaneseq
        %v5671 = vshrl.u32 %v5670, 7
        %v5672 = vsub.s32 0, %v5671
        %v5673 = vrot.slane %v5628, %v5672
        %v5707 = vunpack.c.l.b16 %v5595
        %v5708 = vunpack.c.l.b16 %v5596
        %v5709 = vunpack.c.l.b16 %v5597
        %v5710 = vunpack.c.l.b16 %v5598
        %v5711 = vunpack.c.l.b16 %v5599
        %v5712 = vunpack.c.l.b16 %v5600
        %v5713 = vunpack.c.l.b16 %v5601
        %v5714 = vunpack.c.l.b16 %v5602
        %v5715 = vunpack.c.l.b16 %v5603
        %v5716 = vunpack.c.l.b16 %v5604
        %v5717 = vunpack.c.l.b16 %v5605
        %v5718 = vunpack.c.l.b16 %v5606
        %v5719 = vunpack.c.l.b16 %v5607
        %v5720 = vunpack.c.l.b16 %v5608
        %v5721 = vunpack.c.l.b16 %v5609
        %v5722 = vunpack.c.l.b16 %v5610
        %v5723 = vunpack.c.l.b16 %v5611
        %v5724 = vunpack.c.l.b16 %v5612
        %v5725 = vunpack.c.l.b16 %v5613
        %v5726 = vunpack.c.l.b16 %v5614
        %v5727 = vunpack.c.l.b16 %v5615
        %v5728 = vunpack.c.l.b16 %v5616
        %v5729 = vunpack.c.l.b16 %v5617
        %v5730 = vunpack.c.l.b16 %v5618
        %v5731 = vunpack.c.l.b16 %v5619
        %v5732 = vunpack.c.l.b16 %v5620
        %v5733 = vunpack.c.l.b16 %v5621
        %v5734 = vunpack.c.l.b16 %v5622
        %v5735 = vunpack.c.l.b16 %v5623
        %v5736 = vunpack.c.l.b16 %v5624
        %v5737 = vunpack.c.l.b16 %v5625
        %v5738 = vunpack.c.l.b16 %v5626
        %v5739 = vpack.c.b16 %v5708, %v5707
        %v5740 = vpack.c.b16 %v5710, %v5709
        %v5741 = vpack.c.b16 %v5712, %v5711
        %v5742 = vpack.c.b16 %v5714, %v5713
        %v5743 = vpack.c.b16 %v5716, %v5715
        %v5744 = vpack.c.b16 %v5718, %v5717
        %v5745 = vpack.c.b16 %v5720, %v5719
        %v5746 = vpack.c.b16 %v5722, %v5721
        %v5747 = vpack.c.b16 %v5724, %v5723
        %v5748 = vpack.c.b16 %v5726, %v5725
        %v5749 = vpack.c.b16 %v5728, %v5727
        %v5750 = vpack.c.b16 %v5730, %v5729
        %v5751 = vpack.c.b16 %v5732, %v5731
        %v5752 = vpack.c.b16 %v5734, %v5733
        %v5753 = vpack.c.b16 %v5736, %v5735
        %v5754 = vpack.c.b16 %v5738, %v5737
        %5771 = vmatprep.subr.bf16.mxu0 0
        %5772 = vmatpush1.bf16.msra.mxu0 %v5739
        %5773 = vmatprep.subr.bf16.mxu0 0
        %5774 = vmatpush1.bf16.msra.mxu0 %v5740
        %5775 = vmatprep.subr.bf16.mxu0 0
        %5776 = vmatpush1.bf16.msra.mxu0 %v5741
        %5777 = vmatprep.subr.bf16.mxu0 0
        %5778 = vmatpush1.bf16.msra.mxu0 %v5742
        %5779 = vmatprep.subr.bf16.mxu0 0
        %5780 = vmatpush1.bf16.msra.mxu0 %v5743
        %5781 = vmatprep.subr.bf16.mxu0 0
        %5782 = vmatpush1.bf16.msra.mxu0 %v5744
        %5783 = vmatprep.subr.bf16.mxu0 0
        %5784 = vmatpush1.bf16.msra.mxu0 %v5745
        %5785 = vmatprep.subr.bf16.mxu0 0
        %5786 = vmatpush1.bf16.msra.mxu0 %v5746
        %5787 = vmatprep.subr.bf16.mxu0 0
        %5788 = vmatpush1.bf16.msra.mxu0 %v5747
        %5789 = vmatprep.subr.bf16.mxu0 0
        %5790 = vmatpush1.bf16.msra.mxu0 %v5748
        %5791 = vmatprep.subr.bf16.mxu0 0
        %5792 = vmatpush1.bf16.msra.mxu0 %v5749
        %5793 = vmatprep.subr.bf16.mxu0 0
        %5794 = vmatpush1.bf16.msra.mxu0 %v5750
        %5795 = vmatprep.subr.bf16.mxu0 0
        %5796 = vmatpush1.bf16.msra.mxu0 %v5751
        %5797 = vmatprep.subr.bf16.mxu0 0
        %5798 = vmatpush1.bf16.msra.mxu0 %v5752
        %5799 = vmatprep.subr.bf16.mxu0 0
        %5800 = vmatpush1.bf16.msra.mxu0 %v5753
        %5801 = vmatprep.subr.bf16.mxu0 0
        %5802 = vmatpush1.bf16.msra.mxu0 %v5754
        %5803 = vmatprep.mubr.bf16.mxu0 %v5591
        %5804 = vmatmul.mubr.bf16.gmra.mrb[0].mxu0 %v5590
        %v5805 = vpop.f32.mrb[0].mxu0
        %v5806 = vadd.f32 %v5673, %v5805
        %v5807 = vpop.f32.mrb[0].mxu0
        %v5808 = vpop.f32.mrb[0].mxu0
        %v5809 = vadd.f32 %v5673, %v5808
        %v5810 = vpop.f32.mrb[0].mxu0
        %5811 = vmatprep.mubr.bf16.mxu0 %v5593
        %5812 = vmatmul.mubr.bf16.gmra.mrb[0].mxu0 %v5592
        %v5813 = vpop.f32.mrb[0].mxu0
        %v5814 = vadd.f32 %v5673, %v5813
        %v5815 = vpop.f32.mrb[0].mxu0
        %v5816 = vpop.f32.mrb[0].mxu0
        %v5817 = vadd.f32 %v5673, %v5816
        %v5818 = vpop.f32.mrb[0].mxu0
        %5819 = vdwg.mxu0
        %v5820 = vmax.f32 %v5806, 0.0
        %v5821 = vmax.f32 %v5809, 0.0
        %v5822 = vmax.f32 %v5814, 0.0
        %v5823 = vmax.f32 %v5817, 0.0
        %v5824 = vrot.slane %v5820, 7
        %v5825 = vrot.slane %v5821, 7
        %v5826 = vrot.slane %v5822, 7
        %v5827 = vrot.slane %v5823, 7
        %v5828 = vsel %vm1421, %v5826, %v5827
        %v5829 = vsel %vm1421, %v5825, %v5826
        %v5830 = vsel %vm1421, %v5824, %v5825
        %v5831 = vsel %vm1421, %v5827, %v5824
        %v5832 = vmul.f32 %v5831, %v1241
        %v5833 = vmul.f32 %v5830, %v1242
        %v5834 = vmul.f32 %v5829, %v1243
        %v5835 = vmul.f32 %v5828, %v1244
        %v5836 = vrot.slane %v5820, 1
        %v5837 = vrot.slane %v5821, 1
        %v5838 = vrot.slane %v5822, 1
        %v5839 = vrot.slane %v5823, 1
        %v5840 = vsel %vm1434, %v5838, %v5839
        %v5841 = vsel %vm1434, %v5837, %v5838
        %v5842 = vsel %vm1434, %v5836, %v5837
        %v5843 = vsel %vm1434, %v5839, %v5836
        %v5844 = vmul.f32 %v5842, %v1253
        %v5845 = vmul.f32 %v5841, %v1254
        %v5846 = vmul.f32 %v5840, %v1255
        %v5847 = vmul.f32 %v5843, %v1256
        %v5848 = vpack.c.bf16 %v5821, %v5820
        %v5849 = vpack.c.bf16 %v5823, %v5822
        %v5850 = vpack.c.bf16 %v5833, %v5832
        %v5851 = vpack.c.bf16 %v5835, %v5834
        %v5860 = vunpack.c.l.b16 %v5630
        %v5861 = vunpack.c.l.b16 %v5631
        %v5862 = vunpack.c.l.b16 %v5632
        %v5863 = vunpack.c.l.b16 %v5633
        %v5864 = vunpack.c.l.b16 %v5634
        %v5865 = vunpack.c.l.b16 %v5635
        %v5866 = vunpack.c.l.b16 %v5636
        %v5867 = vunpack.c.l.b16 %v5637
        %v5868 = vpack.c.b16 %v5861, %v5860
        %v5869 = vpack.c.b16 %v5863, %v5862
        %v5870 = vpack.c.b16 %v5865, %v5864
        %v5871 = vpack.c.b16 %v5867, %v5866
        %v5877 = vsel %vm1471, %v5850, 0
        %v5880 = vsel %vm1471, %v5851, 0
        %5882 = vmatprep.subr.bf16.mxu0 0
        %5883 = vmatpush1.bf16.msra.mxu0 %v5868
        %5884 = vmatprep.subr.bf16.mxu0 0
        %5885 = vmatpush1.bf16.msra.mxu0 %v5869
        %5886 = vmatprep.subr.bf16.mxu0 0
        %5887 = vmatpush1.bf16.msra.mxu0 %v5870
        %5888 = vmatprep.subr.bf16.mxu0 0
        %5889 = vmatpush1.bf16.msra.mxu0 %v5871
        %5890 = vmatprep.subr.bf16.mxu0 0
        %5891 = vmatpush1.bf16.msra.mxu0 0
        %5892 = vmatprep.subr.bf16.mxu0 0
        %5893 = vmatpush1.bf16.msra.mxu0 0
        %5894 = vmatprep.subr.bf16.mxu0 0
        %5895 = vmatpush1.bf16.msra.mxu0 0
        %5896 = vmatprep.subr.bf16.mxu0 0
        %5897 = vmatpush1.bf16.msra.mxu0 0
        %5898 = vmatprep.subr.bf16.mxu0 0
        %5899 = vmatpush1.bf16.msra.mxu0 0
        %5900 = vmatprep.subr.bf16.mxu0 0
        %5901 = vmatpush1.bf16.msra.mxu0 0
        %5902 = vmatprep.subr.bf16.mxu0 0
        %5903 = vmatpush1.bf16.msra.mxu0 0
        %5904 = vmatprep.subr.bf16.mxu0 0
        %5905 = vmatpush1.bf16.msra.mxu0 0
        %5906 = vmatprep.subr.bf16.mxu0 0
        %5907 = vmatpush1.bf16.msra.mxu0 0
        %5908 = vmatprep.subr.bf16.mxu0 0
        %5909 = vmatpush1.bf16.msra.mxu0 0
        %5910 = vmatprep.subr.bf16.mxu0 0
        %5911 = vmatpush1.bf16.msra.mxu0 0
        %5912 = vmatprep.subr.bf16.mxu0 0
        %5913 = vmatpush1.bf16.msra.mxu0 0
        %5914 = vmatprep.mubr.bf16.mxu0 0
        %5915 = vmatmul.mubr.bf16.gmra.mrb[0].mxu0 %v5877
        %v5916 = vpop.f32.mrb[0].mxu0
        %v5917 = vadd.f32 0.0, %v5916
        %v5918 = vpop.f32.mrb[0].mxu0
        %v5919 = vpop.f32.mrb[0].mxu0
        %v5920 = vadd.f32 0.0, %v5919
        %v5921 = vpop.f32.mrb[0].mxu0
        %5922 = vmatprep.mubr.bf16.mxu0 0
        %5923 = vmatmul.mubr.bf16.gmra.mrb[0].mxu0 %v5880
        %v5924 = vpop.f32.mrb[0].mxu0
        %v5925 = vadd.f32 0.0, %v5924
        %v5926 = vpop.f32.mrb[0].mxu0
        %v5927 = vpop.f32.mrb[0].mxu0
        %v5928 = vadd.f32 0.0, %v5927
        %v5929 = vpop.f32.mrb[0].mxu0
        %5930 = vdwg.mxu0
        %v5939 = vunpack.c.l.b16 %v5639
        %v5940 = vunpack.c.l.b16 %v5640
        %v5941 = vunpack.c.l.b16 %v5641
        %v5942 = vunpack.c.l.b16 %v5642
        %v5943 = vunpack.c.l.b16 %v5643
        %v5944 = vunpack.c.l.b16 %v5644
        %v5945 = vunpack.c.l.b16 %v5645
        %v5946 = vunpack.c.l.b16 %v5646
        %v5947 = vpack.c.b16 %v5940, %v5939
        %v5948 = vpack.c.b16 %v5942, %v5941
        %v5949 = vpack.c.b16 %v5944, %v5943
        %v5950 = vpack.c.b16 %v5946, %v5945
        %v5956 = vsel %vm1471, %v5848, 0
        %v5959 = vsel %vm1471, %v5849, 0
        %5961 = vmatprep.subr.bf16.mxu0 0
        %5962 = vmatpush1.bf16.msra.mxu0 %v5947
        %5963 = vmatprep.subr.bf16.mxu0 0
        %5964 = vmatpush1.bf16.msra.mxu0 %v5948
        %5965 = vmatprep.subr.bf16.mxu0 0
        %5966 = vmatpush1.bf16.msra.mxu0 %v5949
        %5967 = vmatprep.subr.bf16.mxu0 0
        %5968 = vmatpush1.bf16.msra.mxu0 %v5950
        %5969 = vmatprep.subr.bf16.mxu0 0
        %5970 = vmatpush1.bf16.msra.mxu0 0
        %5971 = vmatprep.subr.bf16.mxu0 0
        %5972 = vmatpush1.bf16.msra.mxu0 0
        %5973 = vmatprep.subr.bf16.mxu0 0
        %5974 = vmatpush1.bf16.msra.mxu0 0
        %5975 = vmatprep.subr.bf16.mxu0 0
        %5976 = vmatpush1.bf16.msra.mxu0 0
        %5977 = vmatprep.subr.bf16.mxu0 0
        %5978 = vmatpush1.bf16.msra.mxu0 0
        %5979 = vmatprep.subr.bf16.mxu0 0
        %5980 = vmatpush1.bf16.msra.mxu0 0
        %5981 = vmatprep.subr.bf16.mxu0 0
        %5982 = vmatpush1.bf16.msra.mxu0 0
        %5983 = vmatprep.subr.bf16.mxu0 0
        %5984 = vmatpush1.bf16.msra.mxu0 0
        %5985 = vmatprep.subr.bf16.mxu0 0
        %5986 = vmatpush1.bf16.msra.mxu0 0
        %5987 = vmatprep.subr.bf16.mxu0 0
        %5988 = vmatpush1.bf16.msra.mxu0 0
        %5989 = vmatprep.subr.bf16.mxu0 0
        %5990 = vmatpush1.bf16.msra.mxu0 0
        %5991 = vmatprep.subr.bf16.mxu0 0
        %5992 = vmatpush1.bf16.msra.mxu0 0
        %5993 = vmatprep.mubr.bf16.mxu0 0
        %5994 = vmatmul.mubr.bf16.gmra.mrb[0].mxu0 %v5956
        %v5995 = vpop.f32.mrb[0].mxu0
        %v5996 = vadd.f32 %v5917, %v5995
        %v5997 = vpop.f32.mrb[0].mxu0
        %v5998 = vpop.f32.mrb[0].mxu0
        %v5999 = vadd.f32 %v5920, %v5998
        %v6000 = vpop.f32.mrb[0].mxu0
        %6001 = vmatprep.mubr.bf16.mxu0 0
        %6002 = vmatmul.mubr.bf16.gmra.mrb[0].mxu0 %v5959
        %v6003 = vpop.f32.mrb[0].mxu0
        %v6004 = vadd.f32 %v5925, %v6003
        %v6005 = vpop.f32.mrb[0].mxu0
        %v6006 = vpop.f32.mrb[0].mxu0
        %v6007 = vadd.f32 %v5928, %v6006
        %v6008 = vpop.f32.mrb[0].mxu0
        %6009 = vdwg.mxu0
        %v6010 = vpack.c.bf16 %v5845, %v5844
        %v6011 = vpack.c.bf16 %v5847, %v5846
        %v6020 = vunpack.c.l.b16 %v5648
        %v6021 = vunpack.c.l.b16 %v5649
        %v6022 = vunpack.c.l.b16 %v5650
        %v6023 = vunpack.c.l.b16 %v5651
        %v6024 = vunpack.c.l.b16 %v5652
        %v6025 = vunpack.c.l.b16 %v5653
        %v6026 = vunpack.c.l.b16 %v5654
        %v6027 = vunpack.c.l.b16 %v5655
        %v6028 = vpack.c.b16 %v6021, %v6020
        %v6029 = vpack.c.b16 %v6023, %v6022
        %v6030 = vpack.c.b16 %v6025, %v6024
        %v6031 = vpack.c.b16 %v6027, %v6026
        %v6037 = vsel %vm1471, %v6010, 0
        %v6040 = vsel %vm1471, %v6011, 0
        %6042 = vmatprep.subr.bf16.mxu0 0
        %6043 = vmatpush1.bf16.msra.mxu0 %v6028
        %6044 = vmatprep.subr.bf16.mxu0 0
        %6045 = vmatpush1.bf16.msra.mxu0 %v6029
        %6046 = vmatprep.subr.bf16.mxu0 0
        %6047 = vmatpush1.bf16.msra.mxu0 %v6030
        %6048 = vmatprep.subr.bf16.mxu0 0
        %6049 = vmatpush1.bf16.msra.mxu0 %v6031
        %6050 = vmatprep.subr.bf16.mxu0 0
        %6051 = vmatpush1.bf16.msra.mxu0 0
        %6052 = vmatprep.subr.bf16.mxu0 0
        %6053 = vmatpush1.bf16.msra.mxu0 0
        %6054 = vmatprep.subr.bf16.mxu0 0
        %6055 = vmatpush1.bf16.msra.mxu0 0
        %6056 = vmatprep.subr.bf16.mxu0 0
        %6057 = vmatpush1.bf16.msra.mxu0 0
        %6058 = vmatprep.subr.bf16.mxu0 0
        %6059 = vmatpush1.bf16.msra.mxu0 0
        %6060 = vmatprep.subr.bf16.mxu0 0
        %6061 = vmatpush1.bf16.msra.mxu0 0
        %6062 = vmatprep.subr.bf16.mxu0 0
        %6063 = vmatpush1.bf16.msra.mxu0 0
        %6064 = vmatprep.subr.bf16.mxu0 0
        %6065 = vmatpush1.bf16.msra.mxu0 0
        %6066 = vmatprep.subr.bf16.mxu0 0
        %6067 = vmatpush1.bf16.msra.mxu0 0
        %6068 = vmatprep.subr.bf16.mxu0 0
        %6069 = vmatpush1.bf16.msra.mxu0 0
        %6070 = vmatprep.subr.bf16.mxu0 0
        %6071 = vmatpush1.bf16.msra.mxu0 0
        %6072 = vmatprep.subr.bf16.mxu0 0
        %6073 = vmatpush1.bf16.msra.mxu0 0
        %6074 = vmatprep.mubr.bf16.mxu0 0
        %6075 = vmatmul.mubr.bf16.gmra.mrb[0].mxu0 %v6037
        %v6076 = vpop.f32.mrb[0].mxu0
        %v6077 = vadd.f32 0.0, %v6076
        %v6078 = vpop.f32.mrb[0].mxu0
        %v6079 = vpop.f32.mrb[0].mxu0
        %v6080 = vadd.f32 0.0, %v6079
        %v6081 = vpop.f32.mrb[0].mxu0
        %6082 = vmatprep.mubr.bf16.mxu0 0
        %6083 = vmatmul.mubr.bf16.gmra.mrb[0].mxu0 %v6040
        %v6084 = vpop.f32.mrb[0].mxu0
        %v6085 = vadd.f32 0.0, %v6084
        %v6086 = vpop.f32.mrb[0].mxu0
        %v6087 = vpop.f32.mrb[0].mxu0
        %v6088 = vadd.f32 0.0, %v6087
        %v6089 = vpop.f32.mrb[0].mxu0
        %6090 = vdwg.mxu0
        %v6091 = vadd.f32 %v5996, %v6077
        %v6092 = vadd.f32 %v5999, %v6080
        %v6093 = vadd.f32 %v6004, %v6085
        %v6094 = vadd.f32 %v6007, %v6088
        %v6096 = vlaneseq
        %v6097 = vshrl.u32 %v6096, 7
        %v6098 = vsub.s32 0, %v6097
        %v6099 = vrot.slane %v5657, %v6098
        %v6101 = vadd.f32 %v6091, %v6099
        %v6102 = vadd.f32 %v6092, %v6099
        %v6103 = vadd.f32 %v6093, %v6099
        %v6104 = vadd.f32 %v6094, %v6099
        %v6105 = vmax.f32 %v6101, 0.0
        %v6106 = vmax.f32 %v6102, 0.0
        %v6107 = vmax.f32 %v6103, 0.0
        %v6108 = vmax.f32 %v6104, 0.0
        %v6109 = vpack.c.bf16 %v6106, %v6105
        %v6110 = vpack.c.bf16 %v6108, %v6107
        %v6112 = vlaneseq
        %v6113 = vshrl.u32 %v6112, 7
        %v6114 = vsub.s32 0, %v6113
        %v6115 = vrot.slane %v5668, %v6114
        %v6116 = vlaneseq
        %v6117 = vshrl.u32 %v6116, 7
        %v6118 = vsub.s32 1, %v6117
        %v6119 = vrot.slane %v5668, %v6118
        %v6130 = vunpack.c.l.b16 %v5659
        %v6131 = vunpack.c.h.b16 %v5659
        %v6132 = vunpack.c.l.b16 %v5660
        %v6133 = vunpack.c.h.b16 %v5660
        %v6134 = vunpack.c.l.b16 %v5661
        %v6135 = vunpack.c.h.b16 %v5661
        %v6136 = vunpack.c.l.b16 %v5662
        %v6137 = vunpack.c.h.b16 %v5662
        %v6138 = vunpack.c.l.b16 %v5663
        %v6139 = vunpack.c.h.b16 %v5663
        %v6140 = vunpack.c.l.b16 %v5664
        %v6141 = vunpack.c.h.b16 %v5664
        %v6142 = vunpack.c.l.b16 %v5665
        %v6143 = vunpack.c.h.b16 %v5665
        %v6144 = vunpack.c.l.b16 %v5666
        %v6145 = vunpack.c.h.b16 %v5666
        %v6146 = vpack.c.b16 %v6132, %v6130
        %v6147 = vpack.c.b16 %v6133, %v6131
        %v6148 = vpack.c.b16 %v6136, %v6134
        %v6149 = vpack.c.b16 %v6137, %v6135
        %v6150 = vpack.c.b16 %v6140, %v6138
        %v6151 = vpack.c.b16 %v6141, %v6139
        %v6152 = vpack.c.b16 %v6144, %v6142
        %v6153 = vpack.c.b16 %v6145, %v6143
        %v6163 = vsel %vm1471, %v6109, 0
        %v6166 = vsel %vm1471, %v6110, 0
        %6168 = vmatprep.subr.bf16.mxu0 %v6147
        %6169 = vmatpush1.bf16.msra.mxu0 %v6146
        %6170 = vmatprep.subr.bf16.mxu0 %v6149
        %6171 = vmatpush1.bf16.msra.mxu0 %v6148
        %6172 = vmatprep.subr.bf16.mxu0 %v6151
        %6173 = vmatpush1.bf16.msra.mxu0 %v6150
        %6174 = vmatprep.subr.bf16.mxu0 %v6153
        %6175 = vmatpush1.bf16.msra.mxu0 %v6152
        %6176 = vmatprep.subr.bf16.mxu0 0
        %6177 = vmatpush1.bf16.msra.mxu0 0
        %6178 = vmatprep.subr.bf16.mxu0 0
        %6179 = vmatpush1.bf16.msra.mxu0 0
        %6180 = vmatprep.subr.bf16.mxu0 0
        %6181 = vmatpush1.bf16.msra.mxu0 0
        %6182 = vmatprep.subr.bf16.mxu0 0
        %6183 = vmatpush1.bf16.msra.mxu0 0
        %6184 = vmatprep.subr.bf16.mxu0 0
        %6185 = vmatpush1.bf16.msra.mxu0 0
        %6186 = vmatprep.subr.bf16.mxu0 0
        %6187 = vmatpush1.bf16.msra.mxu0 0
        %6188 = vmatprep.subr.bf16.mxu0 0
        %6189 = vmatpush1.bf16.msra.mxu0 0
        %6190 = vmatprep.subr.bf16.mxu0 0
        %6191 = vmatpush1.bf16.msra.mxu0 0
        %6192 = vmatprep.subr.bf16.mxu0 0
        %6193 = vmatpush1.bf16.msra.mxu0 0
        %6194 = vmatprep.subr.bf16.mxu0 0
        %6195 = vmatpush1.bf16.msra.mxu0 0
        %6196 = vmatprep.subr.bf16.mxu0 0
        %6197 = vmatpush1.bf16.msra.mxu0 0
        %6198 = vmatprep.subr.bf16.mxu0 0
        %6199 = vmatpush1.bf16.msra.mxu0 0
        %6200 = vmatprep.mubr.bf16.mxu0 0
        %6201 = vmatmul.mubr.bf16.gmra.mrb[0].mxu0 %v6163
        %v6202 = vpop.f32.mrb[0].mxu0
        %v6203 = vadd.f32 %v6115, %v6202
        %v6204 = vpop.f32.mrb[0].mxu0
        %v6205 = vadd.f32 %v6119, %v6204
        %v6206 = vpop.f32.mrb[0].mxu0
        %v6207 = vadd.f32 %v6115, %v6206
        %v6208 = vpop.f32.mrb[0].mxu0
        %v6209 = vadd.f32 %v6119, %v6208
        %6210 = vmatprep.mubr.bf16.mxu0 0
        %6211 = vmatmul.mubr.bf16.gmra.mrb[0].mxu0 %v6166
        %v6212 = vpop.f32.mrb[0].mxu0
        %v6213 = vadd.f32 %v6115, %v6212
        %v6214 = vpop.f32.mrb[0].mxu0
        %v6215 = vadd.f32 %v6119, %v6214
        %v6216 = vpop.f32.mrb[0].mxu0
        %v6217 = vadd.f32 %v6115, %v6216
        %v6218 = vpop.f32.mrb[0].mxu0
        %v6219 = vadd.f32 %v6119, %v6218
        %6220 = vdwg.mxu0
        %v6221 = vadd.f32 %v6203, %v5582
        %v6222 = vadd.f32 %v6205, %v5583
        %v6223 = vadd.f32 %v6207, %v5584
        %v6224 = vadd.f32 %v6209, %v5585
        %v6225 = vadd.f32 %v6213, %v5586
        %v6226 = vadd.f32 %v6215, %v5587
        %v6227 = vadd.f32 %v6217, %v5588
        %v6228 = vadd.f32 %v6219, %v5589
        %v6229 = vmax.f32 %v6221, 0.0
        %v6230 = vmax.f32 %v6222, 0.0
        %v6231 = vmax.f32 %v6223, 0.0
        %v6232 = vmax.f32 %v6224, 0.0
        %v6233 = vmax.f32 %v6225, 0.0
        %v6234 = vmax.f32 %v6226, 0.0
        %v6235 = vmax.f32 %v6227, 0.0
        %v6236 = vmax.f32 %v6228, 0.0
        %v6237 = vpack.c.bf16 %v6231, %v6229
        %v6238 = vpack.c.bf16 %v6232, %v6230
        %v6239 = vpack.c.bf16 %v6235, %v6233
        %v6240 = vpack.c.bf16 %v6236, %v6234
        %s6241 = scalar_lea.vmem %s847, 640
        %v6242 = vld [vmem:[%s6241] sm:$0xf]
        %v6243 = vld [vmem:[%s6241 + $0x4] sm:$0xf]
        %v6244 = vld [vmem:[%s6241 + $0x8] sm:$0xf]
        %v6245 = vld [vmem:[%s6241 + $0xc] sm:$0xf]
        %v6246 = vld [vmem:[%s6241 + $0x10] sm:$0xf]
        %v6247 = vld [vmem:[%s6241 + $0x14] sm:$0xf]
        %v6248 = vld [vmem:[%s6241 + $0x18] sm:$0xf]
        %v6249 = vld [vmem:[%s6241 + $0x1c] sm:$0xf]
        %v6250 = vld [vmem:[%s6241 + $0x20] sm:$0xf]
        %v6251 = vld [vmem:[%s6241 + $0x24] sm:$0xf]
        %v6252 = vld [vmem:[%s6241 + $0x28] sm:$0xf]
        %v6253 = vld [vmem:[%s6241 + $0x2c] sm:$0xf]
        %v6254 = vld [vmem:[%s6241 + $0x30] sm:$0xf]
        %v6255 = vld [vmem:[%s6241 + $0x34] sm:$0xf]
        %v6256 = vld [vmem:[%s6241 + $0x38] sm:$0xf]
        %v6257 = vld [vmem:[%s6241 + $0x3c] sm:$0xf]
        %v6258 = vld [vmem:[%s6241 + $0x40] sm:$0xf]
        %v6259 = vld [vmem:[%s6241 + $0x44] sm:$0xf]
        %v6260 = vld [vmem:[%s6241 + $0x48] sm:$0xf]
        %v6261 = vld [vmem:[%s6241 + $0x4c] sm:$0xf]
        %v6262 = vld [vmem:[%s6241 + $0x50] sm:$0xf]
        %v6263 = vld [vmem:[%s6241 + $0x54] sm:$0xf]
        %v6264 = vld [vmem:[%s6241 + $0x58] sm:$0xf]
        %v6265 = vld [vmem:[%s6241 + $0x5c] sm:$0xf]
        %v6266 = vld [vmem:[%s6241 + $0x60] sm:$0xf]
        %v6267 = vld [vmem:[%s6241 + $0x64] sm:$0xf]
        %v6268 = vld [vmem:[%s6241 + $0x68] sm:$0xf]
        %v6269 = vld [vmem:[%s6241 + $0x6c] sm:$0xf]
        %v6270 = vld [vmem:[%s6241 + $0x70] sm:$0xf]
        %v6271 = vld [vmem:[%s6241 + $0x74] sm:$0xf]
        %v6272 = vld [vmem:[%s6241 + $0x78] sm:$0xf]
        %v6273 = vld [vmem:[%s6241 + $0x7c] sm:$0xf]
        %s6274 = scalar_lea.vmem %s701, 5 [#allocation6]
        %v6275 = vld [vmem:[%s6274] sm:$0x1]
        %s6276 = scalar_lea.vmem %s852, 480
        %v6277 = vld [vmem:[%s6276] sm:$0xf]
        %v6278 = vld [vmem:[%s6276 + $0x4] sm:$0xf]
        %v6279 = vld [vmem:[%s6276 + $0x8] sm:$0xf]
        %v6280 = vld [vmem:[%s6276 + $0xc] sm:$0xf]
        %v6281 = vld [vmem:[%s6276 + $0x10] sm:$0xf]
        %v6282 = vld [vmem:[%s6276 + $0x14] sm:$0xf]
        %v6283 = vld [vmem:[%s6276 + $0x18] sm:$0xf]
        %v6284 = vld [vmem:[%s6276 + $0x1c] sm:$0xf]
        %s6285 = scalar_lea.vmem %s852, 512
        %v6286 = vld [vmem:[%s6285] sm:$0xf]
        %v6287 = vld [vmem:[%s6285 + $0x4] sm:$0xf]
        %v6288 = vld [vmem:[%s6285 + $0x8] sm:$0xf]
        %v6289 = vld [vmem:[%s6285 + $0xc] sm:$0xf]
        %v6290 = vld [vmem:[%s6285 + $0x10] sm:$0xf]
        %v6291 = vld [vmem:[%s6285 + $0x14] sm:$0xf]
        %v6292 = vld [vmem:[%s6285 + $0x18] sm:$0xf]
        %v6293 = vld [vmem:[%s6285 + $0x1c] sm:$0xf]
        %s6294 = scalar_lea.vmem %s852, 544
        %v6295 = vld [vmem:[%s6294] sm:$0xf]
        %v6296 = vld [vmem:[%s6294 + $0x4] sm:$0xf]
        %v6297 = vld [vmem:[%s6294 + $0x8] sm:$0xf]
        %v6298 = vld [vmem:[%s6294 + $0xc] sm:$0xf]
        %v6299 = vld [vmem:[%s6294 + $0x10] sm:$0xf]
        %v6300 = vld [vmem:[%s6294 + $0x14] sm:$0xf]
        %v6301 = vld [vmem:[%s6294 + $0x18] sm:$0xf]
        %v6302 = vld [vmem:[%s6294 + $0x1c] sm:$0xf]
        %s6303 = scalar_lea.vmem %s710, 5 [#allocation7]
        %v6304 = vld [vmem:[%s6303] sm:$0x1]
        %s6305 = scalar_lea.vmem %s857, 320
        %v6306 = vld [vmem:[%s6305] sm:$0xff]
        %v6307 = vld [vmem:[%s6305 + $0x8] sm:$0xff]
        %v6308 = vld [vmem:[%s6305 + $0x10] sm:$0xff]
        %v6309 = vld [vmem:[%s6305 + $0x18] sm:$0xff]
        %v6310 = vld [vmem:[%s6305 + $0x20] sm:$0xff]
        %v6311 = vld [vmem:[%s6305 + $0x28] sm:$0xff]
        %v6312 = vld [vmem:[%s6305 + $0x30] sm:$0xff]
        %v6313 = vld [vmem:[%s6305 + $0x38] sm:$0xff]
        %s6314 = scalar_lea.vmem %s861, 10
        %v6315 = vld [vmem:[%s6314] sm:$0x3]
        %v6317 = vlaneseq
        %v6318 = vshrl.u32 %v6317, 7
        %v6319 = vsub.s32 0, %v6318
        %v6320 = vrot.slane %v6275, %v6319
        %v6354 = vunpack.c.l.b16 %v6242
        %v6355 = vunpack.c.l.b16 %v6243
        %v6356 = vunpack.c.l.b16 %v6244
        %v6357 = vunpack.c.l.b16 %v6245
        %v6358 = vunpack.c.l.b16 %v6246
        %v6359 = vunpack.c.l.b16 %v6247
        %v6360 = vunpack.c.l.b16 %v6248
        %v6361 = vunpack.c.l.b16 %v6249
        %v6362 = vunpack.c.l.b16 %v6250
        %v6363 = vunpack.c.l.b16 %v6251
        %v6364 = vunpack.c.l.b16 %v6252
        %v6365 = vunpack.c.l.b16 %v6253
        %v6366 = vunpack.c.l.b16 %v6254
        %v6367 = vunpack.c.l.b16 %v6255
        %v6368 = vunpack.c.l.b16 %v6256
        %v6369 = vunpack.c.l.b16 %v6257
        %v6370 = vunpack.c.l.b16 %v6258
        %v6371 = vunpack.c.l.b16 %v6259
        %v6372 = vunpack.c.l.b16 %v6260
        %v6373 = vunpack.c.l.b16 %v6261
        %v6374 = vunpack.c.l.b16 %v6262
        %v6375 = vunpack.c.l.b16 %v6263
        %v6376 = vunpack.c.l.b16 %v6264
        %v6377 = vunpack.c.l.b16 %v6265
        %v6378 = vunpack.c.l.b16 %v6266
        %v6379 = vunpack.c.l.b16 %v6267
        %v6380 = vunpack.c.l.b16 %v6268
        %v6381 = vunpack.c.l.b16 %v6269
        %v6382 = vunpack.c.l.b16 %v6270
        %v6383 = vunpack.c.l.b16 %v6271
        %v6384 = vunpack.c.l.b16 %v6272
        %v6385 = vunpack.c.l.b16 %v6273
        %v6386 = vpack.c.b16 %v6355, %v6354
        %v6387 = vpack.c.b16 %v6357, %v6356
        %v6388 = vpack.c.b16 %v6359, %v6358
        %v6389 = vpack.c.b16 %v6361, %v6360
        %v6390 = vpack.c.b16 %v6363, %v6362
        %v6391 = vpack.c.b16 %v6365, %v6364
        %v6392 = vpack.c.b16 %v6367, %v6366
        %v6393 = vpack.c.b16 %v6369, %v6368
        %v6394 = vpack.c.b16 %v6371, %v6370
        %v6395 = vpack.c.b16 %v6373, %v6372
        %v6396 = vpack.c.b16 %v6375, %v6374
        %v6397 = vpack.c.b16 %v6377, %v6376
        %v6398 = vpack.c.b16 %v6379, %v6378
        %v6399 = vpack.c.b16 %v6381, %v6380
        %v6400 = vpack.c.b16 %v6383, %v6382
        %v6401 = vpack.c.b16 %v6385, %v6384
        %6418 = vmatprep.subr.bf16.mxu0 0
        %6419 = vmatpush1.bf16.msra.mxu0 %v6386
        %6420 = vmatprep.subr.bf16.mxu0 0
        %6421 = vmatpush1.bf16.msra.mxu0 %v6387
        %6422 = vmatprep.subr.bf16.mxu0 0
        %6423 = vmatpush1.bf16.msra.mxu0 %v6388
        %6424 = vmatprep.subr.bf16.mxu0 0
        %6425 = vmatpush1.bf16.msra.mxu0 %v6389
        %6426 = vmatprep.subr.bf16.mxu0 0
        %6427 = vmatpush1.bf16.msra.mxu0 %v6390
        %6428 = vmatprep.subr.bf16.mxu0 0
        %6429 = vmatpush1.bf16.msra.mxu0 %v6391
        %6430 = vmatprep.subr.bf16.mxu0 0
        %6431 = vmatpush1.bf16.msra.mxu0 %v6392
        %6432 = vmatprep.subr.bf16.mxu0 0
        %6433 = vmatpush1.bf16.msra.mxu0 %v6393
        %6434 = vmatprep.subr.bf16.mxu0 0
        %6435 = vmatpush1.bf16.msra.mxu0 %v6394
        %6436 = vmatprep.subr.bf16.mxu0 0
        %6437 = vmatpush1.bf16.msra.mxu0 %v6395
        %6438 = vmatprep.subr.bf16.mxu0 0
        %6439 = vmatpush1.bf16.msra.mxu0 %v6396
        %6440 = vmatprep.subr.bf16.mxu0 0
        %6441 = vmatpush1.bf16.msra.mxu0 %v6397
        %6442 = vmatprep.subr.bf16.mxu0 0
        %6443 = vmatpush1.bf16.msra.mxu0 %v6398
        %6444 = vmatprep.subr.bf16.mxu0 0
        %6445 = vmatpush1.bf16.msra.mxu0 %v6399
        %6446 = vmatprep.subr.bf16.mxu0 0
        %6447 = vmatpush1.bf16.msra.mxu0 %v6400
        %6448 = vmatprep.subr.bf16.mxu0 0
        %6449 = vmatpush1.bf16.msra.mxu0 %v6401
        %6450 = vmatprep.mubr.bf16.mxu0 %v6238
        %6451 = vmatmul.mubr.bf16.gmra.mrb[0].mxu0 %v6237
        %v6452 = vpop.f32.mrb[0].mxu0
        %v6453 = vadd.f32 %v6320, %v6452
        %v6454 = vpop.f32.mrb[0].mxu0
        %v6455 = vpop.f32.mrb[0].mxu0
        %v6456 = vadd.f32 %v6320, %v6455
        %v6457 = vpop.f32.mrb[0].mxu0
        %6458 = vmatprep.mubr.bf16.mxu0 %v6240
        %6459 = vmatmul.mubr.bf16.gmra.mrb[0].mxu0 %v6239
        %v6460 = vpop.f32.mrb[0].mxu0
        %v6461 = vadd.f32 %v6320, %v6460
        %v6462 = vpop.f32.mrb[0].mxu0
        %v6463 = vpop.f32.mrb[0].mxu0
        %v6464 = vadd.f32 %v6320, %v6463
        %v6465 = vpop.f32.mrb[0].mxu0
        %6466 = vdwg.mxu0
        %v6467 = vmax.f32 %v6453, 0.0
        %v6468 = vmax.f32 %v6456, 0.0
        %v6469 = vmax.f32 %v6461, 0.0
        %v6470 = vmax.f32 %v6464, 0.0
        %v6471 = vrot.slane %v6467, 7
        %v6472 = vrot.slane %v6468, 7
        %v6473 = vrot.slane %v6469, 7
        %v6474 = vrot.slane %v6470, 7
        %v6475 = vsel %vm1421, %v6473, %v6474
        %v6476 = vsel %vm1421, %v6472, %v6473
        %v6477 = vsel %vm1421, %v6471, %v6472
        %v6478 = vsel %vm1421, %v6474, %v6471
        %v6479 = vmul.f32 %v6478, %v1241
        %v6480 = vmul.f32 %v6477, %v1242
        %v6481 = vmul.f32 %v6476, %v1243
        %v6482 = vmul.f32 %v6475, %v1244
        %v6483 = vrot.slane %v6467, 1
        %v6484 = vrot.slane %v6468, 1
        %v6485 = vrot.slane %v6469, 1
        %v6486 = vrot.slane %v6470, 1
        %v6487 = vsel %vm1434, %v6485, %v6486
        %v6488 = vsel %vm1434, %v6484, %v6485
        %v6489 = vsel %vm1434, %v6483, %v6484
        %v6490 = vsel %vm1434, %v6486, %v6483
        %v6491 = vmul.f32 %v6489, %v1253
        %v6492 = vmul.f32 %v6488, %v1254
        %v6493 = vmul.f32 %v6487, %v1255
        %v6494 = vmul.f32 %v6490, %v1256
        %v6495 = vpack.c.bf16 %v6468, %v6467
        %v6496 = vpack.c.bf16 %v6470, %v6469
        %v6497 = vpack.c.bf16 %v6480, %v6479
        %v6498 = vpack.c.bf16 %v6482, %v6481
        %v6507 = vunpack.c.l.b16 %v6277
        %v6508 = vunpack.c.l.b16 %v6278
        %v6509 = vunpack.c.l.b16 %v6279
        %v6510 = vunpack.c.l.b16 %v6280
        %v6511 = vunpack.c.l.b16 %v6281
        %v6512 = vunpack.c.l.b16 %v6282
        %v6513 = vunpack.c.l.b16 %v6283
        %v6514 = vunpack.c.l.b16 %v6284
        %v6515 = vpack.c.b16 %v6508, %v6507
        %v6516 = vpack.c.b16 %v6510, %v6509
        %v6517 = vpack.c.b16 %v6512, %v6511
        %v6518 = vpack.c.b16 %v6514, %v6513
        %v6524 = vsel %vm1471, %v6497, 0
        %v6527 = vsel %vm1471, %v6498, 0
        %6529 = vmatprep.subr.bf16.mxu0 0
        %6530 = vmatpush1.bf16.msra.mxu0 %v6515
        %6531 = vmatprep.subr.bf16.mxu0 0
        %6532 = vmatpush1.bf16.msra.mxu0 %v6516
        %6533 = vmatprep.subr.bf16.mxu0 0
        %6534 = vmatpush1.bf16.msra.mxu0 %v6517
        %6535 = vmatprep.subr.bf16.mxu0 0
        %6536 = vmatpush1.bf16.msra.mxu0 %v6518
        %6537 = vmatprep.subr.bf16.mxu0 0
        %6538 = vmatpush1.bf16.msra.mxu0 0
        %6539 = vmatprep.subr.bf16.mxu0 0
        %6540 = vmatpush1.bf16.msra.mxu0 0
        %6541 = vmatprep.subr.bf16.mxu0 0
        %6542 = vmatpush1.bf16.msra.mxu0 0
        %6543 = vmatprep.subr.bf16.mxu0 0
        %6544 = vmatpush1.bf16.msra.mxu0 0
        %6545 = vmatprep.subr.bf16.mxu0 0
        %6546 = vmatpush1.bf16.msra.mxu0 0
        %6547 = vmatprep.subr.bf16.mxu0 0
        %6548 = vmatpush1.bf16.msra.mxu0 0
        %6549 = vmatprep.subr.bf16.mxu0 0
        %6550 = vmatpush1.bf16.msra.mxu0 0
        %6551 = vmatprep.subr.bf16.mxu0 0
        %6552 = vmatpush1.bf16.msra.mxu0 0
        %6553 = vmatprep.subr.bf16.mxu0 0
        %6554 = vmatpush1.bf16.msra.mxu0 0
        %6555 = vmatprep.subr.bf16.mxu0 0
        %6556 = vmatpush1.bf16.msra.mxu0 0
        %6557 = vmatprep.subr.bf16.mxu0 0
        %6558 = vmatpush1.bf16.msra.mxu0 0
        %6559 = vmatprep.subr.bf16.mxu0 0
        %6560 = vmatpush1.bf16.msra.mxu0 0
        %6561 = vmatprep.mubr.bf16.mxu0 0
        %6562 = vmatmul.mubr.bf16.gmra.mrb[0].mxu0 %v6524
        %v6563 = vpop.f32.mrb[0].mxu0
        %v6564 = vadd.f32 0.0, %v6563
        %v6565 = vpop.f32.mrb[0].mxu0
        %v6566 = vpop.f32.mrb[0].mxu0
        %v6567 = vadd.f32 0.0, %v6566
        %v6568 = vpop.f32.mrb[0].mxu0
        %6569 = vmatprep.mubr.bf16.mxu0 0
        %6570 = vmatmul.mubr.bf16.gmra.mrb[0].mxu0 %v6527
        %v6571 = vpop.f32.mrb[0].mxu0
        %v6572 = vadd.f32 0.0, %v6571
        %v6573 = vpop.f32.mrb[0].mxu0
        %v6574 = vpop.f32.mrb[0].mxu0
        %v6575 = vadd.f32 0.0, %v6574
        %v6576 = vpop.f32.mrb[0].mxu0
        %6577 = vdwg.mxu0
        %v6586 = vunpack.c.l.b16 %v6286
        %v6587 = vunpack.c.l.b16 %v6287
        %v6588 = vunpack.c.l.b16 %v6288
        %v6589 = vunpack.c.l.b16 %v6289
        %v6590 = vunpack.c.l.b16 %v6290
        %v6591 = vunpack.c.l.b16 %v6291
        %v6592 = vunpack.c.l.b16 %v6292
        %v6593 = vunpack.c.l.b16 %v6293
        %v6594 = vpack.c.b16 %v6587, %v6586
        %v6595 = vpack.c.b16 %v6589, %v6588
        %v6596 = vpack.c.b16 %v6591, %v6590
        %v6597 = vpack.c.b16 %v6593, %v6592
        %v6603 = vsel %vm1471, %v6495, 0
        %v6606 = vsel %vm1471, %v6496, 0
        %6608 = vmatprep.subr.bf16.mxu0 0
        %6609 = vmatpush1.bf16.msra.mxu0 %v6594
        %6610 = vmatprep.subr.bf16.mxu0 0
        %6611 = vmatpush1.bf16.msra.mxu0 %v6595
        %6612 = vmatprep.subr.bf16.mxu0 0
        %6613 = vmatpush1.bf16.msra.mxu0 %v6596
        %6614 = vmatprep.subr.bf16.mxu0 0
        %6615 = vmatpush1.bf16.msra.mxu0 %v6597
        %6616 = vmatprep.subr.bf16.mxu0 0
        %6617 = vmatpush1.bf16.msra.mxu0 0
        %6618 = vmatprep.subr.bf16.mxu0 0
        %6619 = vmatpush1.bf16.msra.mxu0 0
        %6620 = vmatprep.subr.bf16.mxu0 0
        %6621 = vmatpush1.bf16.msra.mxu0 0
        %6622 = vmatprep.subr.bf16.mxu0 0
        %6623 = vmatpush1.bf16.msra.mxu0 0
        %6624 = vmatprep.subr.bf16.mxu0 0
        %6625 = vmatpush1.bf16.msra.mxu0 0
        %6626 = vmatprep.subr.bf16.mxu0 0
        %6627 = vmatpush1.bf16.msra.mxu0 0
        %6628 = vmatprep.subr.bf16.mxu0 0
        %6629 = vmatpush1.bf16.msra.mxu0 0
        %6630 = vmatprep.subr.bf16.mxu0 0
        %6631 = vmatpush1.bf16.msra.mxu0 0
        %6632 = vmatprep.subr.bf16.mxu0 0
        %6633 = vmatpush1.bf16.msra.mxu0 0
        %6634 = vmatprep.subr.bf16.mxu0 0
        %6635 = vmatpush1.bf16.msra.mxu0 0
        %6636 = vmatprep.subr.bf16.mxu0 0
        %6637 = vmatpush1.bf16.msra.mxu0 0
        %6638 = vmatprep.subr.bf16.mxu0 0
        %6639 = vmatpush1.bf16.msra.mxu0 0
        %6640 = vmatprep.mubr.bf16.mxu0 0
        %6641 = vmatmul.mubr.bf16.gmra.mrb[0].mxu0 %v6603
        %v6642 = vpop.f32.mrb[0].mxu0
        %v6643 = vadd.f32 %v6564, %v6642
        %v6644 = vpop.f32.mrb[0].mxu0
        %v6645 = vpop.f32.mrb[0].mxu0
        %v6646 = vadd.f32 %v6567, %v6645
        %v6647 = vpop.f32.mrb[0].mxu0
        %6648 = vmatprep.mubr.bf16.mxu0 0
        %6649 = vmatmul.mubr.bf16.gmra.mrb[0].mxu0 %v6606
        %v6650 = vpop.f32.mrb[0].mxu0
        %v6651 = vadd.f32 %v6572, %v6650
        %v6652 = vpop.f32.mrb[0].mxu0
        %v6653 = vpop.f32.mrb[0].mxu0
        %v6654 = vadd.f32 %v6575, %v6653
        %v6655 = vpop.f32.mrb[0].mxu0
        %6656 = vdwg.mxu0
        %v6657 = vpack.c.bf16 %v6492, %v6491
        %v6658 = vpack.c.bf16 %v6494, %v6493
        %v6667 = vunpack.c.l.b16 %v6295
        %v6668 = vunpack.c.l.b16 %v6296
        %v6669 = vunpack.c.l.b16 %v6297
        %v6670 = vunpack.c.l.b16 %v6298
        %v6671 = vunpack.c.l.b16 %v6299
        %v6672 = vunpack.c.l.b16 %v6300
        %v6673 = vunpack.c.l.b16 %v6301
        %v6674 = vunpack.c.l.b16 %v6302
        %v6675 = vpack.c.b16 %v6668, %v6667
        %v6676 = vpack.c.b16 %v6670, %v6669
        %v6677 = vpack.c.b16 %v6672, %v6671
        %v6678 = vpack.c.b16 %v6674, %v6673
        %v6684 = vsel %vm1471, %v6657, 0
        %v6687 = vsel %vm1471, %v6658, 0
        %6689 = vmatprep.subr.bf16.mxu0 0
        %6690 = vmatpush1.bf16.msra.mxu0 %v6675
        %6691 = vmatprep.subr.bf16.mxu0 0
        %6692 = vmatpush1.bf16.msra.mxu0 %v6676
        %6693 = vmatprep.subr.bf16.mxu0 0
        %6694 = vmatpush1.bf16.msra.mxu0 %v6677
        %6695 = vmatprep.subr.bf16.mxu0 0
        %6696 = vmatpush1.bf16.msra.mxu0 %v6678
        %6697 = vmatprep.subr.bf16.mxu0 0
        %6698 = vmatpush1.bf16.msra.mxu0 0
        %6699 = vmatprep.subr.bf16.mxu0 0
        %6700 = vmatpush1.bf16.msra.mxu0 0
        %6701 = vmatprep.subr.bf16.mxu0 0
        %6702 = vmatpush1.bf16.msra.mxu0 0
        %6703 = vmatprep.subr.bf16.mxu0 0
        %6704 = vmatpush1.bf16.msra.mxu0 0
        %6705 = vmatprep.subr.bf16.mxu0 0
        %6706 = vmatpush1.bf16.msra.mxu0 0
        %6707 = vmatprep.subr.bf16.mxu0 0
        %6708 = vmatpush1.bf16.msra.mxu0 0
        %6709 = vmatprep.subr.bf16.mxu0 0
        %6710 = vmatpush1.bf16.msra.mxu0 0
        %6711 = vmatprep.subr.bf16.mxu0 0
        %6712 = vmatpush1.bf16.msra.mxu0 0
        %6713 = vmatprep.subr.bf16.mxu0 0
        %6714 = vmatpush1.bf16.msra.mxu0 0
        %6715 = vmatprep.subr.bf16.mxu0 0
        %6716 = vmatpush1.bf16.msra.mxu0 0
        %6717 = vmatprep.subr.bf16.mxu0 0
        %6718 = vmatpush1.bf16.msra.mxu0 0
        %6719 = vmatprep.subr.bf16.mxu0 0
        %6720 = vmatpush1.bf16.msra.mxu0 0
        %6721 = vmatprep.mubr.bf16.mxu0 0
        %6722 = vmatmul.mubr.bf16.gmra.mrb[0].mxu0 %v6684
        %v6723 = vpop.f32.mrb[0].mxu0
        %v6724 = vadd.f32 0.0, %v6723
        %v6725 = vpop.f32.mrb[0].mxu0
        %v6726 = vpop.f32.mrb[0].mxu0
        %v6727 = vadd.f32 0.0, %v6726
        %v6728 = vpop.f32.mrb[0].mxu0
        %6729 = vmatprep.mubr.bf16.mxu0 0
        %6730 = vmatmul.mubr.bf16.gmra.mrb[0].mxu0 %v6687
        %v6731 = vpop.f32.mrb[0].mxu0
        %v6732 = vadd.f32 0.0, %v6731
        %v6733 = vpop.f32.mrb[0].mxu0
        %v6734 = vpop.f32.mrb[0].mxu0
        %v6735 = vadd.f32 0.0, %v6734
        %v6736 = vpop.f32.mrb[0].mxu0
        %6737 = vdwg.mxu0
        %v6738 = vadd.f32 %v6643, %v6724
        %v6739 = vadd.f32 %v6646, %v6727
        %v6740 = vadd.f32 %v6651, %v6732
        %v6741 = vadd.f32 %v6654, %v6735
        %v6743 = vlaneseq
        %v6744 = vshrl.u32 %v6743, 7
        %v6745 = vsub.s32 0, %v6744
        %v6746 = vrot.slane %v6304, %v6745
        %v6748 = vadd.f32 %v6738, %v6746
        %v6749 = vadd.f32 %v6739, %v6746
        %v6750 = vadd.f32 %v6740, %v6746
        %v6751 = vadd.f32 %v6741, %v6746
        %v6752 = vmax.f32 %v6748, 0.0
        %v6753 = vmax.f32 %v6749, 0.0
        %v6754 = vmax.f32 %v6750, 0.0
        %v6755 = vmax.f32 %v6751, 0.0
        %v6756 = vpack.c.bf16 %v6753, %v6752
        %v6757 = vpack.c.bf16 %v6755, %v6754
        %v6759 = vlaneseq
        %v6760 = vshrl.u32 %v6759, 7
        %v6761 = vsub.s32 0, %v6760
        %v6762 = vrot.slane %v6315, %v6761
        %v6763 = vlaneseq
        %v6764 = vshrl.u32 %v6763, 7
        %v6765 = vsub.s32 1, %v6764
        %v6766 = vrot.slane %v6315, %v6765
        %v6777 = vunpack.c.l.b16 %v6306
        %v6778 = vunpack.c.h.b16 %v6306
        %v6779 = vunpack.c.l.b16 %v6307
        %v6780 = vunpack.c.h.b16 %v6307
        %v6781 = vunpack.c.l.b16 %v6308
        %v6782 = vunpack.c.h.b16 %v6308
        %v6783 = vunpack.c.l.b16 %v6309
        %v6784 = vunpack.c.h.b16 %v6309
        %v6785 = vunpack.c.l.b16 %v6310
        %v6786 = vunpack.c.h.b16 %v6310
        %v6787 = vunpack.c.l.b16 %v6311
        %v6788 = vunpack.c.h.b16 %v6311
        %v6789 = vunpack.c.l.b16 %v6312
        %v6790 = vunpack.c.h.b16 %v6312
        %v6791 = vunpack.c.l.b16 %v6313
        %v6792 = vunpack.c.h.b16 %v6313
        %v6793 = vpack.c.b16 %v6779, %v6777
        %v6794 = vpack.c.b16 %v6780, %v6778
        %v6795 = vpack.c.b16 %v6783, %v6781
        %v6796 = vpack.c.b16 %v6784, %v6782
        %v6797 = vpack.c.b16 %v6787, %v6785
        %v6798 = vpack.c.b16 %v6788, %v6786
        %v6799 = vpack.c.b16 %v6791, %v6789
        %v6800 = vpack.c.b16 %v6792, %v6790
        %v6810 = vsel %vm1471, %v6756, 0
        %v6813 = vsel %vm1471, %v6757, 0
        %6815 = vmatprep.subr.bf16.mxu0 %v6794
        %6816 = vmatpush1.bf16.msra.mxu0 %v6793
        %6817 = vmatprep.subr.bf16.mxu0 %v6796
        %6818 = vmatpush1.bf16.msra.mxu0 %v6795
        %6819 = vmatprep.subr.bf16.mxu0 %v6798
        %6820 = vmatpush1.bf16.msra.mxu0 %v6797
        %6821 = vmatprep.subr.bf16.mxu0 %v6800
        %6822 = vmatpush1.bf16.msra.mxu0 %v6799
        %6823 = vmatprep.subr.bf16.mxu0 0
        %6824 = vmatpush1.bf16.msra.mxu0 0
        %6825 = vmatprep.subr.bf16.mxu0 0
        %6826 = vmatpush1.bf16.msra.mxu0 0
        %6827 = vmatprep.subr.bf16.mxu0 0
        %6828 = vmatpush1.bf16.msra.mxu0 0
        %6829 = vmatprep.subr.bf16.mxu0 0
        %6830 = vmatpush1.bf16.msra.mxu0 0
        %6831 = vmatprep.subr.bf16.mxu0 0
        %6832 = vmatpush1.bf16.msra.mxu0 0
        %6833 = vmatprep.subr.bf16.mxu0 0
        %6834 = vmatpush1.bf16.msra.mxu0 0
        %6835 = vmatprep.subr.bf16.mxu0 0
        %6836 = vmatpush1.bf16.msra.mxu0 0
        %6837 = vmatprep.subr.bf16.mxu0 0
        %6838 = vmatpush1.bf16.msra.mxu0 0
        %6839 = vmatprep.subr.bf16.mxu0 0
        %6840 = vmatpush1.bf16.msra.mxu0 0
        %6841 = vmatprep.subr.bf16.mxu0 0
        %6842 = vmatpush1.bf16.msra.mxu0 0
        %6843 = vmatprep.subr.bf16.mxu0 0
        %6844 = vmatpush1.bf16.msra.mxu0 0
        %6845 = vmatprep.subr.bf16.mxu0 0
        %6846 = vmatpush1.bf16.msra.mxu0 0
        %6847 = vmatprep.mubr.bf16.mxu0 0
        %6848 = vmatmul.mubr.bf16.gmra.mrb[0].mxu0 %v6810
        %v6849 = vpop.f32.mrb[0].mxu0
        %v6850 = vadd.f32 %v6762, %v6849
        %v6851 = vpop.f32.mrb[0].mxu0
        %v6852 = vadd.f32 %v6766, %v6851
        %v6853 = vpop.f32.mrb[0].mxu0
        %v6854 = vadd.f32 %v6762, %v6853
        %v6855 = vpop.f32.mrb[0].mxu0
        %v6856 = vadd.f32 %v6766, %v6855
        %6857 = vmatprep.mubr.bf16.mxu0 0
        %6858 = vmatmul.mubr.bf16.gmra.mrb[0].mxu0 %v6813
        %v6859 = vpop.f32.mrb[0].mxu0
        %v6860 = vadd.f32 %v6762, %v6859
        %v6861 = vpop.f32.mrb[0].mxu0
        %v6862 = vadd.f32 %v6766, %v6861
        %v6863 = vpop.f32.mrb[0].mxu0
        %v6864 = vadd.f32 %v6762, %v6863
        %v6865 = vpop.f32.mrb[0].mxu0
        %v6866 = vadd.f32 %v6766, %v6865
        %6867 = vdwg.mxu0
        %v6868 = vadd.f32 %v6850, %v6229
        %v6869 = vadd.f32 %v6852, %v6230
        %v6870 = vadd.f32 %v6854, %v6231
        %v6871 = vadd.f32 %v6856, %v6232
        %v6872 = vadd.f32 %v6860, %v6233
        %v6873 = vadd.f32 %v6862, %v6234
        %v6874 = vadd.f32 %v6864, %v6235
        %v6875 = vadd.f32 %v6866, %v6236
        %v6876 = vmax.f32 %v6868, 0.0
        %v6877 = vmax.f32 %v6869, 0.0
        %v6878 = vmax.f32 %v6870, 0.0
        %v6879 = vmax.f32 %v6871, 0.0
        %v6880 = vmax.f32 %v6872, 0.0
        %v6881 = vmax.f32 %v6873, 0.0
        %v6882 = vmax.f32 %v6874, 0.0
        %v6883 = vmax.f32 %v6875, 0.0
        %s6884 = scalar_lea.vmem %s871, 128
        %6885 = vst [vmem:[%s6884] sm:$0xff] %v6876
        %6886 = vst [vmem:[%s6884 + $0x8] sm:$0xff] %v6877
        %6887 = vst [vmem:[%s6884 + $0x10] sm:$0xff] %v6878
        %6888 = vst [vmem:[%s6884 + $0x18] sm:$0xff] %v6879
        %6889 = vst [vmem:[%s6884 + $0x20] sm:$0xff] %v6880
        %6890 = vst [vmem:[%s6884 + $0x28] sm:$0xff] %v6881
        %6891 = vst [vmem:[%s6884 + $0x30] sm:$0xff] %v6882
        %6892 = vst [vmem:[%s6884 + $0x38] sm:$0xff] %v6883
        %p6893 = scmp.lt.s32.totalorder %s37, 1
        %s6894 = scalar_select %p6893, %s37, 1
        %s6895 = smul.addr %s6894, 4
        %s6896 = smul.addr %s6895, 8
        %s6897 = scalar_lea.vmem %s17, %s6896
        %p6898 = scmp.lt.s32.totalorder %s37, 1
        %s6899 = scalar_select %p6898, %s37, 1
        %s6900 = smul.addr %s6899, 24
        %s6901 = smul.addr %s6900, 8
        %s6902 = scalar_lea.vmem %s18, %s6901
        // Predicated region
        $region105: #{resnet_text_50_forward.1} parent=87 // pred_check
          %p6903 = pneg %p472
        $region106: #{resnet_text_50_forward.1} parent=87 // pred_check_branch
          %6905 = sbr.rel (%p6903) target = $region108
        $region107: #{resnet_text_50_forward.1} parent=87 // pred_region
          _
        $region108: #{resnet_text_50_forward.1} parent=87 // pred_fallthru
          _
        // Predicated region
        $region109: #{resnet_text_50_forward.1} parent=87 // pred_check
          %p6906 = pneg %p498
        $region110: #{resnet_text_50_forward.1} parent=87 // pred_check_branch
          %6908 = sbr.rel (%p6906) target = $region112
        $region111: #{resnet_text_50_forward.1} parent=87 // pred_region
          _
        $region112: #{resnet_text_50_forward.1} parent=87 // pred_fallthru
          _
      $region88: #{resnet_text_50_forward.1} parent=5 // pred_fallthru
        _
      %p6909 = scmp.le.s32.totalorder 2, %s32
      // Predicated region
      $region113: #{resnet_text_50_forward.1} parent=5 // pred_check
        %p6910 = pneg %p6909
      $region114: #{resnet_text_50_forward.1} parent=5 // pred_check_branch
        %6912 = sbr.rel (%p6910) target = $region116
      $region115: #{resnet_text_50_forward.1} parent=5 // pred_region
        %s6913 = ssub.s32 %s32, 2
        // Predicated region
        $region117: #{resnet_text_50_forward.1} parent=115 // pred_check
          %p6914 = pneg %p478
        $region118: #{resnet_text_50_forward.1} parent=115 // pred_check_branch
          %6916 = sbr.rel (%p6914) target = $region120
        $region119: #{resnet_text_50_forward.1} parent=115 // pred_region
          %p6917 = scmp.lt.s32.totalorder %s38, 1
          %s6918 = scalar_select %p6917, %s38, 1
          %s6919 = smul.addr %s6918, 4
          %s6920 = smul.addr %s6919, 8
          %s6921 = scalar_lea.vmem %s17, %s6920
        $region120: #{resnet_text_50_forward.1} parent=115 // pred_fallthru
          _
        // Predicated region
        $region121: #{resnet_text_50_forward.1} parent=115 // pred_check
          %p6922 = pneg %p504
        $region122: #{resnet_text_50_forward.1} parent=115 // pred_check_branch
          %6924 = sbr.rel (%p6922) target = $region124
        $region123: #{resnet_text_50_forward.1} parent=115 // pred_region
          %p6925 = scmp.lt.s32.totalorder %s38, 1
          %s6926 = scalar_select %p6925, %s38, 1
          %s6927 = smul.addr %s6926, 24
          %s6928 = smul.addr %s6927, 8
          %s6929 = scalar_lea.vmem %s18, %s6928
        $region124: #{resnet_text_50_forward.1} parent=115 // pred_fallthru
          _
      $region116: #{resnet_text_50_forward.1} parent=5 // pred_fallthru
        _
    $region6: #{resnet_text_50_forward.1} parent=1 // loop_footer
      %s36 = sadd.s32 1, %s32
    $region7: #{resnet_text_50_forward.1} parent=1 // loop_footer_branch
      %31 = sbr.rel target = $region3
    $region8: #{resnet_text_50_forward.1} parent=1 // loop_exit
      _
    %6930 = vsyncpa [#allocation3], 1
    %s6931 = scalar_lea.sflag [#allocation3], 1
    %6932 = vsyncpa %s6931, 1
    %6933 = vsyncpa [#allocation5], 1
    %s6934 = scalar_lea.sflag [#allocation5], 1
    %6935 = vsyncpa %s6934, 1
    %6936 = vsyncpa [#allocation8], 1
    %s6937 = scalar_lea.sflag [#allocation8], 1
    %6938 = vsyncpa %s6937, 1

</llo_original>
